<compile_context>
chip_gen: v5e
topology: v5e:2x2
jax: 0.10.0
libtpu: 0.0.40
codegen_flags: <defaults>
</compile_context>

<pallas_src>
import functools

import numpy as np
import jax
import jax.numpy as jnp
from jax import lax
from jax.experimental import pallas as pl
from jax.experimental.pallas import tpu as pltpu


# ----------------------------- tiling constants -----------------------------
TILE_ANCH = 256       # anchor rows per grid step along axis 0 (parallel)
TILE_CAND = 1024      # candidate rows (pos ++ neg slab) per grid step along axis 1
ROW_BUCKET = 1024     # padded P / N are multiples of this  =>  p_pad % TILE_CAND == 0
LANE = 128            # channel padding target (lane width)

assert ROW_BUCKET % TILE_ANCH == 0 and ROW_BUCKET % TILE_CAND == 0


def _round_up(x, m):
    return ((x + m - 1) // m) * m


def _bucket_rows(n):
    """Round a row count up to ROW_BUCKET * next_pow2(chunks): keeps the set of
    compiled kernel shapes small (compile-cache hits across classes / calls)."""
    chunks = max(1, -(-n // ROW_BUCKET))
    chunks = 1 << (chunks - 1).bit_length()
    return chunks * ROW_BUCKET


# --------------------------------- kernel -----------------------------------
def hard_triplet_kernel(counts_ref, anch_ref, anch_sq_ref, cand_ref, cand_sq_ref,
                        out_ref, max_sc, min_sc,
                        *, margin, eps, norm, p_pad, tile_p, tile_k):
    """Streamed hard-triplet loss for one class.

    counts_ref : SMEM (2,) int32 -> [real_P, real_N]
    anch_ref   : (tile_p, C_pad) sigmoid anchor rows (first p_pad rows of the slab)
    anch_sq_ref: (1, tile_p)     anchor squared norms (lane-oriented)
    cand_ref   : (tile_k, C_pad) sigmoid candidate rows (pos rows [0, p_pad) ++ neg rows)
    cand_sq_ref: (tile_k, 1)     candidate squared norms (sublane-oriented)
    out_ref    : (1, 1, tile_p)  per-anchor clamp(margin + d_p - d_n, 0); 0 for pad rows
    max_sc/min_sc: running hardest-positive / hardest-negative SQUARED distances;
                   the 1/norm root is applied once at finalize.
    """
    i = pl.program_id(0)
    k = pl.program_id(1)
    real_p = counts_ref[0]
    real_n = counts_ref[1]

    # --- first candidate tile of each anchor tile: reset running stats.
    @pl.when(k == 0)
    def _():
        max_sc[...] = jnp.full(max_sc.shape, -jnp.inf, max_sc.dtype)
        min_sc[...] = jnp.full(min_sc.shape, jnp.inf, min_sc.dtype)

    row_start = i * tile_p          # first anchor row of this anchor tile
    col_start = k * tile_k          # first candidate row of this candidate tile
    anchors_live = row_start < real_p

    def sq_dist():
        # pairwise^2 in (candidate, anchor) orientation so the reduction result is
        # lane-dense (1, tile_p) -> no relayout before the output store.
        a = anch_ref[...]                                          # (tile_p, C)
        c = cand_ref[...]                                          # (tile_k, C)
        ca = lax.dot_general(c, a, (((1,), (1,)), ((), ())),
                             preferred_element_type=jnp.float32)   # (tile_k, tile_p)
        return jnp.maximum(cand_sq_ref[...] - 2.0 * ca + anch_sq_ref[...], 0.0)

    cand_row = col_start + lax.broadcasted_iota(jnp.int32, (tile_k, 1), 0)

    # --- positive-region tile with >= 1 valid column.
    # (real_p <= p_pad and p_pad % tile_k == 0 => col_start < real_p implies the
    #  whole tile lies inside the positive region.)
    @pl.when(jnp.logical_and(anchors_live, col_start < real_p))
    def _():
        d2 = jnp.where(cand_row < real_p, sq_dist(), -jnp.inf)
        max_sc[...] = jnp.maximum(max_sc[...], jnp.max(d2, axis=0, keepdims=True))

    # --- negative-region tile with >= 1 valid column.
    @pl.when(jnp.logical_and(anchors_live,
                             jnp.logical_and(col_start >= p_pad,
                                             col_start < p_pad + real_n)))
    def _():
        d2 = jnp.where(cand_row < p_pad + real_n, sq_dist(), jnp.inf)
        min_sc[...] = jnp.minimum(min_sc[...], jnp.min(d2, axis=0, keepdims=True))

    # --- after the last candidate tile: root, margin, mask padded anchors, store.
    @pl.when(k == pl.num_programs(1) - 1)
    def _():
        anc = row_start + lax.broadcasted_iota(jnp.int32, (1, tile_p), 1)
        valid = anc < real_p
        if norm == 2:
            d_p = jnp.sqrt(max_sc[...] + eps)
            d_n = jnp.sqrt(min_sc[...] + eps)
        else:
            # TODO(synk): for norm != 2 the reference selects the hardest pair with the
            # L2 quadratic form but recomputes d_p/d_n with the true p-norm; here the
            # selection metric is reused (exact only for norm == 2, the module default).
            d_p = jnp.power(max_sc[...] + eps, 1.0 / float(norm))
            d_n = jnp.power(min_sc[...] + eps, 1.0 / float(norm))
        d = jnp.maximum(margin + d_p - d_n, 0.0)
        out_ref[...] = jnp.where(valid, d, 0.0).reshape(1, 1, tile_p)


# ----------------------- pallas_call builder (cached) ------------------------
@functools.lru_cache(maxsize=None)
def _build_triplet_call(p_pad, total_rows, c_pad, margin, eps, norm):
    kern = functools.partial(hard_triplet_kernel, margin=margin, eps=eps, norm=norm,
                             p_pad=p_pad, tile_p=TILE_ANCH, tile_k=TILE_CAND)
    grid0 = p_pad // TILE_ANCH
    grid = (grid0, total_rows // TILE_CAND)
    fn = pl.pallas_call(
        kern,
        out_shape=jax.ShapeDtypeStruct((grid0, 1, TILE_ANCH), jnp.float32),
        grid_spec=pltpu.PrefetchScalarGridSpec(
            num_scalar_prefetch=1,
            grid=grid,
            in_specs=[
                # anchors: first p_pad rows of the sigmoid slab, resident across k
                pl.BlockSpec((TILE_ANCH, c_pad), lambda i, k, cnt: (i, 0)),
                # anchor squared norms (lane-oriented)
                pl.BlockSpec((1, TILE_ANCH), lambda i, k, cnt: (0, i)),
                # streamed candidate tiles (pos ++ neg)
                pl.BlockSpec((TILE_CAND, c_pad), lambda i, k, cnt: (k, 0)),
                # candidate squared norms (sublane-oriented)
                pl.BlockSpec((TILE_CAND, 1), lambda i, k, cnt: (k, 0)),
            ],
            out_specs=pl.BlockSpec((1, 1, TILE_ANCH), lambda i, k, cnt: (i, 0, 0)),
            scratch_shapes=[
                pltpu.VMEM((1, TILE_ANCH), jnp.float32),   # running hardest-positive d^2
                pltpu.VMEM((1, TILE_ANCH), jnp.float32),   # running hardest-negative d^2
            ]),
        compiler_params=pltpu.CompilerParams(
            dimension_semantics=("parallel", "arbitrary"),
            vmem_limit_bytes=32 * 1024 * 1024),
    )
    return jax.jit(fn)


def _per_class_loss(cands, cand_sq, counts, real_p, p_pad, margin, eps, norm):
    total_rows, c_pad = cands.shape
    fn = _build_triplet_call(int(p_pad), int(total_rows), int(c_pad),
                             float(margin), float(eps), int(norm))
    anch_sq = cand_sq[:p_pad].reshape(1, p_pad)
    cand_sq_col = cand_sq.reshape(total_rows, 1)
    # The sigmoid slab is passed twice: once read as anchors (first p_pad rows,
    # resident per anchor tile), once as the streamed candidate set.
    per_anchor = fn(counts, cands, anch_sq, cands, cand_sq_col)   # (grid0, 1, TILE_ANCH)
    return jnp.sum(per_anchor) / float(real_p)                    # torch.mean over real anchors


# ------------------------- host-side glue (mask logic) -----------------------
# TODO(synk): get_mask/small_mask use data-dependent boolean indexing and host
# numpy randomness — kept on host (numpy) exactly as in the reference.

def _small_mask(mask, total_num, num, rng):
    assert total_num > num
    mask = mask.copy()
    pos = np.where(mask == 1)[0]
    start = int(rng.randint(0, total_num - num))
    choose_pos = pos[start:start + num]
    mask[choose_pos] = 0
    return mask


def _get_mask(logits_flat, positive_label, rng):
    p_mask = (logits_flat == positive_label).astype(np.int64)
    n_mask = (logits_flat != positive_label).astype(np.int64)
    p_num = int(p_mask.sum())
    n_num = int(n_mask.sum())
    if p_num == 0 or n_num == 0:
        return None, None
    minvalue = min(p_num, n_num)
    if minvalue <= 1000:
        if p_num > n_num:
            p_mask = _small_mask(p_mask, p_num, n_num, rng)
        elif p_num < n_num:
            frac = n_num // p_num
            frac = 1 if frac > 1 else frac
            n_mask = _small_mask(n_mask, n_num, p_num * frac, rng)
    else:
        num = 1000
        p_mask = _small_mask(p_mask, p_num, num, rng)
        n_mask = _small_mask(n_mask, n_num, num, rng)
    return p_mask, n_mask


def modified_triplet_margin_loss(outs, logits, margin, norm=2, seed=0):
    preds, features = outs          # preds: (n, nclass, h, w); features: (n, c, h, w) NCHW
    nclass = preds.shape[1]
    # sigmoid(preds) is computed in the reference but never consumed afterwards.
    n, c, h, w = features.shape
    eps = 0.0001 / c                # pairwise()/PairwiseDistance eps uses the REAL channel count

    # sigmoid once (XLA), NHWC-flatten so channels sit on the lane axis, pad channels
    # with zeros (post-sigmoid zeros contribute nothing to dot products or norms).
    feats = jax.nn.sigmoid(
        jnp.transpose(features, (0, 2, 3, 1)).reshape(n * h * w, c).astype(jnp.float32))
    c_pad = _round_up(c, LANE)
    if c_pad > c:
        feats = jnp.pad(feats, ((0, 0), (0, c_pad - c)))
    # Sentinel zero row used by padded gather indices (padded rows are masked in-kernel).
    feats_ext = jnp.concatenate([feats, jnp.zeros((1, c_pad), feats.dtype)], axis=0)
    sentinel = n * h * w

    # Build ALL per-class index/count plans on the host up front (single device_get).
    logits_flat = np.asarray(jax.device_get(logits)).reshape(-1)
    rng = np.random.RandomState(seed)
    plans = []
    for i in range(1, nclass):
        p_mask, n_mask = _get_mask(logits_flat, i, rng)
        if p_mask is None:
            continue
        p_idx = np.where(p_mask == 1)[0].astype(np.int32)
        n_idx = np.where(n_mask == 1)[0].astype(np.int32)
        real_p, real_n = int(p_idx.size), int(n_idx.size)
        p_pad = _bucket_rows(real_p)
        n_pad = _bucket_rows(real_n)
        # Single padded gather index vector: [pos rows | pad | neg rows | pad].
        cand_idx = np.full((p_pad + n_pad,), sentinel, dtype=np.int32)
        cand_idx[:real_p] = p_idx
        cand_idx[p_pad:p_pad + real_n] = n_idx
        plans.append((cand_idx, real_p, real_n, p_pad))

    loss = jnp.float32(0.0)
    for cand_idx, real_p, real_n, p_pad in plans:
        cands = jnp.take(feats_ext, jnp.asarray(cand_idx), axis=0)   # (rows, c_pad) sigmoid'd
        cand_sq = jnp.sum(cands * cands, axis=1)                     # (rows,) squared norms
        counts = jnp.asarray([real_p, real_n], dtype=jnp.int32)
        loss = loss + _per_class_loss(cands, cand_sq, counts, real_p, p_pad,
                                      margin, eps, norm)
    return loss


if __name__ == "__main__":
    key = jax.random.PRNGKey(0)
    k1, k2, k3 = jax.random.split(key, 3)
    n, c, h, w, nclass = 2, 8, 8, 8, 3
    preds = jax.random.normal(k1, (n, nclass, h, w), dtype=jnp.float32)
    features = jax.random.normal(k2, (n, c, h, w), dtype=jnp.float32)
    logits = jax.random.randint(k3, (n, h, w), 0, nclass, dtype=jnp.int32)

    loss = modified_triplet_margin_loss((preds, features), logits, margin=1.0, norm=2)
    loss = jax.block_until_ready(loss)
    assert bool(jnp.isfinite(loss)), "loss is not finite"
    print("KERNEL_OK")
</pallas_src>

<mosaic_0001>
module attributes {stable_mosaic.version = 11 : i64} {
  func.func @hard_triplet_kernel(%arg0: i32, %arg1: i32, %arg2: memref<2xi32, #tpu.memory_space<smem>>, %arg3: memref<256x128xf32, #tpu.memory_space<vmem>>, %arg4: memref<1x256xf32, #tpu.memory_space<vmem>>, %arg5: memref<1024x128xf32, #tpu.memory_space<vmem>>, %arg6: memref<1024x1xf32, #tpu.memory_space<vmem>>, %arg7: memref<1x1x256xf32, #tpu.memory_space<vmem>>, %arg8: memref<1x256xf32, #tpu.memory_space<vmem>>, %arg9: memref<1x256xf32, #tpu.memory_space<vmem>>) attributes {dimension_semantics = [#tpu.dimension_semantics<parallel>, #tpu.dimension_semantics<arbitrary>], iteration_bounds = array<i64: 4, 2>, scalar_prefetch = 1 : i64, scratch_operands = 2 : i64, tpu.core_type = #tpu.core_type<tc>, window_params = [{transform_indices = @transform_0, window_bounds = array<i64: 256, 128>}, {transform_indices = @transform_1, window_bounds = array<i64: 1, 256>}, {transform_indices = @transform_2, window_bounds = array<i64: 1024, 128>}, {transform_indices = @transform_3, window_bounds = array<i64: 1024, 1>}, {transform_indices = @transform_4, window_bounds = array<i64: 1, 1, 256>}]} {
    %c0 = arith.constant 0 : index
    %0 = memref.load %arg2[%c0] : memref<2xi32, #tpu.memory_space<smem>>
    %c1 = arith.constant 1 : index
    %1 = memref.load %arg2[%c1] : memref<2xi32, #tpu.memory_space<smem>>
    %c0_i32 = arith.constant 0 : i32
    %2 = arith.cmpi eq, %arg1, %c0_i32 : i32
    %3 = arith.extui %2 : i1 to i32
    %c0_i32_0 = arith.constant 0 : i32
    %4 = arith.cmpi ne, %3, %c0_i32_0 : i32
    scf.if %4 {
      %cst = arith.constant 0xFF800000 : f32
      %25 = vector.broadcast %cst : f32 to vector<1x256xf32>
      %c0_6 = arith.constant 0 : index
      %c0_7 = arith.constant 0 : index
      %26 = vector.load %arg8[%c0_6, %c0_7] : memref<1x256xf32, #tpu.memory_space<vmem>>, vector<1x256xf32>
      tpu.vector_store %arg8[%c0_6, %c0_7], %25 {strides = array<i32>} : memref<1x256xf32, #tpu.memory_space<vmem>>, vector<1x256xf32>,
      %cst_8 = arith.constant 0x7F800000 : f32
      %27 = vector.broadcast %cst_8 : f32 to vector<1x256xf32>
      %c0_9 = arith.constant 0 : index
      %c0_10 = arith.constant 0 : index
      %28 = vector.load %arg9[%c0_9, %c0_10] : memref<1x256xf32, #tpu.memory_space<vmem>>, vector<1x256xf32>
      tpu.vector_store %arg9[%c0_9, %c0_10], %27 {strides = array<i32>} : memref<1x256xf32, #tpu.memory_space<vmem>>, vector<1x256xf32>,
    } else {
    }
    %c256_i32 = arith.constant 256 : i32
    %5 = arith.muli %arg0, %c256_i32 : i32
    %c1024_i32 = arith.constant 1024 : i32
    %6 = arith.muli %arg1, %c1024_i32 : i32
    %7 = arith.cmpi slt, %5, %0 : i32
    %8 = tpu.iota {dimensions = array<i32: 0>} : vector<1024x1xi32>
    %9 = vector.broadcast %6 : i32 to vector<1024x1xi32>
    %10 = arith.addi %9, %8 : vector<1024x1xi32>
    %11 = arith.cmpi slt, %6, %0 : i32
    %12 = arith.andi %7, %11 : i1
    %13 = arith.extui %12 : i1 to i32
    %c0_i32_1 = arith.constant 0 : i32
    %14 = arith.cmpi ne, %13, %c0_i32_1 : i32
    scf.if %14 {
      %25 = vector.broadcast %0 : i32 to vector<1024x1xi32>
      %26 = arith.cmpi slt, %10, %25 : vector<1024x1xi32>
      %c0_6 = arith.constant 0 : index
      %c0_7 = arith.constant 0 : index
      %27 = vector.load %arg3[%c0_6, %c0_7] : memref<256x128xf32, #tpu.memory_space<vmem>>, vector<256x128xf32>
      %c0_8 = arith.constant 0 : index
      %c0_9 = arith.constant 0 : index
      %28 = vector.load %arg5[%c0_8, %c0_9] : memref<1024x128xf32, #tpu.memory_space<vmem>>, vector<1024x128xf32>
      %cst = arith.constant dense<0.000000e+00> : vector<1024x256xf32>
      %29 = tpu.matmul %28, %27, %cst {dimension_numbers = #tpu.dot_dimension_numbers<[1], [1], [0], [0], [0, 0, 1, 0], [], []>} : vector<1024x128xf32>, vector<256x128xf32>, vector<1024x256xf32> -> vector<1024x256xf32>
      %c0_10 = arith.constant 0 : index
      %c0_11 = arith.constant 0 : index
      %30 = vector.load %arg6[%c0_10, %c0_11] : memref<1024x1xf32, #tpu.memory_space<vmem>>, vector<1024x1xf32>
      %cst_12 = arith.constant 2.000000e+00 : f32
      %31 = vector.broadcast %cst_12 : f32 to vector<1024x256xf32>
      %32 = arith.mulf %31, %29 : vector<1024x256xf32>
      %33 = vector.broadcast %30 : vector<1024x1xf32> to vector<1024x256xf32>
      %34 = arith.subf %33, %32 : vector<1024x256xf32>
      %c0_13 = arith.constant 0 : index
      %c0_14 = arith.constant 0 : index
      %35 = vector.load %arg4[%c0_13, %c0_14] : memref<1x256xf32, #tpu.memory_space<vmem>>, vector<1x256xf32>
      %36 = vector.broadcast %35 : vector<1x256xf32> to vector<1024x256xf32>
      %37 = arith.addf %34, %36 : vector<1024x256xf32>
      %cst_15 = arith.constant 0.000000e+00 : f32
      %38 = vector.broadcast %cst_15 : f32 to vector<1024x256xf32>
      %39 = arith.maximumf %37, %38 : vector<1024x256xf32>
      %cst_16 = arith.constant 0xFF800000 : f32
      %40 = vector.shape_cast %26 : vector<1024x1xi1> to vector<1024x1xi1>
      %41 = vector.broadcast %40 : vector<1024x1xi1> to vector<1024x256xi1>
      %42 = vector.broadcast %cst_16 : f32 to vector<1024x256xf32>
      %43 = arith.select %41, %39, %42 : vector<1024x256xi1>, vector<1024x256xf32>
      %c0_17 = arith.constant 0 : index
      %c0_18 = arith.constant 0 : index
      %44 = vector.load %arg8[%c0_17, %c0_18] : memref<1x256xf32, #tpu.memory_space<vmem>>, vector<1x256xf32>
      %cst_19 = arith.constant dense<0xFF800000> : vector<256xf32>
      %45 = vector.multi_reduction <maximumf>, %43, %cst_19 [0] : vector<1024x256xf32> to vector<256xf32>
      %46 = vector.shape_cast %45 : vector<256xf32> to vector<1x256xf32>
      %47 = arith.maximumf %44, %46 : vector<1x256xf32>
      %c0_20 = arith.constant 0 : index
      %c0_21 = arith.constant 0 : index
      %48 = vector.load %arg8[%c0_20, %c0_21] : memref<1x256xf32, #tpu.memory_space<vmem>>, vector<1x256xf32>
      tpu.vector_store %arg8[%c0_20, %c0_21], %47 {strides = array<i32>} : memref<1x256xf32, #tpu.memory_space<vmem>>, vector<1x256xf32>,
    } else {
    }
    %c1024_i32_2 = arith.constant 1024 : i32
    %15 = arith.cmpi sge, %6, %c1024_i32_2 : i32
    %c1024_i32_3 = arith.constant 1024 : i32
    %16 = arith.addi %c1024_i32_3, %1 : i32
    %17 = arith.cmpi slt, %6, %16 : i32
    %18 = arith.andi %15, %17 : i1
    %19 = arith.andi %7, %18 : i1
    %20 = arith.extui %19 : i1 to i32
    %c0_i32_4 = arith.constant 0 : i32
    %21 = arith.cmpi ne, %20, %c0_i32_4 : i32
    scf.if %21 {
      %c1024_i32_6 = arith.constant 1024 : i32
      %25 = arith.addi %c1024_i32_6, %1 : i32
      %26 = vector.broadcast %25 : i32 to vector<1024x1xi32>
      %27 = arith.cmpi slt, %10, %26 : vector<1024x1xi32>
      %c0_7 = arith.constant 0 : index
      %c0_8 = arith.constant 0 : index
      %28 = vector.load %arg3[%c0_7, %c0_8] : memref<256x128xf32, #tpu.memory_space<vmem>>, vector<256x128xf32>
      %c0_9 = arith.constant 0 : index
      %c0_10 = arith.constant 0 : index
      %29 = vector.load %arg5[%c0_9, %c0_10] : memref<1024x128xf32, #tpu.memory_space<vmem>>, vector<1024x128xf32>
      %cst = arith.constant dense<0.000000e+00> : vector<1024x256xf32>
      %30 = tpu.matmul %29, %28, %cst {dimension_numbers = #tpu.dot_dimension_numbers<[1], [1], [0], [0], [0, 0, 1, 0], [], []>} : vector<1024x128xf32>, vector<256x128xf32>, vector<1024x256xf32> -> vector<1024x256xf32>
      %c0_11 = arith.constant 0 : index
      %c0_12 = arith.constant 0 : index
      %31 = vector.load %arg6[%c0_11, %c0_12] : memref<1024x1xf32, #tpu.memory_space<vmem>>, vector<1024x1xf32>
      %cst_13 = arith.constant 2.000000e+00 : f32
      %32 = vector.broadcast %cst_13 : f32 to vector<1024x256xf32>
      %33 = arith.mulf %32, %30 : vector<1024x256xf32>
      %34 = vector.broadcast %31 : vector<1024x1xf32> to vector<1024x256xf32>
      %35 = arith.subf %34, %33 : vector<1024x256xf32>
      %c0_14 = arith.constant 0 : index
      %c0_15 = arith.constant 0 : index
      %36 = vector.load %arg4[%c0_14, %c0_15] : memref<1x256xf32, #tpu.memory_space<vmem>>, vector<1x256xf32>
      %37 = vector.broadcast %36 : vector<1x256xf32> to vector<1024x256xf32>
      %38 = arith.addf %35, %37 : vector<1024x256xf32>
      %cst_16 = arith.constant 0.000000e+00 : f32
      %39 = vector.broadcast %cst_16 : f32 to vector<1024x256xf32>
      %40 = arith.maximumf %38, %39 : vector<1024x256xf32>
      %cst_17 = arith.constant 0x7F800000 : f32
      %41 = vector.shape_cast %27 : vector<1024x1xi1> to vector<1024x1xi1>
      %42 = vector.broadcast %41 : vector<1024x1xi1> to vector<1024x256xi1>
      %43 = vector.broadcast %cst_17 : f32 to vector<1024x256xf32>
      %44 = arith.select %42, %40, %43 : vector<1024x256xi1>, vector<1024x256xf32>
      %c0_18 = arith.constant 0 : index
      %c0_19 = arith.constant 0 : index
      %45 = vector.load %arg9[%c0_18, %c0_19] : memref<1x256xf32, #tpu.memory_space<vmem>>, vector<1x256xf32>
      %cst_20 = arith.constant dense<0x7F800000> : vector<256xf32>
      %46 = vector.multi_reduction <minimumf>, %44, %cst_20 [0] : vector<1024x256xf32> to vector<256xf32>
      %47 = vector.shape_cast %46 : vector<256xf32> to vector<1x256xf32>
      %48 = arith.minimumf %45, %47 : vector<1x256xf32>
      %c0_21 = arith.constant 0 : index
      %c0_22 = arith.constant 0 : index
      %49 = vector.load %arg9[%c0_21, %c0_22] : memref<1x256xf32, #tpu.memory_space<vmem>>, vector<1x256xf32>
      tpu.vector_store %arg9[%c0_21, %c0_22], %48 {strides = array<i32>} : memref<1x256xf32, #tpu.memory_space<vmem>>, vector<1x256xf32>,
    } else {
    }
    %c1_i32 = arith.constant 1 : i32
    %22 = arith.cmpi eq, %arg1, %c1_i32 : i32
    %23 = arith.extui %22 : i1 to i32
    %c0_i32_5 = arith.constant 0 : i32
    %24 = arith.cmpi ne, %23, %c0_i32_5 : i32
    scf.if %24 {
      %25 = tpu.iota {dimensions = array<i32: 1>} : vector<1x256xi32>
      %26 = vector.broadcast %5 : i32 to vector<1x256xi32>
      %27 = arith.addi %26, %25 : vector<1x256xi32>
      %28 = vector.broadcast %0 : i32 to vector<1x256xi32>
      %29 = arith.cmpi slt, %27, %28 : vector<1x256xi32>
      %c0_6 = arith.constant 0 : index
      %c0_7 = arith.constant 0 : index
      %30 = vector.load %arg8[%c0_6, %c0_7] : memref<1x256xf32, #tpu.memory_space<vmem>>, vector<1x256xf32>
      %cst = arith.constant 1.250000e-05 : f32
      %31 = vector.broadcast %cst : f32 to vector<1x256xf32>
      %32 = arith.addf %30, %31 : vector<1x256xf32>
      %33 = math.sqrt %32 : vector<1x256xf32>
      %c0_8 = arith.constant 0 : index
      %c0_9 = arith.constant 0 : index
      %34 = vector.load %arg9[%c0_8, %c0_9] : memref<1x256xf32, #tpu.memory_space<vmem>>, vector<1x256xf32>
      %cst_10 = arith.constant 1.250000e-05 : f32
      %35 = vector.broadcast %cst_10 : f32 to vector<1x256xf32>
      %36 = arith.addf %34, %35 : vector<1x256xf32>
      %37 = math.sqrt %36 : vector<1x256xf32>
      %cst_11 = arith.constant 1.000000e+00 : f32
      %38 = vector.broadcast %cst_11 : f32 to vector<1x256xf32>
      %39 = arith.addf %38, %33 : vector<1x256xf32>
      %40 = arith.subf %39, %37 : vector<1x256xf32>
      %cst_12 = arith.constant 0.000000e+00 : f32
      %41 = vector.broadcast %cst_12 : f32 to vector<1x256xf32>
      %42 = arith.maximumf %40, %41 : vector<1x256xf32>
      %cst_13 = arith.constant 0.000000e+00 : f32
      %43 = vector.broadcast %cst_13 : f32 to vector<1x256xf32>
      %44 = arith.select %29, %42, %43 : vector<1x256xi1>, vector<1x256xf32>
      %45 = vector.shape_cast %44 : vector<1x256xf32> to vector<1x1x256xf32>
      %c0_14 = arith.constant 0 : index
      %c0_15 = arith.constant 0 : index
      %c0_16 = arith.constant 0 : index
      %46 = vector.load %arg7[%c0_14, %c0_15, %c0_16] : memref<1x1x256xf32, #tpu.memory_space<vmem>>, vector<1x1x256xf32>
      tpu.vector_store %arg7[%c0_14, %c0_15, %c0_16], %45 {strides = array<i32>} : memref<1x1x256xf32, #tpu.memory_space<vmem>>, vector<1x1x256xf32>,
    } else {
    }
    return
  }
  func.func @transform_0(%arg0: i32, %arg1: i32, %arg2: memref<2xi32, #tpu.memory_space<smem>>) -> (i32, i32) {
    %c0_i32 = arith.constant 0 : i32
    %c0_i32_0 = arith.constant 0 : i32
    return %arg0, %c0_i32 : i32, i32
  }
  func.func @transform_1(%arg0: i32, %arg1: i32, %arg2: memref<2xi32, #tpu.memory_space<smem>>) -> (i32, i32) {
    %c0_i32 = arith.constant 0 : i32
    %c0_i32_0 = arith.constant 0 : i32
    return %c0_i32, %arg0 : i32, i32
  }
  func.func @transform_2(%arg0: i32, %arg1: i32, %arg2: memref<2xi32, #tpu.memory_space<smem>>) -> (i32, i32) {
    %c0_i32 = arith.constant 0 : i32
    %c0_i32_0 = arith.constant 0 : i32
    return %arg1, %c0_i32 : i32, i32
  }
  func.func @transform_3(%arg0: i32, %arg1: i32, %arg2: memref<2xi32, #tpu.memory_space<smem>>) -> (i32, i32) {
    %c0_i32 = arith.constant 0 : i32
    %c0_i32_0 = arith.constant 0 : i32
    return %arg1, %c0_i32 : i32, i32
  }
  func.func @transform_4(%arg0: i32, %arg1: i32, %arg2: memref<2xi32, #tpu.memory_space<smem>>) -> (i32, i32, i32) {
    %c0_i32 = arith.constant 0 : i32
    %c0_i32_0 = arith.constant 0 : i32
    %c0_i32_1 = arith.constant 0 : i32
    return %arg0, %c0_i32, %c0_i32_0 : i32, i32, i32
  }
}

</mosaic_0001>

<llo_original>
// kernel: tpu_custom_call.1
$region0: #{tpu_custom_call.1}
  #allocation0 [shape = 'u32[]', space=smem, size = 0x4, offset = 0x4, fixed_abs, tag = 'smem constant byte address 0x4 - core index']
  #allocation1 [shape = 'u32[72,128]{1,0:T(1,128)}', space=vmem, size = 0x9000, scoped, tag = 'internal scratch']
  #allocation2 [shape = 'f32[1,256]{1,0:T(1,128)}', space=vmem, size = 0x400, scoped, tag = 'scratch operand']
  #allocation3 [shape = 'f32[1,256]{1,0:T(1,128)}', space=vmem, size = 0x400, scoped, tag = 'scratch operand']
  #allocation4 [shape = 's32[1]{0}', space=sflag, size = 0x4, scoped, tag = 'scoped memory for tpu_custom_call.1']
  #allocation5 [shape = 'u8[512]{0}', space=smem, size = 0x200, scoped, tag = 'prefetched SMEM operand 0']
  %s0 = inlined_call_operand.vmem [shape: s32[2], index: 0, kind: input, shape index: {}]
  %s1 = inlined_call_operand.vmem [shape: f32[2048,128], index: 1, kind: input, shape index: {}]
  %s2 = inlined_call_operand.vmem [shape: f32[1,1024], index: 2, kind: input, shape index: {}]
  %s3 = inlined_call_operand.hbm [shape: f32[2048,128], index: 3, kind: input, shape index: {}]
  %s4 = inlined_call_operand.vmem [shape: f32[2048,1], index: 4, kind: input, shape index: {}]
  %s5 = inlined_call_operand.hbm [shape: f32[4,1,256], index: 5, kind: output, shape index: {}]
  %s6 = sld [smem:[#allocation0]]
  $region69: #{tpu_custom_call.1} parent=0
    _
  %s8 = ssub.s32 1, %s6
  %s9 = scalar_select 0, %s8, %s6
  %s11 = sshll.u32 %s0, 4
  %s12 = int_to_ptr.vmem [resolvable:$true] %s11
  %14 = dma.vmem_to_smem %s12, 16, [#allocation5], [#allocation4]
  %16 = dma.done [#allocation4], 16
  %17 = sfence
  $region1: #{tpu_custom_call.1} parent=0
    #allocation6 [shape = 'u8[1048576]{0}', space=vmem, size = 0x100000, scoped, tag = 'input window, operand 3']
    #allocation7 [shape = 's32[2]{0}', space=sflag, size = 0x8, scoped, tag = 'scoped memory for tpu_custom_call.1']
    #allocation8 [shape = 's32[2]{0}', space=sflag, size = 0x8, scoped, tag = 'scoped memory for tpu_custom_call.1']
    #allocation9 [shape = 'u8[2048]{0}', space=vmem, size = 0x800, scoped, tag = 'output window, operand 0']
    %18 = vsyncpa [#allocation7], 0
    %s19 = scalar_lea.sflag [#allocation7], 1
    %20 = vsyncpa %s19, 0
    %21 = vsyncpa [#allocation8], 0
    %s22 = scalar_lea.sflag [#allocation8], 1
    %23 = vsyncpa %s22, 0
    loop: start=0, step=1, limit=10
    $region2: #{tpu_custom_call.1} parent=1 // loop_pre_header
      _
    $region3: #{tpu_custom_call.1} parent=1 // loop_header
      %s25 = sphi 0, %s29
      %p26 = scmp.ge.s32.totalorder %s25, 10
      %s32 = sphi 0, %s44
      %s33 = sphi 0, %s40
      %s34 = sphi 0, %s32
      %s35 = sphi 0, %s33
      %s36 = sphi 0, %s34
      %s37 = sphi 0, %s35
      %s47 = sphi 0, %s49
      %s50 = sphi 0, %s47
      %s51 = sphi 0, %s50
      %s67 = sphi 0, %s51
      %s73 = sphi 0, %s75
      %s76 = sphi 0, %s73
      %s77 = sphi 0, %s76
      %s93 = sphi 0, %s77
      %s99 = sphi 0, %s101
      %s102 = sphi 0, %s99
      %s103 = sphi 0, %s102
      %s119 = sphi 0, %s103
      %s125 = sphi 0, %s127
      %s128 = sphi 0, %s125
      %s129 = sphi 0, %s128
      %s145 = sphi 0, %s129
      %s151 = sphi 0, %s153
      %s154 = sphi 0, %s151
      %s155 = sphi 0, %s154
      %s171 = sphi 0, %s155
    $region4: #{tpu_custom_call.1} parent=1 // loop_header_branch
      %28 = sbr.rel (%p26) target = $region8
    $region5: #{tpu_custom_call.1} parent=1 // loop_body
      %s30 = ssub.s32 %s25, 1
      %s31 = ssub.s32 %s25, 2
      %s38 = sadd.s32 1, %s33
      %p39 = scmp.ge.s32.totalorder %s38, 2
      %s40 = scalar_select %p39, 0, %s38
      %s41 = sadd.s32 1, %s32
      %s42 = scalar_select %p39, %s41, %s32
      %p43 = scmp.ge.s32.totalorder %s42, 4
      %s44 = scalar_select %p43, 0, %s42
      %s45 = ssub.s32 %s32, %s44
      %p46 = scmp.eq.s32.totalorder %s45, 0
      %s48 = sadd.s32 %s47, 1
      %s49 = scalar_select %p46, %s47, %s48
      %p52 = pneg %p46
      %p53 = scmp.eq.s32.totalorder %s25, 7
      %p54 = por %p52, %p53
      %p55 = scmp.ne.s32.totalorder %s47, %s50
      %p56 = scmp.eq.s32.totalorder %s25, 0
      %p57 = por %p55, %p56
      %p58 = scmp.ne.s32.totalorder %s47, %s50
      %p59 = scmp.eq.s32.totalorder %s30, 7
      %p60 = por %p58, %p59
      %p61 = scmp.ne.s32.totalorder %s50, %s51
      %p62 = scmp.eq.s32.totalorder %s30, 0
      %p63 = por %p61, %p62
      %p64 = scmp.ne.s32.totalorder %s50, %s51
      %p65 = scmp.eq.s32.totalorder %s31, 7
      %p66 = por %p64, %p65
      %p68 = scmp.ne.s32.totalorder %s51, %s67
      %p69 = scmp.eq.s32.totalorder %s31, 0
      %p70 = por %p68, %p69
      %s71 = ssub.s32 %s32, %s44
      %p72 = scmp.eq.s32.totalorder %s71, 0
      %s74 = sadd.s32 %s73, 1
      %s75 = scalar_select %p72, %s73, %s74
      %p78 = pneg %p72
      %p79 = scmp.eq.s32.totalorder %s25, 7
      %p80 = por %p78, %p79
      %p81 = scmp.ne.s32.totalorder %s73, %s76
      %p82 = scmp.eq.s32.totalorder %s25, 0
      %p83 = por %p81, %p82
      %p84 = scmp.ne.s32.totalorder %s73, %s76
      %p85 = scmp.eq.s32.totalorder %s30, 7
      %p86 = por %p84, %p85
      %p87 = scmp.ne.s32.totalorder %s76, %s77
      %p88 = scmp.eq.s32.totalorder %s30, 0
      %p89 = por %p87, %p88
      %p90 = scmp.ne.s32.totalorder %s76, %s77
      %p91 = scmp.eq.s32.totalorder %s31, 7
      %p92 = por %p90, %p91
      %p94 = scmp.ne.s32.totalorder %s77, %s93
      %p95 = scmp.eq.s32.totalorder %s31, 0
      %p96 = por %p94, %p95
      %s97 = ssub.s32 %s33, %s40
      %p98 = scmp.eq.s32.totalorder %s97, 0
      %s100 = sadd.s32 %s99, 1
      %s101 = scalar_select %p98, %s99, %s100
      %p104 = pneg %p98
      %p105 = scmp.eq.s32.totalorder %s25, 7
      %p106 = por %p104, %p105
      %p107 = scmp.ne.s32.totalorder %s99, %s102
      %p108 = scmp.eq.s32.totalorder %s25, 0
      %p109 = por %p107, %p108
      %p110 = scmp.ne.s32.totalorder %s99, %s102
      %p111 = scmp.eq.s32.totalorder %s30, 7
      %p112 = por %p110, %p111
      %p113 = scmp.ne.s32.totalorder %s102, %s103
      %p114 = scmp.eq.s32.totalorder %s30, 0
      %p115 = por %p113, %p114
      %p116 = scmp.ne.s32.totalorder %s102, %s103
      %p117 = scmp.eq.s32.totalorder %s31, 7
      %p118 = por %p116, %p117
      %p120 = scmp.ne.s32.totalorder %s103, %s119
      %p121 = scmp.eq.s32.totalorder %s31, 0
      %p122 = por %p120, %p121
      %s123 = ssub.s32 %s33, %s40
      %p124 = scmp.eq.s32.totalorder %s123, 0
      %s126 = sadd.s32 %s125, 1
      %s127 = scalar_select %p124, %s125, %s126
      %p130 = pneg %p124
      %p131 = scmp.eq.s32.totalorder %s25, 7
      %p132 = por %p130, %p131
      %p133 = scmp.ne.s32.totalorder %s125, %s128
      %p134 = scmp.eq.s32.totalorder %s25, 0
      %p135 = por %p133, %p134
      %p136 = scmp.ne.s32.totalorder %s125, %s128
      %p137 = scmp.eq.s32.totalorder %s30, 7
      %p138 = por %p136, %p137
      %p139 = scmp.ne.s32.totalorder %s128, %s129
      %p140 = scmp.eq.s32.totalorder %s30, 0
      %p141 = por %p139, %p140
      %p142 = scmp.ne.s32.totalorder %s128, %s129
      %p143 = scmp.eq.s32.totalorder %s31, 7
      %p144 = por %p142, %p143
      %p146 = scmp.ne.s32.totalorder %s129, %s145
      %p147 = scmp.eq.s32.totalorder %s31, 0
      %p148 = por %p146, %p147
      %s149 = ssub.s32 %s32, %s44
      %p150 = scmp.eq.s32.totalorder %s149, 0
      %s152 = sadd.s32 %s151, 1
      %s153 = scalar_select %p150, %s151, %s152
      %p156 = pneg %p150
      %p157 = scmp.eq.s32.totalorder %s25, 7
      %p158 = por %p156, %p157
      %p159 = scmp.ne.s32.totalorder %s151, %s154
      %p160 = scmp.eq.s32.totalorder %s25, 0
      %p161 = por %p159, %p160
      %p162 = scmp.ne.s32.totalorder %s151, %s154
      %p163 = scmp.eq.s32.totalorder %s30, 7
      %p164 = por %p162, %p163
      %p165 = scmp.ne.s32.totalorder %s154, %s155
      %p166 = scmp.eq.s32.totalorder %s30, 0
      %p167 = por %p165, %p166
      %p168 = scmp.ne.s32.totalorder %s154, %s155
      %p169 = scmp.eq.s32.totalorder %s31, 7
      %p170 = por %p168, %p169
      %p172 = scmp.ne.s32.totalorder %s155, %s171
      %p173 = scmp.eq.s32.totalorder %s31, 0
      %p174 = por %p172, %p173
      %p175 = scmp.le.s32.totalorder 1, %s25
      %p176 = scmp.lt.s32.totalorder %s25, 9
      %p177 = pnand %p175, %p176
      %p178 = pneg %p177
      // Predicated region
      $region9: #{tpu_custom_call.1} parent=5 // pred_check
        _
      $region10: #{tpu_custom_call.1} parent=5 // pred_check_branch
        %180 = sbr.rel (%p177) target = $region12
      $region11: #{tpu_custom_call.1} parent=5 // pred_region
        %s181 = ssub.s32 %s25, 1
      $region12: #{tpu_custom_call.1} parent=5 // pred_fallthru
        _
      %p182 = scmp.lt.s32.totalorder %s25, 8
      // Predicated region
      $region13: #{tpu_custom_call.1} parent=5 // pred_check
        %p183 = pneg %p182
      $region14: #{tpu_custom_call.1} parent=5 // pred_check_branch
        %185 = sbr.rel (%p183) target = $region16
      $region15: #{tpu_custom_call.1} parent=5 // pred_region
        // Predicated region
        $region17: #{tpu_custom_call.1} parent=15 // pred_check
          %p186 = pneg %p57
        $region18: #{tpu_custom_call.1} parent=15 // pred_check_branch
          %188 = sbr.rel (%p186) target = $region20
        $region19: #{tpu_custom_call.1} parent=15 // pred_region
          %s189 = smul.u32 32, %s32
          %p190 = scmp.lt.s32.totalorder %s189, 255
          %s191 = scalar_select %p190, %s189, 255
          %s192 = smul.addr %s191, 8
          %s193 = scalar_lea.vmem %s1, %s192
          %s194 = smul.u32 32, %s32
        $region20: #{tpu_custom_call.1} parent=15 // pred_fallthru
          _
        // Predicated region
        $region21: #{tpu_custom_call.1} parent=15 // pred_check
          %p195 = pneg %p83
        $region22: #{tpu_custom_call.1} parent=15 // pred_check_branch
          %197 = sbr.rel (%p195) target = $region24
        $region23: #{tpu_custom_call.1} parent=15 // pred_region
          %s198 = smul.u32 2, %s32
          %p199 = scmp.lt.s32.totalorder %s198, 7
          %s200 = scalar_select %p199, %s198, 7
          %s201 = scalar_lea.vmem %s2, %s200
          %s202 = smul.u32 2, %s32
        $region24: #{tpu_custom_call.1} parent=15 // pred_fallthru
          _
        // Predicated region
        $region25: #{tpu_custom_call.1} parent=15 // pred_check
          %p203 = pneg %p109
        $region26: #{tpu_custom_call.1} parent=15 // pred_check_branch
          %205 = sbr.rel (%p203) target = $region28
        $region27: #{tpu_custom_call.1} parent=15 // pred_region
          %s206 = sand.u32 %s99, 1
          %s207 = scalar_lea.sflag [#allocation7], %s206
          %s208 = sand.u32 %s99, 1
          %s209 = smul.addr %s208, 1024
          %s210 = scalar_lea.vmem [#allocation6], %s209
          %s211 = smul.u32 128, %s33
          %213 = vsyncadd %s207, 0
          %s214 = smul.addr %s211, 8
          %s215 = scalar_lea.hbm %s3, %s214
          %s216 = sshll.u32 %s215, 4
          %s217 = int_to_ptr.hbm [resolvable:$true] %s216
          %s218 = sshll.u32 %s210, 4
          %s219 = int_to_ptr.vmem [resolvable:$true] %s218
          %224 = dma.hbm_to_vmem [thread:$0]  %s217, 16384, %s219, %s207, 128, 128, 8
        $region28: #{tpu_custom_call.1} parent=15 // pred_fallthru
          _
        // Predicated region
        $region29: #{tpu_custom_call.1} parent=15 // pred_check
          %p225 = pneg %p135
        $region30: #{tpu_custom_call.1} parent=15 // pred_check_branch
          %227 = sbr.rel (%p225) target = $region32
        $region31: #{tpu_custom_call.1} parent=15 // pred_region
          %s228 = smul.u32 128, %s33
          %p229 = scmp.lt.s32.totalorder %s228, 255
          %s230 = scalar_select %p229, %s228, 255
          %s231 = smul.addr %s230, 8
          %s232 = scalar_lea.vmem %s4, %s231
          %s233 = smul.u32 128, %s33
        $region32: #{tpu_custom_call.1} parent=15 // pred_fallthru
          _
      $region16: #{tpu_custom_call.1} parent=5 // pred_fallthru
        _
      %p234 = scmp.le.s32.totalorder 1, %s25
      %p235 = scmp.lt.s32.totalorder %s25, 9
      %p236 = pnand %p234, %p235
      %p237 = pneg %p236
      // Predicated region
      $region33: #{tpu_custom_call.1} parent=5 // pred_check
        _
      $region34: #{tpu_custom_call.1} parent=5 // pred_check_branch
        %239 = sbr.rel (%p236) target = $region36
      $region35: #{tpu_custom_call.1} parent=5 // pred_region
        %s240 = ssub.s32 %s25, 1
        %s241 = sand.u32 %s102, 1
        %s242 = scalar_lea.sflag [#allocation7], %s241
        %s243 = sand.u32 %s102, 1
        %s244 = smul.addr %s243, 1024
        %s245 = scalar_lea.vmem [#allocation6], %s244
        // Predicated region
        $region37: #{tpu_custom_call.1} parent=35 // pred_check
          %p246 = pneg %p115
        $region38: #{tpu_custom_call.1} parent=35 // pred_check_branch
          %248 = sbr.rel (%p246) target = $region40
        $region39: #{tpu_custom_call.1} parent=35 // pred_region
          %250 = dma.done %s242, 16384
        $region40: #{tpu_custom_call.1} parent=35 // pred_fallthru
          _
        %s251 = smul.u32 32, %s34
        %p252 = scmp.lt.s32.totalorder %s251, 255
        %s253 = scalar_select %p252, %s251, 255
        %s254 = smul.addr %s253, 8
        %s255 = scalar_lea.vmem %s1, %s254
        %p256 = pneg %p63
        %p257 = pneg %p60
        %s258 = smul.u32 2, %s34
        %p259 = scmp.lt.s32.totalorder %s258, 7
        %s260 = scalar_select %p259, %s258, 7
        %s261 = scalar_lea.vmem %s2, %s260
        %p262 = pneg %p89
        %p263 = pneg %p86
        %s264 = sand.u32 %s102, 1
        %s265 = scalar_lea.sflag [#allocation7], %s264
        %s266 = sand.u32 %s102, 1
        %s267 = smul.addr %s266, 1024
        %s268 = scalar_lea.vmem [#allocation6], %s267
        %p269 = pneg %p115
        %p270 = pneg %p112
        %s271 = smul.u32 128, %s35
        %p272 = scmp.lt.s32.totalorder %s271, 255
        %s273 = scalar_select %p272, %s271, 255
        %s274 = smul.addr %s273, 8
        %s275 = scalar_lea.vmem %s4, %s274
        %p276 = pneg %p141
        %p277 = pneg %p138
        %p278 = pneg %p167
        %p279 = pneg %p164
        %s280 = sand.u32 %s154, 1
        %s281 = scalar_lea.sflag [#allocation8], %s280
        %s282 = sand.u32 %s154, 1
        %s283 = smul.addr %s282, 2
        %s284 = scalar_lea.vmem [#allocation9], %s283
        %s285 = smul.u32 32, %s34
        %p286 = scmp.lt.s32.totalorder %s285, 255
        %s287 = scalar_select %p286, %s285, 255
        %s288 = smul.addr %s287, 8
        %s289 = scalar_lea.vmem %s1, %s288
        %s290 = smul.u32 32, %s34
        %s291 = smul.u32 2, %s34
        %p292 = scmp.lt.s32.totalorder %s291, 7
        %s293 = scalar_select %p292, %s291, 7
        %s294 = scalar_lea.vmem %s2, %s293
        %s295 = smul.u32 2, %s34
        %s296 = smul.u32 128, %s35
        %s297 = smul.u32 128, %s35
        %p298 = scmp.lt.s32.totalorder %s297, 255
        %s299 = scalar_select %p298, %s297, 255
        %s300 = smul.addr %s299, 8
        %s301 = scalar_lea.vmem %s4, %s300
        %s302 = smul.u32 128, %s35
        %s303 = sld [smem:[#allocation5]]
        %s304 = sld [smem:[#allocation5 + $0x1]]
        %p305 = scmp.eq.s32.totalorder %s35, 0
        // Predicated region
        $region41: #{tpu_custom_call.1} parent=35 // pred_check
          %p306 = pneg %p305
        $region42: #{tpu_custom_call.1} parent=35 // pred_check_branch
          %308 = sbr.rel (%p306) target = $region44
        $region43: #{tpu_custom_call.1} parent=35 // pred_region
          %v309 = vlaneseq
          %vm310 = vcmp.ge.s32.totalorder %v309, 0
          %vm311 = vcmp.lt.s32.totalorder %v309, 256
          %vm312 = vmand %vm310, %vm311
          %313 = vst.msk [vmem:[#allocation2] sm:$0x3] %vm312, -inf
          %314 = vst.msk [vmem:[#allocation3] sm:$0x3] %vm312, inf
        $region44: #{tpu_custom_call.1} parent=35 // pred_fallthru
          _
        %s315 = smul.u32 %s34, 256
        %s316 = smul.u32 %s35, 1024
        %p317 = scmp.lt.s32.totalorder %s315, %s303
        %v318 = vlaneseq
        %v319 = vshrl.u32 %v318, 7
        %v320 = vadd.s32 %v319, 8
        %v321 = vadd.s32 %v319, 16
        %v322 = vadd.s32 %v319, 24
        %v323 = vadd.s32 %v319, 32
        %v324 = vadd.s32 %v319, 40
        %v325 = vadd.s32 %v319, 48
        %v326 = vadd.s32 %v319, 56
        %v327 = vadd.s32 %v319, 64
        %v328 = vadd.s32 %v319, 72
        %v329 = vadd.s32 %v319, 80
        %v330 = vadd.s32 %v319, 88
        %v331 = vadd.s32 %v319, 96
        %v332 = vadd.s32 %v319, 104
        %v333 = vadd.s32 %v319, 112
        %v334 = vadd.s32 %v319, 120
        %v335 = vadd.s32 %v319, 128
        %v336 = vadd.s32 %v319, 136
        %v337 = vadd.s32 %v319, 144
        %v338 = vadd.s32 %v319, 152
        %v339 = vadd.s32 %v319, 160
        %v340 = vadd.s32 %v319, 168
        %v341 = vadd.s32 %v319, 176
        %v342 = vadd.s32 %v319, 184
        %v343 = vadd.s32 %v319, 192
        %v344 = vadd.s32 %v319, 200
        %v345 = vadd.s32 %v319, 208
        %v346 = vadd.s32 %v319, 216
        %v347 = vadd.s32 %v319, 224
        %v348 = vadd.s32 %v319, 232
        %v349 = vadd.s32 %v319, 240
        %v350 = vadd.s32 %v319, 248
        %v351 = vadd.s32 %v319, 256
        %v352 = vadd.s32 %v319, 264
        %v353 = vadd.s32 %v319, 272
        %v354 = vadd.s32 %v319, 280
        %v355 = vadd.s32 %v319, 288
        %v356 = vadd.s32 %v319, 296
        %v357 = vadd.s32 %v319, 304
        %v358 = vadd.s32 %v319, 312
        %v359 = vadd.s32 %v319, 320
        %v360 = vadd.s32 %v319, 328
        %v361 = vadd.s32 %v319, 336
        %v362 = vadd.s32 %v319, 344
        %v363 = vadd.s32 %v319, 352
        %v364 = vadd.s32 %v319, 360
        %v365 = vadd.s32 %v319, 368
        %v366 = vadd.s32 %v319, 376
        %v367 = vadd.s32 %v319, 384
        %v368 = vadd.s32 %v319, 392
        %v369 = vadd.s32 %v319, 400
        %v370 = vadd.s32 %v319, 408
        %v371 = vadd.s32 %v319, 416
        %v372 = vadd.s32 %v319, 424
        %v373 = vadd.s32 %v319, 432
        %v374 = vadd.s32 %v319, 440
        %v375 = vadd.s32 %v319, 448
        %v376 = vadd.s32 %v319, 456
        %v377 = vadd.s32 %v319, 464
        %v378 = vadd.s32 %v319, 472
        %v379 = vadd.s32 %v319, 480
        %v380 = vadd.s32 %v319, 488
        %v381 = vadd.s32 %v319, 496
        %v382 = vadd.s32 %v319, 504
        %v383 = vadd.s32 %v319, 512
        %v384 = vadd.s32 %v319, 520
        %v385 = vadd.s32 %v319, 528
        %v386 = vadd.s32 %v319, 536
        %v387 = vadd.s32 %v319, 544
        %v388 = vadd.s32 %v319, 552
        %v389 = vadd.s32 %v319, 560
        %v390 = vadd.s32 %v319, 568
        %v391 = vadd.s32 %v319, 576
        %v392 = vadd.s32 %v319, 584
        %v393 = vadd.s32 %v319, 592
        %v394 = vadd.s32 %v319, 600
        %v395 = vadd.s32 %v319, 608
        %v396 = vadd.s32 %v319, 616
        %v397 = vadd.s32 %v319, 624
        %v398 = vadd.s32 %v319, 632
        %v399 = vadd.s32 %v319, 640
        %v400 = vadd.s32 %v319, 648
        %v401 = vadd.s32 %v319, 656
        %v402 = vadd.s32 %v319, 664
        %v403 = vadd.s32 %v319, 672
        %v404 = vadd.s32 %v319, 680
        %v405 = vadd.s32 %v319, 688
        %v406 = vadd.s32 %v319, 696
        %v407 = vadd.s32 %v319, 704
        %v408 = vadd.s32 %v319, 712
        %v409 = vadd.s32 %v319, 720
        %v410 = vadd.s32 %v319, 728
        %v411 = vadd.s32 %v319, 736
        %v412 = vadd.s32 %v319, 744
        %v413 = vadd.s32 %v319, 752
        %v414 = vadd.s32 %v319, 760
        %v415 = vadd.s32 %v319, 768
        %v416 = vadd.s32 %v319, 776
        %v417 = vadd.s32 %v319, 784
        %v418 = vadd.s32 %v319, 792
        %v419 = vadd.s32 %v319, 800
        %v420 = vadd.s32 %v319, 808
        %v421 = vadd.s32 %v319, 816
        %v422 = vadd.s32 %v319, 824
        %v423 = vadd.s32 %v319, 832
        %v424 = vadd.s32 %v319, 840
        %v425 = vadd.s32 %v319, 848
        %v426 = vadd.s32 %v319, 856
        %v427 = vadd.s32 %v319, 864
        %v428 = vadd.s32 %v319, 872
        %v429 = vadd.s32 %v319, 880
        %v430 = vadd.s32 %v319, 888
        %v431 = vadd.s32 %v319, 896
        %v432 = vadd.s32 %v319, 904
        %v433 = vadd.s32 %v319, 912
        %v434 = vadd.s32 %v319, 920
        %v435 = vadd.s32 %v319, 928
        %v436 = vadd.s32 %v319, 936
        %v437 = vadd.s32 %v319, 944
        %v438 = vadd.s32 %v319, 952
        %v439 = vadd.s32 %v319, 960
        %v440 = vadd.s32 %v319, 968
        %v441 = vadd.s32 %v319, 976
        %v442 = vadd.s32 %v319, 984
        %v443 = vadd.s32 %v319, 992
        %v444 = vadd.s32 %v319, 1000
        %v445 = vadd.s32 %v319, 1008
        %v446 = vadd.s32 %v319, 1016
        %v447 = vstv %s316
        %v448 = vadd.s32 %v447, %v319
        %v449 = vadd.s32 %v447, %v320
        %v450 = vadd.s32 %v447, %v321
        %v451 = vadd.s32 %v447, %v322
        %v452 = vadd.s32 %v447, %v323
        %v453 = vadd.s32 %v447, %v324
        %v454 = vadd.s32 %v447, %v325
        %v455 = vadd.s32 %v447, %v326
        %v456 = vadd.s32 %v447, %v327
        %v457 = vadd.s32 %v447, %v328
        %v458 = vadd.s32 %v447, %v329
        %v459 = vadd.s32 %v447, %v330
        %v460 = vadd.s32 %v447, %v331
        %v461 = vadd.s32 %v447, %v332
        %v462 = vadd.s32 %v447, %v333
        %v463 = vadd.s32 %v447, %v334
        %v464 = vadd.s32 %v447, %v335
        %v465 = vadd.s32 %v447, %v336
        %v466 = vadd.s32 %v447, %v337
        %v467 = vadd.s32 %v447, %v338
        %v468 = vadd.s32 %v447, %v339
        %v469 = vadd.s32 %v447, %v340
        %v470 = vadd.s32 %v447, %v341
        %v471 = vadd.s32 %v447, %v342
        %v472 = vadd.s32 %v447, %v343
        %v473 = vadd.s32 %v447, %v344
        %v474 = vadd.s32 %v447, %v345
        %v475 = vadd.s32 %v447, %v346
        %v476 = vadd.s32 %v447, %v347
        %v477 = vadd.s32 %v447, %v348
        %v478 = vadd.s32 %v447, %v349
        %v479 = vadd.s32 %v447, %v350
        %v480 = vadd.s32 %v447, %v351
        %v481 = vadd.s32 %v447, %v352
        %v482 = vadd.s32 %v447, %v353
        %v483 = vadd.s32 %v447, %v354
        %v484 = vadd.s32 %v447, %v355
        %v485 = vadd.s32 %v447, %v356
        %v486 = vadd.s32 %v447, %v357
        %v487 = vadd.s32 %v447, %v358
        %v488 = vadd.s32 %v447, %v359
        %v489 = vadd.s32 %v447, %v360
        %v490 = vadd.s32 %v447, %v361
        %v491 = vadd.s32 %v447, %v362
        %v492 = vadd.s32 %v447, %v363
        %v493 = vadd.s32 %v447, %v364
        %v494 = vadd.s32 %v447, %v365
        %v495 = vadd.s32 %v447, %v366
        %v496 = vadd.s32 %v447, %v367
        %v497 = vadd.s32 %v447, %v368
        %v498 = vadd.s32 %v447, %v369
        %v499 = vadd.s32 %v447, %v370
        %v500 = vadd.s32 %v447, %v371
        %v501 = vadd.s32 %v447, %v372
        %v502 = vadd.s32 %v447, %v373
        %v503 = vadd.s32 %v447, %v374
        %v504 = vadd.s32 %v447, %v375
        %v505 = vadd.s32 %v447, %v376
        %v506 = vadd.s32 %v447, %v377
        %v507 = vadd.s32 %v447, %v378
        %v508 = vadd.s32 %v447, %v379
        %v509 = vadd.s32 %v447, %v380
        %v510 = vadd.s32 %v447, %v381
        %v511 = vadd.s32 %v447, %v382
        %v512 = vadd.s32 %v447, %v383
        %v513 = vadd.s32 %v447, %v384
        %v514 = vadd.s32 %v447, %v385
        %v515 = vadd.s32 %v447, %v386
        %v516 = vadd.s32 %v447, %v387
        %v517 = vadd.s32 %v447, %v388
        %v518 = vadd.s32 %v447, %v389
        %v519 = vadd.s32 %v447, %v390
        %v520 = vadd.s32 %v447, %v391
        %v521 = vadd.s32 %v447, %v392
        %v522 = vadd.s32 %v447, %v393
        %v523 = vadd.s32 %v447, %v394
        %v524 = vadd.s32 %v447, %v395
        %v525 = vadd.s32 %v447, %v396
        %v526 = vadd.s32 %v447, %v397
        %v527 = vadd.s32 %v447, %v398
        %v528 = vadd.s32 %v447, %v399
        %v529 = vadd.s32 %v447, %v400
        %v530 = vadd.s32 %v447, %v401
        %v531 = vadd.s32 %v447, %v402
        %v532 = vadd.s32 %v447, %v403
        %v533 = vadd.s32 %v447, %v404
        %v534 = vadd.s32 %v447, %v405
        %v535 = vadd.s32 %v447, %v406
        %v536 = vadd.s32 %v447, %v407
        %v537 = vadd.s32 %v447, %v408
        %v538 = vadd.s32 %v447, %v409
        %v539 = vadd.s32 %v447, %v410
        %v540 = vadd.s32 %v447, %v411
        %v541 = vadd.s32 %v447, %v412
        %v542 = vadd.s32 %v447, %v413
        %v543 = vadd.s32 %v447, %v414
        %v544 = vadd.s32 %v447, %v415
        %v545 = vadd.s32 %v447, %v416
        %v546 = vadd.s32 %v447, %v417
        %v547 = vadd.s32 %v447, %v418
        %v548 = vadd.s32 %v447, %v419
        %v549 = vadd.s32 %v447, %v420
        %v550 = vadd.s32 %v447, %v421
        %v551 = vadd.s32 %v447, %v422
        %v552 = vadd.s32 %v447, %v423
        %v553 = vadd.s32 %v447, %v424
        %v554 = vadd.s32 %v447, %v425
        %v555 = vadd.s32 %v447, %v426
        %v556 = vadd.s32 %v447, %v427
        %v557 = vadd.s32 %v447, %v428
        %v558 = vadd.s32 %v447, %v429
        %v559 = vadd.s32 %v447, %v430
        %v560 = vadd.s32 %v447, %v431
        %v561 = vadd.s32 %v447, %v432
        %v562 = vadd.s32 %v447, %v433
        %v563 = vadd.s32 %v447, %v434
        %v564 = vadd.s32 %v447, %v435
        %v565 = vadd.s32 %v447, %v436
        %v566 = vadd.s32 %v447, %v437
        %v567 = vadd.s32 %v447, %v438
        %v568 = vadd.s32 %v447, %v439
        %v569 = vadd.s32 %v447, %v440
        %v570 = vadd.s32 %v447, %v441
        %v571 = vadd.s32 %v447, %v442
        %v572 = vadd.s32 %v447, %v443
        %v573 = vadd.s32 %v447, %v444
        %v574 = vadd.s32 %v447, %v445
        %v575 = vadd.s32 %v447, %v446
        %p576 = scmp.lt.s32.totalorder %s316, %s303
        %p577 = pnand %p317, %p576
        %p578 = pneg %p577
        // Predicated region
        $region45: #{tpu_custom_call.1} parent=35 // pred_check
          _
        $region46: #{tpu_custom_call.1} parent=35 // pred_check_branch
          %580 = sbr.rel (%p577) target = $region48
        $region47: #{tpu_custom_call.1} parent=35 // pred_region
          %v581 = vstv %s303
          %vm582 = vcmp.lt.s32.totalorder %v448, %v581
          %vm583 = vcmp.lt.s32.totalorder %v449, %v581
          %vm584 = vcmp.lt.s32.totalorder %v450, %v581
          %vm585 = vcmp.lt.s32.totalorder %v451, %v581
          %vm586 = vcmp.lt.s32.totalorder %v452, %v581
          %vm587 = vcmp.lt.s32.totalorder %v453, %v581
          %vm588 = vcmp.lt.s32.totalorder %v454, %v581
          %vm589 = vcmp.lt.s32.totalorder %v455, %v581
          %vm590 = vcmp.lt.s32.totalorder %v456, %v581
          %vm591 = vcmp.lt.s32.totalorder %v457, %v581
          %vm592 = vcmp.lt.s32.totalorder %v458, %v581
          %vm593 = vcmp.lt.s32.totalorder %v459, %v581
          %vm594 = vcmp.lt.s32.totalorder %v460, %v581
          %vm595 = vcmp.lt.s32.totalorder %v461, %v581
          %vm596 = vcmp.lt.s32.totalorder %v462, %v581
          %vm597 = vcmp.lt.s32.totalorder %v463, %v581
          %vm598 = vcmp.lt.s32.totalorder %v464, %v581
          %vm599 = vcmp.lt.s32.totalorder %v465, %v581
          %vm600 = vcmp.lt.s32.totalorder %v466, %v581
          %vm601 = vcmp.lt.s32.totalorder %v467, %v581
          %vm602 = vcmp.lt.s32.totalorder %v468, %v581
          %vm603 = vcmp.lt.s32.totalorder %v469, %v581
          %vm604 = vcmp.lt.s32.totalorder %v470, %v581
          %vm605 = vcmp.lt.s32.totalorder %v471, %v581
          %vm606 = vcmp.lt.s32.totalorder %v472, %v581
          %vm607 = vcmp.lt.s32.totalorder %v473, %v581
          %vm608 = vcmp.lt.s32.totalorder %v474, %v581
          %vm609 = vcmp.lt.s32.totalorder %v475, %v581
          %vm610 = vcmp.lt.s32.totalorder %v476, %v581
          %vm611 = vcmp.lt.s32.totalorder %v477, %v581
          %vm612 = vcmp.lt.s32.totalorder %v478, %v581
          %vm613 = vcmp.lt.s32.totalorder %v479, %v581
          %vm614 = vcmp.lt.s32.totalorder %v480, %v581
          %vm615 = vcmp.lt.s32.totalorder %v481, %v581
          %vm616 = vcmp.lt.s32.totalorder %v482, %v581
          %vm617 = vcmp.lt.s32.totalorder %v483, %v581
          %vm618 = vcmp.lt.s32.totalorder %v484, %v581
          %vm619 = vcmp.lt.s32.totalorder %v485, %v581
          %vm620 = vcmp.lt.s32.totalorder %v486, %v581
          %vm621 = vcmp.lt.s32.totalorder %v487, %v581
          %vm622 = vcmp.lt.s32.totalorder %v488, %v581
          %vm623 = vcmp.lt.s32.totalorder %v489, %v581
          %vm624 = vcmp.lt.s32.totalorder %v490, %v581
          %vm625 = vcmp.lt.s32.totalorder %v491, %v581
          %vm626 = vcmp.lt.s32.totalorder %v492, %v581
          %vm627 = vcmp.lt.s32.totalorder %v493, %v581
          %vm628 = vcmp.lt.s32.totalorder %v494, %v581
          %vm629 = vcmp.lt.s32.totalorder %v495, %v581
          %vm630 = vcmp.lt.s32.totalorder %v496, %v581
          %vm631 = vcmp.lt.s32.totalorder %v497, %v581
          %vm632 = vcmp.lt.s32.totalorder %v498, %v581
          %vm633 = vcmp.lt.s32.totalorder %v499, %v581
          %vm634 = vcmp.lt.s32.totalorder %v500, %v581
          %vm635 = vcmp.lt.s32.totalorder %v501, %v581
          %vm636 = vcmp.lt.s32.totalorder %v502, %v581
          %vm637 = vcmp.lt.s32.totalorder %v503, %v581
          %vm638 = vcmp.lt.s32.totalorder %v504, %v581
          %vm639 = vcmp.lt.s32.totalorder %v505, %v581
          %vm640 = vcmp.lt.s32.totalorder %v506, %v581
          %vm641 = vcmp.lt.s32.totalorder %v507, %v581
          %vm642 = vcmp.lt.s32.totalorder %v508, %v581
          %vm643 = vcmp.lt.s32.totalorder %v509, %v581
          %vm644 = vcmp.lt.s32.totalorder %v510, %v581
          %vm645 = vcmp.lt.s32.totalorder %v511, %v581
          %vm646 = vcmp.lt.s32.totalorder %v512, %v581
          %vm647 = vcmp.lt.s32.totalorder %v513, %v581
          %vm648 = vcmp.lt.s32.totalorder %v514, %v581
          %vm649 = vcmp.lt.s32.totalorder %v515, %v581
          %vm650 = vcmp.lt.s32.totalorder %v516, %v581
          %vm651 = vcmp.lt.s32.totalorder %v517, %v581
          %vm652 = vcmp.lt.s32.totalorder %v518, %v581
          %vm653 = vcmp.lt.s32.totalorder %v519, %v581
          %vm654 = vcmp.lt.s32.totalorder %v520, %v581
          %vm655 = vcmp.lt.s32.totalorder %v521, %v581
          %vm656 = vcmp.lt.s32.totalorder %v522, %v581
          %vm657 = vcmp.lt.s32.totalorder %v523, %v581
          %vm658 = vcmp.lt.s32.totalorder %v524, %v581
          %vm659 = vcmp.lt.s32.totalorder %v525, %v581
          %vm660 = vcmp.lt.s32.totalorder %v526, %v581
          %vm661 = vcmp.lt.s32.totalorder %v527, %v581
          %vm662 = vcmp.lt.s32.totalorder %v528, %v581
          %vm663 = vcmp.lt.s32.totalorder %v529, %v581
          %vm664 = vcmp.lt.s32.totalorder %v530, %v581
          %vm665 = vcmp.lt.s32.totalorder %v531, %v581
          %vm666 = vcmp.lt.s32.totalorder %v532, %v581
          %vm667 = vcmp.lt.s32.totalorder %v533, %v581
          %vm668 = vcmp.lt.s32.totalorder %v534, %v581
          %vm669 = vcmp.lt.s32.totalorder %v535, %v581
          %vm670 = vcmp.lt.s32.totalorder %v536, %v581
          %vm671 = vcmp.lt.s32.totalorder %v537, %v581
          %vm672 = vcmp.lt.s32.totalorder %v538, %v581
          %vm673 = vcmp.lt.s32.totalorder %v539, %v581
          %vm674 = vcmp.lt.s32.totalorder %v540, %v581
          %vm675 = vcmp.lt.s32.totalorder %v541, %v581
          %vm676 = vcmp.lt.s32.totalorder %v542, %v581
          %vm677 = vcmp.lt.s32.totalorder %v543, %v581
          %vm678 = vcmp.lt.s32.totalorder %v544, %v581
          %vm679 = vcmp.lt.s32.totalorder %v545, %v581
          %vm680 = vcmp.lt.s32.totalorder %v546, %v581
          %vm681 = vcmp.lt.s32.totalorder %v547, %v581
          %vm682 = vcmp.lt.s32.totalorder %v548, %v581
          %vm683 = vcmp.lt.s32.totalorder %v549, %v581
          %vm684 = vcmp.lt.s32.totalorder %v550, %v581
          %vm685 = vcmp.lt.s32.totalorder %v551, %v581
          %vm686 = vcmp.lt.s32.totalorder %v552, %v581
          %vm687 = vcmp.lt.s32.totalorder %v553, %v581
          %vm688 = vcmp.lt.s32.totalorder %v554, %v581
          %vm689 = vcmp.lt.s32.totalorder %v555, %v581
          %vm690 = vcmp.lt.s32.totalorder %v556, %v581
          %vm691 = vcmp.lt.s32.totalorder %v557, %v581
          %vm692 = vcmp.lt.s32.totalorder %v558, %v581
          %vm693 = vcmp.lt.s32.totalorder %v559, %v581
          %vm694 = vcmp.lt.s32.totalorder %v560, %v581
          %vm695 = vcmp.lt.s32.totalorder %v561, %v581
          %vm696 = vcmp.lt.s32.totalorder %v562, %v581
          %vm697 = vcmp.lt.s32.totalorder %v563, %v581
          %vm698 = vcmp.lt.s32.totalorder %v564, %v581
          %vm699 = vcmp.lt.s32.totalorder %v565, %v581
          %vm700 = vcmp.lt.s32.totalorder %v566, %v581
          %vm701 = vcmp.lt.s32.totalorder %v567, %v581
          %vm702 = vcmp.lt.s32.totalorder %v568, %v581
          %vm703 = vcmp.lt.s32.totalorder %v569, %v581
          %vm704 = vcmp.lt.s32.totalorder %v570, %v581
          %vm705 = vcmp.lt.s32.totalorder %v571, %v581
          %vm706 = vcmp.lt.s32.totalorder %v572, %v581
          %vm707 = vcmp.lt.s32.totalorder %v573, %v581
          %vm708 = vcmp.lt.s32.totalorder %v574, %v581
          %vm709 = vcmp.lt.s32.totalorder %v575, %v581
          %v710 = vld [vmem:[%s289] sm:$0xff]
          %v711 = vld [vmem:[%s289 + $0x8] sm:$0xff]
          %v712 = vld [vmem:[%s289 + $0x10] sm:$0xff]
          %v713 = vld [vmem:[%s289 + $0x18] sm:$0xff]
          %v714 = vld [vmem:[%s289 + $0x20] sm:$0xff]
          %v715 = vld [vmem:[%s289 + $0x28] sm:$0xff]
          %v716 = vld [vmem:[%s289 + $0x30] sm:$0xff]
          %v717 = vld [vmem:[%s289 + $0x38] sm:$0xff]
          %v718 = vld [vmem:[%s289 + $0x40] sm:$0xff]
          %v719 = vld [vmem:[%s289 + $0x48] sm:$0xff]
          %v720 = vld [vmem:[%s289 + $0x50] sm:$0xff]
          %v721 = vld [vmem:[%s289 + $0x58] sm:$0xff]
          %v722 = vld [vmem:[%s289 + $0x60] sm:$0xff]
          %v723 = vld [vmem:[%s289 + $0x68] sm:$0xff]
          %v724 = vld [vmem:[%s289 + $0x70] sm:$0xff]
          %v725 = vld [vmem:[%s289 + $0x78] sm:$0xff]
          %v726 = vld [vmem:[%s289 + $0x80] sm:$0xff]
          %v727 = vld [vmem:[%s289 + $0x88] sm:$0xff]
          %v728 = vld [vmem:[%s289 + $0x90] sm:$0xff]
          %v729 = vld [vmem:[%s289 + $0x98] sm:$0xff]
          %v730 = vld [vmem:[%s289 + $0xa0] sm:$0xff]
          %v731 = vld [vmem:[%s289 + $0xa8] sm:$0xff]
          %v732 = vld [vmem:[%s289 + $0xb0] sm:$0xff]
          %v733 = vld [vmem:[%s289 + $0xb8] sm:$0xff]
          %v734 = vld [vmem:[%s289 + $0xc0] sm:$0xff]
          %v735 = vld [vmem:[%s289 + $0xc8] sm:$0xff]
          %v736 = vld [vmem:[%s289 + $0xd0] sm:$0xff]
          %v737 = vld [vmem:[%s289 + $0xd8] sm:$0xff]
          %v738 = vld [vmem:[%s289 + $0xe0] sm:$0xff]
          %v739 = vld [vmem:[%s289 + $0xe8] sm:$0xff]
          %v740 = vld [vmem:[%s289 + $0xf0] sm:$0xff]
          %v741 = vld [vmem:[%s289 + $0xf8] sm:$0xff]
          %v742 = vld [vmem:[%s245] sm:$0xff]
          %v743 = vld [vmem:[%s245 + $0x8] sm:$0xff]
          %v744 = vld [vmem:[%s245 + $0x10] sm:$0xff]
          %v745 = vld [vmem:[%s245 + $0x18] sm:$0xff]
          %v746 = vld [vmem:[%s245 + $0x20] sm:$0xff]
          %v747 = vld [vmem:[%s245 + $0x28] sm:$0xff]
          %v748 = vld [vmem:[%s245 + $0x30] sm:$0xff]
          %v749 = vld [vmem:[%s245 + $0x38] sm:$0xff]
          %v750 = vld [vmem:[%s245 + $0x40] sm:$0xff]
          %v751 = vld [vmem:[%s245 + $0x48] sm:$0xff]
          %v752 = vld [vmem:[%s245 + $0x50] sm:$0xff]
          %v753 = vld [vmem:[%s245 + $0x58] sm:$0xff]
          %v754 = vld [vmem:[%s245 + $0x60] sm:$0xff]
          %v755 = vld [vmem:[%s245 + $0x68] sm:$0xff]
          %v756 = vld [vmem:[%s245 + $0x70] sm:$0xff]
          %v757 = vld [vmem:[%s245 + $0x78] sm:$0xff]
          %v758 = vld [vmem:[%s245 + $0x80] sm:$0xff]
          %v759 = vld [vmem:[%s245 + $0x88] sm:$0xff]
          %v760 = vld [vmem:[%s245 + $0x90] sm:$0xff]
          %v761 = vld [vmem:[%s245 + $0x98] sm:$0xff]
          %v762 = vld [vmem:[%s245 + $0xa0] sm:$0xff]
          %v763 = vld [vmem:[%s245 + $0xa8] sm:$0xff]
          %v764 = vld [vmem:[%s245 + $0xb0] sm:$0xff]
          %v765 = vld [vmem:[%s245 + $0xb8] sm:$0xff]
          %v766 = vld [vmem:[%s245 + $0xc0] sm:$0xff]
          %v767 = vld [vmem:[%s245 + $0xc8] sm:$0xff]
          %v768 = vld [vmem:[%s245 + $0xd0] sm:$0xff]
          %v769 = vld [vmem:[%s245 + $0xd8] sm:$0xff]
          %v770 = vld [vmem:[%s245 + $0xe0] sm:$0xff]
          %v771 = vld [vmem:[%s245 + $0xe8] sm:$0xff]
          %v772 = vld [vmem:[%s245 + $0xf0] sm:$0xff]
          %v773 = vld [vmem:[%s245 + $0xf8] sm:$0xff]
          %v774 = vld [vmem:[%s245 + $0x100] sm:$0xff]
          %v775 = vld [vmem:[%s245 + $0x108] sm:$0xff]
          %v776 = vld [vmem:[%s245 + $0x110] sm:$0xff]
          %v777 = vld [vmem:[%s245 + $0x118] sm:$0xff]
          %v778 = vld [vmem:[%s245 + $0x120] sm:$0xff]
          %v779 = vld [vmem:[%s245 + $0x128] sm:$0xff]
          %v780 = vld [vmem:[%s245 + $0x130] sm:$0xff]
          %v781 = vld [vmem:[%s245 + $0x138] sm:$0xff]
          %v782 = vld [vmem:[%s245 + $0x140] sm:$0xff]
          %v783 = vld [vmem:[%s245 + $0x148] sm:$0xff]
          %v784 = vld [vmem:[%s245 + $0x150] sm:$0xff]
          %v785 = vld [vmem:[%s245 + $0x158] sm:$0xff]
          %v786 = vld [vmem:[%s245 + $0x160] sm:$0xff]
          %v787 = vld [vmem:[%s245 + $0x168] sm:$0xff]
          %v788 = vld [vmem:[%s245 + $0x170] sm:$0xff]
          %v789 = vld [vmem:[%s245 + $0x178] sm:$0xff]
          %v790 = vld [vmem:[%s245 + $0x180] sm:$0xff]
          %v791 = vld [vmem:[%s245 + $0x188] sm:$0xff]
          %v792 = vld [vmem:[%s245 + $0x190] sm:$0xff]
          %v793 = vld [vmem:[%s245 + $0x198] sm:$0xff]
          %v794 = vld [vmem:[%s245 + $0x1a0] sm:$0xff]
          %v795 = vld [vmem:[%s245 + $0x1a8] sm:$0xff]
          %v796 = vld [vmem:[%s245 + $0x1b0] sm:$0xff]
          %v797 = vld [vmem:[%s245 + $0x1b8] sm:$0xff]
          %v798 = vld [vmem:[%s245 + $0x1c0] sm:$0xff]
          %v799 = vld [vmem:[%s245 + $0x1c8] sm:$0xff]
          %v800 = vld [vmem:[%s245 + $0x1d0] sm:$0xff]
          %v801 = vld [vmem:[%s245 + $0x1d8] sm:$0xff]
          %v802 = vld [vmem:[%s245 + $0x1e0] sm:$0xff]
          %v803 = vld [vmem:[%s245 + $0x1e8] sm:$0xff]
          %v804 = vld [vmem:[%s245 + $0x1f0] sm:$0xff]
          %v805 = vld [vmem:[%s245 + $0x1f8] sm:$0xff]
          %v806 = vld [vmem:[%s245 + $0x200] sm:$0xff]
          %v807 = vld [vmem:[%s245 + $0x208] sm:$0xff]
          %v808 = vld [vmem:[%s245 + $0x210] sm:$0xff]
          %v809 = vld [vmem:[%s245 + $0x218] sm:$0xff]
          %v810 = vld [vmem:[%s245 + $0x220] sm:$0xff]
          %v811 = vld [vmem:[%s245 + $0x228] sm:$0xff]
          %v812 = vld [vmem:[%s245 + $0x230] sm:$0xff]
          %v813 = vld [vmem:[%s245 + $0x238] sm:$0xff]
          %v814 = vld [vmem:[%s245 + $0x240] sm:$0xff]
          %v815 = vld [vmem:[%s245 + $0x248] sm:$0xff]
          %v816 = vld [vmem:[%s245 + $0x250] sm:$0xff]
          %v817 = vld [vmem:[%s245 + $0x258] sm:$0xff]
          %v818 = vld [vmem:[%s245 + $0x260] sm:$0xff]
          %v819 = vld [vmem:[%s245 + $0x268] sm:$0xff]
          %v820 = vld [vmem:[%s245 + $0x270] sm:$0xff]
          %v821 = vld [vmem:[%s245 + $0x278] sm:$0xff]
          %v822 = vld [vmem:[%s245 + $0x280] sm:$0xff]
          %v823 = vld [vmem:[%s245 + $0x288] sm:$0xff]
          %v824 = vld [vmem:[%s245 + $0x290] sm:$0xff]
          %v825 = vld [vmem:[%s245 + $0x298] sm:$0xff]
          %v826 = vld [vmem:[%s245 + $0x2a0] sm:$0xff]
          %v827 = vld [vmem:[%s245 + $0x2a8] sm:$0xff]
          %v828 = vld [vmem:[%s245 + $0x2b0] sm:$0xff]
          %v829 = vld [vmem:[%s245 + $0x2b8] sm:$0xff]
          %v830 = vld [vmem:[%s245 + $0x2c0] sm:$0xff]
          %v831 = vld [vmem:[%s245 + $0x2c8] sm:$0xff]
          %v832 = vld [vmem:[%s245 + $0x2d0] sm:$0xff]
          %v833 = vld [vmem:[%s245 + $0x2d8] sm:$0xff]
          %v834 = vld [vmem:[%s245 + $0x2e0] sm:$0xff]
          %v835 = vld [vmem:[%s245 + $0x2e8] sm:$0xff]
          %v836 = vld [vmem:[%s245 + $0x2f0] sm:$0xff]
          %v837 = vld [vmem:[%s245 + $0x2f8] sm:$0xff]
          %v838 = vld [vmem:[%s245 + $0x300] sm:$0xff]
          %v839 = vld [vmem:[%s245 + $0x308] sm:$0xff]
          %v840 = vld [vmem:[%s245 + $0x310] sm:$0xff]
          %v841 = vld [vmem:[%s245 + $0x318] sm:$0xff]
          %v842 = vld [vmem:[%s245 + $0x320] sm:$0xff]
          %v843 = vld [vmem:[%s245 + $0x328] sm:$0xff]
          %v844 = vld [vmem:[%s245 + $0x330] sm:$0xff]
          %v845 = vld [vmem:[%s245 + $0x338] sm:$0xff]
          %v846 = vld [vmem:[%s245 + $0x340] sm:$0xff]
          %v847 = vld [vmem:[%s245 + $0x348] sm:$0xff]
          %v848 = vld [vmem:[%s245 + $0x350] sm:$0xff]
          %v849 = vld [vmem:[%s245 + $0x358] sm:$0xff]
          %v850 = vld [vmem:[%s245 + $0x360] sm:$0xff]
          %v851 = vld [vmem:[%s245 + $0x368] sm:$0xff]
          %v852 = vld [vmem:[%s245 + $0x370] sm:$0xff]
          %v853 = vld [vmem:[%s245 + $0x378] sm:$0xff]
          %v854 = vld [vmem:[%s245 + $0x380] sm:$0xff]
          %v855 = vld [vmem:[%s245 + $0x388] sm:$0xff]
          %v856 = vld [vmem:[%s245 + $0x390] sm:$0xff]
          %v857 = vld [vmem:[%s245 + $0x398] sm:$0xff]
          %v858 = vld [vmem:[%s245 + $0x3a0] sm:$0xff]
          %v859 = vld [vmem:[%s245 + $0x3a8] sm:$0xff]
          %v860 = vld [vmem:[%s245 + $0x3b0] sm:$0xff]
          %v861 = vld [vmem:[%s245 + $0x3b8] sm:$0xff]
          %v862 = vld [vmem:[%s245 + $0x3c0] sm:$0xff]
          %v863 = vld [vmem:[%s245 + $0x3c8] sm:$0xff]
          %v864 = vld [vmem:[%s245 + $0x3d0] sm:$0xff]
          %v865 = vld [vmem:[%s245 + $0x3d8] sm:$0xff]
          %v866 = vld [vmem:[%s245 + $0x3e0] sm:$0xff]
          %v867 = vld [vmem:[%s245 + $0x3e8] sm:$0xff]
          %v868 = vld [vmem:[%s245 + $0x3f0] sm:$0xff]
          %v869 = vld [vmem:[%s245 + $0x3f8] sm:$0xff]
          %870 = vmatpush.xpose.msra.mxu0 %v725
          %871 = vmatpush.xpose.msra.mxu0 %v724
          %872 = vmatpush.xpose.msra.mxu0 %v723
          %873 = vmatpush.xpose.msra.mxu0 %v722
          %874 = vmatpush.xpose.msra.mxu0 %v721
          %875 = vmatpush.xpose.msra.mxu0 %v720
          %876 = vmatpush.xpose.msra.mxu0 %v719
          %877 = vmatpush.xpose.msra.mxu0 %v718
          %878 = vmatpush.xpose.msra.mxu0 %v717
          %879 = vmatpush.xpose.msra.mxu0 %v716
          %880 = vmatpush.xpose.msra.mxu0 %v715
          %881 = vmatpush.xpose.msra.mxu0 %v714
          %882 = vmatpush.xpose.msra.mxu0 %v713
          %883 = vmatpush.xpose.msra.mxu0 %v712
          %884 = vmatpush.xpose.msra.mxu0 %v711
          %885 = vmatpush.xpose.msra.mxu0 %v710
          %886 = vmatmul.f32.gmra.mxu0 %v742
          %v887 = vpop.f32.mrf.mxu0
          %v888 = vadd.f32 0.0, %v887
          %889 = vmatmul.f32.gmra.mxu0 %v743
          %v890 = vpop.f32.mrf.mxu0
          %v891 = vadd.f32 0.0, %v890
          %892 = vmatmul.f32.gmra.mxu0 %v744
          %v893 = vpop.f32.mrf.mxu0
          %v894 = vadd.f32 0.0, %v893
          %895 = vmatmul.f32.gmra.mxu0 %v745
          %v896 = vpop.f32.mrf.mxu0
          %v897 = vadd.f32 0.0, %v896
          %898 = vmatmul.f32.gmra.mxu0 %v746
          %v899 = vpop.f32.mrf.mxu0
          %v900 = vadd.f32 0.0, %v899
          %901 = vmatmul.f32.gmra.mxu0 %v747
          %v902 = vpop.f32.mrf.mxu0
          %v903 = vadd.f32 0.0, %v902
          %904 = vmatmul.f32.gmra.mxu0 %v748
          %v905 = vpop.f32.mrf.mxu0
          %v906 = vadd.f32 0.0, %v905
          %907 = vmatmul.f32.gmra.mxu0 %v749
          %v908 = vpop.f32.mrf.mxu0
          %v909 = vadd.f32 0.0, %v908
          %910 = vmatmul.f32.gmra.mxu0 %v750
          %v911 = vpop.f32.mrf.mxu0
          %v912 = vadd.f32 0.0, %v911
          %913 = vmatmul.f32.gmra.mxu0 %v751
          %v914 = vpop.f32.mrf.mxu0
          %v915 = vadd.f32 0.0, %v914
          %916 = vmatmul.f32.gmra.mxu0 %v752
          %v917 = vpop.f32.mrf.mxu0
          %v918 = vadd.f32 0.0, %v917
          %919 = vmatmul.f32.gmra.mxu0 %v753
          %v920 = vpop.f32.mrf.mxu0
          %v921 = vadd.f32 0.0, %v920
          %922 = vmatmul.f32.gmra.mxu0 %v754
          %v923 = vpop.f32.mrf.mxu0
          %v924 = vadd.f32 0.0, %v923
          %925 = vmatmul.f32.gmra.mxu0 %v755
          %v926 = vpop.f32.mrf.mxu0
          %v927 = vadd.f32 0.0, %v926
          %928 = vmatmul.f32.gmra.mxu0 %v756
          %v929 = vpop.f32.mrf.mxu0
          %v930 = vadd.f32 0.0, %v929
          %931 = vmatmul.f32.gmra.mxu0 %v757
          %v932 = vpop.f32.mrf.mxu0
          %v933 = vadd.f32 0.0, %v932
          %934 = vmatmul.f32.gmra.mxu0 %v758
          %v935 = vpop.f32.mrf.mxu0
          %v936 = vadd.f32 0.0, %v935
          %937 = vmatmul.f32.gmra.mxu0 %v759
          %v938 = vpop.f32.mrf.mxu0
          %v939 = vadd.f32 0.0, %v938
          %940 = vmatmul.f32.gmra.mxu0 %v760
          %v941 = vpop.f32.mrf.mxu0
          %v942 = vadd.f32 0.0, %v941
          %943 = vmatmul.f32.gmra.mxu0 %v761
          %v944 = vpop.f32.mrf.mxu0
          %v945 = vadd.f32 0.0, %v944
          %946 = vmatmul.f32.gmra.mxu0 %v762
          %v947 = vpop.f32.mrf.mxu0
          %v948 = vadd.f32 0.0, %v947
          %949 = vmatmul.f32.gmra.mxu0 %v763
          %v950 = vpop.f32.mrf.mxu0
          %v951 = vadd.f32 0.0, %v950
          %952 = vmatmul.f32.gmra.mxu0 %v764
          %v953 = vpop.f32.mrf.mxu0
          %v954 = vadd.f32 0.0, %v953
          %955 = vmatmul.f32.gmra.mxu0 %v765
          %v956 = vpop.f32.mrf.mxu0
          %v957 = vadd.f32 0.0, %v956
          %958 = vmatmul.f32.gmra.mxu0 %v766
          %v959 = vpop.f32.mrf.mxu0
          %v960 = vadd.f32 0.0, %v959
          %961 = vmatmul.f32.gmra.mxu0 %v767
          %v962 = vpop.f32.mrf.mxu0
          %v963 = vadd.f32 0.0, %v962
          %964 = vmatmul.f32.gmra.mxu0 %v768
          %v965 = vpop.f32.mrf.mxu0
          %v966 = vadd.f32 0.0, %v965
          %967 = vmatmul.f32.gmra.mxu0 %v769
          %v968 = vpop.f32.mrf.mxu0
          %v969 = vadd.f32 0.0, %v968
          %970 = vmatmul.f32.gmra.mxu0 %v770
          %v971 = vpop.f32.mrf.mxu0
          %v972 = vadd.f32 0.0, %v971
          %973 = vmatmul.f32.gmra.mxu0 %v771
          %v974 = vpop.f32.mrf.mxu0
          %v975 = vadd.f32 0.0, %v974
          %976 = vmatmul.f32.gmra.mxu0 %v772
          %v977 = vpop.f32.mrf.mxu0
          %v978 = vadd.f32 0.0, %v977
          %979 = vmatmul.f32.gmra.mxu0 %v773
          %v980 = vpop.f32.mrf.mxu0
          %v981 = vadd.f32 0.0, %v980
          %982 = vmatmul.f32.gmra.mxu0 %v774
          %v983 = vpop.f32.mrf.mxu0
          %v984 = vadd.f32 0.0, %v983
          %985 = vmatmul.f32.gmra.mxu0 %v775
          %v986 = vpop.f32.mrf.mxu0
          %v987 = vadd.f32 0.0, %v986
          %988 = vmatmul.f32.gmra.mxu0 %v776
          %v989 = vpop.f32.mrf.mxu0
          %v990 = vadd.f32 0.0, %v989
          %991 = vmatmul.f32.gmra.mxu0 %v777
          %v992 = vpop.f32.mrf.mxu0
          %v993 = vadd.f32 0.0, %v992
          %994 = vmatmul.f32.gmra.mxu0 %v778
          %v995 = vpop.f32.mrf.mxu0
          %v996 = vadd.f32 0.0, %v995
          %997 = vmatmul.f32.gmra.mxu0 %v779
          %v998 = vpop.f32.mrf.mxu0
          %v999 = vadd.f32 0.0, %v998
          %1000 = vmatmul.f32.gmra.mxu0 %v780
          %v1001 = vpop.f32.mrf.mxu0
          %v1002 = vadd.f32 0.0, %v1001
          %1003 = vmatmul.f32.gmra.mxu0 %v781
          %v1004 = vpop.f32.mrf.mxu0
          %v1005 = vadd.f32 0.0, %v1004
          %1006 = vmatmul.f32.gmra.mxu0 %v782
          %v1007 = vpop.f32.mrf.mxu0
          %v1008 = vadd.f32 0.0, %v1007
          %1009 = vmatmul.f32.gmra.mxu0 %v783
          %v1010 = vpop.f32.mrf.mxu0
          %v1011 = vadd.f32 0.0, %v1010
          %1012 = vmatmul.f32.gmra.mxu0 %v784
          %v1013 = vpop.f32.mrf.mxu0
          %v1014 = vadd.f32 0.0, %v1013
          %1015 = vmatmul.f32.gmra.mxu0 %v785
          %v1016 = vpop.f32.mrf.mxu0
          %v1017 = vadd.f32 0.0, %v1016
          %1018 = vmatmul.f32.gmra.mxu0 %v786
          %v1019 = vpop.f32.mrf.mxu0
          %v1020 = vadd.f32 0.0, %v1019
          %1021 = vmatmul.f32.gmra.mxu0 %v787
          %v1022 = vpop.f32.mrf.mxu0
          %v1023 = vadd.f32 0.0, %v1022
          %1024 = vmatmul.f32.gmra.mxu0 %v788
          %v1025 = vpop.f32.mrf.mxu0
          %v1026 = vadd.f32 0.0, %v1025
          %1027 = vmatmul.f32.gmra.mxu0 %v789
          %v1028 = vpop.f32.mrf.mxu0
          %v1029 = vadd.f32 0.0, %v1028
          %1030 = vmatmul.f32.gmra.mxu0 %v790
          %v1031 = vpop.f32.mrf.mxu0
          %v1032 = vadd.f32 0.0, %v1031
          %1033 = vmatmul.f32.gmra.mxu0 %v791
          %v1034 = vpop.f32.mrf.mxu0
          %v1035 = vadd.f32 0.0, %v1034
          %1036 = vmatmul.f32.gmra.mxu0 %v792
          %v1037 = vpop.f32.mrf.mxu0
          %v1038 = vadd.f32 0.0, %v1037
          %1039 = vmatmul.f32.gmra.mxu0 %v793
          %v1040 = vpop.f32.mrf.mxu0
          %v1041 = vadd.f32 0.0, %v1040
          %1042 = vmatmul.f32.gmra.mxu0 %v794
          %v1043 = vpop.f32.mrf.mxu0
          %v1044 = vadd.f32 0.0, %v1043
          %1045 = vmatmul.f32.gmra.mxu0 %v795
          %v1046 = vpop.f32.mrf.mxu0
          %v1047 = vadd.f32 0.0, %v1046
          %1048 = vmatmul.f32.gmra.mxu0 %v796
          %v1049 = vpop.f32.mrf.mxu0
          %v1050 = vadd.f32 0.0, %v1049
          %1051 = vmatmul.f32.gmra.mxu0 %v797
          %v1052 = vpop.f32.mrf.mxu0
          %v1053 = vadd.f32 0.0, %v1052
          %1054 = vmatmul.f32.gmra.mxu0 %v798
          %v1055 = vpop.f32.mrf.mxu0
          %v1056 = vadd.f32 0.0, %v1055
          %1057 = vmatmul.f32.gmra.mxu0 %v799
          %v1058 = vpop.f32.mrf.mxu0
          %v1059 = vadd.f32 0.0, %v1058
          %1060 = vmatmul.f32.gmra.mxu0 %v800
          %v1061 = vpop.f32.mrf.mxu0
          %v1062 = vadd.f32 0.0, %v1061
          %1063 = vmatmul.f32.gmra.mxu0 %v801
          %v1064 = vpop.f32.mrf.mxu0
          %v1065 = vadd.f32 0.0, %v1064
          %1066 = vmatmul.f32.gmra.mxu0 %v802
          %v1067 = vpop.f32.mrf.mxu0
          %v1068 = vadd.f32 0.0, %v1067
          %1069 = vmatmul.f32.gmra.mxu0 %v803
          %v1070 = vpop.f32.mrf.mxu0
          %v1071 = vadd.f32 0.0, %v1070
          %1072 = vmatmul.f32.gmra.mxu0 %v804
          %v1073 = vpop.f32.mrf.mxu0
          %v1074 = vadd.f32 0.0, %v1073
          %1075 = vmatmul.f32.gmra.mxu0 %v805
          %v1076 = vpop.f32.mrf.mxu0
          %v1077 = vadd.f32 0.0, %v1076
          %1078 = vmatmul.f32.gmra.mxu0 %v806
          %v1079 = vpop.f32.mrf.mxu0
          %v1080 = vadd.f32 0.0, %v1079
          %1081 = vmatmul.f32.gmra.mxu0 %v807
          %v1082 = vpop.f32.mrf.mxu0
          %v1083 = vadd.f32 0.0, %v1082
          %1084 = vmatmul.f32.gmra.mxu0 %v808
          %v1085 = vpop.f32.mrf.mxu0
          %v1086 = vadd.f32 0.0, %v1085
          %1087 = vmatmul.f32.gmra.mxu0 %v809
          %v1088 = vpop.f32.mrf.mxu0
          %v1089 = vadd.f32 0.0, %v1088
          %1090 = vmatmul.f32.gmra.mxu0 %v810
          %v1091 = vpop.f32.mrf.mxu0
          %v1092 = vadd.f32 0.0, %v1091
          %1093 = vmatmul.f32.gmra.mxu0 %v811
          %v1094 = vpop.f32.mrf.mxu0
          %v1095 = vadd.f32 0.0, %v1094
          %1096 = vmatmul.f32.gmra.mxu0 %v812
          %v1097 = vpop.f32.mrf.mxu0
          %v1098 = vadd.f32 0.0, %v1097
          %1099 = vmatmul.f32.gmra.mxu0 %v813
          %v1100 = vpop.f32.mrf.mxu0
          %v1101 = vadd.f32 0.0, %v1100
          %1102 = vmatmul.f32.gmra.mxu0 %v814
          %v1103 = vpop.f32.mrf.mxu0
          %v1104 = vadd.f32 0.0, %v1103
          %1105 = vmatmul.f32.gmra.mxu0 %v815
          %v1106 = vpop.f32.mrf.mxu0
          %v1107 = vadd.f32 0.0, %v1106
          %1108 = vmatmul.f32.gmra.mxu0 %v816
          %v1109 = vpop.f32.mrf.mxu0
          %v1110 = vadd.f32 0.0, %v1109
          %1111 = vmatmul.f32.gmra.mxu0 %v817
          %v1112 = vpop.f32.mrf.mxu0
          %v1113 = vadd.f32 0.0, %v1112
          %1114 = vmatmul.f32.gmra.mxu0 %v818
          %v1115 = vpop.f32.mrf.mxu0
          %v1116 = vadd.f32 0.0, %v1115
          %1117 = vmatmul.f32.gmra.mxu0 %v819
          %v1118 = vpop.f32.mrf.mxu0
          %v1119 = vadd.f32 0.0, %v1118
          %1120 = vmatmul.f32.gmra.mxu0 %v820
          %v1121 = vpop.f32.mrf.mxu0
          %v1122 = vadd.f32 0.0, %v1121
          %1123 = vmatmul.f32.gmra.mxu0 %v821
          %v1124 = vpop.f32.mrf.mxu0
          %v1125 = vadd.f32 0.0, %v1124
          %1126 = vmatmul.f32.gmra.mxu0 %v822
          %v1127 = vpop.f32.mrf.mxu0
          %v1128 = vadd.f32 0.0, %v1127
          %1129 = vmatmul.f32.gmra.mxu0 %v823
          %v1130 = vpop.f32.mrf.mxu0
          %v1131 = vadd.f32 0.0, %v1130
          %1132 = vmatmul.f32.gmra.mxu0 %v824
          %v1133 = vpop.f32.mrf.mxu0
          %v1134 = vadd.f32 0.0, %v1133
          %1135 = vmatmul.f32.gmra.mxu0 %v825
          %v1136 = vpop.f32.mrf.mxu0
          %v1137 = vadd.f32 0.0, %v1136
          %1138 = vmatmul.f32.gmra.mxu0 %v826
          %v1139 = vpop.f32.mrf.mxu0
          %v1140 = vadd.f32 0.0, %v1139
          %1141 = vmatmul.f32.gmra.mxu0 %v827
          %v1142 = vpop.f32.mrf.mxu0
          %v1143 = vadd.f32 0.0, %v1142
          %1144 = vmatmul.f32.gmra.mxu0 %v828
          %v1145 = vpop.f32.mrf.mxu0
          %v1146 = vadd.f32 0.0, %v1145
          %1147 = vmatmul.f32.gmra.mxu0 %v829
          %v1148 = vpop.f32.mrf.mxu0
          %v1149 = vadd.f32 0.0, %v1148
          %1150 = vmatmul.f32.gmra.mxu0 %v830
          %v1151 = vpop.f32.mrf.mxu0
          %v1152 = vadd.f32 0.0, %v1151
          %1153 = vmatmul.f32.gmra.mxu0 %v831
          %v1154 = vpop.f32.mrf.mxu0
          %v1155 = vadd.f32 0.0, %v1154
          %1156 = vmatmul.f32.gmra.mxu0 %v832
          %v1157 = vpop.f32.mrf.mxu0
          %v1158 = vadd.f32 0.0, %v1157
          %1159 = vmatmul.f32.gmra.mxu0 %v833
          %v1160 = vpop.f32.mrf.mxu0
          %v1161 = vadd.f32 0.0, %v1160
          %1162 = vmatmul.f32.gmra.mxu0 %v834
          %v1163 = vpop.f32.mrf.mxu0
          %v1164 = vadd.f32 0.0, %v1163
          %1165 = vmatmul.f32.gmra.mxu0 %v835
          %v1166 = vpop.f32.mrf.mxu0
          %v1167 = vadd.f32 0.0, %v1166
          %1168 = vmatmul.f32.gmra.mxu0 %v836
          %v1169 = vpop.f32.mrf.mxu0
          %v1170 = vadd.f32 0.0, %v1169
          %1171 = vmatmul.f32.gmra.mxu0 %v837
          %v1172 = vpop.f32.mrf.mxu0
          %v1173 = vadd.f32 0.0, %v1172
          %1174 = vmatmul.f32.gmra.mxu0 %v838
          %v1175 = vpop.f32.mrf.mxu0
          %v1176 = vadd.f32 0.0, %v1175
          %1177 = vmatmul.f32.gmra.mxu0 %v839
          %v1178 = vpop.f32.mrf.mxu0
          %v1179 = vadd.f32 0.0, %v1178
          %1180 = vmatmul.f32.gmra.mxu0 %v840
          %v1181 = vpop.f32.mrf.mxu0
          %v1182 = vadd.f32 0.0, %v1181
          %1183 = vmatmul.f32.gmra.mxu0 %v841
          %v1184 = vpop.f32.mrf.mxu0
          %v1185 = vadd.f32 0.0, %v1184
          %1186 = vmatmul.f32.gmra.mxu0 %v842
          %v1187 = vpop.f32.mrf.mxu0
          %v1188 = vadd.f32 0.0, %v1187
          %1189 = vmatmul.f32.gmra.mxu0 %v843
          %v1190 = vpop.f32.mrf.mxu0
          %v1191 = vadd.f32 0.0, %v1190
          %1192 = vmatmul.f32.gmra.mxu0 %v844
          %v1193 = vpop.f32.mrf.mxu0
          %v1194 = vadd.f32 0.0, %v1193
          %1195 = vmatmul.f32.gmra.mxu0 %v845
          %v1196 = vpop.f32.mrf.mxu0
          %v1197 = vadd.f32 0.0, %v1196
          %1198 = vmatmul.f32.gmra.mxu0 %v846
          %v1199 = vpop.f32.mrf.mxu0
          %v1200 = vadd.f32 0.0, %v1199
          %1201 = vmatmul.f32.gmra.mxu0 %v847
          %v1202 = vpop.f32.mrf.mxu0
          %v1203 = vadd.f32 0.0, %v1202
          %1204 = vmatmul.f32.gmra.mxu0 %v848
          %v1205 = vpop.f32.mrf.mxu0
          %v1206 = vadd.f32 0.0, %v1205
          %1207 = vmatmul.f32.gmra.mxu0 %v849
          %v1208 = vpop.f32.mrf.mxu0
          %v1209 = vadd.f32 0.0, %v1208
          %1210 = vmatmul.f32.gmra.mxu0 %v850
          %v1211 = vpop.f32.mrf.mxu0
          %v1212 = vadd.f32 0.0, %v1211
          %1213 = vmatmul.f32.gmra.mxu0 %v851
          %v1214 = vpop.f32.mrf.mxu0
          %v1215 = vadd.f32 0.0, %v1214
          %1216 = vmatmul.f32.gmra.mxu0 %v852
          %v1217 = vpop.f32.mrf.mxu0
          %v1218 = vadd.f32 0.0, %v1217
          %1219 = vmatmul.f32.gmra.mxu0 %v853
          %v1220 = vpop.f32.mrf.mxu0
          %v1221 = vadd.f32 0.0, %v1220
          %1222 = vmatmul.f32.gmra.mxu0 %v854
          %v1223 = vpop.f32.mrf.mxu0
          %v1224 = vadd.f32 0.0, %v1223
          %1225 = vmatmul.f32.gmra.mxu0 %v855
          %v1226 = vpop.f32.mrf.mxu0
          %v1227 = vadd.f32 0.0, %v1226
          %1228 = vmatmul.f32.gmra.mxu0 %v856
          %v1229 = vpop.f32.mrf.mxu0
          %v1230 = vadd.f32 0.0, %v1229
          %1231 = vmatmul.f32.gmra.mxu0 %v857
          %v1232 = vpop.f32.mrf.mxu0
          %v1233 = vadd.f32 0.0, %v1232
          %1234 = vmatmul.f32.gmra.mxu0 %v858
          %v1235 = vpop.f32.mrf.mxu0
          %v1236 = vadd.f32 0.0, %v1235
          %1237 = vmatmul.f32.gmra.mxu0 %v859
          %v1238 = vpop.f32.mrf.mxu0
          %v1239 = vadd.f32 0.0, %v1238
          %1240 = vmatmul.f32.gmra.mxu0 %v860
          %v1241 = vpop.f32.mrf.mxu0
          %v1242 = vadd.f32 0.0, %v1241
          %1243 = vmatmul.f32.gmra.mxu0 %v861
          %v1244 = vpop.f32.mrf.mxu0
          %v1245 = vadd.f32 0.0, %v1244
          %1246 = vmatmul.f32.gmra.mxu0 %v862
          %v1247 = vpop.f32.mrf.mxu0
          %v1248 = vadd.f32 0.0, %v1247
          %1249 = vmatmul.f32.gmra.mxu0 %v863
          %v1250 = vpop.f32.mrf.mxu0
          %v1251 = vadd.f32 0.0, %v1250
          %1252 = vmatmul.f32.gmra.mxu0 %v864
          %v1253 = vpop.f32.mrf.mxu0
          %v1254 = vadd.f32 0.0, %v1253
          %1255 = vmatmul.f32.gmra.mxu0 %v865
          %v1256 = vpop.f32.mrf.mxu0
          %v1257 = vadd.f32 0.0, %v1256
          %1258 = vmatmul.f32.gmra.mxu0 %v866
          %v1259 = vpop.f32.mrf.mxu0
          %v1260 = vadd.f32 0.0, %v1259
          %1261 = vmatmul.f32.gmra.mxu0 %v867
          %v1262 = vpop.f32.mrf.mxu0
          %v1263 = vadd.f32 0.0, %v1262
          %1264 = vmatmul.f32.gmra.mxu0 %v868
          %v1265 = vpop.f32.mrf.mxu0
          %v1266 = vadd.f32 0.0, %v1265
          %1267 = vmatmul.f32.gmra.mxu0 %v869
          %v1268 = vpop.f32.mrf.mxu0
          %v1269 = vadd.f32 0.0, %v1268
          %1270 = vdwg.mxu0
          %1271 = vmatpush.xpose.msra.mxu0 %v741
          %1272 = vmatpush.xpose.msra.mxu0 %v740
          %1273 = vmatpush.xpose.msra.mxu0 %v739
          %1274 = vmatpush.xpose.msra.mxu0 %v738
          %1275 = vmatpush.xpose.msra.mxu0 %v737
          %1276 = vmatpush.xpose.msra.mxu0 %v736
          %1277 = vmatpush.xpose.msra.mxu0 %v735
          %1278 = vmatpush.xpose.msra.mxu0 %v734
          %1279 = vmatpush.xpose.msra.mxu0 %v733
          %1280 = vmatpush.xpose.msra.mxu0 %v732
          %1281 = vmatpush.xpose.msra.mxu0 %v731
          %1282 = vmatpush.xpose.msra.mxu0 %v730
          %1283 = vmatpush.xpose.msra.mxu0 %v729
          %1284 = vmatpush.xpose.msra.mxu0 %v728
          %1285 = vmatpush.xpose.msra.mxu0 %v727
          %1286 = vmatpush.xpose.msra.mxu0 %v726
          %1287 = vmatmul.f32.gmra.mxu0 %v742
          %v1288 = vpop.f32.mrf.mxu0
          %v1289 = vadd.f32 0.0, %v1288
          %1290 = vmatmul.f32.gmra.mxu0 %v743
          %v1291 = vpop.f32.mrf.mxu0
          %v1292 = vadd.f32 0.0, %v1291
          %1293 = vmatmul.f32.gmra.mxu0 %v744
          %v1294 = vpop.f32.mrf.mxu0
          %v1295 = vadd.f32 0.0, %v1294
          %1296 = vmatmul.f32.gmra.mxu0 %v745
          %v1297 = vpop.f32.mrf.mxu0
          %v1298 = vadd.f32 0.0, %v1297
          %1299 = vmatmul.f32.gmra.mxu0 %v746
          %v1300 = vpop.f32.mrf.mxu0
          %v1301 = vadd.f32 0.0, %v1300
          %1302 = vmatmul.f32.gmra.mxu0 %v747
          %v1303 = vpop.f32.mrf.mxu0
          %v1304 = vadd.f32 0.0, %v1303
          %1305 = vmatmul.f32.gmra.mxu0 %v748
          %v1306 = vpop.f32.mrf.mxu0
          %v1307 = vadd.f32 0.0, %v1306
          %1308 = vmatmul.f32.gmra.mxu0 %v749
          %v1309 = vpop.f32.mrf.mxu0
          %v1310 = vadd.f32 0.0, %v1309
          %1311 = vmatmul.f32.gmra.mxu0 %v750
          %v1312 = vpop.f32.mrf.mxu0
          %v1313 = vadd.f32 0.0, %v1312
          %1314 = vmatmul.f32.gmra.mxu0 %v751
          %v1315 = vpop.f32.mrf.mxu0
          %v1316 = vadd.f32 0.0, %v1315
          %1317 = vmatmul.f32.gmra.mxu0 %v752
          %v1318 = vpop.f32.mrf.mxu0
          %v1319 = vadd.f32 0.0, %v1318
          %1320 = vmatmul.f32.gmra.mxu0 %v753
          %v1321 = vpop.f32.mrf.mxu0
          %v1322 = vadd.f32 0.0, %v1321
          %1323 = vmatmul.f32.gmra.mxu0 %v754
          %v1324 = vpop.f32.mrf.mxu0
          %v1325 = vadd.f32 0.0, %v1324
          %1326 = vmatmul.f32.gmra.mxu0 %v755
          %v1327 = vpop.f32.mrf.mxu0
          %v1328 = vadd.f32 0.0, %v1327
          %1329 = vmatmul.f32.gmra.mxu0 %v756
          %v1330 = vpop.f32.mrf.mxu0
          %v1331 = vadd.f32 0.0, %v1330
          %1332 = vmatmul.f32.gmra.mxu0 %v757
          %v1333 = vpop.f32.mrf.mxu0
          %v1334 = vadd.f32 0.0, %v1333
          %1335 = vmatmul.f32.gmra.mxu0 %v758
          %v1336 = vpop.f32.mrf.mxu0
          %v1337 = vadd.f32 0.0, %v1336
          %1338 = vmatmul.f32.gmra.mxu0 %v759
          %v1339 = vpop.f32.mrf.mxu0
          %v1340 = vadd.f32 0.0, %v1339
          %1341 = vmatmul.f32.gmra.mxu0 %v760
          %v1342 = vpop.f32.mrf.mxu0
          %v1343 = vadd.f32 0.0, %v1342
          %1344 = vmatmul.f32.gmra.mxu0 %v761
          %v1345 = vpop.f32.mrf.mxu0
          %v1346 = vadd.f32 0.0, %v1345
          %1347 = vmatmul.f32.gmra.mxu0 %v762
          %v1348 = vpop.f32.mrf.mxu0
          %v1349 = vadd.f32 0.0, %v1348
          %1350 = vmatmul.f32.gmra.mxu0 %v763
          %v1351 = vpop.f32.mrf.mxu0
          %v1352 = vadd.f32 0.0, %v1351
          %1353 = vmatmul.f32.gmra.mxu0 %v764
          %v1354 = vpop.f32.mrf.mxu0
          %v1355 = vadd.f32 0.0, %v1354
          %1356 = vmatmul.f32.gmra.mxu0 %v765
          %v1357 = vpop.f32.mrf.mxu0
          %v1358 = vadd.f32 0.0, %v1357
          %1359 = vmatmul.f32.gmra.mxu0 %v766
          %v1360 = vpop.f32.mrf.mxu0
          %v1361 = vadd.f32 0.0, %v1360
          %1362 = vmatmul.f32.gmra.mxu0 %v767
          %v1363 = vpop.f32.mrf.mxu0
          %v1364 = vadd.f32 0.0, %v1363
          %1365 = vmatmul.f32.gmra.mxu0 %v768
          %v1366 = vpop.f32.mrf.mxu0
          %v1367 = vadd.f32 0.0, %v1366
          %1368 = vmatmul.f32.gmra.mxu0 %v769
          %v1369 = vpop.f32.mrf.mxu0
          %v1370 = vadd.f32 0.0, %v1369
          %1371 = vmatmul.f32.gmra.mxu0 %v770
          %v1372 = vpop.f32.mrf.mxu0
          %v1373 = vadd.f32 0.0, %v1372
          %1374 = vmatmul.f32.gmra.mxu0 %v771
          %v1375 = vpop.f32.mrf.mxu0
          %v1376 = vadd.f32 0.0, %v1375
          %1377 = vmatmul.f32.gmra.mxu0 %v772
          %v1378 = vpop.f32.mrf.mxu0
          %v1379 = vadd.f32 0.0, %v1378
          %1380 = vmatmul.f32.gmra.mxu0 %v773
          %v1381 = vpop.f32.mrf.mxu0
          %v1382 = vadd.f32 0.0, %v1381
          %1383 = vmatmul.f32.gmra.mxu0 %v774
          %v1384 = vpop.f32.mrf.mxu0
          %v1385 = vadd.f32 0.0, %v1384
          %1386 = vmatmul.f32.gmra.mxu0 %v775
          %v1387 = vpop.f32.mrf.mxu0
          %v1388 = vadd.f32 0.0, %v1387
          %1389 = vmatmul.f32.gmra.mxu0 %v776
          %v1390 = vpop.f32.mrf.mxu0
          %v1391 = vadd.f32 0.0, %v1390
          %1392 = vmatmul.f32.gmra.mxu0 %v777
          %v1393 = vpop.f32.mrf.mxu0
          %v1394 = vadd.f32 0.0, %v1393
          %1395 = vmatmul.f32.gmra.mxu0 %v778
          %v1396 = vpop.f32.mrf.mxu0
          %v1397 = vadd.f32 0.0, %v1396
          %1398 = vmatmul.f32.gmra.mxu0 %v779
          %v1399 = vpop.f32.mrf.mxu0
          %v1400 = vadd.f32 0.0, %v1399
          %1401 = vmatmul.f32.gmra.mxu0 %v780
          %v1402 = vpop.f32.mrf.mxu0
          %v1403 = vadd.f32 0.0, %v1402
          %1404 = vmatmul.f32.gmra.mxu0 %v781
          %v1405 = vpop.f32.mrf.mxu0
          %v1406 = vadd.f32 0.0, %v1405
          %1407 = vmatmul.f32.gmra.mxu0 %v782
          %v1408 = vpop.f32.mrf.mxu0
          %v1409 = vadd.f32 0.0, %v1408
          %1410 = vmatmul.f32.gmra.mxu0 %v783
          %v1411 = vpop.f32.mrf.mxu0
          %v1412 = vadd.f32 0.0, %v1411
          %1413 = vmatmul.f32.gmra.mxu0 %v784
          %v1414 = vpop.f32.mrf.mxu0
          %v1415 = vadd.f32 0.0, %v1414
          %1416 = vmatmul.f32.gmra.mxu0 %v785
          %v1417 = vpop.f32.mrf.mxu0
          %v1418 = vadd.f32 0.0, %v1417
          %1419 = vmatmul.f32.gmra.mxu0 %v786
          %v1420 = vpop.f32.mrf.mxu0
          %v1421 = vadd.f32 0.0, %v1420
          %1422 = vmatmul.f32.gmra.mxu0 %v787
          %v1423 = vpop.f32.mrf.mxu0
          %v1424 = vadd.f32 0.0, %v1423
          %1425 = vmatmul.f32.gmra.mxu0 %v788
          %v1426 = vpop.f32.mrf.mxu0
          %v1427 = vadd.f32 0.0, %v1426
          %1428 = vmatmul.f32.gmra.mxu0 %v789
          %v1429 = vpop.f32.mrf.mxu0
          %v1430 = vadd.f32 0.0, %v1429
          %1431 = vmatmul.f32.gmra.mxu0 %v790
          %v1432 = vpop.f32.mrf.mxu0
          %v1433 = vadd.f32 0.0, %v1432
          %1434 = vmatmul.f32.gmra.mxu0 %v791
          %v1435 = vpop.f32.mrf.mxu0
          %v1436 = vadd.f32 0.0, %v1435
          %1437 = vmatmul.f32.gmra.mxu0 %v792
          %v1438 = vpop.f32.mrf.mxu0
          %v1439 = vadd.f32 0.0, %v1438
          %1440 = vmatmul.f32.gmra.mxu0 %v793
          %v1441 = vpop.f32.mrf.mxu0
          %v1442 = vadd.f32 0.0, %v1441
          %1443 = vmatmul.f32.gmra.mxu0 %v794
          %v1444 = vpop.f32.mrf.mxu0
          %v1445 = vadd.f32 0.0, %v1444
          %1446 = vmatmul.f32.gmra.mxu0 %v795
          %v1447 = vpop.f32.mrf.mxu0
          %v1448 = vadd.f32 0.0, %v1447
          %1449 = vmatmul.f32.gmra.mxu0 %v796
          %v1450 = vpop.f32.mrf.mxu0
          %v1451 = vadd.f32 0.0, %v1450
          %1452 = vmatmul.f32.gmra.mxu0 %v797
          %v1453 = vpop.f32.mrf.mxu0
          %v1454 = vadd.f32 0.0, %v1453
          %1455 = vmatmul.f32.gmra.mxu0 %v798
          %v1456 = vpop.f32.mrf.mxu0
          %v1457 = vadd.f32 0.0, %v1456
          %1458 = vmatmul.f32.gmra.mxu0 %v799
          %v1459 = vpop.f32.mrf.mxu0
          %v1460 = vadd.f32 0.0, %v1459
          %1461 = vmatmul.f32.gmra.mxu0 %v800
          %v1462 = vpop.f32.mrf.mxu0
          %v1463 = vadd.f32 0.0, %v1462
          %1464 = vmatmul.f32.gmra.mxu0 %v801
          %v1465 = vpop.f32.mrf.mxu0
          %v1466 = vadd.f32 0.0, %v1465
          %1467 = vmatmul.f32.gmra.mxu0 %v802
          %v1468 = vpop.f32.mrf.mxu0
          %v1469 = vadd.f32 0.0, %v1468
          %1470 = vmatmul.f32.gmra.mxu0 %v803
          %v1471 = vpop.f32.mrf.mxu0
          %v1472 = vadd.f32 0.0, %v1471
          %1473 = vmatmul.f32.gmra.mxu0 %v804
          %v1474 = vpop.f32.mrf.mxu0
          %v1475 = vadd.f32 0.0, %v1474
          %1476 = vmatmul.f32.gmra.mxu0 %v805
          %v1477 = vpop.f32.mrf.mxu0
          %v1478 = vadd.f32 0.0, %v1477
          %1479 = vmatmul.f32.gmra.mxu0 %v806
          %v1480 = vpop.f32.mrf.mxu0
          %v1481 = vadd.f32 0.0, %v1480
          %1482 = vmatmul.f32.gmra.mxu0 %v807
          %v1483 = vpop.f32.mrf.mxu0
          %v1484 = vadd.f32 0.0, %v1483
          %1485 = vmatmul.f32.gmra.mxu0 %v808
          %v1486 = vpop.f32.mrf.mxu0
          %v1487 = vadd.f32 0.0, %v1486
          %1488 = vmatmul.f32.gmra.mxu0 %v809
          %v1489 = vpop.f32.mrf.mxu0
          %v1490 = vadd.f32 0.0, %v1489
          %1491 = vmatmul.f32.gmra.mxu0 %v810
          %v1492 = vpop.f32.mrf.mxu0
          %v1493 = vadd.f32 0.0, %v1492
          %1494 = vmatmul.f32.gmra.mxu0 %v811
          %v1495 = vpop.f32.mrf.mxu0
          %v1496 = vadd.f32 0.0, %v1495
          %1497 = vmatmul.f32.gmra.mxu0 %v812
          %v1498 = vpop.f32.mrf.mxu0
          %v1499 = vadd.f32 0.0, %v1498
          %1500 = vmatmul.f32.gmra.mxu0 %v813
          %v1501 = vpop.f32.mrf.mxu0
          %v1502 = vadd.f32 0.0, %v1501
          %1503 = vmatmul.f32.gmra.mxu0 %v814
          %v1504 = vpop.f32.mrf.mxu0
          %v1505 = vadd.f32 0.0, %v1504
          %1506 = vmatmul.f32.gmra.mxu0 %v815
          %v1507 = vpop.f32.mrf.mxu0
          %v1508 = vadd.f32 0.0, %v1507
          %1509 = vmatmul.f32.gmra.mxu0 %v816
          %v1510 = vpop.f32.mrf.mxu0
          %v1511 = vadd.f32 0.0, %v1510
          %1512 = vmatmul.f32.gmra.mxu0 %v817
          %v1513 = vpop.f32.mrf.mxu0
          %v1514 = vadd.f32 0.0, %v1513
          %1515 = vmatmul.f32.gmra.mxu0 %v818
          %v1516 = vpop.f32.mrf.mxu0
          %v1517 = vadd.f32 0.0, %v1516
          %1518 = vmatmul.f32.gmra.mxu0 %v819
          %v1519 = vpop.f32.mrf.mxu0
          %v1520 = vadd.f32 0.0, %v1519
          %1521 = vmatmul.f32.gmra.mxu0 %v820
          %v1522 = vpop.f32.mrf.mxu0
          %v1523 = vadd.f32 0.0, %v1522
          %1524 = vmatmul.f32.gmra.mxu0 %v821
          %v1525 = vpop.f32.mrf.mxu0
          %v1526 = vadd.f32 0.0, %v1525
          %1527 = vmatmul.f32.gmra.mxu0 %v822
          %v1528 = vpop.f32.mrf.mxu0
          %v1529 = vadd.f32 0.0, %v1528
          %1530 = vmatmul.f32.gmra.mxu0 %v823
          %v1531 = vpop.f32.mrf.mxu0
          %v1532 = vadd.f32 0.0, %v1531
          %1533 = vmatmul.f32.gmra.mxu0 %v824
          %v1534 = vpop.f32.mrf.mxu0
          %v1535 = vadd.f32 0.0, %v1534
          %1536 = vmatmul.f32.gmra.mxu0 %v825
          %v1537 = vpop.f32.mrf.mxu0
          %v1538 = vadd.f32 0.0, %v1537
          %1539 = vmatmul.f32.gmra.mxu0 %v826
          %v1540 = vpop.f32.mrf.mxu0
          %v1541 = vadd.f32 0.0, %v1540
          %1542 = vmatmul.f32.gmra.mxu0 %v827
          %v1543 = vpop.f32.mrf.mxu0
          %v1544 = vadd.f32 0.0, %v1543
          %1545 = vmatmul.f32.gmra.mxu0 %v828
          %v1546 = vpop.f32.mrf.mxu0
          %v1547 = vadd.f32 0.0, %v1546
          %1548 = vmatmul.f32.gmra.mxu0 %v829
          %v1549 = vpop.f32.mrf.mxu0
          %v1550 = vadd.f32 0.0, %v1549
          %1551 = vmatmul.f32.gmra.mxu0 %v830
          %v1552 = vpop.f32.mrf.mxu0
          %v1553 = vadd.f32 0.0, %v1552
          %1554 = vmatmul.f32.gmra.mxu0 %v831
          %v1555 = vpop.f32.mrf.mxu0
          %v1556 = vadd.f32 0.0, %v1555
          %1557 = vmatmul.f32.gmra.mxu0 %v832
          %v1558 = vpop.f32.mrf.mxu0
          %v1559 = vadd.f32 0.0, %v1558
          %1560 = vmatmul.f32.gmra.mxu0 %v833
          %v1561 = vpop.f32.mrf.mxu0
          %v1562 = vadd.f32 0.0, %v1561
          %1563 = vmatmul.f32.gmra.mxu0 %v834
          %v1564 = vpop.f32.mrf.mxu0
          %v1565 = vadd.f32 0.0, %v1564
          %1566 = vmatmul.f32.gmra.mxu0 %v835
          %v1567 = vpop.f32.mrf.mxu0
          %v1568 = vadd.f32 0.0, %v1567
          %1569 = vmatmul.f32.gmra.mxu0 %v836
          %v1570 = vpop.f32.mrf.mxu0
          %v1571 = vadd.f32 0.0, %v1570
          %1572 = vmatmul.f32.gmra.mxu0 %v837
          %v1573 = vpop.f32.mrf.mxu0
          %v1574 = vadd.f32 0.0, %v1573
          %1575 = vmatmul.f32.gmra.mxu0 %v838
          %v1576 = vpop.f32.mrf.mxu0
          %v1577 = vadd.f32 0.0, %v1576
          %1578 = vmatmul.f32.gmra.mxu0 %v839
          %v1579 = vpop.f32.mrf.mxu0
          %v1580 = vadd.f32 0.0, %v1579
          %1581 = vmatmul.f32.gmra.mxu0 %v840
          %v1582 = vpop.f32.mrf.mxu0
          %v1583 = vadd.f32 0.0, %v1582
          %1584 = vmatmul.f32.gmra.mxu0 %v841
          %v1585 = vpop.f32.mrf.mxu0
          %v1586 = vadd.f32 0.0, %v1585
          %1587 = vmatmul.f32.gmra.mxu0 %v842
          %v1588 = vpop.f32.mrf.mxu0
          %v1589 = vadd.f32 0.0, %v1588
          %1590 = vmatmul.f32.gmra.mxu0 %v843
          %v1591 = vpop.f32.mrf.mxu0
          %v1592 = vadd.f32 0.0, %v1591
          %1593 = vmatmul.f32.gmra.mxu0 %v844
          %v1594 = vpop.f32.mrf.mxu0
          %v1595 = vadd.f32 0.0, %v1594
          %1596 = vmatmul.f32.gmra.mxu0 %v845
          %v1597 = vpop.f32.mrf.mxu0
          %v1598 = vadd.f32 0.0, %v1597
          %1599 = vmatmul.f32.gmra.mxu0 %v846
          %v1600 = vpop.f32.mrf.mxu0
          %v1601 = vadd.f32 0.0, %v1600
          %1602 = vmatmul.f32.gmra.mxu0 %v847
          %v1603 = vpop.f32.mrf.mxu0
          %v1604 = vadd.f32 0.0, %v1603
          %1605 = vmatmul.f32.gmra.mxu0 %v848
          %v1606 = vpop.f32.mrf.mxu0
          %v1607 = vadd.f32 0.0, %v1606
          %1608 = vmatmul.f32.gmra.mxu0 %v849
          %v1609 = vpop.f32.mrf.mxu0
          %v1610 = vadd.f32 0.0, %v1609
          %1611 = vmatmul.f32.gmra.mxu0 %v850
          %v1612 = vpop.f32.mrf.mxu0
          %v1613 = vadd.f32 0.0, %v1612
          %1614 = vmatmul.f32.gmra.mxu0 %v851
          %v1615 = vpop.f32.mrf.mxu0
          %v1616 = vadd.f32 0.0, %v1615
          %1617 = vmatmul.f32.gmra.mxu0 %v852
          %v1618 = vpop.f32.mrf.mxu0
          %v1619 = vadd.f32 0.0, %v1618
          %1620 = vmatmul.f32.gmra.mxu0 %v853
          %v1621 = vpop.f32.mrf.mxu0
          %v1622 = vadd.f32 0.0, %v1621
          %1623 = vmatmul.f32.gmra.mxu0 %v854
          %v1624 = vpop.f32.mrf.mxu0
          %v1625 = vadd.f32 0.0, %v1624
          %1626 = vmatmul.f32.gmra.mxu0 %v855
          %v1627 = vpop.f32.mrf.mxu0
          %v1628 = vadd.f32 0.0, %v1627
          %1629 = vmatmul.f32.gmra.mxu0 %v856
          %v1630 = vpop.f32.mrf.mxu0
          %v1631 = vadd.f32 0.0, %v1630
          %1632 = vmatmul.f32.gmra.mxu0 %v857
          %v1633 = vpop.f32.mrf.mxu0
          %v1634 = vadd.f32 0.0, %v1633
          %1635 = vmatmul.f32.gmra.mxu0 %v858
          %v1636 = vpop.f32.mrf.mxu0
          %v1637 = vadd.f32 0.0, %v1636
          %1638 = vmatmul.f32.gmra.mxu0 %v859
          %v1639 = vpop.f32.mrf.mxu0
          %v1640 = vadd.f32 0.0, %v1639
          %1641 = vmatmul.f32.gmra.mxu0 %v860
          %v1642 = vpop.f32.mrf.mxu0
          %v1643 = vadd.f32 0.0, %v1642
          %1644 = vmatmul.f32.gmra.mxu0 %v861
          %v1645 = vpop.f32.mrf.mxu0
          %v1646 = vadd.f32 0.0, %v1645
          %1647 = vmatmul.f32.gmra.mxu0 %v862
          %v1648 = vpop.f32.mrf.mxu0
          %v1649 = vadd.f32 0.0, %v1648
          %1650 = vmatmul.f32.gmra.mxu0 %v863
          %v1651 = vpop.f32.mrf.mxu0
          %v1652 = vadd.f32 0.0, %v1651
          %1653 = vmatmul.f32.gmra.mxu0 %v864
          %v1654 = vpop.f32.mrf.mxu0
          %v1655 = vadd.f32 0.0, %v1654
          %1656 = vmatmul.f32.gmra.mxu0 %v865
          %v1657 = vpop.f32.mrf.mxu0
          %v1658 = vadd.f32 0.0, %v1657
          %1659 = vmatmul.f32.gmra.mxu0 %v866
          %v1660 = vpop.f32.mrf.mxu0
          %v1661 = vadd.f32 0.0, %v1660
          %1662 = vmatmul.f32.gmra.mxu0 %v867
          %v1663 = vpop.f32.mrf.mxu0
          %v1664 = vadd.f32 0.0, %v1663
          %1665 = vmatmul.f32.gmra.mxu0 %v868
          %v1666 = vpop.f32.mrf.mxu0
          %v1667 = vadd.f32 0.0, %v1666
          %1668 = vmatmul.f32.gmra.mxu0 %v869
          %v1669 = vpop.f32.mrf.mxu0
          %v1670 = vadd.f32 0.0, %v1669
          %1671 = vdwg.mxu0
          %v1672 = vld [vmem:[%s301] sm:$0xff]
          %v1673 = vld [vmem:[%s301 + $0x8] sm:$0xff]
          %v1674 = vld [vmem:[%s301 + $0x10] sm:$0xff]
          %v1675 = vld [vmem:[%s301 + $0x18] sm:$0xff]
          %v1676 = vld [vmem:[%s301 + $0x20] sm:$0xff]
          %v1677 = vld [vmem:[%s301 + $0x28] sm:$0xff]
          %v1678 = vld [vmem:[%s301 + $0x30] sm:$0xff]
          %v1679 = vld [vmem:[%s301 + $0x38] sm:$0xff]
          %v1680 = vld [vmem:[%s301 + $0x40] sm:$0xff]
          %v1681 = vld [vmem:[%s301 + $0x48] sm:$0xff]
          %v1682 = vld [vmem:[%s301 + $0x50] sm:$0xff]
          %v1683 = vld [vmem:[%s301 + $0x58] sm:$0xff]
          %v1684 = vld [vmem:[%s301 + $0x60] sm:$0xff]
          %v1685 = vld [vmem:[%s301 + $0x68] sm:$0xff]
          %v1686 = vld [vmem:[%s301 + $0x70] sm:$0xff]
          %v1687 = vld [vmem:[%s301 + $0x78] sm:$0xff]
          %v1688 = vld [vmem:[%s301 + $0x80] sm:$0xff]
          %v1689 = vld [vmem:[%s301 + $0x88] sm:$0xff]
          %v1690 = vld [vmem:[%s301 + $0x90] sm:$0xff]
          %v1691 = vld [vmem:[%s301 + $0x98] sm:$0xff]
          %v1692 = vld [vmem:[%s301 + $0xa0] sm:$0xff]
          %v1693 = vld [vmem:[%s301 + $0xa8] sm:$0xff]
          %v1694 = vld [vmem:[%s301 + $0xb0] sm:$0xff]
          %v1695 = vld [vmem:[%s301 + $0xb8] sm:$0xff]
          %v1696 = vld [vmem:[%s301 + $0xc0] sm:$0xff]
          %v1697 = vld [vmem:[%s301 + $0xc8] sm:$0xff]
          %v1698 = vld [vmem:[%s301 + $0xd0] sm:$0xff]
          %v1699 = vld [vmem:[%s301 + $0xd8] sm:$0xff]
          %v1700 = vld [vmem:[%s301 + $0xe0] sm:$0xff]
          %v1701 = vld [vmem:[%s301 + $0xe8] sm:$0xff]
          %v1702 = vld [vmem:[%s301 + $0xf0] sm:$0xff]
          %v1703 = vld [vmem:[%s301 + $0xf8] sm:$0xff]
          %v1704 = vld [vmem:[%s301 + $0x100] sm:$0xff]
          %v1705 = vld [vmem:[%s301 + $0x108] sm:$0xff]
          %v1706 = vld [vmem:[%s301 + $0x110] sm:$0xff]
          %v1707 = vld [vmem:[%s301 + $0x118] sm:$0xff]
          %v1708 = vld [vmem:[%s301 + $0x120] sm:$0xff]
          %v1709 = vld [vmem:[%s301 + $0x128] sm:$0xff]
          %v1710 = vld [vmem:[%s301 + $0x130] sm:$0xff]
          %v1711 = vld [vmem:[%s301 + $0x138] sm:$0xff]
          %v1712 = vld [vmem:[%s301 + $0x140] sm:$0xff]
          %v1713 = vld [vmem:[%s301 + $0x148] sm:$0xff]
          %v1714 = vld [vmem:[%s301 + $0x150] sm:$0xff]
          %v1715 = vld [vmem:[%s301 + $0x158] sm:$0xff]
          %v1716 = vld [vmem:[%s301 + $0x160] sm:$0xff]
          %v1717 = vld [vmem:[%s301 + $0x168] sm:$0xff]
          %v1718 = vld [vmem:[%s301 + $0x170] sm:$0xff]
          %v1719 = vld [vmem:[%s301 + $0x178] sm:$0xff]
          %v1720 = vld [vmem:[%s301 + $0x180] sm:$0xff]
          %v1721 = vld [vmem:[%s301 + $0x188] sm:$0xff]
          %v1722 = vld [vmem:[%s301 + $0x190] sm:$0xff]
          %v1723 = vld [vmem:[%s301 + $0x198] sm:$0xff]
          %v1724 = vld [vmem:[%s301 + $0x1a0] sm:$0xff]
          %v1725 = vld [vmem:[%s301 + $0x1a8] sm:$0xff]
          %v1726 = vld [vmem:[%s301 + $0x1b0] sm:$0xff]
          %v1727 = vld [vmem:[%s301 + $0x1b8] sm:$0xff]
          %v1728 = vld [vmem:[%s301 + $0x1c0] sm:$0xff]
          %v1729 = vld [vmem:[%s301 + $0x1c8] sm:$0xff]
          %v1730 = vld [vmem:[%s301 + $0x1d0] sm:$0xff]
          %v1731 = vld [vmem:[%s301 + $0x1d8] sm:$0xff]
          %v1732 = vld [vmem:[%s301 + $0x1e0] sm:$0xff]
          %v1733 = vld [vmem:[%s301 + $0x1e8] sm:$0xff]
          %v1734 = vld [vmem:[%s301 + $0x1f0] sm:$0xff]
          %v1735 = vld [vmem:[%s301 + $0x1f8] sm:$0xff]
          %v1736 = vld [vmem:[%s301 + $0x200] sm:$0xff]
          %v1737 = vld [vmem:[%s301 + $0x208] sm:$0xff]
          %v1738 = vld [vmem:[%s301 + $0x210] sm:$0xff]
          %v1739 = vld [vmem:[%s301 + $0x218] sm:$0xff]
          %v1740 = vld [vmem:[%s301 + $0x220] sm:$0xff]
          %v1741 = vld [vmem:[%s301 + $0x228] sm:$0xff]
          %v1742 = vld [vmem:[%s301 + $0x230] sm:$0xff]
          %v1743 = vld [vmem:[%s301 + $0x238] sm:$0xff]
          %v1744 = vld [vmem:[%s301 + $0x240] sm:$0xff]
          %v1745 = vld [vmem:[%s301 + $0x248] sm:$0xff]
          %v1746 = vld [vmem:[%s301 + $0x250] sm:$0xff]
          %v1747 = vld [vmem:[%s301 + $0x258] sm:$0xff]
          %v1748 = vld [vmem:[%s301 + $0x260] sm:$0xff]
          %v1749 = vld [vmem:[%s301 + $0x268] sm:$0xff]
          %v1750 = vld [vmem:[%s301 + $0x270] sm:$0xff]
          %v1751 = vld [vmem:[%s301 + $0x278] sm:$0xff]
          %v1752 = vld [vmem:[%s301 + $0x280] sm:$0xff]
          %v1753 = vld [vmem:[%s301 + $0x288] sm:$0xff]
          %v1754 = vld [vmem:[%s301 + $0x290] sm:$0xff]
          %v1755 = vld [vmem:[%s301 + $0x298] sm:$0xff]
          %v1756 = vld [vmem:[%s301 + $0x2a0] sm:$0xff]
          %v1757 = vld [vmem:[%s301 + $0x2a8] sm:$0xff]
          %v1758 = vld [vmem:[%s301 + $0x2b0] sm:$0xff]
          %v1759 = vld [vmem:[%s301 + $0x2b8] sm:$0xff]
          %v1760 = vld [vmem:[%s301 + $0x2c0] sm:$0xff]
          %v1761 = vld [vmem:[%s301 + $0x2c8] sm:$0xff]
          %v1762 = vld [vmem:[%s301 + $0x2d0] sm:$0xff]
          %v1763 = vld [vmem:[%s301 + $0x2d8] sm:$0xff]
          %v1764 = vld [vmem:[%s301 + $0x2e0] sm:$0xff]
          %v1765 = vld [vmem:[%s301 + $0x2e8] sm:$0xff]
          %v1766 = vld [vmem:[%s301 + $0x2f0] sm:$0xff]
          %v1767 = vld [vmem:[%s301 + $0x2f8] sm:$0xff]
          %v1768 = vld [vmem:[%s301 + $0x300] sm:$0xff]
          %v1769 = vld [vmem:[%s301 + $0x308] sm:$0xff]
          %v1770 = vld [vmem:[%s301 + $0x310] sm:$0xff]
          %v1771 = vld [vmem:[%s301 + $0x318] sm:$0xff]
          %v1772 = vld [vmem:[%s301 + $0x320] sm:$0xff]
          %v1773 = vld [vmem:[%s301 + $0x328] sm:$0xff]
          %v1774 = vld [vmem:[%s301 + $0x330] sm:$0xff]
          %v1775 = vld [vmem:[%s301 + $0x338] sm:$0xff]
          %v1776 = vld [vmem:[%s301 + $0x340] sm:$0xff]
          %v1777 = vld [vmem:[%s301 + $0x348] sm:$0xff]
          %v1778 = vld [vmem:[%s301 + $0x350] sm:$0xff]
          %v1779 = vld [vmem:[%s301 + $0x358] sm:$0xff]
          %v1780 = vld [vmem:[%s301 + $0x360] sm:$0xff]
          %v1781 = vld [vmem:[%s301 + $0x368] sm:$0xff]
          %v1782 = vld [vmem:[%s301 + $0x370] sm:$0xff]
          %v1783 = vld [vmem:[%s301 + $0x378] sm:$0xff]
          %v1784 = vld [vmem:[%s301 + $0x380] sm:$0xff]
          %v1785 = vld [vmem:[%s301 + $0x388] sm:$0xff]
          %v1786 = vld [vmem:[%s301 + $0x390] sm:$0xff]
          %v1787 = vld [vmem:[%s301 + $0x398] sm:$0xff]
          %v1788 = vld [vmem:[%s301 + $0x3a0] sm:$0xff]
          %v1789 = vld [vmem:[%s301 + $0x3a8] sm:$0xff]
          %v1790 = vld [vmem:[%s301 + $0x3b0] sm:$0xff]
          %v1791 = vld [vmem:[%s301 + $0x3b8] sm:$0xff]
          %v1792 = vld [vmem:[%s301 + $0x3c0] sm:$0xff]
          %v1793 = vld [vmem:[%s301 + $0x3c8] sm:$0xff]
          %v1794 = vld [vmem:[%s301 + $0x3d0] sm:$0xff]
          %v1795 = vld [vmem:[%s301 + $0x3d8] sm:$0xff]
          %v1796 = vld [vmem:[%s301 + $0x3e0] sm:$0xff]
          %v1797 = vld [vmem:[%s301 + $0x3e8] sm:$0xff]
          %v1798 = vld [vmem:[%s301 + $0x3f0] sm:$0xff]
          %v1799 = vld [vmem:[%s301 + $0x3f8] sm:$0xff]
          %v1800 = vmul.f32 %v888, 2.0
          %v1801 = vmul.f32 %v1289, 2.0
          %v1802 = vmul.f32 %v891, 2.0
          %v1803 = vmul.f32 %v1292, 2.0
          %v1804 = vmul.f32 %v894, 2.0
          %v1805 = vmul.f32 %v1295, 2.0
          %v1806 = vmul.f32 %v897, 2.0
          %v1807 = vmul.f32 %v1298, 2.0
          %v1808 = vmul.f32 %v900, 2.0
          %v1809 = vmul.f32 %v1301, 2.0
          %v1810 = vmul.f32 %v903, 2.0
          %v1811 = vmul.f32 %v1304, 2.0
          %v1812 = vmul.f32 %v906, 2.0
          %v1813 = vmul.f32 %v1307, 2.0
          %v1814 = vmul.f32 %v909, 2.0
          %v1815 = vmul.f32 %v1310, 2.0
          %v1816 = vmul.f32 %v912, 2.0
          %v1817 = vmul.f32 %v1313, 2.0
          %v1818 = vmul.f32 %v915, 2.0
          %v1819 = vmul.f32 %v1316, 2.0
          %v1820 = vmul.f32 %v918, 2.0
          %v1821 = vmul.f32 %v1319, 2.0
          %v1822 = vmul.f32 %v921, 2.0
          %v1823 = vmul.f32 %v1322, 2.0
          %v1824 = vmul.f32 %v924, 2.0
          %v1825 = vmul.f32 %v1325, 2.0
          %v1826 = vmul.f32 %v927, 2.0
          %v1827 = vmul.f32 %v1328, 2.0
          %v1828 = vmul.f32 %v930, 2.0
          %v1829 = vmul.f32 %v1331, 2.0
          %v1830 = vmul.f32 %v933, 2.0
          %v1831 = vmul.f32 %v1334, 2.0
          %v1832 = vmul.f32 %v936, 2.0
          %v1833 = vmul.f32 %v1337, 2.0
          %v1834 = vmul.f32 %v939, 2.0
          %v1835 = vmul.f32 %v1340, 2.0
          %v1836 = vmul.f32 %v942, 2.0
          %v1837 = vmul.f32 %v1343, 2.0
          %v1838 = vmul.f32 %v945, 2.0
          %v1839 = vmul.f32 %v1346, 2.0
          %v1840 = vmul.f32 %v948, 2.0
          %v1841 = vmul.f32 %v1349, 2.0
          %v1842 = vmul.f32 %v951, 2.0
          %v1843 = vmul.f32 %v1352, 2.0
          %v1844 = vmul.f32 %v954, 2.0
          %v1845 = vmul.f32 %v1355, 2.0
          %v1846 = vmul.f32 %v957, 2.0
          %v1847 = vmul.f32 %v1358, 2.0
          %v1848 = vmul.f32 %v960, 2.0
          %v1849 = vmul.f32 %v1361, 2.0
          %v1850 = vmul.f32 %v963, 2.0
          %v1851 = vmul.f32 %v1364, 2.0
          %v1852 = vmul.f32 %v966, 2.0
          %v1853 = vmul.f32 %v1367, 2.0
          %v1854 = vmul.f32 %v969, 2.0
          %v1855 = vmul.f32 %v1370, 2.0
          %v1856 = vmul.f32 %v972, 2.0
          %v1857 = vmul.f32 %v1373, 2.0
          %v1858 = vmul.f32 %v975, 2.0
          %v1859 = vmul.f32 %v1376, 2.0
          %v1860 = vmul.f32 %v978, 2.0
          %v1861 = vmul.f32 %v1379, 2.0
          %v1862 = vmul.f32 %v981, 2.0
          %v1863 = vmul.f32 %v1382, 2.0
          %v1864 = vmul.f32 %v984, 2.0
          %v1865 = vmul.f32 %v1385, 2.0
          %v1866 = vmul.f32 %v987, 2.0
          %v1867 = vmul.f32 %v1388, 2.0
          %v1868 = vmul.f32 %v990, 2.0
          %v1869 = vmul.f32 %v1391, 2.0
          %v1870 = vmul.f32 %v993, 2.0
          %v1871 = vmul.f32 %v1394, 2.0
          %v1872 = vmul.f32 %v996, 2.0
          %v1873 = vmul.f32 %v1397, 2.0
          %v1874 = vmul.f32 %v999, 2.0
          %v1875 = vmul.f32 %v1400, 2.0
          %v1876 = vmul.f32 %v1002, 2.0
          %v1877 = vmul.f32 %v1403, 2.0
          %v1878 = vmul.f32 %v1005, 2.0
          %v1879 = vmul.f32 %v1406, 2.0
          %v1880 = vmul.f32 %v1008, 2.0
          %v1881 = vmul.f32 %v1409, 2.0
          %v1882 = vmul.f32 %v1011, 2.0
          %v1883 = vmul.f32 %v1412, 2.0
          %v1884 = vmul.f32 %v1014, 2.0
          %v1885 = vmul.f32 %v1415, 2.0
          %v1886 = vmul.f32 %v1017, 2.0
          %v1887 = vmul.f32 %v1418, 2.0
          %v1888 = vmul.f32 %v1020, 2.0
          %v1889 = vmul.f32 %v1421, 2.0
          %v1890 = vmul.f32 %v1023, 2.0
          %v1891 = vmul.f32 %v1424, 2.0
          %v1892 = vmul.f32 %v1026, 2.0
          %v1893 = vmul.f32 %v1427, 2.0
          %v1894 = vmul.f32 %v1029, 2.0
          %v1895 = vmul.f32 %v1430, 2.0
          %v1896 = vmul.f32 %v1032, 2.0
          %v1897 = vmul.f32 %v1433, 2.0
          %v1898 = vmul.f32 %v1035, 2.0
          %v1899 = vmul.f32 %v1436, 2.0
          %v1900 = vmul.f32 %v1038, 2.0
          %v1901 = vmul.f32 %v1439, 2.0
          %v1902 = vmul.f32 %v1041, 2.0
          %v1903 = vmul.f32 %v1442, 2.0
          %v1904 = vmul.f32 %v1044, 2.0
          %v1905 = vmul.f32 %v1445, 2.0
          %v1906 = vmul.f32 %v1047, 2.0
          %v1907 = vmul.f32 %v1448, 2.0
          %v1908 = vmul.f32 %v1050, 2.0
          %v1909 = vmul.f32 %v1451, 2.0
          %v1910 = vmul.f32 %v1053, 2.0
          %v1911 = vmul.f32 %v1454, 2.0
          %v1912 = vmul.f32 %v1056, 2.0
          %v1913 = vmul.f32 %v1457, 2.0
          %v1914 = vmul.f32 %v1059, 2.0
          %v1915 = vmul.f32 %v1460, 2.0
          %v1916 = vmul.f32 %v1062, 2.0
          %v1917 = vmul.f32 %v1463, 2.0
          %v1918 = vmul.f32 %v1065, 2.0
          %v1919 = vmul.f32 %v1466, 2.0
          %v1920 = vmul.f32 %v1068, 2.0
          %v1921 = vmul.f32 %v1469, 2.0
          %v1922 = vmul.f32 %v1071, 2.0
          %v1923 = vmul.f32 %v1472, 2.0
          %v1924 = vmul.f32 %v1074, 2.0
          %v1925 = vmul.f32 %v1475, 2.0
          %v1926 = vmul.f32 %v1077, 2.0
          %v1927 = vmul.f32 %v1478, 2.0
          %v1928 = vmul.f32 %v1080, 2.0
          %v1929 = vmul.f32 %v1481, 2.0
          %v1930 = vmul.f32 %v1083, 2.0
          %v1931 = vmul.f32 %v1484, 2.0
          %v1932 = vmul.f32 %v1086, 2.0
          %v1933 = vmul.f32 %v1487, 2.0
          %v1934 = vmul.f32 %v1089, 2.0
          %v1935 = vmul.f32 %v1490, 2.0
          %v1936 = vmul.f32 %v1092, 2.0
          %v1937 = vmul.f32 %v1493, 2.0
          %v1938 = vmul.f32 %v1095, 2.0
          %v1939 = vmul.f32 %v1496, 2.0
          %v1940 = vmul.f32 %v1098, 2.0
          %v1941 = vmul.f32 %v1499, 2.0
          %v1942 = vmul.f32 %v1101, 2.0
          %v1943 = vmul.f32 %v1502, 2.0
          %v1944 = vmul.f32 %v1104, 2.0
          %v1945 = vmul.f32 %v1505, 2.0
          %v1946 = vmul.f32 %v1107, 2.0
          %v1947 = vmul.f32 %v1508, 2.0
          %v1948 = vmul.f32 %v1110, 2.0
          %v1949 = vmul.f32 %v1511, 2.0
          %v1950 = vmul.f32 %v1113, 2.0
          %v1951 = vmul.f32 %v1514, 2.0
          %v1952 = vmul.f32 %v1116, 2.0
          %v1953 = vmul.f32 %v1517, 2.0
          %v1954 = vmul.f32 %v1119, 2.0
          %v1955 = vmul.f32 %v1520, 2.0
          %v1956 = vmul.f32 %v1122, 2.0
          %v1957 = vmul.f32 %v1523, 2.0
          %v1958 = vmul.f32 %v1125, 2.0
          %v1959 = vmul.f32 %v1526, 2.0
          %v1960 = vmul.f32 %v1128, 2.0
          %v1961 = vmul.f32 %v1529, 2.0
          %v1962 = vmul.f32 %v1131, 2.0
          %v1963 = vmul.f32 %v1532, 2.0
          %v1964 = vmul.f32 %v1134, 2.0
          %v1965 = vmul.f32 %v1535, 2.0
          %v1966 = vmul.f32 %v1137, 2.0
          %v1967 = vmul.f32 %v1538, 2.0
          %v1968 = vmul.f32 %v1140, 2.0
          %v1969 = vmul.f32 %v1541, 2.0
          %v1970 = vmul.f32 %v1143, 2.0
          %v1971 = vmul.f32 %v1544, 2.0
          %v1972 = vmul.f32 %v1146, 2.0
          %v1973 = vmul.f32 %v1547, 2.0
          %v1974 = vmul.f32 %v1149, 2.0
          %v1975 = vmul.f32 %v1550, 2.0
          %v1976 = vmul.f32 %v1152, 2.0
          %v1977 = vmul.f32 %v1553, 2.0
          %v1978 = vmul.f32 %v1155, 2.0
          %v1979 = vmul.f32 %v1556, 2.0
          %v1980 = vmul.f32 %v1158, 2.0
          %v1981 = vmul.f32 %v1559, 2.0
          %v1982 = vmul.f32 %v1161, 2.0
          %v1983 = vmul.f32 %v1562, 2.0
          %v1984 = vmul.f32 %v1164, 2.0
          %v1985 = vmul.f32 %v1565, 2.0
          %v1986 = vmul.f32 %v1167, 2.0
          %v1987 = vmul.f32 %v1568, 2.0
          %v1988 = vmul.f32 %v1170, 2.0
          %v1989 = vmul.f32 %v1571, 2.0
          %v1990 = vmul.f32 %v1173, 2.0
          %v1991 = vmul.f32 %v1574, 2.0
          %v1992 = vmul.f32 %v1176, 2.0
          %v1993 = vmul.f32 %v1577, 2.0
          %v1994 = vmul.f32 %v1179, 2.0
          %v1995 = vmul.f32 %v1580, 2.0
          %v1996 = vmul.f32 %v1182, 2.0
          %v1997 = vmul.f32 %v1583, 2.0
          %v1998 = vmul.f32 %v1185, 2.0
          %v1999 = vmul.f32 %v1586, 2.0
          %v2000 = vmul.f32 %v1188, 2.0
          %v2001 = vmul.f32 %v1589, 2.0
          %v2002 = vmul.f32 %v1191, 2.0
          %v2003 = vmul.f32 %v1592, 2.0
          %v2004 = vmul.f32 %v1194, 2.0
          %v2005 = vmul.f32 %v1595, 2.0
          %v2006 = vmul.f32 %v1197, 2.0
          %v2007 = vmul.f32 %v1598, 2.0
          %v2008 = vmul.f32 %v1200, 2.0
          %v2009 = vmul.f32 %v1601, 2.0
          %v2010 = vmul.f32 %v1203, 2.0
          %v2011 = vmul.f32 %v1604, 2.0
          %v2012 = vmul.f32 %v1206, 2.0
          %v2013 = vmul.f32 %v1607, 2.0
          %v2014 = vmul.f32 %v1209, 2.0
          %v2015 = vmul.f32 %v1610, 2.0
          %v2016 = vmul.f32 %v1212, 2.0
          %v2017 = vmul.f32 %v1613, 2.0
          %v2018 = vmul.f32 %v1215, 2.0
          %v2019 = vmul.f32 %v1616, 2.0
          %v2020 = vmul.f32 %v1218, 2.0
          %v2021 = vmul.f32 %v1619, 2.0
          %v2022 = vmul.f32 %v1221, 2.0
          %v2023 = vmul.f32 %v1622, 2.0
          %v2024 = vmul.f32 %v1224, 2.0
          %v2025 = vmul.f32 %v1625, 2.0
          %v2026 = vmul.f32 %v1227, 2.0
          %v2027 = vmul.f32 %v1628, 2.0
          %v2028 = vmul.f32 %v1230, 2.0
          %v2029 = vmul.f32 %v1631, 2.0
          %v2030 = vmul.f32 %v1233, 2.0
          %v2031 = vmul.f32 %v1634, 2.0
          %v2032 = vmul.f32 %v1236, 2.0
          %v2033 = vmul.f32 %v1637, 2.0
          %v2034 = vmul.f32 %v1239, 2.0
          %v2035 = vmul.f32 %v1640, 2.0
          %v2036 = vmul.f32 %v1242, 2.0
          %v2037 = vmul.f32 %v1643, 2.0
          %v2038 = vmul.f32 %v1245, 2.0
          %v2039 = vmul.f32 %v1646, 2.0
          %v2040 = vmul.f32 %v1248, 2.0
          %v2041 = vmul.f32 %v1649, 2.0
          %v2042 = vmul.f32 %v1251, 2.0
          %v2043 = vmul.f32 %v1652, 2.0
          %v2044 = vmul.f32 %v1254, 2.0
          %v2045 = vmul.f32 %v1655, 2.0
          %v2046 = vmul.f32 %v1257, 2.0
          %v2047 = vmul.f32 %v1658, 2.0
          %v2048 = vmul.f32 %v1260, 2.0
          %v2049 = vmul.f32 %v1661, 2.0
          %v2050 = vmul.f32 %v1263, 2.0
          %v2051 = vmul.f32 %v1664, 2.0
          %v2052 = vmul.f32 %v1266, 2.0
          %v2053 = vmul.f32 %v1667, 2.0
          %v2054 = vmul.f32 %v1269, 2.0
          %v2055 = vmul.f32 %v1670, 2.0
          %2057 = vset.pattern.permute.xlu0 0
          %2058 = vperm.xlu0 %2057, %v1672
          %v2059 = vpop.permute.xlu0 %2058
          %2062 = vset.pattern.permute.xlu0 0
          %2063 = vperm.xlu0 %2062, %v1673
          %v2064 = vpop.permute.xlu0 %2063
          %2067 = vset.pattern.permute.xlu0 0
          %2068 = vperm.xlu0 %2067, %v1674
          %v2069 = vpop.permute.xlu0 %2068
          %2072 = vset.pattern.permute.xlu0 0
          %2073 = vperm.xlu0 %2072, %v1675
          %v2074 = vpop.permute.xlu0 %2073
          %2077 = vset.pattern.permute.xlu0 0
          %2078 = vperm.xlu0 %2077, %v1676
          %v2079 = vpop.permute.xlu0 %2078
          %2082 = vset.pattern.permute.xlu0 0
          %2083 = vperm.xlu0 %2082, %v1677
          %v2084 = vpop.permute.xlu0 %2083
          %2087 = vset.pattern.permute.xlu0 0
          %2088 = vperm.xlu0 %2087, %v1678
          %v2089 = vpop.permute.xlu0 %2088
          %2092 = vset.pattern.permute.xlu0 0
          %2093 = vperm.xlu0 %2092, %v1679
          %v2094 = vpop.permute.xlu0 %2093
          %2097 = vset.pattern.permute.xlu0 0
          %2098 = vperm.xlu0 %2097, %v1680
          %v2099 = vpop.permute.xlu0 %2098
          %2102 = vset.pattern.permute.xlu0 0
          %2103 = vperm.xlu0 %2102, %v1681
          %v2104 = vpop.permute.xlu0 %2103
          %2107 = vset.pattern.permute.xlu0 0
          %2108 = vperm.xlu0 %2107, %v1682
          %v2109 = vpop.permute.xlu0 %2108
          %2112 = vset.pattern.permute.xlu0 0
          %2113 = vperm.xlu0 %2112, %v1683
          %v2114 = vpop.permute.xlu0 %2113
          %2117 = vset.pattern.permute.xlu0 0
          %2118 = vperm.xlu0 %2117, %v1684
          %v2119 = vpop.permute.xlu0 %2118
          %2122 = vset.pattern.permute.xlu0 0
          %2123 = vperm.xlu0 %2122, %v1685
          %v2124 = vpop.permute.xlu0 %2123
          %2127 = vset.pattern.permute.xlu0 0
          %2128 = vperm.xlu0 %2127, %v1686
          %v2129 = vpop.permute.xlu0 %2128
          %2132 = vset.pattern.permute.xlu0 0
          %2133 = vperm.xlu0 %2132, %v1687
          %v2134 = vpop.permute.xlu0 %2133
          %2137 = vset.pattern.permute.xlu0 0
          %2138 = vperm.xlu0 %2137, %v1688
          %v2139 = vpop.permute.xlu0 %2138
          %2142 = vset.pattern.permute.xlu0 0
          %2143 = vperm.xlu0 %2142, %v1689
          %v2144 = vpop.permute.xlu0 %2143
          %2147 = vset.pattern.permute.xlu0 0
          %2148 = vperm.xlu0 %2147, %v1690
          %v2149 = vpop.permute.xlu0 %2148
          %2152 = vset.pattern.permute.xlu0 0
          %2153 = vperm.xlu0 %2152, %v1691
          %v2154 = vpop.permute.xlu0 %2153
          %2157 = vset.pattern.permute.xlu0 0
          %2158 = vperm.xlu0 %2157, %v1692
          %v2159 = vpop.permute.xlu0 %2158
          %2162 = vset.pattern.permute.xlu0 0
          %2163 = vperm.xlu0 %2162, %v1693
          %v2164 = vpop.permute.xlu0 %2163
          %2167 = vset.pattern.permute.xlu0 0
          %2168 = vperm.xlu0 %2167, %v1694
          %v2169 = vpop.permute.xlu0 %2168
          %2172 = vset.pattern.permute.xlu0 0
          %2173 = vperm.xlu0 %2172, %v1695
          %v2174 = vpop.permute.xlu0 %2173
          %2177 = vset.pattern.permute.xlu0 0
          %2178 = vperm.xlu0 %2177, %v1696
          %v2179 = vpop.permute.xlu0 %2178
          %2182 = vset.pattern.permute.xlu0 0
          %2183 = vperm.xlu0 %2182, %v1697
          %v2184 = vpop.permute.xlu0 %2183
          %2187 = vset.pattern.permute.xlu0 0
          %2188 = vperm.xlu0 %2187, %v1698
          %v2189 = vpop.permute.xlu0 %2188
          %2192 = vset.pattern.permute.xlu0 0
          %2193 = vperm.xlu0 %2192, %v1699
          %v2194 = vpop.permute.xlu0 %2193
          %2197 = vset.pattern.permute.xlu0 0
          %2198 = vperm.xlu0 %2197, %v1700
          %v2199 = vpop.permute.xlu0 %2198
          %2202 = vset.pattern.permute.xlu0 0
          %2203 = vperm.xlu0 %2202, %v1701
          %v2204 = vpop.permute.xlu0 %2203
          %2207 = vset.pattern.permute.xlu0 0
          %2208 = vperm.xlu0 %2207, %v1702
          %v2209 = vpop.permute.xlu0 %2208
          %2212 = vset.pattern.permute.xlu0 0
          %2213 = vperm.xlu0 %2212, %v1703
          %v2214 = vpop.permute.xlu0 %2213
          %2217 = vset.pattern.permute.xlu0 0
          %2218 = vperm.xlu0 %2217, %v1704
          %v2219 = vpop.permute.xlu0 %2218
          %2222 = vset.pattern.permute.xlu0 0
          %2223 = vperm.xlu0 %2222, %v1705
          %v2224 = vpop.permute.xlu0 %2223
          %2227 = vset.pattern.permute.xlu0 0
          %2228 = vperm.xlu0 %2227, %v1706
          %v2229 = vpop.permute.xlu0 %2228
          %2232 = vset.pattern.permute.xlu0 0
          %2233 = vperm.xlu0 %2232, %v1707
          %v2234 = vpop.permute.xlu0 %2233
          %2237 = vset.pattern.permute.xlu0 0
          %2238 = vperm.xlu0 %2237, %v1708
          %v2239 = vpop.permute.xlu0 %2238
          %2242 = vset.pattern.permute.xlu0 0
          %2243 = vperm.xlu0 %2242, %v1709
          %v2244 = vpop.permute.xlu0 %2243
          %2247 = vset.pattern.permute.xlu0 0
          %2248 = vperm.xlu0 %2247, %v1710
          %v2249 = vpop.permute.xlu0 %2248
          %2252 = vset.pattern.permute.xlu0 0
          %2253 = vperm.xlu0 %2252, %v1711
          %v2254 = vpop.permute.xlu0 %2253
          %2257 = vset.pattern.permute.xlu0 0
          %2258 = vperm.xlu0 %2257, %v1712
          %v2259 = vpop.permute.xlu0 %2258
          %2262 = vset.pattern.permute.xlu0 0
          %2263 = vperm.xlu0 %2262, %v1713
          %v2264 = vpop.permute.xlu0 %2263
          %2267 = vset.pattern.permute.xlu0 0
          %2268 = vperm.xlu0 %2267, %v1714
          %v2269 = vpop.permute.xlu0 %2268
          %2272 = vset.pattern.permute.xlu0 0
          %2273 = vperm.xlu0 %2272, %v1715
          %v2274 = vpop.permute.xlu0 %2273
          %2277 = vset.pattern.permute.xlu0 0
          %2278 = vperm.xlu0 %2277, %v1716
          %v2279 = vpop.permute.xlu0 %2278
          %2282 = vset.pattern.permute.xlu0 0
          %2283 = vperm.xlu0 %2282, %v1717
          %v2284 = vpop.permute.xlu0 %2283
          %2287 = vset.pattern.permute.xlu0 0
          %2288 = vperm.xlu0 %2287, %v1718
          %v2289 = vpop.permute.xlu0 %2288
          %2292 = vset.pattern.permute.xlu0 0
          %2293 = vperm.xlu0 %2292, %v1719
          %v2294 = vpop.permute.xlu0 %2293
          %2297 = vset.pattern.permute.xlu0 0
          %2298 = vperm.xlu0 %2297, %v1720
          %v2299 = vpop.permute.xlu0 %2298
          %2302 = vset.pattern.permute.xlu0 0
          %2303 = vperm.xlu0 %2302, %v1721
          %v2304 = vpop.permute.xlu0 %2303
          %2307 = vset.pattern.permute.xlu0 0
          %2308 = vperm.xlu0 %2307, %v1722
          %v2309 = vpop.permute.xlu0 %2308
          %2312 = vset.pattern.permute.xlu0 0
          %2313 = vperm.xlu0 %2312, %v1723
          %v2314 = vpop.permute.xlu0 %2313
          %2317 = vset.pattern.permute.xlu0 0
          %2318 = vperm.xlu0 %2317, %v1724
          %v2319 = vpop.permute.xlu0 %2318
          %2322 = vset.pattern.permute.xlu0 0
          %2323 = vperm.xlu0 %2322, %v1725
          %v2324 = vpop.permute.xlu0 %2323
          %2327 = vset.pattern.permute.xlu0 0
          %2328 = vperm.xlu0 %2327, %v1726
          %v2329 = vpop.permute.xlu0 %2328
          %2332 = vset.pattern.permute.xlu0 0
          %2333 = vperm.xlu0 %2332, %v1727
          %v2334 = vpop.permute.xlu0 %2333
          %2337 = vset.pattern.permute.xlu0 0
          %2338 = vperm.xlu0 %2337, %v1728
          %v2339 = vpop.permute.xlu0 %2338
          %2342 = vset.pattern.permute.xlu0 0
          %2343 = vperm.xlu0 %2342, %v1729
          %v2344 = vpop.permute.xlu0 %2343
          %2347 = vset.pattern.permute.xlu0 0
          %2348 = vperm.xlu0 %2347, %v1730
          %v2349 = vpop.permute.xlu0 %2348
          %2352 = vset.pattern.permute.xlu0 0
          %2353 = vperm.xlu0 %2352, %v1731
          %v2354 = vpop.permute.xlu0 %2353
          %2357 = vset.pattern.permute.xlu0 0
          %2358 = vperm.xlu0 %2357, %v1732
          %v2359 = vpop.permute.xlu0 %2358
          %2362 = vset.pattern.permute.xlu0 0
          %2363 = vperm.xlu0 %2362, %v1733
          %v2364 = vpop.permute.xlu0 %2363
          %2367 = vset.pattern.permute.xlu0 0
          %2368 = vperm.xlu0 %2367, %v1734
          %v2369 = vpop.permute.xlu0 %2368
          %2372 = vset.pattern.permute.xlu0 0
          %2373 = vperm.xlu0 %2372, %v1735
          %v2374 = vpop.permute.xlu0 %2373
          %2377 = vset.pattern.permute.xlu0 0
          %2378 = vperm.xlu0 %2377, %v1736
          %v2379 = vpop.permute.xlu0 %2378
          %2382 = vset.pattern.permute.xlu0 0
          %2383 = vperm.xlu0 %2382, %v1737
          %v2384 = vpop.permute.xlu0 %2383
          %2387 = vset.pattern.permute.xlu0 0
          %2388 = vperm.xlu0 %2387, %v1738
          %v2389 = vpop.permute.xlu0 %2388
          %2392 = vset.pattern.permute.xlu0 0
          %2393 = vperm.xlu0 %2392, %v1739
          %v2394 = vpop.permute.xlu0 %2393
          %2397 = vset.pattern.permute.xlu0 0
          %2398 = vperm.xlu0 %2397, %v1740
          %v2399 = vpop.permute.xlu0 %2398
          %2402 = vset.pattern.permute.xlu0 0
          %2403 = vperm.xlu0 %2402, %v1741
          %v2404 = vpop.permute.xlu0 %2403
          %2407 = vset.pattern.permute.xlu0 0
          %2408 = vperm.xlu0 %2407, %v1742
          %v2409 = vpop.permute.xlu0 %2408
          %2412 = vset.pattern.permute.xlu0 0
          %2413 = vperm.xlu0 %2412, %v1743
          %v2414 = vpop.permute.xlu0 %2413
          %2417 = vset.pattern.permute.xlu0 0
          %2418 = vperm.xlu0 %2417, %v1744
          %v2419 = vpop.permute.xlu0 %2418
          %2422 = vset.pattern.permute.xlu0 0
          %2423 = vperm.xlu0 %2422, %v1745
          %v2424 = vpop.permute.xlu0 %2423
          %2427 = vset.pattern.permute.xlu0 0
          %2428 = vperm.xlu0 %2427, %v1746
          %v2429 = vpop.permute.xlu0 %2428
          %2432 = vset.pattern.permute.xlu0 0
          %2433 = vperm.xlu0 %2432, %v1747
          %v2434 = vpop.permute.xlu0 %2433
          %2437 = vset.pattern.permute.xlu0 0
          %2438 = vperm.xlu0 %2437, %v1748
          %v2439 = vpop.permute.xlu0 %2438
          %2442 = vset.pattern.permute.xlu0 0
          %2443 = vperm.xlu0 %2442, %v1749
          %v2444 = vpop.permute.xlu0 %2443
          %2447 = vset.pattern.permute.xlu0 0
          %2448 = vperm.xlu0 %2447, %v1750
          %v2449 = vpop.permute.xlu0 %2448
          %2452 = vset.pattern.permute.xlu0 0
          %2453 = vperm.xlu0 %2452, %v1751
          %v2454 = vpop.permute.xlu0 %2453
          %2457 = vset.pattern.permute.xlu0 0
          %2458 = vperm.xlu0 %2457, %v1752
          %v2459 = vpop.permute.xlu0 %2458
          %2462 = vset.pattern.permute.xlu0 0
          %2463 = vperm.xlu0 %2462, %v1753
          %v2464 = vpop.permute.xlu0 %2463
          %2467 = vset.pattern.permute.xlu0 0
          %2468 = vperm.xlu0 %2467, %v1754
          %v2469 = vpop.permute.xlu0 %2468
          %2472 = vset.pattern.permute.xlu0 0
          %2473 = vperm.xlu0 %2472, %v1755
          %v2474 = vpop.permute.xlu0 %2473
          %2477 = vset.pattern.permute.xlu0 0
          %2478 = vperm.xlu0 %2477, %v1756
          %v2479 = vpop.permute.xlu0 %2478
          %2482 = vset.pattern.permute.xlu0 0
          %2483 = vperm.xlu0 %2482, %v1757
          %v2484 = vpop.permute.xlu0 %2483
          %2487 = vset.pattern.permute.xlu0 0
          %2488 = vperm.xlu0 %2487, %v1758
          %v2489 = vpop.permute.xlu0 %2488
          %2492 = vset.pattern.permute.xlu0 0
          %2493 = vperm.xlu0 %2492, %v1759
          %v2494 = vpop.permute.xlu0 %2493
          %2497 = vset.pattern.permute.xlu0 0
          %2498 = vperm.xlu0 %2497, %v1760
          %v2499 = vpop.permute.xlu0 %2498
          %2502 = vset.pattern.permute.xlu0 0
          %2503 = vperm.xlu0 %2502, %v1761
          %v2504 = vpop.permute.xlu0 %2503
          %2507 = vset.pattern.permute.xlu0 0
          %2508 = vperm.xlu0 %2507, %v1762
          %v2509 = vpop.permute.xlu0 %2508
          %2512 = vset.pattern.permute.xlu0 0
          %2513 = vperm.xlu0 %2512, %v1763
          %v2514 = vpop.permute.xlu0 %2513
          %2517 = vset.pattern.permute.xlu0 0
          %2518 = vperm.xlu0 %2517, %v1764
          %v2519 = vpop.permute.xlu0 %2518
          %2522 = vset.pattern.permute.xlu0 0
          %2523 = vperm.xlu0 %2522, %v1765
          %v2524 = vpop.permute.xlu0 %2523
          %2527 = vset.pattern.permute.xlu0 0
          %2528 = vperm.xlu0 %2527, %v1766
          %v2529 = vpop.permute.xlu0 %2528
          %2532 = vset.pattern.permute.xlu0 0
          %2533 = vperm.xlu0 %2532, %v1767
          %v2534 = vpop.permute.xlu0 %2533
          %2537 = vset.pattern.permute.xlu0 0
          %2538 = vperm.xlu0 %2537, %v1768
          %v2539 = vpop.permute.xlu0 %2538
          %2542 = vset.pattern.permute.xlu0 0
          %2543 = vperm.xlu0 %2542, %v1769
          %v2544 = vpop.permute.xlu0 %2543
          %2547 = vset.pattern.permute.xlu0 0
          %2548 = vperm.xlu0 %2547, %v1770
          %v2549 = vpop.permute.xlu0 %2548
          %2552 = vset.pattern.permute.xlu0 0
          %2553 = vperm.xlu0 %2552, %v1771
          %v2554 = vpop.permute.xlu0 %2553
          %2557 = vset.pattern.permute.xlu0 0
          %2558 = vperm.xlu0 %2557, %v1772
          %v2559 = vpop.permute.xlu0 %2558
          %2562 = vset.pattern.permute.xlu0 0
          %2563 = vperm.xlu0 %2562, %v1773
          %v2564 = vpop.permute.xlu0 %2563
          %2567 = vset.pattern.permute.xlu0 0
          %2568 = vperm.xlu0 %2567, %v1774
          %v2569 = vpop.permute.xlu0 %2568
          %2572 = vset.pattern.permute.xlu0 0
          %2573 = vperm.xlu0 %2572, %v1775
          %v2574 = vpop.permute.xlu0 %2573
          %2577 = vset.pattern.permute.xlu0 0
          %2578 = vperm.xlu0 %2577, %v1776
          %v2579 = vpop.permute.xlu0 %2578
          %2582 = vset.pattern.permute.xlu0 0
          %2583 = vperm.xlu0 %2582, %v1777
          %v2584 = vpop.permute.xlu0 %2583
          %2587 = vset.pattern.permute.xlu0 0
          %2588 = vperm.xlu0 %2587, %v1778
          %v2589 = vpop.permute.xlu0 %2588
          %2592 = vset.pattern.permute.xlu0 0
          %2593 = vperm.xlu0 %2592, %v1779
          %v2594 = vpop.permute.xlu0 %2593
          %2597 = vset.pattern.permute.xlu0 0
          %2598 = vperm.xlu0 %2597, %v1780
          %v2599 = vpop.permute.xlu0 %2598
          %2602 = vset.pattern.permute.xlu0 0
          %2603 = vperm.xlu0 %2602, %v1781
          %v2604 = vpop.permute.xlu0 %2603
          %2607 = vset.pattern.permute.xlu0 0
          %2608 = vperm.xlu0 %2607, %v1782
          %v2609 = vpop.permute.xlu0 %2608
          %2612 = vset.pattern.permute.xlu0 0
          %2613 = vperm.xlu0 %2612, %v1783
          %v2614 = vpop.permute.xlu0 %2613
          %2617 = vset.pattern.permute.xlu0 0
          %2618 = vperm.xlu0 %2617, %v1784
          %v2619 = vpop.permute.xlu0 %2618
          %2622 = vset.pattern.permute.xlu0 0
          %2623 = vperm.xlu0 %2622, %v1785
          %v2624 = vpop.permute.xlu0 %2623
          %2627 = vset.pattern.permute.xlu0 0
          %2628 = vperm.xlu0 %2627, %v1786
          %v2629 = vpop.permute.xlu0 %2628
          %2632 = vset.pattern.permute.xlu0 0
          %2633 = vperm.xlu0 %2632, %v1787
          %v2634 = vpop.permute.xlu0 %2633
          %2637 = vset.pattern.permute.xlu0 0
          %2638 = vperm.xlu0 %2637, %v1788
          %v2639 = vpop.permute.xlu0 %2638
          %2642 = vset.pattern.permute.xlu0 0
          %2643 = vperm.xlu0 %2642, %v1789
          %v2644 = vpop.permute.xlu0 %2643
          %2647 = vset.pattern.permute.xlu0 0
          %2648 = vperm.xlu0 %2647, %v1790
          %v2649 = vpop.permute.xlu0 %2648
          %2652 = vset.pattern.permute.xlu0 0
          %2653 = vperm.xlu0 %2652, %v1791
          %v2654 = vpop.permute.xlu0 %2653
          %2657 = vset.pattern.permute.xlu0 0
          %2658 = vperm.xlu0 %2657, %v1792
          %v2659 = vpop.permute.xlu0 %2658
          %2662 = vset.pattern.permute.xlu0 0
          %2663 = vperm.xlu0 %2662, %v1793
          %v2664 = vpop.permute.xlu0 %2663
          %2667 = vset.pattern.permute.xlu0 0
          %2668 = vperm.xlu0 %2667, %v1794
          %v2669 = vpop.permute.xlu0 %2668
          %2672 = vset.pattern.permute.xlu0 0
          %2673 = vperm.xlu0 %2672, %v1795
          %v2674 = vpop.permute.xlu0 %2673
          %2677 = vset.pattern.permute.xlu0 0
          %2678 = vperm.xlu0 %2677, %v1796
          %v2679 = vpop.permute.xlu0 %2678
          %2682 = vset.pattern.permute.xlu0 0
          %2683 = vperm.xlu0 %2682, %v1797
          %v2684 = vpop.permute.xlu0 %2683
          %2687 = vset.pattern.permute.xlu0 0
          %2688 = vperm.xlu0 %2687, %v1798
          %v2689 = vpop.permute.xlu0 %2688
          %2692 = vset.pattern.permute.xlu0 0
          %2693 = vperm.xlu0 %2692, %v1799
          %v2694 = vpop.permute.xlu0 %2693
          %v2696 = vsub.f32 %v2059, %v1800
          %v2697 = vsub.f32 %v2059, %v1801
          %v2698 = vsub.f32 %v2064, %v1802
          %v2699 = vsub.f32 %v2064, %v1803
          %v2700 = vsub.f32 %v2069, %v1804
          %v2701 = vsub.f32 %v2069, %v1805
          %v2702 = vsub.f32 %v2074, %v1806
          %v2703 = vsub.f32 %v2074, %v1807
          %v2704 = vsub.f32 %v2079, %v1808
          %v2705 = vsub.f32 %v2079, %v1809
          %v2706 = vsub.f32 %v2084, %v1810
          %v2707 = vsub.f32 %v2084, %v1811
          %v2708 = vsub.f32 %v2089, %v1812
          %v2709 = vsub.f32 %v2089, %v1813
          %v2710 = vsub.f32 %v2094, %v1814
          %v2711 = vsub.f32 %v2094, %v1815
          %v2712 = vsub.f32 %v2099, %v1816
          %v2713 = vsub.f32 %v2099, %v1817
          %v2714 = vsub.f32 %v2104, %v1818
          %v2715 = vsub.f32 %v2104, %v1819
          %v2716 = vsub.f32 %v2109, %v1820
          %v2717 = vsub.f32 %v2109, %v1821
          %v2718 = vsub.f32 %v2114, %v1822
          %v2719 = vsub.f32 %v2114, %v1823
          %v2720 = vsub.f32 %v2119, %v1824
          %v2721 = vsub.f32 %v2119, %v1825
          %v2722 = vsub.f32 %v2124, %v1826
          %v2723 = vsub.f32 %v2124, %v1827
          %v2724 = vsub.f32 %v2129, %v1828
          %v2725 = vsub.f32 %v2129, %v1829
          %v2726 = vsub.f32 %v2134, %v1830
          %v2727 = vsub.f32 %v2134, %v1831
          %v2728 = vsub.f32 %v2139, %v1832
          %v2729 = vsub.f32 %v2139, %v1833
          %v2730 = vsub.f32 %v2144, %v1834
          %v2731 = vsub.f32 %v2144, %v1835
          %v2732 = vsub.f32 %v2149, %v1836
          %v2733 = vsub.f32 %v2149, %v1837
          %v2734 = vsub.f32 %v2154, %v1838
          %v2735 = vsub.f32 %v2154, %v1839
          %v2736 = vsub.f32 %v2159, %v1840
          %v2737 = vsub.f32 %v2159, %v1841
          %v2738 = vsub.f32 %v2164, %v1842
          %v2739 = vsub.f32 %v2164, %v1843
          %v2740 = vsub.f32 %v2169, %v1844
          %v2741 = vsub.f32 %v2169, %v1845
          %v2742 = vsub.f32 %v2174, %v1846
          %v2743 = vsub.f32 %v2174, %v1847
          %v2744 = vsub.f32 %v2179, %v1848
          %v2745 = vsub.f32 %v2179, %v1849
          %v2746 = vsub.f32 %v2184, %v1850
          %v2747 = vsub.f32 %v2184, %v1851
          %v2748 = vsub.f32 %v2189, %v1852
          %v2749 = vsub.f32 %v2189, %v1853
          %v2750 = vsub.f32 %v2194, %v1854
          %v2751 = vsub.f32 %v2194, %v1855
          %v2752 = vsub.f32 %v2199, %v1856
          %v2753 = vsub.f32 %v2199, %v1857
          %v2754 = vsub.f32 %v2204, %v1858
          %v2755 = vsub.f32 %v2204, %v1859
          %v2756 = vsub.f32 %v2209, %v1860
          %v2757 = vsub.f32 %v2209, %v1861
          %v2758 = vsub.f32 %v2214, %v1862
          %v2759 = vsub.f32 %v2214, %v1863
          %v2760 = vsub.f32 %v2219, %v1864
          %v2761 = vsub.f32 %v2219, %v1865
          %v2762 = vsub.f32 %v2224, %v1866
          %v2763 = vsub.f32 %v2224, %v1867
          %v2764 = vsub.f32 %v2229, %v1868
          %v2765 = vsub.f32 %v2229, %v1869
          %v2766 = vsub.f32 %v2234, %v1870
          %v2767 = vsub.f32 %v2234, %v1871
          %v2768 = vsub.f32 %v2239, %v1872
          %v2769 = vsub.f32 %v2239, %v1873
          %v2770 = vsub.f32 %v2244, %v1874
          %v2771 = vsub.f32 %v2244, %v1875
          %v2772 = vsub.f32 %v2249, %v1876
          %v2773 = vsub.f32 %v2249, %v1877
          %v2774 = vsub.f32 %v2254, %v1878
          %v2775 = vsub.f32 %v2254, %v1879
          %v2776 = vsub.f32 %v2259, %v1880
          %v2777 = vsub.f32 %v2259, %v1881
          %v2778 = vsub.f32 %v2264, %v1882
          %v2779 = vsub.f32 %v2264, %v1883
          %v2780 = vsub.f32 %v2269, %v1884
          %v2781 = vsub.f32 %v2269, %v1885
          %v2782 = vsub.f32 %v2274, %v1886
          %v2783 = vsub.f32 %v2274, %v1887
          %v2784 = vsub.f32 %v2279, %v1888
          %v2785 = vsub.f32 %v2279, %v1889
          %v2786 = vsub.f32 %v2284, %v1890
          %v2787 = vsub.f32 %v2284, %v1891
          %v2788 = vsub.f32 %v2289, %v1892
          %v2789 = vsub.f32 %v2289, %v1893
          %v2790 = vsub.f32 %v2294, %v1894
          %v2791 = vsub.f32 %v2294, %v1895
          %v2792 = vsub.f32 %v2299, %v1896
          %v2793 = vsub.f32 %v2299, %v1897
          %v2794 = vsub.f32 %v2304, %v1898
          %v2795 = vsub.f32 %v2304, %v1899
          %v2796 = vsub.f32 %v2309, %v1900
          %v2797 = vsub.f32 %v2309, %v1901
          %v2798 = vsub.f32 %v2314, %v1902
          %v2799 = vsub.f32 %v2314, %v1903
          %v2800 = vsub.f32 %v2319, %v1904
          %v2801 = vsub.f32 %v2319, %v1905
          %v2802 = vsub.f32 %v2324, %v1906
          %v2803 = vsub.f32 %v2324, %v1907
          %v2804 = vsub.f32 %v2329, %v1908
          %v2805 = vsub.f32 %v2329, %v1909
          %v2806 = vsub.f32 %v2334, %v1910
          %v2807 = vsub.f32 %v2334, %v1911
          %v2808 = vsub.f32 %v2339, %v1912
          %v2809 = vsub.f32 %v2339, %v1913
          %v2810 = vsub.f32 %v2344, %v1914
          %v2811 = vsub.f32 %v2344, %v1915
          %v2812 = vsub.f32 %v2349, %v1916
          %v2813 = vsub.f32 %v2349, %v1917
          %v2814 = vsub.f32 %v2354, %v1918
          %v2815 = vsub.f32 %v2354, %v1919
          %v2816 = vsub.f32 %v2359, %v1920
          %v2817 = vsub.f32 %v2359, %v1921
          %v2818 = vsub.f32 %v2364, %v1922
          %v2819 = vsub.f32 %v2364, %v1923
          %v2820 = vsub.f32 %v2369, %v1924
          %v2821 = vsub.f32 %v2369, %v1925
          %v2822 = vsub.f32 %v2374, %v1926
          %v2823 = vsub.f32 %v2374, %v1927
          %v2824 = vsub.f32 %v2379, %v1928
          %v2825 = vsub.f32 %v2379, %v1929
          %v2826 = vsub.f32 %v2384, %v1930
          %v2827 = vsub.f32 %v2384, %v1931
          %v2828 = vsub.f32 %v2389, %v1932
          %v2829 = vsub.f32 %v2389, %v1933
          %v2830 = vsub.f32 %v2394, %v1934
          %v2831 = vsub.f32 %v2394, %v1935
          %v2832 = vsub.f32 %v2399, %v1936
          %v2833 = vsub.f32 %v2399, %v1937
          %v2834 = vsub.f32 %v2404, %v1938
          %v2835 = vsub.f32 %v2404, %v1939
          %v2836 = vsub.f32 %v2409, %v1940
          %v2837 = vsub.f32 %v2409, %v1941
          %v2838 = vsub.f32 %v2414, %v1942
          %v2839 = vsub.f32 %v2414, %v1943
          %v2840 = vsub.f32 %v2419, %v1944
          %v2841 = vsub.f32 %v2419, %v1945
          %v2842 = vsub.f32 %v2424, %v1946
          %v2843 = vsub.f32 %v2424, %v1947
          %v2844 = vsub.f32 %v2429, %v1948
          %v2845 = vsub.f32 %v2429, %v1949
          %v2846 = vsub.f32 %v2434, %v1950
          %v2847 = vsub.f32 %v2434, %v1951
          %v2848 = vsub.f32 %v2439, %v1952
          %v2849 = vsub.f32 %v2439, %v1953
          %v2850 = vsub.f32 %v2444, %v1954
          %v2851 = vsub.f32 %v2444, %v1955
          %v2852 = vsub.f32 %v2449, %v1956
          %v2853 = vsub.f32 %v2449, %v1957
          %v2854 = vsub.f32 %v2454, %v1958
          %v2855 = vsub.f32 %v2454, %v1959
          %v2856 = vsub.f32 %v2459, %v1960
          %v2857 = vsub.f32 %v2459, %v1961
          %v2858 = vsub.f32 %v2464, %v1962
          %v2859 = vsub.f32 %v2464, %v1963
          %v2860 = vsub.f32 %v2469, %v1964
          %v2861 = vsub.f32 %v2469, %v1965
          %v2862 = vsub.f32 %v2474, %v1966
          %v2863 = vsub.f32 %v2474, %v1967
          %v2864 = vsub.f32 %v2479, %v1968
          %v2865 = vsub.f32 %v2479, %v1969
          %v2866 = vsub.f32 %v2484, %v1970
          %v2867 = vsub.f32 %v2484, %v1971
          %v2868 = vsub.f32 %v2489, %v1972
          %v2869 = vsub.f32 %v2489, %v1973
          %v2870 = vsub.f32 %v2494, %v1974
          %v2871 = vsub.f32 %v2494, %v1975
          %v2872 = vsub.f32 %v2499, %v1976
          %v2873 = vsub.f32 %v2499, %v1977
          %v2874 = vsub.f32 %v2504, %v1978
          %v2875 = vsub.f32 %v2504, %v1979
          %v2876 = vsub.f32 %v2509, %v1980
          %v2877 = vsub.f32 %v2509, %v1981
          %v2878 = vsub.f32 %v2514, %v1982
          %v2879 = vsub.f32 %v2514, %v1983
          %v2880 = vsub.f32 %v2519, %v1984
          %v2881 = vsub.f32 %v2519, %v1985
          %v2882 = vsub.f32 %v2524, %v1986
          %v2883 = vsub.f32 %v2524, %v1987
          %v2884 = vsub.f32 %v2529, %v1988
          %v2885 = vsub.f32 %v2529, %v1989
          %v2886 = vsub.f32 %v2534, %v1990
          %v2887 = vsub.f32 %v2534, %v1991
          %v2888 = vsub.f32 %v2539, %v1992
          %v2889 = vsub.f32 %v2539, %v1993
          %v2890 = vsub.f32 %v2544, %v1994
          %v2891 = vsub.f32 %v2544, %v1995
          %v2892 = vsub.f32 %v2549, %v1996
          %v2893 = vsub.f32 %v2549, %v1997
          %v2894 = vsub.f32 %v2554, %v1998
          %v2895 = vsub.f32 %v2554, %v1999
          %v2896 = vsub.f32 %v2559, %v2000
          %v2897 = vsub.f32 %v2559, %v2001
          %v2898 = vsub.f32 %v2564, %v2002
          %v2899 = vsub.f32 %v2564, %v2003
          %v2900 = vsub.f32 %v2569, %v2004
          %v2901 = vsub.f32 %v2569, %v2005
          %v2902 = vsub.f32 %v2574, %v2006
          %v2903 = vsub.f32 %v2574, %v2007
          %v2904 = vsub.f32 %v2579, %v2008
          %v2905 = vsub.f32 %v2579, %v2009
          %v2906 = vsub.f32 %v2584, %v2010
          %v2907 = vsub.f32 %v2584, %v2011
          %v2908 = vsub.f32 %v2589, %v2012
          %v2909 = vsub.f32 %v2589, %v2013
          %v2910 = vsub.f32 %v2594, %v2014
          %v2911 = vsub.f32 %v2594, %v2015
          %v2912 = vsub.f32 %v2599, %v2016
          %v2913 = vsub.f32 %v2599, %v2017
          %v2914 = vsub.f32 %v2604, %v2018
          %v2915 = vsub.f32 %v2604, %v2019
          %v2916 = vsub.f32 %v2609, %v2020
          %v2917 = vsub.f32 %v2609, %v2021
          %v2918 = vsub.f32 %v2614, %v2022
          %v2919 = vsub.f32 %v2614, %v2023
          %v2920 = vsub.f32 %v2619, %v2024
          %v2921 = vsub.f32 %v2619, %v2025
          %v2922 = vsub.f32 %v2624, %v2026
          %v2923 = vsub.f32 %v2624, %v2027
          %v2924 = vsub.f32 %v2629, %v2028
          %v2925 = vsub.f32 %v2629, %v2029
          %v2926 = vsub.f32 %v2634, %v2030
          %v2927 = vsub.f32 %v2634, %v2031
          %v2928 = vsub.f32 %v2639, %v2032
          %v2929 = vsub.f32 %v2639, %v2033
          %v2930 = vsub.f32 %v2644, %v2034
          %v2931 = vsub.f32 %v2644, %v2035
          %v2932 = vsub.f32 %v2649, %v2036
          %v2933 = vsub.f32 %v2649, %v2037
          %v2934 = vsub.f32 %v2654, %v2038
          %v2935 = vsub.f32 %v2654, %v2039
          %v2936 = vsub.f32 %v2659, %v2040
          %v2937 = vsub.f32 %v2659, %v2041
          %v2938 = vsub.f32 %v2664, %v2042
          %v2939 = vsub.f32 %v2664, %v2043
          %v2940 = vsub.f32 %v2669, %v2044
          %v2941 = vsub.f32 %v2669, %v2045
          %v2942 = vsub.f32 %v2674, %v2046
          %v2943 = vsub.f32 %v2674, %v2047
          %v2944 = vsub.f32 %v2679, %v2048
          %v2945 = vsub.f32 %v2679, %v2049
          %v2946 = vsub.f32 %v2684, %v2050
          %v2947 = vsub.f32 %v2684, %v2051
          %v2948 = vsub.f32 %v2689, %v2052
          %v2949 = vsub.f32 %v2689, %v2053
          %v2950 = vsub.f32 %v2694, %v2054
          %v2951 = vsub.f32 %v2694, %v2055
          %v2952 = vld [vmem:[%s294] sm:$0x3]
          %v2954 = vperm.slane %v2952, 0
          %v2955 = vperm.slane %v2952, 1
          %v2958 = vadd.f32 %v2696, %v2954
          %v2959 = vadd.f32 %v2697, %v2955
          %v2960 = vadd.f32 %v2698, %v2954
          %v2961 = vadd.f32 %v2699, %v2955
          %v2962 = vadd.f32 %v2700, %v2954
          %v2963 = vadd.f32 %v2701, %v2955
          %v2964 = vadd.f32 %v2702, %v2954
          %v2965 = vadd.f32 %v2703, %v2955
          %v2966 = vadd.f32 %v2704, %v2954
          %v2967 = vadd.f32 %v2705, %v2955
          %v2968 = vadd.f32 %v2706, %v2954
          %v2969 = vadd.f32 %v2707, %v2955
          %v2970 = vadd.f32 %v2708, %v2954
          %v2971 = vadd.f32 %v2709, %v2955
          %v2972 = vadd.f32 %v2710, %v2954
          %v2973 = vadd.f32 %v2711, %v2955
          %v2974 = vadd.f32 %v2712, %v2954
          %v2975 = vadd.f32 %v2713, %v2955
          %v2976 = vadd.f32 %v2714, %v2954
          %v2977 = vadd.f32 %v2715, %v2955
          %v2978 = vadd.f32 %v2716, %v2954
          %v2979 = vadd.f32 %v2717, %v2955
          %v2980 = vadd.f32 %v2718, %v2954
          %v2981 = vadd.f32 %v2719, %v2955
          %v2982 = vadd.f32 %v2720, %v2954
          %v2983 = vadd.f32 %v2721, %v2955
          %v2984 = vadd.f32 %v2722, %v2954
          %v2985 = vadd.f32 %v2723, %v2955
          %v2986 = vadd.f32 %v2724, %v2954
          %v2987 = vadd.f32 %v2725, %v2955
          %v2988 = vadd.f32 %v2726, %v2954
          %v2989 = vadd.f32 %v2727, %v2955
          %v2990 = vadd.f32 %v2728, %v2954
          %v2991 = vadd.f32 %v2729, %v2955
          %v2992 = vadd.f32 %v2730, %v2954
          %v2993 = vadd.f32 %v2731, %v2955
          %v2994 = vadd.f32 %v2732, %v2954
          %v2995 = vadd.f32 %v2733, %v2955
          %v2996 = vadd.f32 %v2734, %v2954
          %v2997 = vadd.f32 %v2735, %v2955
          %v2998 = vadd.f32 %v2736, %v2954
          %v2999 = vadd.f32 %v2737, %v2955
          %v3000 = vadd.f32 %v2738, %v2954
          %v3001 = vadd.f32 %v2739, %v2955
          %v3002 = vadd.f32 %v2740, %v2954
          %v3003 = vadd.f32 %v2741, %v2955
          %v3004 = vadd.f32 %v2742, %v2954
          %v3005 = vadd.f32 %v2743, %v2955
          %v3006 = vadd.f32 %v2744, %v2954
          %v3007 = vadd.f32 %v2745, %v2955
          %v3008 = vadd.f32 %v2746, %v2954
          %v3009 = vadd.f32 %v2747, %v2955
          %v3010 = vadd.f32 %v2748, %v2954
          %v3011 = vadd.f32 %v2749, %v2955
          %v3012 = vadd.f32 %v2750, %v2954
          %v3013 = vadd.f32 %v2751, %v2955
          %v3014 = vadd.f32 %v2752, %v2954
          %v3015 = vadd.f32 %v2753, %v2955
          %v3016 = vadd.f32 %v2754, %v2954
          %v3017 = vadd.f32 %v2755, %v2955
          %v3018 = vadd.f32 %v2756, %v2954
          %v3019 = vadd.f32 %v2757, %v2955
          %v3020 = vadd.f32 %v2758, %v2954
          %v3021 = vadd.f32 %v2759, %v2955
          %v3022 = vadd.f32 %v2760, %v2954
          %v3023 = vadd.f32 %v2761, %v2955
          %v3024 = vadd.f32 %v2762, %v2954
          %v3025 = vadd.f32 %v2763, %v2955
          %v3026 = vadd.f32 %v2764, %v2954
          %v3027 = vadd.f32 %v2765, %v2955
          %v3028 = vadd.f32 %v2766, %v2954
          %v3029 = vadd.f32 %v2767, %v2955
          %v3030 = vadd.f32 %v2768, %v2954
          %v3031 = vadd.f32 %v2769, %v2955
          %v3032 = vadd.f32 %v2770, %v2954
          %v3033 = vadd.f32 %v2771, %v2955
          %v3034 = vadd.f32 %v2772, %v2954
          %v3035 = vadd.f32 %v2773, %v2955
          %v3036 = vadd.f32 %v2774, %v2954
          %v3037 = vadd.f32 %v2775, %v2955
          %v3038 = vadd.f32 %v2776, %v2954
          %v3039 = vadd.f32 %v2777, %v2955
          %v3040 = vadd.f32 %v2778, %v2954
          %v3041 = vadd.f32 %v2779, %v2955
          %v3042 = vadd.f32 %v2780, %v2954
          %v3043 = vadd.f32 %v2781, %v2955
          %v3044 = vadd.f32 %v2782, %v2954
          %v3045 = vadd.f32 %v2783, %v2955
          %v3046 = vadd.f32 %v2784, %v2954
          %v3047 = vadd.f32 %v2785, %v2955
          %v3048 = vadd.f32 %v2786, %v2954
          %v3049 = vadd.f32 %v2787, %v2955
          %v3050 = vadd.f32 %v2788, %v2954
          %v3051 = vadd.f32 %v2789, %v2955
          %v3052 = vadd.f32 %v2790, %v2954
          %v3053 = vadd.f32 %v2791, %v2955
          %v3054 = vadd.f32 %v2792, %v2954
          %v3055 = vadd.f32 %v2793, %v2955
          %v3056 = vadd.f32 %v2794, %v2954
          %v3057 = vadd.f32 %v2795, %v2955
          %v3058 = vadd.f32 %v2796, %v2954
          %v3059 = vadd.f32 %v2797, %v2955
          %v3060 = vadd.f32 %v2798, %v2954
          %v3061 = vadd.f32 %v2799, %v2955
          %v3062 = vadd.f32 %v2800, %v2954
          %v3063 = vadd.f32 %v2801, %v2955
          %v3064 = vadd.f32 %v2802, %v2954
          %v3065 = vadd.f32 %v2803, %v2955
          %v3066 = vadd.f32 %v2804, %v2954
          %v3067 = vadd.f32 %v2805, %v2955
          %v3068 = vadd.f32 %v2806, %v2954
          %v3069 = vadd.f32 %v2807, %v2955
          %v3070 = vadd.f32 %v2808, %v2954
          %v3071 = vadd.f32 %v2809, %v2955
          %v3072 = vadd.f32 %v2810, %v2954
          %v3073 = vadd.f32 %v2811, %v2955
          %v3074 = vadd.f32 %v2812, %v2954
          %v3075 = vadd.f32 %v2813, %v2955
          %v3076 = vadd.f32 %v2814, %v2954
          %v3077 = vadd.f32 %v2815, %v2955
          %v3078 = vadd.f32 %v2816, %v2954
          %v3079 = vadd.f32 %v2817, %v2955
          %v3080 = vadd.f32 %v2818, %v2954
          %v3081 = vadd.f32 %v2819, %v2955
          %v3082 = vadd.f32 %v2820, %v2954
          %v3083 = vadd.f32 %v2821, %v2955
          %v3084 = vadd.f32 %v2822, %v2954
          %v3085 = vadd.f32 %v2823, %v2955
          %v3086 = vadd.f32 %v2824, %v2954
          %v3087 = vadd.f32 %v2825, %v2955
          %v3088 = vadd.f32 %v2826, %v2954
          %v3089 = vadd.f32 %v2827, %v2955
          %v3090 = vadd.f32 %v2828, %v2954
          %v3091 = vadd.f32 %v2829, %v2955
          %v3092 = vadd.f32 %v2830, %v2954
          %v3093 = vadd.f32 %v2831, %v2955
          %v3094 = vadd.f32 %v2832, %v2954
          %v3095 = vadd.f32 %v2833, %v2955
          %v3096 = vadd.f32 %v2834, %v2954
          %v3097 = vadd.f32 %v2835, %v2955
          %v3098 = vadd.f32 %v2836, %v2954
          %v3099 = vadd.f32 %v2837, %v2955
          %v3100 = vadd.f32 %v2838, %v2954
          %v3101 = vadd.f32 %v2839, %v2955
          %v3102 = vadd.f32 %v2840, %v2954
          %v3103 = vadd.f32 %v2841, %v2955
          %v3104 = vadd.f32 %v2842, %v2954
          %v3105 = vadd.f32 %v2843, %v2955
          %v3106 = vadd.f32 %v2844, %v2954
          %v3107 = vadd.f32 %v2845, %v2955
          %v3108 = vadd.f32 %v2846, %v2954
          %v3109 = vadd.f32 %v2847, %v2955
          %v3110 = vadd.f32 %v2848, %v2954
          %v3111 = vadd.f32 %v2849, %v2955
          %v3112 = vadd.f32 %v2850, %v2954
          %v3113 = vadd.f32 %v2851, %v2955
          %v3114 = vadd.f32 %v2852, %v2954
          %v3115 = vadd.f32 %v2853, %v2955
          %v3116 = vadd.f32 %v2854, %v2954
          %v3117 = vadd.f32 %v2855, %v2955
          %v3118 = vadd.f32 %v2856, %v2954
          %v3119 = vadd.f32 %v2857, %v2955
          %v3120 = vadd.f32 %v2858, %v2954
          %v3121 = vadd.f32 %v2859, %v2955
          %v3122 = vadd.f32 %v2860, %v2954
          %v3123 = vadd.f32 %v2861, %v2955
          %v3124 = vadd.f32 %v2862, %v2954
          %v3125 = vadd.f32 %v2863, %v2955
          %v3126 = vadd.f32 %v2864, %v2954
          %v3127 = vadd.f32 %v2865, %v2955
          %v3128 = vadd.f32 %v2866, %v2954
          %v3129 = vadd.f32 %v2867, %v2955
          %v3130 = vadd.f32 %v2868, %v2954
          %v3131 = vadd.f32 %v2869, %v2955
          %v3132 = vadd.f32 %v2870, %v2954
          %v3133 = vadd.f32 %v2871, %v2955
          %v3134 = vadd.f32 %v2872, %v2954
          %v3135 = vadd.f32 %v2873, %v2955
          %v3136 = vadd.f32 %v2874, %v2954
          %v3137 = vadd.f32 %v2875, %v2955
          %v3138 = vadd.f32 %v2876, %v2954
          %v3139 = vadd.f32 %v2877, %v2955
          %v3140 = vadd.f32 %v2878, %v2954
          %v3141 = vadd.f32 %v2879, %v2955
          %v3142 = vadd.f32 %v2880, %v2954
          %v3143 = vadd.f32 %v2881, %v2955
          %v3144 = vadd.f32 %v2882, %v2954
          %v3145 = vadd.f32 %v2883, %v2955
          %v3146 = vadd.f32 %v2884, %v2954
          %v3147 = vadd.f32 %v2885, %v2955
          %v3148 = vadd.f32 %v2886, %v2954
          %v3149 = vadd.f32 %v2887, %v2955
          %v3150 = vadd.f32 %v2888, %v2954
          %v3151 = vadd.f32 %v2889, %v2955
          %v3152 = vadd.f32 %v2890, %v2954
          %v3153 = vadd.f32 %v2891, %v2955
          %v3154 = vadd.f32 %v2892, %v2954
          %v3155 = vadd.f32 %v2893, %v2955
          %v3156 = vadd.f32 %v2894, %v2954
          %v3157 = vadd.f32 %v2895, %v2955
          %v3158 = vadd.f32 %v2896, %v2954
          %v3159 = vadd.f32 %v2897, %v2955
          %v3160 = vadd.f32 %v2898, %v2954
          %v3161 = vadd.f32 %v2899, %v2955
          %v3162 = vadd.f32 %v2900, %v2954
          %v3163 = vadd.f32 %v2901, %v2955
          %v3164 = vadd.f32 %v2902, %v2954
          %v3165 = vadd.f32 %v2903, %v2955
          %v3166 = vadd.f32 %v2904, %v2954
          %v3167 = vadd.f32 %v2905, %v2955
          %v3168 = vadd.f32 %v2906, %v2954
          %v3169 = vadd.f32 %v2907, %v2955
          %v3170 = vadd.f32 %v2908, %v2954
          %v3171 = vadd.f32 %v2909, %v2955
          %v3172 = vadd.f32 %v2910, %v2954
          %v3173 = vadd.f32 %v2911, %v2955
          %v3174 = vadd.f32 %v2912, %v2954
          %v3175 = vadd.f32 %v2913, %v2955
          %v3176 = vadd.f32 %v2914, %v2954
          %v3177 = vadd.f32 %v2915, %v2955
          %v3178 = vadd.f32 %v2916, %v2954
          %v3179 = vadd.f32 %v2917, %v2955
          %v3180 = vadd.f32 %v2918, %v2954
          %v3181 = vadd.f32 %v2919, %v2955
          %v3182 = vadd.f32 %v2920, %v2954
          %v3183 = vadd.f32 %v2921, %v2955
          %v3184 = vadd.f32 %v2922, %v2954
          %v3185 = vadd.f32 %v2923, %v2955
          %v3186 = vadd.f32 %v2924, %v2954
          %v3187 = vadd.f32 %v2925, %v2955
          %v3188 = vadd.f32 %v2926, %v2954
          %v3189 = vadd.f32 %v2927, %v2955
          %v3190 = vadd.f32 %v2928, %v2954
          %v3191 = vadd.f32 %v2929, %v2955
          %v3192 = vadd.f32 %v2930, %v2954
          %v3193 = vadd.f32 %v2931, %v2955
          %v3194 = vadd.f32 %v2932, %v2954
          %v3195 = vadd.f32 %v2933, %v2955
          %v3196 = vadd.f32 %v2934, %v2954
          %v3197 = vadd.f32 %v2935, %v2955
          %v3198 = vadd.f32 %v2936, %v2954
          %v3199 = vadd.f32 %v2937, %v2955
          %v3200 = vadd.f32 %v2938, %v2954
          %v3201 = vadd.f32 %v2939, %v2955
          %v3202 = vadd.f32 %v2940, %v2954
          %v3203 = vadd.f32 %v2941, %v2955
          %v3204 = vadd.f32 %v2942, %v2954
          %v3205 = vadd.f32 %v2943, %v2955
          %v3206 = vadd.f32 %v2944, %v2954
          %v3207 = vadd.f32 %v2945, %v2955
          %v3208 = vadd.f32 %v2946, %v2954
          %v3209 = vadd.f32 %v2947, %v2955
          %v3210 = vadd.f32 %v2948, %v2954
          %v3211 = vadd.f32 %v2949, %v2955
          %v3212 = vadd.f32 %v2950, %v2954
          %v3213 = vadd.f32 %v2951, %v2955
          %v3214 = vmax.f32 %v2958, 0.0
          %v3215 = vmax.f32 %v2959, 0.0
          %v3216 = vmax.f32 %v2960, 0.0
          %v3217 = vmax.f32 %v2961, 0.0
          %v3218 = vmax.f32 %v2962, 0.0
          %v3219 = vmax.f32 %v2963, 0.0
          %v3220 = vmax.f32 %v2964, 0.0
          %v3221 = vmax.f32 %v2965, 0.0
          %v3222 = vmax.f32 %v2966, 0.0
          %v3223 = vmax.f32 %v2967, 0.0
          %v3224 = vmax.f32 %v2968, 0.0
          %v3225 = vmax.f32 %v2969, 0.0
          %v3226 = vmax.f32 %v2970, 0.0
          %v3227 = vmax.f32 %v2971, 0.0
          %v3228 = vmax.f32 %v2972, 0.0
          %v3229 = vmax.f32 %v2973, 0.0
          %v3230 = vmax.f32 %v2974, 0.0
          %v3231 = vmax.f32 %v2975, 0.0
          %v3232 = vmax.f32 %v2976, 0.0
          %v3233 = vmax.f32 %v2977, 0.0
          %v3234 = vmax.f32 %v2978, 0.0
          %v3235 = vmax.f32 %v2979, 0.0
          %v3236 = vmax.f32 %v2980, 0.0
          %v3237 = vmax.f32 %v2981, 0.0
          %v3238 = vmax.f32 %v2982, 0.0
          %v3239 = vmax.f32 %v2983, 0.0
          %v3240 = vmax.f32 %v2984, 0.0
          %v3241 = vmax.f32 %v2985, 0.0
          %v3242 = vmax.f32 %v2986, 0.0
          %v3243 = vmax.f32 %v2987, 0.0
          %v3244 = vmax.f32 %v2988, 0.0
          %v3245 = vmax.f32 %v2989, 0.0
          %v3246 = vmax.f32 %v2990, 0.0
          %v3247 = vmax.f32 %v2991, 0.0
          %v3248 = vmax.f32 %v2992, 0.0
          %v3249 = vmax.f32 %v2993, 0.0
          %v3250 = vmax.f32 %v2994, 0.0
          %v3251 = vmax.f32 %v2995, 0.0
          %v3252 = vmax.f32 %v2996, 0.0
          %v3253 = vmax.f32 %v2997, 0.0
          %v3254 = vmax.f32 %v2998, 0.0
          %v3255 = vmax.f32 %v2999, 0.0
          %v3256 = vmax.f32 %v3000, 0.0
          %v3257 = vmax.f32 %v3001, 0.0
          %v3258 = vmax.f32 %v3002, 0.0
          %v3259 = vmax.f32 %v3003, 0.0
          %v3260 = vmax.f32 %v3004, 0.0
          %v3261 = vmax.f32 %v3005, 0.0
          %v3262 = vmax.f32 %v3006, 0.0
          %v3263 = vmax.f32 %v3007, 0.0
          %v3264 = vmax.f32 %v3008, 0.0
          %v3265 = vmax.f32 %v3009, 0.0
          %v3266 = vmax.f32 %v3010, 0.0
          %v3267 = vmax.f32 %v3011, 0.0
          %v3268 = vmax.f32 %v3012, 0.0
          %v3269 = vmax.f32 %v3013, 0.0
          %v3270 = vmax.f32 %v3014, 0.0
          %v3271 = vmax.f32 %v3015, 0.0
          %v3272 = vmax.f32 %v3016, 0.0
          %v3273 = vmax.f32 %v3017, 0.0
          %v3274 = vmax.f32 %v3018, 0.0
          %v3275 = vmax.f32 %v3019, 0.0
          %v3276 = vmax.f32 %v3020, 0.0
          %v3277 = vmax.f32 %v3021, 0.0
          %v3278 = vmax.f32 %v3022, 0.0
          %v3279 = vmax.f32 %v3023, 0.0
          %v3280 = vmax.f32 %v3024, 0.0
          %v3281 = vmax.f32 %v3025, 0.0
          %v3282 = vmax.f32 %v3026, 0.0
          %v3283 = vmax.f32 %v3027, 0.0
          %v3284 = vmax.f32 %v3028, 0.0
          %v3285 = vmax.f32 %v3029, 0.0
          %v3286 = vmax.f32 %v3030, 0.0
          %v3287 = vmax.f32 %v3031, 0.0
          %v3288 = vmax.f32 %v3032, 0.0
          %v3289 = vmax.f32 %v3033, 0.0
          %v3290 = vmax.f32 %v3034, 0.0
          %v3291 = vmax.f32 %v3035, 0.0
          %v3292 = vmax.f32 %v3036, 0.0
          %v3293 = vmax.f32 %v3037, 0.0
          %v3294 = vmax.f32 %v3038, 0.0
          %v3295 = vmax.f32 %v3039, 0.0
          %v3296 = vmax.f32 %v3040, 0.0
          %v3297 = vmax.f32 %v3041, 0.0
          %v3298 = vmax.f32 %v3042, 0.0
          %v3299 = vmax.f32 %v3043, 0.0
          %v3300 = vmax.f32 %v3044, 0.0
          %v3301 = vmax.f32 %v3045, 0.0
          %v3302 = vmax.f32 %v3046, 0.0
          %v3303 = vmax.f32 %v3047, 0.0
          %v3304 = vmax.f32 %v3048, 0.0
          %v3305 = vmax.f32 %v3049, 0.0
          %v3306 = vmax.f32 %v3050, 0.0
          %v3307 = vmax.f32 %v3051, 0.0
          %v3308 = vmax.f32 %v3052, 0.0
          %v3309 = vmax.f32 %v3053, 0.0
          %v3310 = vmax.f32 %v3054, 0.0
          %v3311 = vmax.f32 %v3055, 0.0
          %v3312 = vmax.f32 %v3056, 0.0
          %v3313 = vmax.f32 %v3057, 0.0
          %v3314 = vmax.f32 %v3058, 0.0
          %v3315 = vmax.f32 %v3059, 0.0
          %v3316 = vmax.f32 %v3060, 0.0
          %v3317 = vmax.f32 %v3061, 0.0
          %v3318 = vmax.f32 %v3062, 0.0
          %v3319 = vmax.f32 %v3063, 0.0
          %v3320 = vmax.f32 %v3064, 0.0
          %v3321 = vmax.f32 %v3065, 0.0
          %v3322 = vmax.f32 %v3066, 0.0
          %v3323 = vmax.f32 %v3067, 0.0
          %v3324 = vmax.f32 %v3068, 0.0
          %v3325 = vmax.f32 %v3069, 0.0
          %v3326 = vmax.f32 %v3070, 0.0
          %v3327 = vmax.f32 %v3071, 0.0
          %v3328 = vmax.f32 %v3072, 0.0
          %v3329 = vmax.f32 %v3073, 0.0
          %v3330 = vmax.f32 %v3074, 0.0
          %v3331 = vmax.f32 %v3075, 0.0
          %v3332 = vmax.f32 %v3076, 0.0
          %v3333 = vmax.f32 %v3077, 0.0
          %v3334 = vmax.f32 %v3078, 0.0
          %v3335 = vmax.f32 %v3079, 0.0
          %v3336 = vmax.f32 %v3080, 0.0
          %v3337 = vmax.f32 %v3081, 0.0
          %v3338 = vmax.f32 %v3082, 0.0
          %v3339 = vmax.f32 %v3083, 0.0
          %v3340 = vmax.f32 %v3084, 0.0
          %v3341 = vmax.f32 %v3085, 0.0
          %v3342 = vmax.f32 %v3086, 0.0
          %v3343 = vmax.f32 %v3087, 0.0
          %v3344 = vmax.f32 %v3088, 0.0
          %v3345 = vmax.f32 %v3089, 0.0
          %v3346 = vmax.f32 %v3090, 0.0
          %v3347 = vmax.f32 %v3091, 0.0
          %v3348 = vmax.f32 %v3092, 0.0
          %v3349 = vmax.f32 %v3093, 0.0
          %v3350 = vmax.f32 %v3094, 0.0
          %v3351 = vmax.f32 %v3095, 0.0
          %v3352 = vmax.f32 %v3096, 0.0
          %v3353 = vmax.f32 %v3097, 0.0
          %v3354 = vmax.f32 %v3098, 0.0
          %v3355 = vmax.f32 %v3099, 0.0
          %v3356 = vmax.f32 %v3100, 0.0
          %v3357 = vmax.f32 %v3101, 0.0
          %v3358 = vmax.f32 %v3102, 0.0
          %v3359 = vmax.f32 %v3103, 0.0
          %v3360 = vmax.f32 %v3104, 0.0
          %v3361 = vmax.f32 %v3105, 0.0
          %v3362 = vmax.f32 %v3106, 0.0
          %v3363 = vmax.f32 %v3107, 0.0
          %v3364 = vmax.f32 %v3108, 0.0
          %v3365 = vmax.f32 %v3109, 0.0
          %v3366 = vmax.f32 %v3110, 0.0
          %v3367 = vmax.f32 %v3111, 0.0
          %v3368 = vmax.f32 %v3112, 0.0
          %v3369 = vmax.f32 %v3113, 0.0
          %v3370 = vmax.f32 %v3114, 0.0
          %v3371 = vmax.f32 %v3115, 0.0
          %v3372 = vmax.f32 %v3116, 0.0
          %v3373 = vmax.f32 %v3117, 0.0
          %v3374 = vmax.f32 %v3118, 0.0
          %v3375 = vmax.f32 %v3119, 0.0
          %v3376 = vmax.f32 %v3120, 0.0
          %v3377 = vmax.f32 %v3121, 0.0
          %v3378 = vmax.f32 %v3122, 0.0
          %v3379 = vmax.f32 %v3123, 0.0
          %v3380 = vmax.f32 %v3124, 0.0
          %v3381 = vmax.f32 %v3125, 0.0
          %v3382 = vmax.f32 %v3126, 0.0
          %v3383 = vmax.f32 %v3127, 0.0
          %v3384 = vmax.f32 %v3128, 0.0
          %v3385 = vmax.f32 %v3129, 0.0
          %v3386 = vmax.f32 %v3130, 0.0
          %v3387 = vmax.f32 %v3131, 0.0
          %v3388 = vmax.f32 %v3132, 0.0
          %v3389 = vmax.f32 %v3133, 0.0
          %v3390 = vmax.f32 %v3134, 0.0
          %v3391 = vmax.f32 %v3135, 0.0
          %v3392 = vmax.f32 %v3136, 0.0
          %v3393 = vmax.f32 %v3137, 0.0
          %v3394 = vmax.f32 %v3138, 0.0
          %v3395 = vmax.f32 %v3139, 0.0
          %v3396 = vmax.f32 %v3140, 0.0
          %v3397 = vmax.f32 %v3141, 0.0
          %v3398 = vmax.f32 %v3142, 0.0
          %v3399 = vmax.f32 %v3143, 0.0
          %v3400 = vmax.f32 %v3144, 0.0
          %v3401 = vmax.f32 %v3145, 0.0
          %v3402 = vmax.f32 %v3146, 0.0
          %v3403 = vmax.f32 %v3147, 0.0
          %v3404 = vmax.f32 %v3148, 0.0
          %v3405 = vmax.f32 %v3149, 0.0
          %v3406 = vmax.f32 %v3150, 0.0
          %v3407 = vmax.f32 %v3151, 0.0
          %v3408 = vmax.f32 %v3152, 0.0
          %v3409 = vmax.f32 %v3153, 0.0
          %v3410 = vmax.f32 %v3154, 0.0
          %v3411 = vmax.f32 %v3155, 0.0
          %v3412 = vmax.f32 %v3156, 0.0
          %v3413 = vmax.f32 %v3157, 0.0
          %v3414 = vmax.f32 %v3158, 0.0
          %v3415 = vmax.f32 %v3159, 0.0
          %v3416 = vmax.f32 %v3160, 0.0
          %v3417 = vmax.f32 %v3161, 0.0
          %v3418 = vmax.f32 %v3162, 0.0
          %v3419 = vmax.f32 %v3163, 0.0
          %v3420 = vmax.f32 %v3164, 0.0
          %v3421 = vmax.f32 %v3165, 0.0
          %v3422 = vmax.f32 %v3166, 0.0
          %v3423 = vmax.f32 %v3167, 0.0
          %v3424 = vmax.f32 %v3168, 0.0
          %v3425 = vmax.f32 %v3169, 0.0
          %v3426 = vmax.f32 %v3170, 0.0
          %v3427 = vmax.f32 %v3171, 0.0
          %v3428 = vmax.f32 %v3172, 0.0
          %v3429 = vmax.f32 %v3173, 0.0
          %v3430 = vmax.f32 %v3174, 0.0
          %v3431 = vmax.f32 %v3175, 0.0
          %v3432 = vmax.f32 %v3176, 0.0
          %v3433 = vmax.f32 %v3177, 0.0
          %v3434 = vmax.f32 %v3178, 0.0
          %v3435 = vmax.f32 %v3179, 0.0
          %v3436 = vmax.f32 %v3180, 0.0
          %v3437 = vmax.f32 %v3181, 0.0
          %v3438 = vmax.f32 %v3182, 0.0
          %v3439 = vmax.f32 %v3183, 0.0
          %v3440 = vmax.f32 %v3184, 0.0
          %v3441 = vmax.f32 %v3185, 0.0
          %v3442 = vmax.f32 %v3186, 0.0
          %v3443 = vmax.f32 %v3187, 0.0
          %v3444 = vmax.f32 %v3188, 0.0
          %v3445 = vmax.f32 %v3189, 0.0
          %v3446 = vmax.f32 %v3190, 0.0
          %v3447 = vmax.f32 %v3191, 0.0
          %v3448 = vmax.f32 %v3192, 0.0
          %v3449 = vmax.f32 %v3193, 0.0
          %v3450 = vmax.f32 %v3194, 0.0
          %v3451 = vmax.f32 %v3195, 0.0
          %v3452 = vmax.f32 %v3196, 0.0
          %v3453 = vmax.f32 %v3197, 0.0
          %v3454 = vmax.f32 %v3198, 0.0
          %v3455 = vmax.f32 %v3199, 0.0
          %v3456 = vmax.f32 %v3200, 0.0
          %v3457 = vmax.f32 %v3201, 0.0
          %v3458 = vmax.f32 %v3202, 0.0
          %v3459 = vmax.f32 %v3203, 0.0
          %v3460 = vmax.f32 %v3204, 0.0
          %v3461 = vmax.f32 %v3205, 0.0
          %v3462 = vmax.f32 %v3206, 0.0
          %v3463 = vmax.f32 %v3207, 0.0
          %v3464 = vmax.f32 %v3208, 0.0
          %v3465 = vmax.f32 %v3209, 0.0
          %v3466 = vmax.f32 %v3210, 0.0
          %v3467 = vmax.f32 %v3211, 0.0
          %v3468 = vmax.f32 %v3212, 0.0
          %v3469 = vmax.f32 %v3213, 0.0
          %v3470 = vsel %vm582, 1, 0
          %v3471 = vsel %vm583, 1, 0
          %v3472 = vsel %vm584, 1, 0
          %v3473 = vsel %vm585, 1, 0
          %v3474 = vsel %vm586, 1, 0
          %v3475 = vsel %vm587, 1, 0
          %v3476 = vsel %vm588, 1, 0
          %v3477 = vsel %vm589, 1, 0
          %v3478 = vsel %vm590, 1, 0
          %v3479 = vsel %vm591, 1, 0
          %v3480 = vsel %vm592, 1, 0
          %v3481 = vsel %vm593, 1, 0
          %v3482 = vsel %vm594, 1, 0
          %v3483 = vsel %vm595, 1, 0
          %v3484 = vsel %vm596, 1, 0
          %v3485 = vsel %vm597, 1, 0
          %v3486 = vsel %vm598, 1, 0
          %v3487 = vsel %vm599, 1, 0
          %v3488 = vsel %vm600, 1, 0
          %v3489 = vsel %vm601, 1, 0
          %v3490 = vsel %vm602, 1, 0
          %v3491 = vsel %vm603, 1, 0
          %v3492 = vsel %vm604, 1, 0
          %v3493 = vsel %vm605, 1, 0
          %v3494 = vsel %vm606, 1, 0
          %v3495 = vsel %vm607, 1, 0
          %v3496 = vsel %vm608, 1, 0
          %v3497 = vsel %vm609, 1, 0
          %v3498 = vsel %vm610, 1, 0
          %v3499 = vsel %vm611, 1, 0
          %v3500 = vsel %vm612, 1, 0
          %v3501 = vsel %vm613, 1, 0
          %v3502 = vsel %vm614, 1, 0
          %v3503 = vsel %vm615, 1, 0
          %v3504 = vsel %vm616, 1, 0
          %v3505 = vsel %vm617, 1, 0
          %v3506 = vsel %vm618, 1, 0
          %v3507 = vsel %vm619, 1, 0
          %v3508 = vsel %vm620, 1, 0
          %v3509 = vsel %vm621, 1, 0
          %v3510 = vsel %vm622, 1, 0
          %v3511 = vsel %vm623, 1, 0
          %v3512 = vsel %vm624, 1, 0
          %v3513 = vsel %vm625, 1, 0
          %v3514 = vsel %vm626, 1, 0
          %v3515 = vsel %vm627, 1, 0
          %v3516 = vsel %vm628, 1, 0
          %v3517 = vsel %vm629, 1, 0
          %v3518 = vsel %vm630, 1, 0
          %v3519 = vsel %vm631, 1, 0
          %v3520 = vsel %vm632, 1, 0
          %v3521 = vsel %vm633, 1, 0
          %v3522 = vsel %vm634, 1, 0
          %v3523 = vsel %vm635, 1, 0
          %v3524 = vsel %vm636, 1, 0
          %v3525 = vsel %vm637, 1, 0
          %v3526 = vsel %vm638, 1, 0
          %v3527 = vsel %vm639, 1, 0
          %v3528 = vsel %vm640, 1, 0
          %v3529 = vsel %vm641, 1, 0
          %v3530 = vsel %vm642, 1, 0
          %v3531 = vsel %vm643, 1, 0
          %v3532 = vsel %vm644, 1, 0
          %v3533 = vsel %vm645, 1, 0
          %v3534 = vsel %vm646, 1, 0
          %v3535 = vsel %vm647, 1, 0
          %v3536 = vsel %vm648, 1, 0
          %v3537 = vsel %vm649, 1, 0
          %v3538 = vsel %vm650, 1, 0
          %v3539 = vsel %vm651, 1, 0
          %v3540 = vsel %vm652, 1, 0
          %v3541 = vsel %vm653, 1, 0
          %v3542 = vsel %vm654, 1, 0
          %v3543 = vsel %vm655, 1, 0
          %v3544 = vsel %vm656, 1, 0
          %v3545 = vsel %vm657, 1, 0
          %v3546 = vsel %vm658, 1, 0
          %v3547 = vsel %vm659, 1, 0
          %v3548 = vsel %vm660, 1, 0
          %v3549 = vsel %vm661, 1, 0
          %v3550 = vsel %vm662, 1, 0
          %v3551 = vsel %vm663, 1, 0
          %v3552 = vsel %vm664, 1, 0
          %v3553 = vsel %vm665, 1, 0
          %v3554 = vsel %vm666, 1, 0
          %v3555 = vsel %vm667, 1, 0
          %v3556 = vsel %vm668, 1, 0
          %v3557 = vsel %vm669, 1, 0
          %v3558 = vsel %vm670, 1, 0
          %v3559 = vsel %vm671, 1, 0
          %v3560 = vsel %vm672, 1, 0
          %v3561 = vsel %vm673, 1, 0
          %v3562 = vsel %vm674, 1, 0
          %v3563 = vsel %vm675, 1, 0
          %v3564 = vsel %vm676, 1, 0
          %v3565 = vsel %vm677, 1, 0
          %v3566 = vsel %vm678, 1, 0
          %v3567 = vsel %vm679, 1, 0
          %v3568 = vsel %vm680, 1, 0
          %v3569 = vsel %vm681, 1, 0
          %v3570 = vsel %vm682, 1, 0
          %v3571 = vsel %vm683, 1, 0
          %v3572 = vsel %vm684, 1, 0
          %v3573 = vsel %vm685, 1, 0
          %v3574 = vsel %vm686, 1, 0
          %v3575 = vsel %vm687, 1, 0
          %v3576 = vsel %vm688, 1, 0
          %v3577 = vsel %vm689, 1, 0
          %v3578 = vsel %vm690, 1, 0
          %v3579 = vsel %vm691, 1, 0
          %v3580 = vsel %vm692, 1, 0
          %v3581 = vsel %vm693, 1, 0
          %v3582 = vsel %vm694, 1, 0
          %v3583 = vsel %vm695, 1, 0
          %v3584 = vsel %vm696, 1, 0
          %v3585 = vsel %vm697, 1, 0
          %v3586 = vsel %vm698, 1, 0
          %v3587 = vsel %vm699, 1, 0
          %v3588 = vsel %vm700, 1, 0
          %v3589 = vsel %vm701, 1, 0
          %v3590 = vsel %vm702, 1, 0
          %v3591 = vsel %vm703, 1, 0
          %v3592 = vsel %vm704, 1, 0
          %v3593 = vsel %vm705, 1, 0
          %v3594 = vsel %vm706, 1, 0
          %v3595 = vsel %vm707, 1, 0
          %v3596 = vsel %vm708, 1, 0
          %v3597 = vsel %vm709, 1, 0
          %vm3598 = vcmp.eq.s32.totalorder %v3470, 1
          %vm3599 = vcmp.eq.s32.totalorder %v3471, 1
          %vm3600 = vcmp.eq.s32.totalorder %v3472, 1
          %vm3601 = vcmp.eq.s32.totalorder %v3473, 1
          %vm3602 = vcmp.eq.s32.totalorder %v3474, 1
          %vm3603 = vcmp.eq.s32.totalorder %v3475, 1
          %vm3604 = vcmp.eq.s32.totalorder %v3476, 1
          %vm3605 = vcmp.eq.s32.totalorder %v3477, 1
          %vm3606 = vcmp.eq.s32.totalorder %v3478, 1
          %vm3607 = vcmp.eq.s32.totalorder %v3479, 1
          %vm3608 = vcmp.eq.s32.totalorder %v3480, 1
          %vm3609 = vcmp.eq.s32.totalorder %v3481, 1
          %vm3610 = vcmp.eq.s32.totalorder %v3482, 1
          %vm3611 = vcmp.eq.s32.totalorder %v3483, 1
          %vm3612 = vcmp.eq.s32.totalorder %v3484, 1
          %vm3613 = vcmp.eq.s32.totalorder %v3485, 1
          %vm3614 = vcmp.eq.s32.totalorder %v3486, 1
          %vm3615 = vcmp.eq.s32.totalorder %v3487, 1
          %vm3616 = vcmp.eq.s32.totalorder %v3488, 1
          %vm3617 = vcmp.eq.s32.totalorder %v3489, 1
          %vm3618 = vcmp.eq.s32.totalorder %v3490, 1
          %vm3619 = vcmp.eq.s32.totalorder %v3491, 1
          %vm3620 = vcmp.eq.s32.totalorder %v3492, 1
          %vm3621 = vcmp.eq.s32.totalorder %v3493, 1
          %vm3622 = vcmp.eq.s32.totalorder %v3494, 1
          %vm3623 = vcmp.eq.s32.totalorder %v3495, 1
          %vm3624 = vcmp.eq.s32.totalorder %v3496, 1
          %vm3625 = vcmp.eq.s32.totalorder %v3497, 1
          %vm3626 = vcmp.eq.s32.totalorder %v3498, 1
          %vm3627 = vcmp.eq.s32.totalorder %v3499, 1
          %vm3628 = vcmp.eq.s32.totalorder %v3500, 1
          %vm3629 = vcmp.eq.s32.totalorder %v3501, 1
          %vm3630 = vcmp.eq.s32.totalorder %v3502, 1
          %vm3631 = vcmp.eq.s32.totalorder %v3503, 1
          %vm3632 = vcmp.eq.s32.totalorder %v3504, 1
          %vm3633 = vcmp.eq.s32.totalorder %v3505, 1
          %vm3634 = vcmp.eq.s32.totalorder %v3506, 1
          %vm3635 = vcmp.eq.s32.totalorder %v3507, 1
          %vm3636 = vcmp.eq.s32.totalorder %v3508, 1
          %vm3637 = vcmp.eq.s32.totalorder %v3509, 1
          %vm3638 = vcmp.eq.s32.totalorder %v3510, 1
          %vm3639 = vcmp.eq.s32.totalorder %v3511, 1
          %vm3640 = vcmp.eq.s32.totalorder %v3512, 1
          %vm3641 = vcmp.eq.s32.totalorder %v3513, 1
          %vm3642 = vcmp.eq.s32.totalorder %v3514, 1
          %vm3643 = vcmp.eq.s32.totalorder %v3515, 1
          %vm3644 = vcmp.eq.s32.totalorder %v3516, 1
          %vm3645 = vcmp.eq.s32.totalorder %v3517, 1
          %vm3646 = vcmp.eq.s32.totalorder %v3518, 1
          %vm3647 = vcmp.eq.s32.totalorder %v3519, 1
          %vm3648 = vcmp.eq.s32.totalorder %v3520, 1
          %vm3649 = vcmp.eq.s32.totalorder %v3521, 1
          %vm3650 = vcmp.eq.s32.totalorder %v3522, 1
          %vm3651 = vcmp.eq.s32.totalorder %v3523, 1
          %vm3652 = vcmp.eq.s32.totalorder %v3524, 1
          %vm3653 = vcmp.eq.s32.totalorder %v3525, 1
          %vm3654 = vcmp.eq.s32.totalorder %v3526, 1
          %vm3655 = vcmp.eq.s32.totalorder %v3527, 1
          %vm3656 = vcmp.eq.s32.totalorder %v3528, 1
          %vm3657 = vcmp.eq.s32.totalorder %v3529, 1
          %vm3658 = vcmp.eq.s32.totalorder %v3530, 1
          %vm3659 = vcmp.eq.s32.totalorder %v3531, 1
          %vm3660 = vcmp.eq.s32.totalorder %v3532, 1
          %vm3661 = vcmp.eq.s32.totalorder %v3533, 1
          %vm3662 = vcmp.eq.s32.totalorder %v3534, 1
          %vm3663 = vcmp.eq.s32.totalorder %v3535, 1
          %vm3664 = vcmp.eq.s32.totalorder %v3536, 1
          %vm3665 = vcmp.eq.s32.totalorder %v3537, 1
          %vm3666 = vcmp.eq.s32.totalorder %v3538, 1
          %vm3667 = vcmp.eq.s32.totalorder %v3539, 1
          %vm3668 = vcmp.eq.s32.totalorder %v3540, 1
          %vm3669 = vcmp.eq.s32.totalorder %v3541, 1
          %vm3670 = vcmp.eq.s32.totalorder %v3542, 1
          %vm3671 = vcmp.eq.s32.totalorder %v3543, 1
          %vm3672 = vcmp.eq.s32.totalorder %v3544, 1
          %vm3673 = vcmp.eq.s32.totalorder %v3545, 1
          %vm3674 = vcmp.eq.s32.totalorder %v3546, 1
          %vm3675 = vcmp.eq.s32.totalorder %v3547, 1
          %vm3676 = vcmp.eq.s32.totalorder %v3548, 1
          %vm3677 = vcmp.eq.s32.totalorder %v3549, 1
          %vm3678 = vcmp.eq.s32.totalorder %v3550, 1
          %vm3679 = vcmp.eq.s32.totalorder %v3551, 1
          %vm3680 = vcmp.eq.s32.totalorder %v3552, 1
          %vm3681 = vcmp.eq.s32.totalorder %v3553, 1
          %vm3682 = vcmp.eq.s32.totalorder %v3554, 1
          %vm3683 = vcmp.eq.s32.totalorder %v3555, 1
          %vm3684 = vcmp.eq.s32.totalorder %v3556, 1
          %vm3685 = vcmp.eq.s32.totalorder %v3557, 1
          %vm3686 = vcmp.eq.s32.totalorder %v3558, 1
          %vm3687 = vcmp.eq.s32.totalorder %v3559, 1
          %vm3688 = vcmp.eq.s32.totalorder %v3560, 1
          %vm3689 = vcmp.eq.s32.totalorder %v3561, 1
          %vm3690 = vcmp.eq.s32.totalorder %v3562, 1
          %vm3691 = vcmp.eq.s32.totalorder %v3563, 1
          %vm3692 = vcmp.eq.s32.totalorder %v3564, 1
          %vm3693 = vcmp.eq.s32.totalorder %v3565, 1
          %vm3694 = vcmp.eq.s32.totalorder %v3566, 1
          %vm3695 = vcmp.eq.s32.totalorder %v3567, 1
          %vm3696 = vcmp.eq.s32.totalorder %v3568, 1
          %vm3697 = vcmp.eq.s32.totalorder %v3569, 1
          %vm3698 = vcmp.eq.s32.totalorder %v3570, 1
          %vm3699 = vcmp.eq.s32.totalorder %v3571, 1
          %vm3700 = vcmp.eq.s32.totalorder %v3572, 1
          %vm3701 = vcmp.eq.s32.totalorder %v3573, 1
          %vm3702 = vcmp.eq.s32.totalorder %v3574, 1
          %vm3703 = vcmp.eq.s32.totalorder %v3575, 1
          %vm3704 = vcmp.eq.s32.totalorder %v3576, 1
          %vm3705 = vcmp.eq.s32.totalorder %v3577, 1
          %vm3706 = vcmp.eq.s32.totalorder %v3578, 1
          %vm3707 = vcmp.eq.s32.totalorder %v3579, 1
          %vm3708 = vcmp.eq.s32.totalorder %v3580, 1
          %vm3709 = vcmp.eq.s32.totalorder %v3581, 1
          %vm3710 = vcmp.eq.s32.totalorder %v3582, 1
          %vm3711 = vcmp.eq.s32.totalorder %v3583, 1
          %vm3712 = vcmp.eq.s32.totalorder %v3584, 1
          %vm3713 = vcmp.eq.s32.totalorder %v3585, 1
          %vm3714 = vcmp.eq.s32.totalorder %v3586, 1
          %vm3715 = vcmp.eq.s32.totalorder %v3587, 1
          %vm3716 = vcmp.eq.s32.totalorder %v3588, 1
          %vm3717 = vcmp.eq.s32.totalorder %v3589, 1
          %vm3718 = vcmp.eq.s32.totalorder %v3590, 1
          %vm3719 = vcmp.eq.s32.totalorder %v3591, 1
          %vm3720 = vcmp.eq.s32.totalorder %v3592, 1
          %vm3721 = vcmp.eq.s32.totalorder %v3593, 1
          %vm3722 = vcmp.eq.s32.totalorder %v3594, 1
          %vm3723 = vcmp.eq.s32.totalorder %v3595, 1
          %vm3724 = vcmp.eq.s32.totalorder %v3596, 1
          %vm3725 = vcmp.eq.s32.totalorder %v3597, 1
          %v3726 = vsel %vm3598, %v3214, -inf
          %v3727 = vsel %vm3598, %v3215, -inf
          %v3728 = vsel %vm3599, %v3216, -inf
          %v3729 = vsel %vm3599, %v3217, -inf
          %v3730 = vsel %vm3600, %v3218, -inf
          %v3731 = vsel %vm3600, %v3219, -inf
          %v3732 = vsel %vm3601, %v3220, -inf
          %v3733 = vsel %vm3601, %v3221, -inf
          %v3734 = vsel %vm3602, %v3222, -inf
          %v3735 = vsel %vm3602, %v3223, -inf
          %v3736 = vsel %vm3603, %v3224, -inf
          %v3737 = vsel %vm3603, %v3225, -inf
          %v3738 = vsel %vm3604, %v3226, -inf
          %v3739 = vsel %vm3604, %v3227, -inf
          %v3740 = vsel %vm3605, %v3228, -inf
          %v3741 = vsel %vm3605, %v3229, -inf
          %v3742 = vsel %vm3606, %v3230, -inf
          %v3743 = vsel %vm3606, %v3231, -inf
          %v3744 = vsel %vm3607, %v3232, -inf
          %v3745 = vsel %vm3607, %v3233, -inf
          %v3746 = vsel %vm3608, %v3234, -inf
          %v3747 = vsel %vm3608, %v3235, -inf
          %v3748 = vsel %vm3609, %v3236, -inf
          %v3749 = vsel %vm3609, %v3237, -inf
          %v3750 = vsel %vm3610, %v3238, -inf
          %v3751 = vsel %vm3610, %v3239, -inf
          %v3752 = vsel %vm3611, %v3240, -inf
          %v3753 = vsel %vm3611, %v3241, -inf
          %v3754 = vsel %vm3612, %v3242, -inf
          %v3755 = vsel %vm3612, %v3243, -inf
          %v3756 = vsel %vm3613, %v3244, -inf
          %v3757 = vsel %vm3613, %v3245, -inf
          %v3758 = vsel %vm3614, %v3246, -inf
          %v3759 = vsel %vm3614, %v3247, -inf
          %v3760 = vsel %vm3615, %v3248, -inf
          %v3761 = vsel %vm3615, %v3249, -inf
          %v3762 = vsel %vm3616, %v3250, -inf
          %v3763 = vsel %vm3616, %v3251, -inf
          %v3764 = vsel %vm3617, %v3252, -inf
          %v3765 = vsel %vm3617, %v3253, -inf
          %v3766 = vsel %vm3618, %v3254, -inf
          %v3767 = vsel %vm3618, %v3255, -inf
          %v3768 = vsel %vm3619, %v3256, -inf
          %v3769 = vsel %vm3619, %v3257, -inf
          %v3770 = vsel %vm3620, %v3258, -inf
          %v3771 = vsel %vm3620, %v3259, -inf
          %v3772 = vsel %vm3621, %v3260, -inf
          %v3773 = vsel %vm3621, %v3261, -inf
          %v3774 = vsel %vm3622, %v3262, -inf
          %v3775 = vsel %vm3622, %v3263, -inf
          %v3776 = vsel %vm3623, %v3264, -inf
          %v3777 = vsel %vm3623, %v3265, -inf
          %v3778 = vsel %vm3624, %v3266, -inf
          %v3779 = vsel %vm3624, %v3267, -inf
          %v3780 = vsel %vm3625, %v3268, -inf
          %v3781 = vsel %vm3625, %v3269, -inf
          %v3782 = vsel %vm3626, %v3270, -inf
          %v3783 = vsel %vm3626, %v3271, -inf
          %v3784 = vsel %vm3627, %v3272, -inf
          %v3785 = vsel %vm3627, %v3273, -inf
          %v3786 = vsel %vm3628, %v3274, -inf
          %v3787 = vsel %vm3628, %v3275, -inf
          %v3788 = vsel %vm3629, %v3276, -inf
          %v3789 = vsel %vm3629, %v3277, -inf
          %v3790 = vsel %vm3630, %v3278, -inf
          %v3791 = vsel %vm3630, %v3279, -inf
          %v3792 = vsel %vm3631, %v3280, -inf
          %v3793 = vsel %vm3631, %v3281, -inf
          %v3794 = vsel %vm3632, %v3282, -inf
          %v3795 = vsel %vm3632, %v3283, -inf
          %v3796 = vsel %vm3633, %v3284, -inf
          %v3797 = vsel %vm3633, %v3285, -inf
          %v3798 = vsel %vm3634, %v3286, -inf
          %v3799 = vsel %vm3634, %v3287, -inf
          %v3800 = vsel %vm3635, %v3288, -inf
          %v3801 = vsel %vm3635, %v3289, -inf
          %v3802 = vsel %vm3636, %v3290, -inf
          %v3803 = vsel %vm3636, %v3291, -inf
          %v3804 = vsel %vm3637, %v3292, -inf
          %v3805 = vsel %vm3637, %v3293, -inf
          %v3806 = vsel %vm3638, %v3294, -inf
          %v3807 = vsel %vm3638, %v3295, -inf
          %v3808 = vsel %vm3639, %v3296, -inf
          %v3809 = vsel %vm3639, %v3297, -inf
          %v3810 = vsel %vm3640, %v3298, -inf
          %v3811 = vsel %vm3640, %v3299, -inf
          %v3812 = vsel %vm3641, %v3300, -inf
          %v3813 = vsel %vm3641, %v3301, -inf
          %v3814 = vsel %vm3642, %v3302, -inf
          %v3815 = vsel %vm3642, %v3303, -inf
          %v3816 = vsel %vm3643, %v3304, -inf
          %v3817 = vsel %vm3643, %v3305, -inf
          %v3818 = vsel %vm3644, %v3306, -inf
          %v3819 = vsel %vm3644, %v3307, -inf
          %v3820 = vsel %vm3645, %v3308, -inf
          %v3821 = vsel %vm3645, %v3309, -inf
          %v3822 = vsel %vm3646, %v3310, -inf
          %v3823 = vsel %vm3646, %v3311, -inf
          %v3824 = vsel %vm3647, %v3312, -inf
          %v3825 = vsel %vm3647, %v3313, -inf
          %v3826 = vsel %vm3648, %v3314, -inf
          %v3827 = vsel %vm3648, %v3315, -inf
          %v3828 = vsel %vm3649, %v3316, -inf
          %v3829 = vsel %vm3649, %v3317, -inf
          %v3830 = vsel %vm3650, %v3318, -inf
          %v3831 = vsel %vm3650, %v3319, -inf
          %v3832 = vsel %vm3651, %v3320, -inf
          %v3833 = vsel %vm3651, %v3321, -inf
          %v3834 = vsel %vm3652, %v3322, -inf
          %v3835 = vsel %vm3652, %v3323, -inf
          %v3836 = vsel %vm3653, %v3324, -inf
          %v3837 = vsel %vm3653, %v3325, -inf
          %v3838 = vsel %vm3654, %v3326, -inf
          %v3839 = vsel %vm3654, %v3327, -inf
          %v3840 = vsel %vm3655, %v3328, -inf
          %v3841 = vsel %vm3655, %v3329, -inf
          %v3842 = vsel %vm3656, %v3330, -inf
          %v3843 = vsel %vm3656, %v3331, -inf
          %v3844 = vsel %vm3657, %v3332, -inf
          %v3845 = vsel %vm3657, %v3333, -inf
          %v3846 = vsel %vm3658, %v3334, -inf
          %v3847 = vsel %vm3658, %v3335, -inf
          %v3848 = vsel %vm3659, %v3336, -inf
          %v3849 = vsel %vm3659, %v3337, -inf
          %v3850 = vsel %vm3660, %v3338, -inf
          %v3851 = vsel %vm3660, %v3339, -inf
          %v3852 = vsel %vm3661, %v3340, -inf
          %v3853 = vsel %vm3661, %v3341, -inf
          %v3854 = vsel %vm3662, %v3342, -inf
          %v3855 = vsel %vm3662, %v3343, -inf
          %v3856 = vsel %vm3663, %v3344, -inf
          %v3857 = vsel %vm3663, %v3345, -inf
          %v3858 = vsel %vm3664, %v3346, -inf
          %v3859 = vsel %vm3664, %v3347, -inf
          %v3860 = vsel %vm3665, %v3348, -inf
          %v3861 = vsel %vm3665, %v3349, -inf
          %v3862 = vsel %vm3666, %v3350, -inf
          %v3863 = vsel %vm3666, %v3351, -inf
          %v3864 = vsel %vm3667, %v3352, -inf
          %v3865 = vsel %vm3667, %v3353, -inf
          %v3866 = vsel %vm3668, %v3354, -inf
          %v3867 = vsel %vm3668, %v3355, -inf
          %v3868 = vsel %vm3669, %v3356, -inf
          %v3869 = vsel %vm3669, %v3357, -inf
          %v3870 = vsel %vm3670, %v3358, -inf
          %v3871 = vsel %vm3670, %v3359, -inf
          %v3872 = vsel %vm3671, %v3360, -inf
          %v3873 = vsel %vm3671, %v3361, -inf
          %v3874 = vsel %vm3672, %v3362, -inf
          %v3875 = vsel %vm3672, %v3363, -inf
          %v3876 = vsel %vm3673, %v3364, -inf
          %v3877 = vsel %vm3673, %v3365, -inf
          %v3878 = vsel %vm3674, %v3366, -inf
          %v3879 = vsel %vm3674, %v3367, -inf
          %v3880 = vsel %vm3675, %v3368, -inf
          %v3881 = vsel %vm3675, %v3369, -inf
          %v3882 = vsel %vm3676, %v3370, -inf
          %v3883 = vsel %vm3676, %v3371, -inf
          %v3884 = vsel %vm3677, %v3372, -inf
          %v3885 = vsel %vm3677, %v3373, -inf
          %v3886 = vsel %vm3678, %v3374, -inf
          %v3887 = vsel %vm3678, %v3375, -inf
          %v3888 = vsel %vm3679, %v3376, -inf
          %v3889 = vsel %vm3679, %v3377, -inf
          %v3890 = vsel %vm3680, %v3378, -inf
          %v3891 = vsel %vm3680, %v3379, -inf
          %v3892 = vsel %vm3681, %v3380, -inf
          %v3893 = vsel %vm3681, %v3381, -inf
          %v3894 = vsel %vm3682, %v3382, -inf
          %v3895 = vsel %vm3682, %v3383, -inf
          %v3896 = vsel %vm3683, %v3384, -inf
          %v3897 = vsel %vm3683, %v3385, -inf
          %v3898 = vsel %vm3684, %v3386, -inf
          %v3899 = vsel %vm3684, %v3387, -inf
          %v3900 = vsel %vm3685, %v3388, -inf
          %v3901 = vsel %vm3685, %v3389, -inf
          %v3902 = vsel %vm3686, %v3390, -inf
          %v3903 = vsel %vm3686, %v3391, -inf
          %v3904 = vsel %vm3687, %v3392, -inf
          %v3905 = vsel %vm3687, %v3393, -inf
          %v3906 = vsel %vm3688, %v3394, -inf
          %v3907 = vsel %vm3688, %v3395, -inf
          %v3908 = vsel %vm3689, %v3396, -inf
          %v3909 = vsel %vm3689, %v3397, -inf
          %v3910 = vsel %vm3690, %v3398, -inf
          %v3911 = vsel %vm3690, %v3399, -inf
          %v3912 = vsel %vm3691, %v3400, -inf
          %v3913 = vsel %vm3691, %v3401, -inf
          %v3914 = vsel %vm3692, %v3402, -inf
          %v3915 = vsel %vm3692, %v3403, -inf
          %v3916 = vsel %vm3693, %v3404, -inf
          %v3917 = vsel %vm3693, %v3405, -inf
          %v3918 = vsel %vm3694, %v3406, -inf
          %v3919 = vsel %vm3694, %v3407, -inf
          %v3920 = vsel %vm3695, %v3408, -inf
          %v3921 = vsel %vm3695, %v3409, -inf
          %v3922 = vsel %vm3696, %v3410, -inf
          %v3923 = vsel %vm3696, %v3411, -inf
          %v3924 = vsel %vm3697, %v3412, -inf
          %v3925 = vsel %vm3697, %v3413, -inf
          %v3926 = vsel %vm3698, %v3414, -inf
          %v3927 = vsel %vm3698, %v3415, -inf
          %v3928 = vsel %vm3699, %v3416, -inf
          %v3929 = vsel %vm3699, %v3417, -inf
          %v3930 = vsel %vm3700, %v3418, -inf
          %v3931 = vsel %vm3700, %v3419, -inf
          %v3932 = vsel %vm3701, %v3420, -inf
          %v3933 = vsel %vm3701, %v3421, -inf
          %v3934 = vsel %vm3702, %v3422, -inf
          %v3935 = vsel %vm3702, %v3423, -inf
          %v3936 = vsel %vm3703, %v3424, -inf
          %v3937 = vsel %vm3703, %v3425, -inf
          %v3938 = vsel %vm3704, %v3426, -inf
          %v3939 = vsel %vm3704, %v3427, -inf
          %v3940 = vsel %vm3705, %v3428, -inf
          %v3941 = vsel %vm3705, %v3429, -inf
          %v3942 = vsel %vm3706, %v3430, -inf
          %v3943 = vsel %vm3706, %v3431, -inf
          %v3944 = vsel %vm3707, %v3432, -inf
          %v3945 = vsel %vm3707, %v3433, -inf
          %v3946 = vsel %vm3708, %v3434, -inf
          %v3947 = vsel %vm3708, %v3435, -inf
          %v3948 = vsel %vm3709, %v3436, -inf
          %v3949 = vsel %vm3709, %v3437, -inf
          %v3950 = vsel %vm3710, %v3438, -inf
          %v3951 = vsel %vm3710, %v3439, -inf
          %v3952 = vsel %vm3711, %v3440, -inf
          %v3953 = vsel %vm3711, %v3441, -inf
          %v3954 = vsel %vm3712, %v3442, -inf
          %v3955 = vsel %vm3712, %v3443, -inf
          %v3956 = vsel %vm3713, %v3444, -inf
          %v3957 = vsel %vm3713, %v3445, -inf
          %v3958 = vsel %vm3714, %v3446, -inf
          %v3959 = vsel %vm3714, %v3447, -inf
          %v3960 = vsel %vm3715, %v3448, -inf
          %v3961 = vsel %vm3715, %v3449, -inf
          %v3962 = vsel %vm3716, %v3450, -inf
          %v3963 = vsel %vm3716, %v3451, -inf
          %v3964 = vsel %vm3717, %v3452, -inf
          %v3965 = vsel %vm3717, %v3453, -inf
          %v3966 = vsel %vm3718, %v3454, -inf
          %v3967 = vsel %vm3718, %v3455, -inf
          %v3968 = vsel %vm3719, %v3456, -inf
          %v3969 = vsel %vm3719, %v3457, -inf
          %v3970 = vsel %vm3720, %v3458, -inf
          %v3971 = vsel %vm3720, %v3459, -inf
          %v3972 = vsel %vm3721, %v3460, -inf
          %v3973 = vsel %vm3721, %v3461, -inf
          %v3974 = vsel %vm3722, %v3462, -inf
          %v3975 = vsel %vm3722, %v3463, -inf
          %v3976 = vsel %vm3723, %v3464, -inf
          %v3977 = vsel %vm3723, %v3465, -inf
          %v3978 = vsel %vm3724, %v3466, -inf
          %v3979 = vsel %vm3724, %v3467, -inf
          %v3980 = vsel %vm3725, %v3468, -inf
          %v3981 = vsel %vm3725, %v3469, -inf
          %v3982 = vld [vmem:[#allocation2] sm:$0x3]
          %v3983 = vmax.f32 %v3726, %v3730
          %v3984 = vmax.f32 %v3728, %v3732
          %v3985 = vmax.f32 %v3983, %v3734
          %v3986 = vmax.f32 %v3984, %v3736
          %v3987 = vmax.f32 %v3985, %v3738
          %v3988 = vmax.f32 %v3986, %v3740
          %v3989 = vmax.f32 %v3987, %v3742
          %v3990 = vmax.f32 %v3988, %v3744
          %v3991 = vmax.f32 %v3989, %v3746
          %v3992 = vmax.f32 %v3990, %v3748
          %v3993 = vmax.f32 %v3991, %v3750
          %v3994 = vmax.f32 %v3992, %v3752
          %v3995 = vmax.f32 %v3993, %v3754
          %v3996 = vmax.f32 %v3994, %v3756
          %v3997 = vmax.f32 %v3995, %v3758
          %v3998 = vmax.f32 %v3996, %v3760
          %v3999 = vmax.f32 %v3997, %v3762
          %v4000 = vmax.f32 %v3998, %v3764
          %v4001 = vmax.f32 %v3999, %v3766
          %v4002 = vmax.f32 %v4000, %v3768
          %v4003 = vmax.f32 %v4001, %v3770
          %v4004 = vmax.f32 %v4002, %v3772
          %v4005 = vmax.f32 %v4003, %v3774
          %v4006 = vmax.f32 %v4004, %v3776
          %v4007 = vmax.f32 %v4005, %v3778
          %v4008 = vmax.f32 %v4006, %v3780
          %v4009 = vmax.f32 %v4007, %v3782
          %v4010 = vmax.f32 %v4008, %v3784
          %v4011 = vmax.f32 %v4009, %v3786
          %v4012 = vmax.f32 %v4010, %v3788
          %v4013 = vmax.f32 %v4011, %v3790
          %v4014 = vmax.f32 %v4012, %v3792
          %v4015 = vmax.f32 %v4013, %v3794
          %v4016 = vmax.f32 %v4014, %v3796
          %v4017 = vmax.f32 %v4015, %v3798
          %v4018 = vmax.f32 %v4016, %v3800
          %v4019 = vmax.f32 %v4017, %v3802
          %v4020 = vmax.f32 %v4018, %v3804
          %v4021 = vmax.f32 %v4019, %v3806
          %v4022 = vmax.f32 %v4020, %v3808
          %v4023 = vmax.f32 %v4021, %v3810
          %v4024 = vmax.f32 %v4022, %v3812
          %v4025 = vmax.f32 %v4023, %v3814
          %v4026 = vmax.f32 %v4024, %v3816
          %v4027 = vmax.f32 %v4025, %v3818
          %v4028 = vmax.f32 %v4026, %v3820
          %v4029 = vmax.f32 %v4027, %v3822
          %v4030 = vmax.f32 %v4028, %v3824
          %v4031 = vmax.f32 %v4029, %v3826
          %v4032 = vmax.f32 %v4030, %v3828
          %v4033 = vmax.f32 %v4031, %v3830
          %v4034 = vmax.f32 %v4032, %v3832
          %v4035 = vmax.f32 %v4033, %v3834
          %v4036 = vmax.f32 %v4034, %v3836
          %v4037 = vmax.f32 %v4035, %v3838
          %v4038 = vmax.f32 %v4036, %v3840
          %v4039 = vmax.f32 %v4037, %v3842
          %v4040 = vmax.f32 %v4038, %v3844
          %v4041 = vmax.f32 %v4039, %v3846
          %v4042 = vmax.f32 %v4040, %v3848
          %v4043 = vmax.f32 %v4041, %v3850
          %v4044 = vmax.f32 %v4042, %v3852
          %v4045 = vmax.f32 %v4043, %v3854
          %v4046 = vmax.f32 %v4044, %v3856
          %v4047 = vmax.f32 %v4045, %v3858
          %v4048 = vmax.f32 %v4046, %v3860
          %v4049 = vmax.f32 %v4047, %v3862
          %v4050 = vmax.f32 %v4048, %v3864
          %v4051 = vmax.f32 %v4049, %v3866
          %v4052 = vmax.f32 %v4050, %v3868
          %v4053 = vmax.f32 %v4051, %v3870
          %v4054 = vmax.f32 %v4052, %v3872
          %v4055 = vmax.f32 %v4053, %v3874
          %v4056 = vmax.f32 %v4054, %v3876
          %v4057 = vmax.f32 %v4055, %v3878
          %v4058 = vmax.f32 %v4056, %v3880
          %v4059 = vmax.f32 %v4057, %v3882
          %v4060 = vmax.f32 %v4058, %v3884
          %v4061 = vmax.f32 %v4059, %v3886
          %v4062 = vmax.f32 %v4060, %v3888
          %v4063 = vmax.f32 %v4061, %v3890
          %v4064 = vmax.f32 %v4062, %v3892
          %v4065 = vmax.f32 %v4063, %v3894
          %v4066 = vmax.f32 %v4064, %v3896
          %v4067 = vmax.f32 %v4065, %v3898
          %v4068 = vmax.f32 %v4066, %v3900
          %v4069 = vmax.f32 %v4067, %v3902
          %v4070 = vmax.f32 %v4068, %v3904
          %v4071 = vmax.f32 %v4069, %v3906
          %v4072 = vmax.f32 %v4070, %v3908
          %v4073 = vmax.f32 %v4071, %v3910
          %v4074 = vmax.f32 %v4072, %v3912
          %v4075 = vmax.f32 %v4073, %v3914
          %v4076 = vmax.f32 %v4074, %v3916
          %v4077 = vmax.f32 %v4075, %v3918
          %v4078 = vmax.f32 %v4076, %v3920
          %v4079 = vmax.f32 %v4077, %v3922
          %v4080 = vmax.f32 %v4078, %v3924
          %v4081 = vmax.f32 %v4079, %v3926
          %v4082 = vmax.f32 %v4080, %v3928
          %v4083 = vmax.f32 %v4081, %v3930
          %v4084 = vmax.f32 %v4082, %v3932
          %v4085 = vmax.f32 %v4083, %v3934
          %v4086 = vmax.f32 %v4084, %v3936
          %v4087 = vmax.f32 %v4085, %v3938
          %v4088 = vmax.f32 %v4086, %v3940
          %v4089 = vmax.f32 %v4087, %v3942
          %v4090 = vmax.f32 %v4088, %v3944
          %v4091 = vmax.f32 %v4089, %v3946
          %v4092 = vmax.f32 %v4090, %v3948
          %v4093 = vmax.f32 %v4091, %v3950
          %v4094 = vmax.f32 %v4092, %v3952
          %v4095 = vmax.f32 %v4093, %v3954
          %v4096 = vmax.f32 %v4094, %v3956
          %v4097 = vmax.f32 %v4095, %v3958
          %v4098 = vmax.f32 %v4096, %v3960
          %v4099 = vmax.f32 %v4097, %v3962
          %v4100 = vmax.f32 %v4098, %v3964
          %v4101 = vmax.f32 %v4099, %v3966
          %v4102 = vmax.f32 %v4100, %v3968
          %v4103 = vmax.f32 %v4101, %v3970
          %v4104 = vmax.f32 %v4102, %v3972
          %v4105 = vmax.f32 %v4103, %v3974
          %v4106 = vmax.f32 %v4104, %v3976
          %v4107 = vmax.f32 %v4105, %v3978
          %v4108 = vmax.f32 %v4106, %v3980
          %v4109 = vmax.f32 %v4107, %v4108
          %v4110 = vrot.slane %v4109, 4
          %v4111 = vmax.f32 %v4109, %v4110
          %v4112 = vrot.slane %v4111, 2
          %v4113 = vmax.f32 %v4111, %v4112
          %v4114 = vrot.slane %v4113, 1
          %v4115 = vmax.f32 %v4113, %v4114
          %v4116 = vmax.f32 %v3727, %v3731
          %v4117 = vmax.f32 %v3729, %v3733
          %v4118 = vmax.f32 %v4116, %v3735
          %v4119 = vmax.f32 %v4117, %v3737
          %v4120 = vmax.f32 %v4118, %v3739
          %v4121 = vmax.f32 %v4119, %v3741
          %v4122 = vmax.f32 %v4120, %v3743
          %v4123 = vmax.f32 %v4121, %v3745
          %v4124 = vmax.f32 %v4122, %v3747
          %v4125 = vmax.f32 %v4123, %v3749
          %v4126 = vmax.f32 %v4124, %v3751
          %v4127 = vmax.f32 %v4125, %v3753
          %v4128 = vmax.f32 %v4126, %v3755
          %v4129 = vmax.f32 %v4127, %v3757
          %v4130 = vmax.f32 %v4128, %v3759
          %v4131 = vmax.f32 %v4129, %v3761
          %v4132 = vmax.f32 %v4130, %v3763
          %v4133 = vmax.f32 %v4131, %v3765
          %v4134 = vmax.f32 %v4132, %v3767
          %v4135 = vmax.f32 %v4133, %v3769
          %v4136 = vmax.f32 %v4134, %v3771
          %v4137 = vmax.f32 %v4135, %v3773
          %v4138 = vmax.f32 %v4136, %v3775
          %v4139 = vmax.f32 %v4137, %v3777
          %v4140 = vmax.f32 %v4138, %v3779
          %v4141 = vmax.f32 %v4139, %v3781
          %v4142 = vmax.f32 %v4140, %v3783
          %v4143 = vmax.f32 %v4141, %v3785
          %v4144 = vmax.f32 %v4142, %v3787
          %v4145 = vmax.f32 %v4143, %v3789
          %v4146 = vmax.f32 %v4144, %v3791
          %v4147 = vmax.f32 %v4145, %v3793
          %v4148 = vmax.f32 %v4146, %v3795
          %v4149 = vmax.f32 %v4147, %v3797
          %v4150 = vmax.f32 %v4148, %v3799
          %v4151 = vmax.f32 %v4149, %v3801
          %v4152 = vmax.f32 %v4150, %v3803
          %v4153 = vmax.f32 %v4151, %v3805
          %v4154 = vmax.f32 %v4152, %v3807
          %v4155 = vmax.f32 %v4153, %v3809
          %v4156 = vmax.f32 %v4154, %v3811
          %v4157 = vmax.f32 %v4155, %v3813
          %v4158 = vmax.f32 %v4156, %v3815
          %v4159 = vmax.f32 %v4157, %v3817
          %v4160 = vmax.f32 %v4158, %v3819
          %v4161 = vmax.f32 %v4159, %v3821
          %v4162 = vmax.f32 %v4160, %v3823
          %v4163 = vmax.f32 %v4161, %v3825
          %v4164 = vmax.f32 %v4162, %v3827
          %v4165 = vmax.f32 %v4163, %v3829
          %v4166 = vmax.f32 %v4164, %v3831
          %v4167 = vmax.f32 %v4165, %v3833
          %v4168 = vmax.f32 %v4166, %v3835
          %v4169 = vmax.f32 %v4167, %v3837
          %v4170 = vmax.f32 %v4168, %v3839
          %v4171 = vmax.f32 %v4169, %v3841
          %v4172 = vmax.f32 %v4170, %v3843
          %v4173 = vmax.f32 %v4171, %v3845
          %v4174 = vmax.f32 %v4172, %v3847
          %v4175 = vmax.f32 %v4173, %v3849
          %v4176 = vmax.f32 %v4174, %v3851
          %v4177 = vmax.f32 %v4175, %v3853
          %v4178 = vmax.f32 %v4176, %v3855
          %v4179 = vmax.f32 %v4177, %v3857
          %v4180 = vmax.f32 %v4178, %v3859
          %v4181 = vmax.f32 %v4179, %v3861
          %v4182 = vmax.f32 %v4180, %v3863
          %v4183 = vmax.f32 %v4181, %v3865
          %v4184 = vmax.f32 %v4182, %v3867
          %v4185 = vmax.f32 %v4183, %v3869
          %v4186 = vmax.f32 %v4184, %v3871
          %v4187 = vmax.f32 %v4185, %v3873
          %v4188 = vmax.f32 %v4186, %v3875
          %v4189 = vmax.f32 %v4187, %v3877
          %v4190 = vmax.f32 %v4188, %v3879
          %v4191 = vmax.f32 %v4189, %v3881
          %v4192 = vmax.f32 %v4190, %v3883
          %v4193 = vmax.f32 %v4191, %v3885
          %v4194 = vmax.f32 %v4192, %v3887
          %v4195 = vmax.f32 %v4193, %v3889
          %v4196 = vmax.f32 %v4194, %v3891
          %v4197 = vmax.f32 %v4195, %v3893
          %v4198 = vmax.f32 %v4196, %v3895
          %v4199 = vmax.f32 %v4197, %v3897
          %v4200 = vmax.f32 %v4198, %v3899
          %v4201 = vmax.f32 %v4199, %v3901
          %v4202 = vmax.f32 %v4200, %v3903
          %v4203 = vmax.f32 %v4201, %v3905
          %v4204 = vmax.f32 %v4202, %v3907
          %v4205 = vmax.f32 %v4203, %v3909
          %v4206 = vmax.f32 %v4204, %v3911
          %v4207 = vmax.f32 %v4205, %v3913
          %v4208 = vmax.f32 %v4206, %v3915
          %v4209 = vmax.f32 %v4207, %v3917
          %v4210 = vmax.f32 %v4208, %v3919
          %v4211 = vmax.f32 %v4209, %v3921
          %v4212 = vmax.f32 %v4210, %v3923
          %v4213 = vmax.f32 %v4211, %v3925
          %v4214 = vmax.f32 %v4212, %v3927
          %v4215 = vmax.f32 %v4213, %v3929
          %v4216 = vmax.f32 %v4214, %v3931
          %v4217 = vmax.f32 %v4215, %v3933
          %v4218 = vmax.f32 %v4216, %v3935
          %v4219 = vmax.f32 %v4217, %v3937
          %v4220 = vmax.f32 %v4218, %v3939
          %v4221 = vmax.f32 %v4219, %v3941
          %v4222 = vmax.f32 %v4220, %v3943
          %v4223 = vmax.f32 %v4221, %v3945
          %v4224 = vmax.f32 %v4222, %v3947
          %v4225 = vmax.f32 %v4223, %v3949
          %v4226 = vmax.f32 %v4224, %v3951
          %v4227 = vmax.f32 %v4225, %v3953
          %v4228 = vmax.f32 %v4226, %v3955
          %v4229 = vmax.f32 %v4227, %v3957
          %v4230 = vmax.f32 %v4228, %v3959
          %v4231 = vmax.f32 %v4229, %v3961
          %v4232 = vmax.f32 %v4230, %v3963
          %v4233 = vmax.f32 %v4231, %v3965
          %v4234 = vmax.f32 %v4232, %v3967
          %v4235 = vmax.f32 %v4233, %v3969
          %v4236 = vmax.f32 %v4234, %v3971
          %v4237 = vmax.f32 %v4235, %v3973
          %v4238 = vmax.f32 %v4236, %v3975
          %v4239 = vmax.f32 %v4237, %v3977
          %v4240 = vmax.f32 %v4238, %v3979
          %v4241 = vmax.f32 %v4239, %v3981
          %v4242 = vmax.f32 %v4240, %v4241
          %v4243 = vrot.slane %v4242, 4
          %v4244 = vmax.f32 %v4242, %v4243
          %v4245 = vrot.slane %v4244, 2
          %v4246 = vmax.f32 %v4244, %v4245
          %v4247 = vrot.slane %v4246, 1
          %v4248 = vmax.f32 %v4246, %v4247
          %v4251 = vrot.slane %v4248, 7
          %vm4252 = vcmask 1040384
          %v4253 = vsel %vm4252, %v4115, %v4251
          %v4255 = vmax.f32 %v3982, %v4253
          %v4256 = vlaneseq
          %vm4257 = vcmp.ge.s32.totalorder %v4256, 0
          %vm4258 = vcmp.lt.s32.totalorder %v4256, 256
          %vm4259 = vmand %vm4257, %vm4258
          %4260 = vst.msk [vmem:[#allocation2] sm:$0x3] %vm4259, %v4255
        $region48: #{tpu_custom_call.1} parent=35 // pred_fallthru
          _
        %p4261 = scmp.ge.s32.totalorder %s316, 1024
        %s4262 = sadd.s32 %s304, 1024
        %p4263 = scmp.lt.s32.totalorder %s316, %s4262
        %p4264 = pnand %p4261, %p4263
        %p4265 = pneg %p4264
        %p4266 = pnand %p317, %p4265
        %p4267 = pneg %p4266
        // Predicated region
        $region49: #{tpu_custom_call.1} parent=35 // pred_check
          _
        $region50: #{tpu_custom_call.1} parent=35 // pred_check_branch
          %4269 = sbr.rel (%p4266) target = $region52
        $region51: #{tpu_custom_call.1} parent=35 // pred_region
          %v4270 = vstv %s4262
          %vm4271 = vcmp.lt.s32.totalorder %v448, %v4270
          %vm4272 = vcmp.lt.s32.totalorder %v449, %v4270
          %vm4273 = vcmp.lt.s32.totalorder %v450, %v4270
          %vm4274 = vcmp.lt.s32.totalorder %v451, %v4270
          %vm4275 = vcmp.lt.s32.totalorder %v452, %v4270
          %vm4276 = vcmp.lt.s32.totalorder %v453, %v4270
          %vm4277 = vcmp.lt.s32.totalorder %v454, %v4270
          %vm4278 = vcmp.lt.s32.totalorder %v455, %v4270
          %vm4279 = vcmp.lt.s32.totalorder %v456, %v4270
          %vm4280 = vcmp.lt.s32.totalorder %v457, %v4270
          %vm4281 = vcmp.lt.s32.totalorder %v458, %v4270
          %vm4282 = vcmp.lt.s32.totalorder %v459, %v4270
          %vm4283 = vcmp.lt.s32.totalorder %v460, %v4270
          %vm4284 = vcmp.lt.s32.totalorder %v461, %v4270
          %vm4285 = vcmp.lt.s32.totalorder %v462, %v4270
          %vm4286 = vcmp.lt.s32.totalorder %v463, %v4270
          %vm4287 = vcmp.lt.s32.totalorder %v464, %v4270
          %vm4288 = vcmp.lt.s32.totalorder %v465, %v4270
          %vm4289 = vcmp.lt.s32.totalorder %v466, %v4270
          %vm4290 = vcmp.lt.s32.totalorder %v467, %v4270
          %vm4291 = vcmp.lt.s32.totalorder %v468, %v4270
          %vm4292 = vcmp.lt.s32.totalorder %v469, %v4270
          %vm4293 = vcmp.lt.s32.totalorder %v470, %v4270
          %vm4294 = vcmp.lt.s32.totalorder %v471, %v4270
          %vm4295 = vcmp.lt.s32.totalorder %v472, %v4270
          %vm4296 = vcmp.lt.s32.totalorder %v473, %v4270
          %vm4297 = vcmp.lt.s32.totalorder %v474, %v4270
          %vm4298 = vcmp.lt.s32.totalorder %v475, %v4270
          %vm4299 = vcmp.lt.s32.totalorder %v476, %v4270
          %vm4300 = vcmp.lt.s32.totalorder %v477, %v4270
          %vm4301 = vcmp.lt.s32.totalorder %v478, %v4270
          %vm4302 = vcmp.lt.s32.totalorder %v479, %v4270
          %vm4303 = vcmp.lt.s32.totalorder %v480, %v4270
          %vm4304 = vcmp.lt.s32.totalorder %v481, %v4270
          %vm4305 = vcmp.lt.s32.totalorder %v482, %v4270
          %vm4306 = vcmp.lt.s32.totalorder %v483, %v4270
          %vm4307 = vcmp.lt.s32.totalorder %v484, %v4270
          %vm4308 = vcmp.lt.s32.totalorder %v485, %v4270
          %vm4309 = vcmp.lt.s32.totalorder %v486, %v4270
          %vm4310 = vcmp.lt.s32.totalorder %v487, %v4270
          %vm4311 = vcmp.lt.s32.totalorder %v488, %v4270
          %vm4312 = vcmp.lt.s32.totalorder %v489, %v4270
          %vm4313 = vcmp.lt.s32.totalorder %v490, %v4270
          %vm4314 = vcmp.lt.s32.totalorder %v491, %v4270
          %vm4315 = vcmp.lt.s32.totalorder %v492, %v4270
          %vm4316 = vcmp.lt.s32.totalorder %v493, %v4270
          %vm4317 = vcmp.lt.s32.totalorder %v494, %v4270
          %vm4318 = vcmp.lt.s32.totalorder %v495, %v4270
          %vm4319 = vcmp.lt.s32.totalorder %v496, %v4270
          %vm4320 = vcmp.lt.s32.totalorder %v497, %v4270
          %vm4321 = vcmp.lt.s32.totalorder %v498, %v4270
          %vm4322 = vcmp.lt.s32.totalorder %v499, %v4270
          %vm4323 = vcmp.lt.s32.totalorder %v500, %v4270
          %vm4324 = vcmp.lt.s32.totalorder %v501, %v4270
          %vm4325 = vcmp.lt.s32.totalorder %v502, %v4270
          %vm4326 = vcmp.lt.s32.totalorder %v503, %v4270
          %vm4327 = vcmp.lt.s32.totalorder %v504, %v4270
          %vm4328 = vcmp.lt.s32.totalorder %v505, %v4270
          %vm4329 = vcmp.lt.s32.totalorder %v506, %v4270
          %vm4330 = vcmp.lt.s32.totalorder %v507, %v4270
          %vm4331 = vcmp.lt.s32.totalorder %v508, %v4270
          %vm4332 = vcmp.lt.s32.totalorder %v509, %v4270
          %vm4333 = vcmp.lt.s32.totalorder %v510, %v4270
          %vm4334 = vcmp.lt.s32.totalorder %v511, %v4270
          %vm4335 = vcmp.lt.s32.totalorder %v512, %v4270
          %vm4336 = vcmp.lt.s32.totalorder %v513, %v4270
          %vm4337 = vcmp.lt.s32.totalorder %v514, %v4270
          %vm4338 = vcmp.lt.s32.totalorder %v515, %v4270
          %vm4339 = vcmp.lt.s32.totalorder %v516, %v4270
          %vm4340 = vcmp.lt.s32.totalorder %v517, %v4270
          %vm4341 = vcmp.lt.s32.totalorder %v518, %v4270
          %vm4342 = vcmp.lt.s32.totalorder %v519, %v4270
          %vm4343 = vcmp.lt.s32.totalorder %v520, %v4270
          %vm4344 = vcmp.lt.s32.totalorder %v521, %v4270
          %vm4345 = vcmp.lt.s32.totalorder %v522, %v4270
          %vm4346 = vcmp.lt.s32.totalorder %v523, %v4270
          %vm4347 = vcmp.lt.s32.totalorder %v524, %v4270
          %vm4348 = vcmp.lt.s32.totalorder %v525, %v4270
          %vm4349 = vcmp.lt.s32.totalorder %v526, %v4270
          %vm4350 = vcmp.lt.s32.totalorder %v527, %v4270
          %vm4351 = vcmp.lt.s32.totalorder %v528, %v4270
          %vm4352 = vcmp.lt.s32.totalorder %v529, %v4270
          %vm4353 = vcmp.lt.s32.totalorder %v530, %v4270
          %vm4354 = vcmp.lt.s32.totalorder %v531, %v4270
          %vm4355 = vcmp.lt.s32.totalorder %v532, %v4270
          %vm4356 = vcmp.lt.s32.totalorder %v533, %v4270
          %vm4357 = vcmp.lt.s32.totalorder %v534, %v4270
          %vm4358 = vcmp.lt.s32.totalorder %v535, %v4270
          %vm4359 = vcmp.lt.s32.totalorder %v536, %v4270
          %vm4360 = vcmp.lt.s32.totalorder %v537, %v4270
          %vm4361 = vcmp.lt.s32.totalorder %v538, %v4270
          %vm4362 = vcmp.lt.s32.totalorder %v539, %v4270
          %vm4363 = vcmp.lt.s32.totalorder %v540, %v4270
          %vm4364 = vcmp.lt.s32.totalorder %v541, %v4270
          %vm4365 = vcmp.lt.s32.totalorder %v542, %v4270
          %vm4366 = vcmp.lt.s32.totalorder %v543, %v4270
          %vm4367 = vcmp.lt.s32.totalorder %v544, %v4270
          %vm4368 = vcmp.lt.s32.totalorder %v545, %v4270
          %vm4369 = vcmp.lt.s32.totalorder %v546, %v4270
          %vm4370 = vcmp.lt.s32.totalorder %v547, %v4270
          %vm4371 = vcmp.lt.s32.totalorder %v548, %v4270
          %vm4372 = vcmp.lt.s32.totalorder %v549, %v4270
          %vm4373 = vcmp.lt.s32.totalorder %v550, %v4270
          %vm4374 = vcmp.lt.s32.totalorder %v551, %v4270
          %vm4375 = vcmp.lt.s32.totalorder %v552, %v4270
          %vm4376 = vcmp.lt.s32.totalorder %v553, %v4270
          %vm4377 = vcmp.lt.s32.totalorder %v554, %v4270
          %vm4378 = vcmp.lt.s32.totalorder %v555, %v4270
          %vm4379 = vcmp.lt.s32.totalorder %v556, %v4270
          %vm4380 = vcmp.lt.s32.totalorder %v557, %v4270
          %vm4381 = vcmp.lt.s32.totalorder %v558, %v4270
          %vm4382 = vcmp.lt.s32.totalorder %v559, %v4270
          %vm4383 = vcmp.lt.s32.totalorder %v560, %v4270
          %vm4384 = vcmp.lt.s32.totalorder %v561, %v4270
          %vm4385 = vcmp.lt.s32.totalorder %v562, %v4270
          %vm4386 = vcmp.lt.s32.totalorder %v563, %v4270
          %vm4387 = vcmp.lt.s32.totalorder %v564, %v4270
          %vm4388 = vcmp.lt.s32.totalorder %v565, %v4270
          %vm4389 = vcmp.lt.s32.totalorder %v566, %v4270
          %vm4390 = vcmp.lt.s32.totalorder %v567, %v4270
          %vm4391 = vcmp.lt.s32.totalorder %v568, %v4270
          %vm4392 = vcmp.lt.s32.totalorder %v569, %v4270
          %vm4393 = vcmp.lt.s32.totalorder %v570, %v4270
          %vm4394 = vcmp.lt.s32.totalorder %v571, %v4270
          %vm4395 = vcmp.lt.s32.totalorder %v572, %v4270
          %vm4396 = vcmp.lt.s32.totalorder %v573, %v4270
          %vm4397 = vcmp.lt.s32.totalorder %v574, %v4270
          %vm4398 = vcmp.lt.s32.totalorder %v575, %v4270
          %v4399 = vld [vmem:[%s289] sm:$0xff]
          %v4400 = vld [vmem:[%s289 + $0x8] sm:$0xff]
          %v4401 = vld [vmem:[%s289 + $0x10] sm:$0xff]
          %v4402 = vld [vmem:[%s289 + $0x18] sm:$0xff]
          %v4403 = vld [vmem:[%s289 + $0x20] sm:$0xff]
          %v4404 = vld [vmem:[%s289 + $0x28] sm:$0xff]
          %v4405 = vld [vmem:[%s289 + $0x30] sm:$0xff]
          %v4406 = vld [vmem:[%s289 + $0x38] sm:$0xff]
          %v4407 = vld [vmem:[%s289 + $0x40] sm:$0xff]
          %v4408 = vld [vmem:[%s289 + $0x48] sm:$0xff]
          %v4409 = vld [vmem:[%s289 + $0x50] sm:$0xff]
          %v4410 = vld [vmem:[%s289 + $0x58] sm:$0xff]
          %v4411 = vld [vmem:[%s289 + $0x60] sm:$0xff]
          %v4412 = vld [vmem:[%s289 + $0x68] sm:$0xff]
          %v4413 = vld [vmem:[%s289 + $0x70] sm:$0xff]
          %v4414 = vld [vmem:[%s289 + $0x78] sm:$0xff]
          %v4415 = vld [vmem:[%s289 + $0x80] sm:$0xff]
          %v4416 = vld [vmem:[%s289 + $0x88] sm:$0xff]
          %v4417 = vld [vmem:[%s289 + $0x90] sm:$0xff]
          %v4418 = vld [vmem:[%s289 + $0x98] sm:$0xff]
          %v4419 = vld [vmem:[%s289 + $0xa0] sm:$0xff]
          %v4420 = vld [vmem:[%s289 + $0xa8] sm:$0xff]
          %v4421 = vld [vmem:[%s289 + $0xb0] sm:$0xff]
          %v4422 = vld [vmem:[%s289 + $0xb8] sm:$0xff]
          %v4423 = vld [vmem:[%s289 + $0xc0] sm:$0xff]
          %v4424 = vld [vmem:[%s289 + $0xc8] sm:$0xff]
          %v4425 = vld [vmem:[%s289 + $0xd0] sm:$0xff]
          %v4426 = vld [vmem:[%s289 + $0xd8] sm:$0xff]
          %v4427 = vld [vmem:[%s289 + $0xe0] sm:$0xff]
          %v4428 = vld [vmem:[%s289 + $0xe8] sm:$0xff]
          %v4429 = vld [vmem:[%s289 + $0xf0] sm:$0xff]
          %v4430 = vld [vmem:[%s289 + $0xf8] sm:$0xff]
          %v4431 = vld [vmem:[%s245] sm:$0xff]
          %v4432 = vld [vmem:[%s245 + $0x8] sm:$0xff]
          %v4433 = vld [vmem:[%s245 + $0x10] sm:$0xff]
          %v4434 = vld [vmem:[%s245 + $0x18] sm:$0xff]
          %v4435 = vld [vmem:[%s245 + $0x20] sm:$0xff]
          %v4436 = vld [vmem:[%s245 + $0x28] sm:$0xff]
          %v4437 = vld [vmem:[%s245 + $0x30] sm:$0xff]
          %v4438 = vld [vmem:[%s245 + $0x38] sm:$0xff]
          %v4439 = vld [vmem:[%s245 + $0x40] sm:$0xff]
          %v4440 = vld [vmem:[%s245 + $0x48] sm:$0xff]
          %v4441 = vld [vmem:[%s245 + $0x50] sm:$0xff]
          %v4442 = vld [vmem:[%s245 + $0x58] sm:$0xff]
          %v4443 = vld [vmem:[%s245 + $0x60] sm:$0xff]
          %v4444 = vld [vmem:[%s245 + $0x68] sm:$0xff]
          %v4445 = vld [vmem:[%s245 + $0x70] sm:$0xff]
          %v4446 = vld [vmem:[%s245 + $0x78] sm:$0xff]
          %v4447 = vld [vmem:[%s245 + $0x80] sm:$0xff]
          %v4448 = vld [vmem:[%s245 + $0x88] sm:$0xff]
          %v4449 = vld [vmem:[%s245 + $0x90] sm:$0xff]
          %v4450 = vld [vmem:[%s245 + $0x98] sm:$0xff]
          %v4451 = vld [vmem:[%s245 + $0xa0] sm:$0xff]
          %v4452 = vld [vmem:[%s245 + $0xa8] sm:$0xff]
          %v4453 = vld [vmem:[%s245 + $0xb0] sm:$0xff]
          %v4454 = vld [vmem:[%s245 + $0xb8] sm:$0xff]
          %v4455 = vld [vmem:[%s245 + $0xc0] sm:$0xff]
          %v4456 = vld [vmem:[%s245 + $0xc8] sm:$0xff]
          %v4457 = vld [vmem:[%s245 + $0xd0] sm:$0xff]
          %v4458 = vld [vmem:[%s245 + $0xd8] sm:$0xff]
          %v4459 = vld [vmem:[%s245 + $0xe0] sm:$0xff]
          %v4460 = vld [vmem:[%s245 + $0xe8] sm:$0xff]
          %v4461 = vld [vmem:[%s245 + $0xf0] sm:$0xff]
          %v4462 = vld [vmem:[%s245 + $0xf8] sm:$0xff]
          %v4463 = vld [vmem:[%s245 + $0x100] sm:$0xff]
          %v4464 = vld [vmem:[%s245 + $0x108] sm:$0xff]
          %v4465 = vld [vmem:[%s245 + $0x110] sm:$0xff]
          %v4466 = vld [vmem:[%s245 + $0x118] sm:$0xff]
          %v4467 = vld [vmem:[%s245 + $0x120] sm:$0xff]
          %v4468 = vld [vmem:[%s245 + $0x128] sm:$0xff]
          %v4469 = vld [vmem:[%s245 + $0x130] sm:$0xff]
          %v4470 = vld [vmem:[%s245 + $0x138] sm:$0xff]
          %v4471 = vld [vmem:[%s245 + $0x140] sm:$0xff]
          %v4472 = vld [vmem:[%s245 + $0x148] sm:$0xff]
          %v4473 = vld [vmem:[%s245 + $0x150] sm:$0xff]
          %v4474 = vld [vmem:[%s245 + $0x158] sm:$0xff]
          %v4475 = vld [vmem:[%s245 + $0x160] sm:$0xff]
          %v4476 = vld [vmem:[%s245 + $0x168] sm:$0xff]
          %v4477 = vld [vmem:[%s245 + $0x170] sm:$0xff]
          %v4478 = vld [vmem:[%s245 + $0x178] sm:$0xff]
          %v4479 = vld [vmem:[%s245 + $0x180] sm:$0xff]
          %v4480 = vld [vmem:[%s245 + $0x188] sm:$0xff]
          %v4481 = vld [vmem:[%s245 + $0x190] sm:$0xff]
          %v4482 = vld [vmem:[%s245 + $0x198] sm:$0xff]
          %v4483 = vld [vmem:[%s245 + $0x1a0] sm:$0xff]
          %v4484 = vld [vmem:[%s245 + $0x1a8] sm:$0xff]
          %v4485 = vld [vmem:[%s245 + $0x1b0] sm:$0xff]
          %v4486 = vld [vmem:[%s245 + $0x1b8] sm:$0xff]
          %v4487 = vld [vmem:[%s245 + $0x1c0] sm:$0xff]
          %v4488 = vld [vmem:[%s245 + $0x1c8] sm:$0xff]
          %v4489 = vld [vmem:[%s245 + $0x1d0] sm:$0xff]
          %v4490 = vld [vmem:[%s245 + $0x1d8] sm:$0xff]
          %v4491 = vld [vmem:[%s245 + $0x1e0] sm:$0xff]
          %v4492 = vld [vmem:[%s245 + $0x1e8] sm:$0xff]
          %v4493 = vld [vmem:[%s245 + $0x1f0] sm:$0xff]
          %v4494 = vld [vmem:[%s245 + $0x1f8] sm:$0xff]
          %v4495 = vld [vmem:[%s245 + $0x200] sm:$0xff]
          %v4496 = vld [vmem:[%s245 + $0x208] sm:$0xff]
          %v4497 = vld [vmem:[%s245 + $0x210] sm:$0xff]
          %v4498 = vld [vmem:[%s245 + $0x218] sm:$0xff]
          %v4499 = vld [vmem:[%s245 + $0x220] sm:$0xff]
          %v4500 = vld [vmem:[%s245 + $0x228] sm:$0xff]
          %v4501 = vld [vmem:[%s245 + $0x230] sm:$0xff]
          %v4502 = vld [vmem:[%s245 + $0x238] sm:$0xff]
          %v4503 = vld [vmem:[%s245 + $0x240] sm:$0xff]
          %v4504 = vld [vmem:[%s245 + $0x248] sm:$0xff]
          %v4505 = vld [vmem:[%s245 + $0x250] sm:$0xff]
          %v4506 = vld [vmem:[%s245 + $0x258] sm:$0xff]
          %v4507 = vld [vmem:[%s245 + $0x260] sm:$0xff]
          %v4508 = vld [vmem:[%s245 + $0x268] sm:$0xff]
          %v4509 = vld [vmem:[%s245 + $0x270] sm:$0xff]
          %v4510 = vld [vmem:[%s245 + $0x278] sm:$0xff]
          %v4511 = vld [vmem:[%s245 + $0x280] sm:$0xff]
          %v4512 = vld [vmem:[%s245 + $0x288] sm:$0xff]
          %v4513 = vld [vmem:[%s245 + $0x290] sm:$0xff]
          %v4514 = vld [vmem:[%s245 + $0x298] sm:$0xff]
          %v4515 = vld [vmem:[%s245 + $0x2a0] sm:$0xff]
          %v4516 = vld [vmem:[%s245 + $0x2a8] sm:$0xff]
          %v4517 = vld [vmem:[%s245 + $0x2b0] sm:$0xff]
          %v4518 = vld [vmem:[%s245 + $0x2b8] sm:$0xff]
          %v4519 = vld [vmem:[%s245 + $0x2c0] sm:$0xff]
          %v4520 = vld [vmem:[%s245 + $0x2c8] sm:$0xff]
          %v4521 = vld [vmem:[%s245 + $0x2d0] sm:$0xff]
          %v4522 = vld [vmem:[%s245 + $0x2d8] sm:$0xff]
          %v4523 = vld [vmem:[%s245 + $0x2e0] sm:$0xff]
          %v4524 = vld [vmem:[%s245 + $0x2e8] sm:$0xff]
          %v4525 = vld [vmem:[%s245 + $0x2f0] sm:$0xff]
          %v4526 = vld [vmem:[%s245 + $0x2f8] sm:$0xff]
          %v4527 = vld [vmem:[%s245 + $0x300] sm:$0xff]
          %v4528 = vld [vmem:[%s245 + $0x308] sm:$0xff]
          %v4529 = vld [vmem:[%s245 + $0x310] sm:$0xff]
          %v4530 = vld [vmem:[%s245 + $0x318] sm:$0xff]
          %v4531 = vld [vmem:[%s245 + $0x320] sm:$0xff]
          %v4532 = vld [vmem:[%s245 + $0x328] sm:$0xff]
          %v4533 = vld [vmem:[%s245 + $0x330] sm:$0xff]
          %v4534 = vld [vmem:[%s245 + $0x338] sm:$0xff]
          %v4535 = vld [vmem:[%s245 + $0x340] sm:$0xff]
          %v4536 = vld [vmem:[%s245 + $0x348] sm:$0xff]
          %v4537 = vld [vmem:[%s245 + $0x350] sm:$0xff]
          %v4538 = vld [vmem:[%s245 + $0x358] sm:$0xff]
          %v4539 = vld [vmem:[%s245 + $0x360] sm:$0xff]
          %v4540 = vld [vmem:[%s245 + $0x368] sm:$0xff]
          %v4541 = vld [vmem:[%s245 + $0x370] sm:$0xff]
          %v4542 = vld [vmem:[%s245 + $0x378] sm:$0xff]
          %v4543 = vld [vmem:[%s245 + $0x380] sm:$0xff]
          %v4544 = vld [vmem:[%s245 + $0x388] sm:$0xff]
          %v4545 = vld [vmem:[%s245 + $0x390] sm:$0xff]
          %v4546 = vld [vmem:[%s245 + $0x398] sm:$0xff]
          %v4547 = vld [vmem:[%s245 + $0x3a0] sm:$0xff]
          %v4548 = vld [vmem:[%s245 + $0x3a8] sm:$0xff]
          %v4549 = vld [vmem:[%s245 + $0x3b0] sm:$0xff]
          %v4550 = vld [vmem:[%s245 + $0x3b8] sm:$0xff]
          %v4551 = vld [vmem:[%s245 + $0x3c0] sm:$0xff]
          %v4552 = vld [vmem:[%s245 + $0x3c8] sm:$0xff]
          %v4553 = vld [vmem:[%s245 + $0x3d0] sm:$0xff]
          %v4554 = vld [vmem:[%s245 + $0x3d8] sm:$0xff]
          %v4555 = vld [vmem:[%s245 + $0x3e0] sm:$0xff]
          %v4556 = vld [vmem:[%s245 + $0x3e8] sm:$0xff]
          %v4557 = vld [vmem:[%s245 + $0x3f0] sm:$0xff]
          %v4558 = vld [vmem:[%s245 + $0x3f8] sm:$0xff]
          %4559 = vmatpush.xpose.msra.mxu0 %v4414
          %4560 = vmatpush.xpose.msra.mxu0 %v4413
          %4561 = vmatpush.xpose.msra.mxu0 %v4412
          %4562 = vmatpush.xpose.msra.mxu0 %v4411
          %4563 = vmatpush.xpose.msra.mxu0 %v4410
          %4564 = vmatpush.xpose.msra.mxu0 %v4409
          %4565 = vmatpush.xpose.msra.mxu0 %v4408
          %4566 = vmatpush.xpose.msra.mxu0 %v4407
          %4567 = vmatpush.xpose.msra.mxu0 %v4406
          %4568 = vmatpush.xpose.msra.mxu0 %v4405
          %4569 = vmatpush.xpose.msra.mxu0 %v4404
          %4570 = vmatpush.xpose.msra.mxu0 %v4403
          %4571 = vmatpush.xpose.msra.mxu0 %v4402
          %4572 = vmatpush.xpose.msra.mxu0 %v4401
          %4573 = vmatpush.xpose.msra.mxu0 %v4400
          %4574 = vmatpush.xpose.msra.mxu0 %v4399
          %4575 = vmatmul.f32.gmra.mxu0 %v4431
          %v4576 = vpop.f32.mrf.mxu0
          %v4577 = vadd.f32 0.0, %v4576
          %4578 = vmatmul.f32.gmra.mxu0 %v4432
          %v4579 = vpop.f32.mrf.mxu0
          %v4580 = vadd.f32 0.0, %v4579
          %4581 = vmatmul.f32.gmra.mxu0 %v4433
          %v4582 = vpop.f32.mrf.mxu0
          %v4583 = vadd.f32 0.0, %v4582
          %4584 = vmatmul.f32.gmra.mxu0 %v4434
          %v4585 = vpop.f32.mrf.mxu0
          %v4586 = vadd.f32 0.0, %v4585
          %4587 = vmatmul.f32.gmra.mxu0 %v4435
          %v4588 = vpop.f32.mrf.mxu0
          %v4589 = vadd.f32 0.0, %v4588
          %4590 = vmatmul.f32.gmra.mxu0 %v4436
          %v4591 = vpop.f32.mrf.mxu0
          %v4592 = vadd.f32 0.0, %v4591
          %4593 = vmatmul.f32.gmra.mxu0 %v4437
          %v4594 = vpop.f32.mrf.mxu0
          %v4595 = vadd.f32 0.0, %v4594
          %4596 = vmatmul.f32.gmra.mxu0 %v4438
          %v4597 = vpop.f32.mrf.mxu0
          %v4598 = vadd.f32 0.0, %v4597
          %4599 = vmatmul.f32.gmra.mxu0 %v4439
          %v4600 = vpop.f32.mrf.mxu0
          %v4601 = vadd.f32 0.0, %v4600
          %4602 = vmatmul.f32.gmra.mxu0 %v4440
          %v4603 = vpop.f32.mrf.mxu0
          %v4604 = vadd.f32 0.0, %v4603
          %4605 = vmatmul.f32.gmra.mxu0 %v4441
          %v4606 = vpop.f32.mrf.mxu0
          %v4607 = vadd.f32 0.0, %v4606
          %4608 = vmatmul.f32.gmra.mxu0 %v4442
          %v4609 = vpop.f32.mrf.mxu0
          %v4610 = vadd.f32 0.0, %v4609
          %4611 = vmatmul.f32.gmra.mxu0 %v4443
          %v4612 = vpop.f32.mrf.mxu0
          %v4613 = vadd.f32 0.0, %v4612
          %4614 = vmatmul.f32.gmra.mxu0 %v4444
          %v4615 = vpop.f32.mrf.mxu0
          %v4616 = vadd.f32 0.0, %v4615
          %4617 = vmatmul.f32.gmra.mxu0 %v4445
          %v4618 = vpop.f32.mrf.mxu0
          %v4619 = vadd.f32 0.0, %v4618
          %4620 = vmatmul.f32.gmra.mxu0 %v4446
          %v4621 = vpop.f32.mrf.mxu0
          %v4622 = vadd.f32 0.0, %v4621
          %4623 = vmatmul.f32.gmra.mxu0 %v4447
          %v4624 = vpop.f32.mrf.mxu0
          %v4625 = vadd.f32 0.0, %v4624
          %4626 = vmatmul.f32.gmra.mxu0 %v4448
          %v4627 = vpop.f32.mrf.mxu0
          %v4628 = vadd.f32 0.0, %v4627
          %4629 = vmatmul.f32.gmra.mxu0 %v4449
          %v4630 = vpop.f32.mrf.mxu0
          %v4631 = vadd.f32 0.0, %v4630
          %4632 = vmatmul.f32.gmra.mxu0 %v4450
          %v4633 = vpop.f32.mrf.mxu0
          %v4634 = vadd.f32 0.0, %v4633
          %4635 = vmatmul.f32.gmra.mxu0 %v4451
          %v4636 = vpop.f32.mrf.mxu0
          %v4637 = vadd.f32 0.0, %v4636
          %4638 = vmatmul.f32.gmra.mxu0 %v4452
          %v4639 = vpop.f32.mrf.mxu0
          %v4640 = vadd.f32 0.0, %v4639
          %4641 = vmatmul.f32.gmra.mxu0 %v4453
          %v4642 = vpop.f32.mrf.mxu0
          %v4643 = vadd.f32 0.0, %v4642
          %4644 = vmatmul.f32.gmra.mxu0 %v4454
          %v4645 = vpop.f32.mrf.mxu0
          %v4646 = vadd.f32 0.0, %v4645
          %4647 = vmatmul.f32.gmra.mxu0 %v4455
          %v4648 = vpop.f32.mrf.mxu0
          %v4649 = vadd.f32 0.0, %v4648
          %4650 = vmatmul.f32.gmra.mxu0 %v4456
          %v4651 = vpop.f32.mrf.mxu0
          %v4652 = vadd.f32 0.0, %v4651
          %4653 = vmatmul.f32.gmra.mxu0 %v4457
          %v4654 = vpop.f32.mrf.mxu0
          %v4655 = vadd.f32 0.0, %v4654
          %4656 = vmatmul.f32.gmra.mxu0 %v4458
          %v4657 = vpop.f32.mrf.mxu0
          %v4658 = vadd.f32 0.0, %v4657
          %4659 = vmatmul.f32.gmra.mxu0 %v4459
          %v4660 = vpop.f32.mrf.mxu0
          %v4661 = vadd.f32 0.0, %v4660
          %4662 = vmatmul.f32.gmra.mxu0 %v4460
          %v4663 = vpop.f32.mrf.mxu0
          %v4664 = vadd.f32 0.0, %v4663
          %4665 = vmatmul.f32.gmra.mxu0 %v4461
          %v4666 = vpop.f32.mrf.mxu0
          %v4667 = vadd.f32 0.0, %v4666
          %4668 = vmatmul.f32.gmra.mxu0 %v4462
          %v4669 = vpop.f32.mrf.mxu0
          %v4670 = vadd.f32 0.0, %v4669
          %4671 = vmatmul.f32.gmra.mxu0 %v4463
          %v4672 = vpop.f32.mrf.mxu0
          %v4673 = vadd.f32 0.0, %v4672
          %4674 = vmatmul.f32.gmra.mxu0 %v4464
          %v4675 = vpop.f32.mrf.mxu0
          %v4676 = vadd.f32 0.0, %v4675
          %4677 = vmatmul.f32.gmra.mxu0 %v4465
          %v4678 = vpop.f32.mrf.mxu0
          %v4679 = vadd.f32 0.0, %v4678
          %4680 = vmatmul.f32.gmra.mxu0 %v4466
          %v4681 = vpop.f32.mrf.mxu0
          %v4682 = vadd.f32 0.0, %v4681
          %4683 = vmatmul.f32.gmra.mxu0 %v4467
          %v4684 = vpop.f32.mrf.mxu0
          %v4685 = vadd.f32 0.0, %v4684
          %4686 = vmatmul.f32.gmra.mxu0 %v4468
          %v4687 = vpop.f32.mrf.mxu0
          %v4688 = vadd.f32 0.0, %v4687
          %4689 = vmatmul.f32.gmra.mxu0 %v4469
          %v4690 = vpop.f32.mrf.mxu0
          %v4691 = vadd.f32 0.0, %v4690
          %4692 = vmatmul.f32.gmra.mxu0 %v4470
          %v4693 = vpop.f32.mrf.mxu0
          %v4694 = vadd.f32 0.0, %v4693
          %4695 = vmatmul.f32.gmra.mxu0 %v4471
          %v4696 = vpop.f32.mrf.mxu0
          %v4697 = vadd.f32 0.0, %v4696
          %4698 = vmatmul.f32.gmra.mxu0 %v4472
          %v4699 = vpop.f32.mrf.mxu0
          %v4700 = vadd.f32 0.0, %v4699
          %4701 = vmatmul.f32.gmra.mxu0 %v4473
          %v4702 = vpop.f32.mrf.mxu0
          %v4703 = vadd.f32 0.0, %v4702
          %4704 = vmatmul.f32.gmra.mxu0 %v4474
          %v4705 = vpop.f32.mrf.mxu0
          %v4706 = vadd.f32 0.0, %v4705
          %4707 = vmatmul.f32.gmra.mxu0 %v4475
          %v4708 = vpop.f32.mrf.mxu0
          %v4709 = vadd.f32 0.0, %v4708
          %4710 = vmatmul.f32.gmra.mxu0 %v4476
          %v4711 = vpop.f32.mrf.mxu0
          %v4712 = vadd.f32 0.0, %v4711
          %4713 = vmatmul.f32.gmra.mxu0 %v4477
          %v4714 = vpop.f32.mrf.mxu0
          %v4715 = vadd.f32 0.0, %v4714
          %4716 = vmatmul.f32.gmra.mxu0 %v4478
          %v4717 = vpop.f32.mrf.mxu0
          %v4718 = vadd.f32 0.0, %v4717
          %4719 = vmatmul.f32.gmra.mxu0 %v4479
          %v4720 = vpop.f32.mrf.mxu0
          %v4721 = vadd.f32 0.0, %v4720
          %4722 = vmatmul.f32.gmra.mxu0 %v4480
          %v4723 = vpop.f32.mrf.mxu0
          %v4724 = vadd.f32 0.0, %v4723
          %4725 = vmatmul.f32.gmra.mxu0 %v4481
          %v4726 = vpop.f32.mrf.mxu0
          %v4727 = vadd.f32 0.0, %v4726
          %4728 = vmatmul.f32.gmra.mxu0 %v4482
          %v4729 = vpop.f32.mrf.mxu0
          %v4730 = vadd.f32 0.0, %v4729
          %4731 = vmatmul.f32.gmra.mxu0 %v4483
          %v4732 = vpop.f32.mrf.mxu0
          %v4733 = vadd.f32 0.0, %v4732
          %4734 = vmatmul.f32.gmra.mxu0 %v4484
          %v4735 = vpop.f32.mrf.mxu0
          %v4736 = vadd.f32 0.0, %v4735
          %4737 = vmatmul.f32.gmra.mxu0 %v4485
          %v4738 = vpop.f32.mrf.mxu0
          %v4739 = vadd.f32 0.0, %v4738
          %4740 = vmatmul.f32.gmra.mxu0 %v4486
          %v4741 = vpop.f32.mrf.mxu0
          %v4742 = vadd.f32 0.0, %v4741
          %4743 = vmatmul.f32.gmra.mxu0 %v4487
          %v4744 = vpop.f32.mrf.mxu0
          %v4745 = vadd.f32 0.0, %v4744
          %4746 = vmatmul.f32.gmra.mxu0 %v4488
          %v4747 = vpop.f32.mrf.mxu0
          %v4748 = vadd.f32 0.0, %v4747
          %4749 = vmatmul.f32.gmra.mxu0 %v4489
          %v4750 = vpop.f32.mrf.mxu0
          %v4751 = vadd.f32 0.0, %v4750
          %4752 = vmatmul.f32.gmra.mxu0 %v4490
          %v4753 = vpop.f32.mrf.mxu0
          %v4754 = vadd.f32 0.0, %v4753
          %4755 = vmatmul.f32.gmra.mxu0 %v4491
          %v4756 = vpop.f32.mrf.mxu0
          %v4757 = vadd.f32 0.0, %v4756
          %4758 = vmatmul.f32.gmra.mxu0 %v4492
          %v4759 = vpop.f32.mrf.mxu0
          %v4760 = vadd.f32 0.0, %v4759
          %4761 = vmatmul.f32.gmra.mxu0 %v4493
          %v4762 = vpop.f32.mrf.mxu0
          %v4763 = vadd.f32 0.0, %v4762
          %4764 = vmatmul.f32.gmra.mxu0 %v4494
          %v4765 = vpop.f32.mrf.mxu0
          %v4766 = vadd.f32 0.0, %v4765
          %4767 = vmatmul.f32.gmra.mxu0 %v4495
          %v4768 = vpop.f32.mrf.mxu0
          %v4769 = vadd.f32 0.0, %v4768
          %4770 = vmatmul.f32.gmra.mxu0 %v4496
          %v4771 = vpop.f32.mrf.mxu0
          %v4772 = vadd.f32 0.0, %v4771
          %4773 = vmatmul.f32.gmra.mxu0 %v4497
          %v4774 = vpop.f32.mrf.mxu0
          %v4775 = vadd.f32 0.0, %v4774
          %4776 = vmatmul.f32.gmra.mxu0 %v4498
          %v4777 = vpop.f32.mrf.mxu0
          %v4778 = vadd.f32 0.0, %v4777
          %4779 = vmatmul.f32.gmra.mxu0 %v4499
          %v4780 = vpop.f32.mrf.mxu0
          %v4781 = vadd.f32 0.0, %v4780
          %4782 = vmatmul.f32.gmra.mxu0 %v4500
          %v4783 = vpop.f32.mrf.mxu0
          %v4784 = vadd.f32 0.0, %v4783
          %4785 = vmatmul.f32.gmra.mxu0 %v4501
          %v4786 = vpop.f32.mrf.mxu0
          %v4787 = vadd.f32 0.0, %v4786
          %4788 = vmatmul.f32.gmra.mxu0 %v4502
          %v4789 = vpop.f32.mrf.mxu0
          %v4790 = vadd.f32 0.0, %v4789
          %4791 = vmatmul.f32.gmra.mxu0 %v4503
          %v4792 = vpop.f32.mrf.mxu0
          %v4793 = vadd.f32 0.0, %v4792
          %4794 = vmatmul.f32.gmra.mxu0 %v4504
          %v4795 = vpop.f32.mrf.mxu0
          %v4796 = vadd.f32 0.0, %v4795
          %4797 = vmatmul.f32.gmra.mxu0 %v4505
          %v4798 = vpop.f32.mrf.mxu0
          %v4799 = vadd.f32 0.0, %v4798
          %4800 = vmatmul.f32.gmra.mxu0 %v4506
          %v4801 = vpop.f32.mrf.mxu0
          %v4802 = vadd.f32 0.0, %v4801
          %4803 = vmatmul.f32.gmra.mxu0 %v4507
          %v4804 = vpop.f32.mrf.mxu0
          %v4805 = vadd.f32 0.0, %v4804
          %4806 = vmatmul.f32.gmra.mxu0 %v4508
          %v4807 = vpop.f32.mrf.mxu0
          %v4808 = vadd.f32 0.0, %v4807
          %4809 = vmatmul.f32.gmra.mxu0 %v4509
          %v4810 = vpop.f32.mrf.mxu0
          %v4811 = vadd.f32 0.0, %v4810
          %4812 = vmatmul.f32.gmra.mxu0 %v4510
          %v4813 = vpop.f32.mrf.mxu0
          %v4814 = vadd.f32 0.0, %v4813
          %4815 = vmatmul.f32.gmra.mxu0 %v4511
          %v4816 = vpop.f32.mrf.mxu0
          %v4817 = vadd.f32 0.0, %v4816
          %4818 = vmatmul.f32.gmra.mxu0 %v4512
          %v4819 = vpop.f32.mrf.mxu0
          %v4820 = vadd.f32 0.0, %v4819
          %4821 = vmatmul.f32.gmra.mxu0 %v4513
          %v4822 = vpop.f32.mrf.mxu0
          %v4823 = vadd.f32 0.0, %v4822
          %4824 = vmatmul.f32.gmra.mxu0 %v4514
          %v4825 = vpop.f32.mrf.mxu0
          %v4826 = vadd.f32 0.0, %v4825
          %4827 = vmatmul.f32.gmra.mxu0 %v4515
          %v4828 = vpop.f32.mrf.mxu0
          %v4829 = vadd.f32 0.0, %v4828
          %4830 = vmatmul.f32.gmra.mxu0 %v4516
          %v4831 = vpop.f32.mrf.mxu0
          %v4832 = vadd.f32 0.0, %v4831
          %4833 = vmatmul.f32.gmra.mxu0 %v4517
          %v4834 = vpop.f32.mrf.mxu0
          %v4835 = vadd.f32 0.0, %v4834
          %4836 = vmatmul.f32.gmra.mxu0 %v4518
          %v4837 = vpop.f32.mrf.mxu0
          %v4838 = vadd.f32 0.0, %v4837
          %4839 = vmatmul.f32.gmra.mxu0 %v4519
          %v4840 = vpop.f32.mrf.mxu0
          %v4841 = vadd.f32 0.0, %v4840
          %4842 = vmatmul.f32.gmra.mxu0 %v4520
          %v4843 = vpop.f32.mrf.mxu0
          %v4844 = vadd.f32 0.0, %v4843
          %4845 = vmatmul.f32.gmra.mxu0 %v4521
          %v4846 = vpop.f32.mrf.mxu0
          %v4847 = vadd.f32 0.0, %v4846
          %4848 = vmatmul.f32.gmra.mxu0 %v4522
          %v4849 = vpop.f32.mrf.mxu0
          %v4850 = vadd.f32 0.0, %v4849
          %4851 = vmatmul.f32.gmra.mxu0 %v4523
          %v4852 = vpop.f32.mrf.mxu0
          %v4853 = vadd.f32 0.0, %v4852
          %4854 = vmatmul.f32.gmra.mxu0 %v4524
          %v4855 = vpop.f32.mrf.mxu0
          %v4856 = vadd.f32 0.0, %v4855
          %4857 = vmatmul.f32.gmra.mxu0 %v4525
          %v4858 = vpop.f32.mrf.mxu0
          %v4859 = vadd.f32 0.0, %v4858
          %4860 = vmatmul.f32.gmra.mxu0 %v4526
          %v4861 = vpop.f32.mrf.mxu0
          %v4862 = vadd.f32 0.0, %v4861
          %4863 = vmatmul.f32.gmra.mxu0 %v4527
          %v4864 = vpop.f32.mrf.mxu0
          %v4865 = vadd.f32 0.0, %v4864
          %4866 = vmatmul.f32.gmra.mxu0 %v4528
          %v4867 = vpop.f32.mrf.mxu0
          %v4868 = vadd.f32 0.0, %v4867
          %4869 = vmatmul.f32.gmra.mxu0 %v4529
          %v4870 = vpop.f32.mrf.mxu0
          %v4871 = vadd.f32 0.0, %v4870
          %4872 = vmatmul.f32.gmra.mxu0 %v4530
          %v4873 = vpop.f32.mrf.mxu0
          %v4874 = vadd.f32 0.0, %v4873
          %4875 = vmatmul.f32.gmra.mxu0 %v4531
          %v4876 = vpop.f32.mrf.mxu0
          %v4877 = vadd.f32 0.0, %v4876
          %4878 = vmatmul.f32.gmra.mxu0 %v4532
          %v4879 = vpop.f32.mrf.mxu0
          %v4880 = vadd.f32 0.0, %v4879
          %4881 = vmatmul.f32.gmra.mxu0 %v4533
          %v4882 = vpop.f32.mrf.mxu0
          %v4883 = vadd.f32 0.0, %v4882
          %4884 = vmatmul.f32.gmra.mxu0 %v4534
          %v4885 = vpop.f32.mrf.mxu0
          %v4886 = vadd.f32 0.0, %v4885
          %4887 = vmatmul.f32.gmra.mxu0 %v4535
          %v4888 = vpop.f32.mrf.mxu0
          %v4889 = vadd.f32 0.0, %v4888
          %4890 = vmatmul.f32.gmra.mxu0 %v4536
          %v4891 = vpop.f32.mrf.mxu0
          %v4892 = vadd.f32 0.0, %v4891
          %4893 = vmatmul.f32.gmra.mxu0 %v4537
          %v4894 = vpop.f32.mrf.mxu0
          %v4895 = vadd.f32 0.0, %v4894
          %4896 = vmatmul.f32.gmra.mxu0 %v4538
          %v4897 = vpop.f32.mrf.mxu0
          %v4898 = vadd.f32 0.0, %v4897
          %4899 = vmatmul.f32.gmra.mxu0 %v4539
          %v4900 = vpop.f32.mrf.mxu0
          %v4901 = vadd.f32 0.0, %v4900
          %4902 = vmatmul.f32.gmra.mxu0 %v4540
          %v4903 = vpop.f32.mrf.mxu0
          %v4904 = vadd.f32 0.0, %v4903
          %4905 = vmatmul.f32.gmra.mxu0 %v4541
          %v4906 = vpop.f32.mrf.mxu0
          %v4907 = vadd.f32 0.0, %v4906
          %4908 = vmatmul.f32.gmra.mxu0 %v4542
          %v4909 = vpop.f32.mrf.mxu0
          %v4910 = vadd.f32 0.0, %v4909
          %4911 = vmatmul.f32.gmra.mxu0 %v4543
          %v4912 = vpop.f32.mrf.mxu0
          %v4913 = vadd.f32 0.0, %v4912
          %4914 = vmatmul.f32.gmra.mxu0 %v4544
          %v4915 = vpop.f32.mrf.mxu0
          %v4916 = vadd.f32 0.0, %v4915
          %4917 = vmatmul.f32.gmra.mxu0 %v4545
          %v4918 = vpop.f32.mrf.mxu0
          %v4919 = vadd.f32 0.0, %v4918
          %4920 = vmatmul.f32.gmra.mxu0 %v4546
          %v4921 = vpop.f32.mrf.mxu0
          %v4922 = vadd.f32 0.0, %v4921
          %4923 = vmatmul.f32.gmra.mxu0 %v4547
          %v4924 = vpop.f32.mrf.mxu0
          %v4925 = vadd.f32 0.0, %v4924
          %4926 = vmatmul.f32.gmra.mxu0 %v4548
          %v4927 = vpop.f32.mrf.mxu0
          %v4928 = vadd.f32 0.0, %v4927
          %4929 = vmatmul.f32.gmra.mxu0 %v4549
          %v4930 = vpop.f32.mrf.mxu0
          %v4931 = vadd.f32 0.0, %v4930
          %4932 = vmatmul.f32.gmra.mxu0 %v4550
          %v4933 = vpop.f32.mrf.mxu0
          %v4934 = vadd.f32 0.0, %v4933
          %4935 = vmatmul.f32.gmra.mxu0 %v4551
          %v4936 = vpop.f32.mrf.mxu0
          %v4937 = vadd.f32 0.0, %v4936
          %4938 = vmatmul.f32.gmra.mxu0 %v4552
          %v4939 = vpop.f32.mrf.mxu0
          %v4940 = vadd.f32 0.0, %v4939
          %4941 = vmatmul.f32.gmra.mxu0 %v4553
          %v4942 = vpop.f32.mrf.mxu0
          %v4943 = vadd.f32 0.0, %v4942
          %4944 = vmatmul.f32.gmra.mxu0 %v4554
          %v4945 = vpop.f32.mrf.mxu0
          %v4946 = vadd.f32 0.0, %v4945
          %4947 = vmatmul.f32.gmra.mxu0 %v4555
          %v4948 = vpop.f32.mrf.mxu0
          %v4949 = vadd.f32 0.0, %v4948
          %4950 = vmatmul.f32.gmra.mxu0 %v4556
          %v4951 = vpop.f32.mrf.mxu0
          %v4952 = vadd.f32 0.0, %v4951
          %4953 = vmatmul.f32.gmra.mxu0 %v4557
          %v4954 = vpop.f32.mrf.mxu0
          %v4955 = vadd.f32 0.0, %v4954
          %4956 = vmatmul.f32.gmra.mxu0 %v4558
          %v4957 = vpop.f32.mrf.mxu0
          %v4958 = vadd.f32 0.0, %v4957
          %4959 = vdwg.mxu0
          %4960 = vmatpush.xpose.msra.mxu0 %v4430
          %4961 = vmatpush.xpose.msra.mxu0 %v4429
          %4962 = vmatpush.xpose.msra.mxu0 %v4428
          %4963 = vmatpush.xpose.msra.mxu0 %v4427
          %4964 = vmatpush.xpose.msra.mxu0 %v4426
          %4965 = vmatpush.xpose.msra.mxu0 %v4425
          %4966 = vmatpush.xpose.msra.mxu0 %v4424
          %4967 = vmatpush.xpose.msra.mxu0 %v4423
          %4968 = vmatpush.xpose.msra.mxu0 %v4422
          %4969 = vmatpush.xpose.msra.mxu0 %v4421
          %4970 = vmatpush.xpose.msra.mxu0 %v4420
          %4971 = vmatpush.xpose.msra.mxu0 %v4419
          %4972 = vmatpush.xpose.msra.mxu0 %v4418
          %4973 = vmatpush.xpose.msra.mxu0 %v4417
          %4974 = vmatpush.xpose.msra.mxu0 %v4416
          %4975 = vmatpush.xpose.msra.mxu0 %v4415
          %4976 = vmatmul.f32.gmra.mxu0 %v4431
          %v4977 = vpop.f32.mrf.mxu0
          %v4978 = vadd.f32 0.0, %v4977
          %4979 = vmatmul.f32.gmra.mxu0 %v4432
          %v4980 = vpop.f32.mrf.mxu0
          %v4981 = vadd.f32 0.0, %v4980
          %4982 = vmatmul.f32.gmra.mxu0 %v4433
          %v4983 = vpop.f32.mrf.mxu0
          %v4984 = vadd.f32 0.0, %v4983
          %4985 = vmatmul.f32.gmra.mxu0 %v4434
          %v4986 = vpop.f32.mrf.mxu0
          %v4987 = vadd.f32 0.0, %v4986
          %4988 = vmatmul.f32.gmra.mxu0 %v4435
          %v4989 = vpop.f32.mrf.mxu0
          %v4990 = vadd.f32 0.0, %v4989
          %4991 = vmatmul.f32.gmra.mxu0 %v4436
          %v4992 = vpop.f32.mrf.mxu0
          %v4993 = vadd.f32 0.0, %v4992
          %4994 = vmatmul.f32.gmra.mxu0 %v4437
          %v4995 = vpop.f32.mrf.mxu0
          %v4996 = vadd.f32 0.0, %v4995
          %4997 = vmatmul.f32.gmra.mxu0 %v4438
          %v4998 = vpop.f32.mrf.mxu0
          %v4999 = vadd.f32 0.0, %v4998
          %5000 = vmatmul.f32.gmra.mxu0 %v4439
          %v5001 = vpop.f32.mrf.mxu0
          %v5002 = vadd.f32 0.0, %v5001
          %5003 = vmatmul.f32.gmra.mxu0 %v4440
          %v5004 = vpop.f32.mrf.mxu0
          %v5005 = vadd.f32 0.0, %v5004
          %5006 = vmatmul.f32.gmra.mxu0 %v4441
          %v5007 = vpop.f32.mrf.mxu0
          %v5008 = vadd.f32 0.0, %v5007
          %5009 = vmatmul.f32.gmra.mxu0 %v4442
          %v5010 = vpop.f32.mrf.mxu0
          %v5011 = vadd.f32 0.0, %v5010
          %5012 = vmatmul.f32.gmra.mxu0 %v4443
          %v5013 = vpop.f32.mrf.mxu0
          %v5014 = vadd.f32 0.0, %v5013
          %5015 = vmatmul.f32.gmra.mxu0 %v4444
          %v5016 = vpop.f32.mrf.mxu0
          %v5017 = vadd.f32 0.0, %v5016
          %5018 = vmatmul.f32.gmra.mxu0 %v4445
          %v5019 = vpop.f32.mrf.mxu0
          %v5020 = vadd.f32 0.0, %v5019
          %5021 = vmatmul.f32.gmra.mxu0 %v4446
          %v5022 = vpop.f32.mrf.mxu0
          %v5023 = vadd.f32 0.0, %v5022
          %5024 = vmatmul.f32.gmra.mxu0 %v4447
          %v5025 = vpop.f32.mrf.mxu0
          %v5026 = vadd.f32 0.0, %v5025
          %5027 = vmatmul.f32.gmra.mxu0 %v4448
          %v5028 = vpop.f32.mrf.mxu0
          %v5029 = vadd.f32 0.0, %v5028
          %5030 = vmatmul.f32.gmra.mxu0 %v4449
          %v5031 = vpop.f32.mrf.mxu0
          %v5032 = vadd.f32 0.0, %v5031
          %5033 = vmatmul.f32.gmra.mxu0 %v4450
          %v5034 = vpop.f32.mrf.mxu0
          %v5035 = vadd.f32 0.0, %v5034
          %5036 = vmatmul.f32.gmra.mxu0 %v4451
          %v5037 = vpop.f32.mrf.mxu0
          %v5038 = vadd.f32 0.0, %v5037
          %5039 = vmatmul.f32.gmra.mxu0 %v4452
          %v5040 = vpop.f32.mrf.mxu0
          %v5041 = vadd.f32 0.0, %v5040
          %5042 = vmatmul.f32.gmra.mxu0 %v4453
          %v5043 = vpop.f32.mrf.mxu0
          %v5044 = vadd.f32 0.0, %v5043
          %5045 = vmatmul.f32.gmra.mxu0 %v4454
          %v5046 = vpop.f32.mrf.mxu0
          %v5047 = vadd.f32 0.0, %v5046
          %5048 = vmatmul.f32.gmra.mxu0 %v4455
          %v5049 = vpop.f32.mrf.mxu0
          %v5050 = vadd.f32 0.0, %v5049
          %5051 = vmatmul.f32.gmra.mxu0 %v4456
          %v5052 = vpop.f32.mrf.mxu0
          %v5053 = vadd.f32 0.0, %v5052
          %5054 = vmatmul.f32.gmra.mxu0 %v4457
          %v5055 = vpop.f32.mrf.mxu0
          %v5056 = vadd.f32 0.0, %v5055
          %5057 = vmatmul.f32.gmra.mxu0 %v4458
          %v5058 = vpop.f32.mrf.mxu0
          %v5059 = vadd.f32 0.0, %v5058
          %5060 = vmatmul.f32.gmra.mxu0 %v4459
          %v5061 = vpop.f32.mrf.mxu0
          %v5062 = vadd.f32 0.0, %v5061
          %5063 = vmatmul.f32.gmra.mxu0 %v4460
          %v5064 = vpop.f32.mrf.mxu0
          %v5065 = vadd.f32 0.0, %v5064
          %5066 = vmatmul.f32.gmra.mxu0 %v4461
          %v5067 = vpop.f32.mrf.mxu0
          %v5068 = vadd.f32 0.0, %v5067
          %5069 = vmatmul.f32.gmra.mxu0 %v4462
          %v5070 = vpop.f32.mrf.mxu0
          %v5071 = vadd.f32 0.0, %v5070
          %5072 = vmatmul.f32.gmra.mxu0 %v4463
          %v5073 = vpop.f32.mrf.mxu0
          %v5074 = vadd.f32 0.0, %v5073
          %5075 = vmatmul.f32.gmra.mxu0 %v4464
          %v5076 = vpop.f32.mrf.mxu0
          %v5077 = vadd.f32 0.0, %v5076
          %5078 = vmatmul.f32.gmra.mxu0 %v4465
          %v5079 = vpop.f32.mrf.mxu0
          %v5080 = vadd.f32 0.0, %v5079
          %5081 = vmatmul.f32.gmra.mxu0 %v4466
          %v5082 = vpop.f32.mrf.mxu0
          %v5083 = vadd.f32 0.0, %v5082
          %5084 = vmatmul.f32.gmra.mxu0 %v4467
          %v5085 = vpop.f32.mrf.mxu0
          %v5086 = vadd.f32 0.0, %v5085
          %5087 = vmatmul.f32.gmra.mxu0 %v4468
          %v5088 = vpop.f32.mrf.mxu0
          %v5089 = vadd.f32 0.0, %v5088
          %5090 = vmatmul.f32.gmra.mxu0 %v4469
          %v5091 = vpop.f32.mrf.mxu0
          %v5092 = vadd.f32 0.0, %v5091
          %5093 = vmatmul.f32.gmra.mxu0 %v4470
          %v5094 = vpop.f32.mrf.mxu0
          %v5095 = vadd.f32 0.0, %v5094
          %5096 = vmatmul.f32.gmra.mxu0 %v4471
          %v5097 = vpop.f32.mrf.mxu0
          %v5098 = vadd.f32 0.0, %v5097
          %5099 = vmatmul.f32.gmra.mxu0 %v4472
          %v5100 = vpop.f32.mrf.mxu0
          %v5101 = vadd.f32 0.0, %v5100
          %5102 = vmatmul.f32.gmra.mxu0 %v4473
          %v5103 = vpop.f32.mrf.mxu0
          %v5104 = vadd.f32 0.0, %v5103
          %5105 = vmatmul.f32.gmra.mxu0 %v4474
          %v5106 = vpop.f32.mrf.mxu0
          %v5107 = vadd.f32 0.0, %v5106
          %5108 = vmatmul.f32.gmra.mxu0 %v4475
          %v5109 = vpop.f32.mrf.mxu0
          %v5110 = vadd.f32 0.0, %v5109
          %5111 = vmatmul.f32.gmra.mxu0 %v4476
          %v5112 = vpop.f32.mrf.mxu0
          %v5113 = vadd.f32 0.0, %v5112
          %5114 = vmatmul.f32.gmra.mxu0 %v4477
          %v5115 = vpop.f32.mrf.mxu0
          %v5116 = vadd.f32 0.0, %v5115
          %5117 = vmatmul.f32.gmra.mxu0 %v4478
          %v5118 = vpop.f32.mrf.mxu0
          %v5119 = vadd.f32 0.0, %v5118
          %5120 = vmatmul.f32.gmra.mxu0 %v4479
          %v5121 = vpop.f32.mrf.mxu0
          %v5122 = vadd.f32 0.0, %v5121
          %5123 = vmatmul.f32.gmra.mxu0 %v4480
          %v5124 = vpop.f32.mrf.mxu0
          %v5125 = vadd.f32 0.0, %v5124
          %5126 = vmatmul.f32.gmra.mxu0 %v4481
          %v5127 = vpop.f32.mrf.mxu0
          %v5128 = vadd.f32 0.0, %v5127
          %5129 = vmatmul.f32.gmra.mxu0 %v4482
          %v5130 = vpop.f32.mrf.mxu0
          %v5131 = vadd.f32 0.0, %v5130
          %5132 = vmatmul.f32.gmra.mxu0 %v4483
          %v5133 = vpop.f32.mrf.mxu0
          %v5134 = vadd.f32 0.0, %v5133
          %5135 = vmatmul.f32.gmra.mxu0 %v4484
          %v5136 = vpop.f32.mrf.mxu0
          %v5137 = vadd.f32 0.0, %v5136
          %5138 = vmatmul.f32.gmra.mxu0 %v4485
          %v5139 = vpop.f32.mrf.mxu0
          %v5140 = vadd.f32 0.0, %v5139
          %5141 = vmatmul.f32.gmra.mxu0 %v4486
          %v5142 = vpop.f32.mrf.mxu0
          %v5143 = vadd.f32 0.0, %v5142
          %5144 = vmatmul.f32.gmra.mxu0 %v4487
          %v5145 = vpop.f32.mrf.mxu0
          %v5146 = vadd.f32 0.0, %v5145
          %5147 = vmatmul.f32.gmra.mxu0 %v4488
          %v5148 = vpop.f32.mrf.mxu0
          %v5149 = vadd.f32 0.0, %v5148
          %5150 = vmatmul.f32.gmra.mxu0 %v4489
          %v5151 = vpop.f32.mrf.mxu0
          %v5152 = vadd.f32 0.0, %v5151
          %5153 = vmatmul.f32.gmra.mxu0 %v4490
          %v5154 = vpop.f32.mrf.mxu0
          %v5155 = vadd.f32 0.0, %v5154
          %5156 = vmatmul.f32.gmra.mxu0 %v4491
          %v5157 = vpop.f32.mrf.mxu0
          %v5158 = vadd.f32 0.0, %v5157
          %5159 = vmatmul.f32.gmra.mxu0 %v4492
          %v5160 = vpop.f32.mrf.mxu0
          %v5161 = vadd.f32 0.0, %v5160
          %5162 = vmatmul.f32.gmra.mxu0 %v4493
          %v5163 = vpop.f32.mrf.mxu0
          %v5164 = vadd.f32 0.0, %v5163
          %5165 = vmatmul.f32.gmra.mxu0 %v4494
          %v5166 = vpop.f32.mrf.mxu0
          %v5167 = vadd.f32 0.0, %v5166
          %5168 = vmatmul.f32.gmra.mxu0 %v4495
          %v5169 = vpop.f32.mrf.mxu0
          %v5170 = vadd.f32 0.0, %v5169
          %5171 = vmatmul.f32.gmra.mxu0 %v4496
          %v5172 = vpop.f32.mrf.mxu0
          %v5173 = vadd.f32 0.0, %v5172
          %5174 = vmatmul.f32.gmra.mxu0 %v4497
          %v5175 = vpop.f32.mrf.mxu0
          %v5176 = vadd.f32 0.0, %v5175
          %5177 = vmatmul.f32.gmra.mxu0 %v4498
          %v5178 = vpop.f32.mrf.mxu0
          %v5179 = vadd.f32 0.0, %v5178
          %5180 = vmatmul.f32.gmra.mxu0 %v4499
          %v5181 = vpop.f32.mrf.mxu0
          %v5182 = vadd.f32 0.0, %v5181
          %5183 = vmatmul.f32.gmra.mxu0 %v4500
          %v5184 = vpop.f32.mrf.mxu0
          %v5185 = vadd.f32 0.0, %v5184
          %5186 = vmatmul.f32.gmra.mxu0 %v4501
          %v5187 = vpop.f32.mrf.mxu0
          %v5188 = vadd.f32 0.0, %v5187
          %5189 = vmatmul.f32.gmra.mxu0 %v4502
          %v5190 = vpop.f32.mrf.mxu0
          %v5191 = vadd.f32 0.0, %v5190
          %5192 = vmatmul.f32.gmra.mxu0 %v4503
          %v5193 = vpop.f32.mrf.mxu0
          %v5194 = vadd.f32 0.0, %v5193
          %5195 = vmatmul.f32.gmra.mxu0 %v4504
          %v5196 = vpop.f32.mrf.mxu0
          %v5197 = vadd.f32 0.0, %v5196
          %5198 = vmatmul.f32.gmra.mxu0 %v4505
          %v5199 = vpop.f32.mrf.mxu0
          %v5200 = vadd.f32 0.0, %v5199
          %5201 = vmatmul.f32.gmra.mxu0 %v4506
          %v5202 = vpop.f32.mrf.mxu0
          %v5203 = vadd.f32 0.0, %v5202
          %5204 = vmatmul.f32.gmra.mxu0 %v4507
          %v5205 = vpop.f32.mrf.mxu0
          %v5206 = vadd.f32 0.0, %v5205
          %5207 = vmatmul.f32.gmra.mxu0 %v4508
          %v5208 = vpop.f32.mrf.mxu0
          %v5209 = vadd.f32 0.0, %v5208
          %5210 = vmatmul.f32.gmra.mxu0 %v4509
          %v5211 = vpop.f32.mrf.mxu0
          %v5212 = vadd.f32 0.0, %v5211
          %5213 = vmatmul.f32.gmra.mxu0 %v4510
          %v5214 = vpop.f32.mrf.mxu0
          %v5215 = vadd.f32 0.0, %v5214
          %5216 = vmatmul.f32.gmra.mxu0 %v4511
          %v5217 = vpop.f32.mrf.mxu0
          %v5218 = vadd.f32 0.0, %v5217
          %5219 = vmatmul.f32.gmra.mxu0 %v4512
          %v5220 = vpop.f32.mrf.mxu0
          %v5221 = vadd.f32 0.0, %v5220
          %5222 = vmatmul.f32.gmra.mxu0 %v4513
          %v5223 = vpop.f32.mrf.mxu0
          %v5224 = vadd.f32 0.0, %v5223
          %5225 = vmatmul.f32.gmra.mxu0 %v4514
          %v5226 = vpop.f32.mrf.mxu0
          %v5227 = vadd.f32 0.0, %v5226
          %5228 = vmatmul.f32.gmra.mxu0 %v4515
          %v5229 = vpop.f32.mrf.mxu0
          %v5230 = vadd.f32 0.0, %v5229
          %5231 = vmatmul.f32.gmra.mxu0 %v4516
          %v5232 = vpop.f32.mrf.mxu0
          %v5233 = vadd.f32 0.0, %v5232
          %5234 = vmatmul.f32.gmra.mxu0 %v4517
          %v5235 = vpop.f32.mrf.mxu0
          %v5236 = vadd.f32 0.0, %v5235
          %5237 = vmatmul.f32.gmra.mxu0 %v4518
          %v5238 = vpop.f32.mrf.mxu0
          %v5239 = vadd.f32 0.0, %v5238
          %5240 = vmatmul.f32.gmra.mxu0 %v4519
          %v5241 = vpop.f32.mrf.mxu0
          %v5242 = vadd.f32 0.0, %v5241
          %5243 = vmatmul.f32.gmra.mxu0 %v4520
          %v5244 = vpop.f32.mrf.mxu0
          %v5245 = vadd.f32 0.0, %v5244
          %5246 = vmatmul.f32.gmra.mxu0 %v4521
          %v5247 = vpop.f32.mrf.mxu0
          %v5248 = vadd.f32 0.0, %v5247
          %5249 = vmatmul.f32.gmra.mxu0 %v4522
          %v5250 = vpop.f32.mrf.mxu0
          %v5251 = vadd.f32 0.0, %v5250
          %5252 = vmatmul.f32.gmra.mxu0 %v4523
          %v5253 = vpop.f32.mrf.mxu0
          %v5254 = vadd.f32 0.0, %v5253
          %5255 = vmatmul.f32.gmra.mxu0 %v4524
          %v5256 = vpop.f32.mrf.mxu0
          %v5257 = vadd.f32 0.0, %v5256
          %5258 = vmatmul.f32.gmra.mxu0 %v4525
          %v5259 = vpop.f32.mrf.mxu0
          %v5260 = vadd.f32 0.0, %v5259
          %5261 = vmatmul.f32.gmra.mxu0 %v4526
          %v5262 = vpop.f32.mrf.mxu0
          %v5263 = vadd.f32 0.0, %v5262
          %5264 = vmatmul.f32.gmra.mxu0 %v4527
          %v5265 = vpop.f32.mrf.mxu0
          %v5266 = vadd.f32 0.0, %v5265
          %5267 = vmatmul.f32.gmra.mxu0 %v4528
          %v5268 = vpop.f32.mrf.mxu0
          %v5269 = vadd.f32 0.0, %v5268
          %5270 = vmatmul.f32.gmra.mxu0 %v4529
          %v5271 = vpop.f32.mrf.mxu0
          %v5272 = vadd.f32 0.0, %v5271
          %5273 = vmatmul.f32.gmra.mxu0 %v4530
          %v5274 = vpop.f32.mrf.mxu0
          %v5275 = vadd.f32 0.0, %v5274
          %5276 = vmatmul.f32.gmra.mxu0 %v4531
          %v5277 = vpop.f32.mrf.mxu0
          %v5278 = vadd.f32 0.0, %v5277
          %5279 = vmatmul.f32.gmra.mxu0 %v4532
          %v5280 = vpop.f32.mrf.mxu0
          %v5281 = vadd.f32 0.0, %v5280
          %5282 = vmatmul.f32.gmra.mxu0 %v4533
          %v5283 = vpop.f32.mrf.mxu0
          %v5284 = vadd.f32 0.0, %v5283
          %5285 = vmatmul.f32.gmra.mxu0 %v4534
          %v5286 = vpop.f32.mrf.mxu0
          %v5287 = vadd.f32 0.0, %v5286
          %5288 = vmatmul.f32.gmra.mxu0 %v4535
          %v5289 = vpop.f32.mrf.mxu0
          %v5290 = vadd.f32 0.0, %v5289
          %5291 = vmatmul.f32.gmra.mxu0 %v4536
          %v5292 = vpop.f32.mrf.mxu0
          %v5293 = vadd.f32 0.0, %v5292
          %5294 = vmatmul.f32.gmra.mxu0 %v4537
          %v5295 = vpop.f32.mrf.mxu0
          %v5296 = vadd.f32 0.0, %v5295
          %5297 = vmatmul.f32.gmra.mxu0 %v4538
          %v5298 = vpop.f32.mrf.mxu0
          %v5299 = vadd.f32 0.0, %v5298
          %5300 = vmatmul.f32.gmra.mxu0 %v4539
          %v5301 = vpop.f32.mrf.mxu0
          %v5302 = vadd.f32 0.0, %v5301
          %5303 = vmatmul.f32.gmra.mxu0 %v4540
          %v5304 = vpop.f32.mrf.mxu0
          %v5305 = vadd.f32 0.0, %v5304
          %5306 = vmatmul.f32.gmra.mxu0 %v4541
          %v5307 = vpop.f32.mrf.mxu0
          %v5308 = vadd.f32 0.0, %v5307
          %5309 = vmatmul.f32.gmra.mxu0 %v4542
          %v5310 = vpop.f32.mrf.mxu0
          %v5311 = vadd.f32 0.0, %v5310
          %5312 = vmatmul.f32.gmra.mxu0 %v4543
          %v5313 = vpop.f32.mrf.mxu0
          %v5314 = vadd.f32 0.0, %v5313
          %5315 = vmatmul.f32.gmra.mxu0 %v4544
          %v5316 = vpop.f32.mrf.mxu0
          %v5317 = vadd.f32 0.0, %v5316
          %5318 = vmatmul.f32.gmra.mxu0 %v4545
          %v5319 = vpop.f32.mrf.mxu0
          %v5320 = vadd.f32 0.0, %v5319
          %5321 = vmatmul.f32.gmra.mxu0 %v4546
          %v5322 = vpop.f32.mrf.mxu0
          %v5323 = vadd.f32 0.0, %v5322
          %5324 = vmatmul.f32.gmra.mxu0 %v4547
          %v5325 = vpop.f32.mrf.mxu0
          %v5326 = vadd.f32 0.0, %v5325
          %5327 = vmatmul.f32.gmra.mxu0 %v4548
          %v5328 = vpop.f32.mrf.mxu0
          %v5329 = vadd.f32 0.0, %v5328
          %5330 = vmatmul.f32.gmra.mxu0 %v4549
          %v5331 = vpop.f32.mrf.mxu0
          %v5332 = vadd.f32 0.0, %v5331
          %5333 = vmatmul.f32.gmra.mxu0 %v4550
          %v5334 = vpop.f32.mrf.mxu0
          %v5335 = vadd.f32 0.0, %v5334
          %5336 = vmatmul.f32.gmra.mxu0 %v4551
          %v5337 = vpop.f32.mrf.mxu0
          %v5338 = vadd.f32 0.0, %v5337
          %5339 = vmatmul.f32.gmra.mxu0 %v4552
          %v5340 = vpop.f32.mrf.mxu0
          %v5341 = vadd.f32 0.0, %v5340
          %5342 = vmatmul.f32.gmra.mxu0 %v4553
          %v5343 = vpop.f32.mrf.mxu0
          %v5344 = vadd.f32 0.0, %v5343
          %5345 = vmatmul.f32.gmra.mxu0 %v4554
          %v5346 = vpop.f32.mrf.mxu0
          %v5347 = vadd.f32 0.0, %v5346
          %5348 = vmatmul.f32.gmra.mxu0 %v4555
          %v5349 = vpop.f32.mrf.mxu0
          %v5350 = vadd.f32 0.0, %v5349
          %5351 = vmatmul.f32.gmra.mxu0 %v4556
          %v5352 = vpop.f32.mrf.mxu0
          %v5353 = vadd.f32 0.0, %v5352
          %5354 = vmatmul.f32.gmra.mxu0 %v4557
          %v5355 = vpop.f32.mrf.mxu0
          %v5356 = vadd.f32 0.0, %v5355
          %5357 = vmatmul.f32.gmra.mxu0 %v4558
          %v5358 = vpop.f32.mrf.mxu0
          %v5359 = vadd.f32 0.0, %v5358
          %5360 = vdwg.mxu0
          %v5361 = vld [vmem:[%s301] sm:$0xff]
          %v5362 = vld [vmem:[%s301 + $0x8] sm:$0xff]
          %v5363 = vld [vmem:[%s301 + $0x10] sm:$0xff]
          %v5364 = vld [vmem:[%s301 + $0x18] sm:$0xff]
          %v5365 = vld [vmem:[%s301 + $0x20] sm:$0xff]
          %v5366 = vld [vmem:[%s301 + $0x28] sm:$0xff]
          %v5367 = vld [vmem:[%s301 + $0x30] sm:$0xff]
          %v5368 = vld [vmem:[%s301 + $0x38] sm:$0xff]
          %v5369 = vld [vmem:[%s301 + $0x40] sm:$0xff]
          %v5370 = vld [vmem:[%s301 + $0x48] sm:$0xff]
          %v5371 = vld [vmem:[%s301 + $0x50] sm:$0xff]
          %v5372 = vld [vmem:[%s301 + $0x58] sm:$0xff]
          %v5373 = vld [vmem:[%s301 + $0x60] sm:$0xff]
          %v5374 = vld [vmem:[%s301 + $0x68] sm:$0xff]
          %v5375 = vld [vmem:[%s301 + $0x70] sm:$0xff]
          %v5376 = vld [vmem:[%s301 + $0x78] sm:$0xff]
          %v5377 = vld [vmem:[%s301 + $0x80] sm:$0xff]
          %v5378 = vld [vmem:[%s301 + $0x88] sm:$0xff]
          %v5379 = vld [vmem:[%s301 + $0x90] sm:$0xff]
          %v5380 = vld [vmem:[%s301 + $0x98] sm:$0xff]
          %v5381 = vld [vmem:[%s301 + $0xa0] sm:$0xff]
          %v5382 = vld [vmem:[%s301 + $0xa8] sm:$0xff]
          %v5383 = vld [vmem:[%s301 + $0xb0] sm:$0xff]
          %v5384 = vld [vmem:[%s301 + $0xb8] sm:$0xff]
          %v5385 = vld [vmem:[%s301 + $0xc0] sm:$0xff]
          %v5386 = vld [vmem:[%s301 + $0xc8] sm:$0xff]
          %v5387 = vld [vmem:[%s301 + $0xd0] sm:$0xff]
          %v5388 = vld [vmem:[%s301 + $0xd8] sm:$0xff]
          %v5389 = vld [vmem:[%s301 + $0xe0] sm:$0xff]
          %v5390 = vld [vmem:[%s301 + $0xe8] sm:$0xff]
          %v5391 = vld [vmem:[%s301 + $0xf0] sm:$0xff]
          %v5392 = vld [vmem:[%s301 + $0xf8] sm:$0xff]
          %v5393 = vld [vmem:[%s301 + $0x100] sm:$0xff]
          %v5394 = vld [vmem:[%s301 + $0x108] sm:$0xff]
          %v5395 = vld [vmem:[%s301 + $0x110] sm:$0xff]
          %v5396 = vld [vmem:[%s301 + $0x118] sm:$0xff]
          %v5397 = vld [vmem:[%s301 + $0x120] sm:$0xff]
          %v5398 = vld [vmem:[%s301 + $0x128] sm:$0xff]
          %v5399 = vld [vmem:[%s301 + $0x130] sm:$0xff]
          %v5400 = vld [vmem:[%s301 + $0x138] sm:$0xff]
          %v5401 = vld [vmem:[%s301 + $0x140] sm:$0xff]
          %v5402 = vld [vmem:[%s301 + $0x148] sm:$0xff]
          %v5403 = vld [vmem:[%s301 + $0x150] sm:$0xff]
          %v5404 = vld [vmem:[%s301 + $0x158] sm:$0xff]
          %v5405 = vld [vmem:[%s301 + $0x160] sm:$0xff]
          %v5406 = vld [vmem:[%s301 + $0x168] sm:$0xff]
          %v5407 = vld [vmem:[%s301 + $0x170] sm:$0xff]
          %v5408 = vld [vmem:[%s301 + $0x178] sm:$0xff]
          %v5409 = vld [vmem:[%s301 + $0x180] sm:$0xff]
          %v5410 = vld [vmem:[%s301 + $0x188] sm:$0xff]
          %v5411 = vld [vmem:[%s301 + $0x190] sm:$0xff]
          %v5412 = vld [vmem:[%s301 + $0x198] sm:$0xff]
          %v5413 = vld [vmem:[%s301 + $0x1a0] sm:$0xff]
          %v5414 = vld [vmem:[%s301 + $0x1a8] sm:$0xff]
          %v5415 = vld [vmem:[%s301 + $0x1b0] sm:$0xff]
          %v5416 = vld [vmem:[%s301 + $0x1b8] sm:$0xff]
          %v5417 = vld [vmem:[%s301 + $0x1c0] sm:$0xff]
          %v5418 = vld [vmem:[%s301 + $0x1c8] sm:$0xff]
          %v5419 = vld [vmem:[%s301 + $0x1d0] sm:$0xff]
          %v5420 = vld [vmem:[%s301 + $0x1d8] sm:$0xff]
          %v5421 = vld [vmem:[%s301 + $0x1e0] sm:$0xff]
          %v5422 = vld [vmem:[%s301 + $0x1e8] sm:$0xff]
          %v5423 = vld [vmem:[%s301 + $0x1f0] sm:$0xff]
          %v5424 = vld [vmem:[%s301 + $0x1f8] sm:$0xff]
          %v5425 = vld [vmem:[%s301 + $0x200] sm:$0xff]
          %v5426 = vld [vmem:[%s301 + $0x208] sm:$0xff]
          %v5427 = vld [vmem:[%s301 + $0x210] sm:$0xff]
          %v5428 = vld [vmem:[%s301 + $0x218] sm:$0xff]
          %v5429 = vld [vmem:[%s301 + $0x220] sm:$0xff]
          %v5430 = vld [vmem:[%s301 + $0x228] sm:$0xff]
          %v5431 = vld [vmem:[%s301 + $0x230] sm:$0xff]
          %v5432 = vld [vmem:[%s301 + $0x238] sm:$0xff]
          %v5433 = vld [vmem:[%s301 + $0x240] sm:$0xff]
          %v5434 = vld [vmem:[%s301 + $0x248] sm:$0xff]
          %v5435 = vld [vmem:[%s301 + $0x250] sm:$0xff]
          %v5436 = vld [vmem:[%s301 + $0x258] sm:$0xff]
          %v5437 = vld [vmem:[%s301 + $0x260] sm:$0xff]
          %v5438 = vld [vmem:[%s301 + $0x268] sm:$0xff]
          %v5439 = vld [vmem:[%s301 + $0x270] sm:$0xff]
          %v5440 = vld [vmem:[%s301 + $0x278] sm:$0xff]
          %v5441 = vld [vmem:[%s301 + $0x280] sm:$0xff]
          %v5442 = vld [vmem:[%s301 + $0x288] sm:$0xff]
          %v5443 = vld [vmem:[%s301 + $0x290] sm:$0xff]
          %v5444 = vld [vmem:[%s301 + $0x298] sm:$0xff]
          %v5445 = vld [vmem:[%s301 + $0x2a0] sm:$0xff]
          %v5446 = vld [vmem:[%s301 + $0x2a8] sm:$0xff]
          %v5447 = vld [vmem:[%s301 + $0x2b0] sm:$0xff]
          %v5448 = vld [vmem:[%s301 + $0x2b8] sm:$0xff]
          %v5449 = vld [vmem:[%s301 + $0x2c0] sm:$0xff]
          %v5450 = vld [vmem:[%s301 + $0x2c8] sm:$0xff]
          %v5451 = vld [vmem:[%s301 + $0x2d0] sm:$0xff]
          %v5452 = vld [vmem:[%s301 + $0x2d8] sm:$0xff]
          %v5453 = vld [vmem:[%s301 + $0x2e0] sm:$0xff]
          %v5454 = vld [vmem:[%s301 + $0x2e8] sm:$0xff]
          %v5455 = vld [vmem:[%s301 + $0x2f0] sm:$0xff]
          %v5456 = vld [vmem:[%s301 + $0x2f8] sm:$0xff]
          %v5457 = vld [vmem:[%s301 + $0x300] sm:$0xff]
          %v5458 = vld [vmem:[%s301 + $0x308] sm:$0xff]
          %v5459 = vld [vmem:[%s301 + $0x310] sm:$0xff]
          %v5460 = vld [vmem:[%s301 + $0x318] sm:$0xff]
          %v5461 = vld [vmem:[%s301 + $0x320] sm:$0xff]
          %v5462 = vld [vmem:[%s301 + $0x328] sm:$0xff]
          %v5463 = vld [vmem:[%s301 + $0x330] sm:$0xff]
          %v5464 = vld [vmem:[%s301 + $0x338] sm:$0xff]
          %v5465 = vld [vmem:[%s301 + $0x340] sm:$0xff]
          %v5466 = vld [vmem:[%s301 + $0x348] sm:$0xff]
          %v5467 = vld [vmem:[%s301 + $0x350] sm:$0xff]
          %v5468 = vld [vmem:[%s301 + $0x358] sm:$0xff]
          %v5469 = vld [vmem:[%s301 + $0x360] sm:$0xff]
          %v5470 = vld [vmem:[%s301 + $0x368] sm:$0xff]
          %v5471 = vld [vmem:[%s301 + $0x370] sm:$0xff]
          %v5472 = vld [vmem:[%s301 + $0x378] sm:$0xff]
          %v5473 = vld [vmem:[%s301 + $0x380] sm:$0xff]
          %v5474 = vld [vmem:[%s301 + $0x388] sm:$0xff]
          %v5475 = vld [vmem:[%s301 + $0x390] sm:$0xff]
          %v5476 = vld [vmem:[%s301 + $0x398] sm:$0xff]
          %v5477 = vld [vmem:[%s301 + $0x3a0] sm:$0xff]
          %v5478 = vld [vmem:[%s301 + $0x3a8] sm:$0xff]
          %v5479 = vld [vmem:[%s301 + $0x3b0] sm:$0xff]
          %v5480 = vld [vmem:[%s301 + $0x3b8] sm:$0xff]
          %v5481 = vld [vmem:[%s301 + $0x3c0] sm:$0xff]
          %v5482 = vld [vmem:[%s301 + $0x3c8] sm:$0xff]
          %v5483 = vld [vmem:[%s301 + $0x3d0] sm:$0xff]
          %v5484 = vld [vmem:[%s301 + $0x3d8] sm:$0xff]
          %v5485 = vld [vmem:[%s301 + $0x3e0] sm:$0xff]
          %v5486 = vld [vmem:[%s301 + $0x3e8] sm:$0xff]
          %v5487 = vld [vmem:[%s301 + $0x3f0] sm:$0xff]
          %v5488 = vld [vmem:[%s301 + $0x3f8] sm:$0xff]
          %v5489 = vmul.f32 %v4577, 2.0
          %v5490 = vmul.f32 %v4978, 2.0
          %v5491 = vmul.f32 %v4580, 2.0
          %v5492 = vmul.f32 %v4981, 2.0
          %v5493 = vmul.f32 %v4583, 2.0
          %v5494 = vmul.f32 %v4984, 2.0
          %v5495 = vmul.f32 %v4586, 2.0
          %v5496 = vmul.f32 %v4987, 2.0
          %v5497 = vmul.f32 %v4589, 2.0
          %v5498 = vmul.f32 %v4990, 2.0
          %v5499 = vmul.f32 %v4592, 2.0
          %v5500 = vmul.f32 %v4993, 2.0
          %v5501 = vmul.f32 %v4595, 2.0
          %v5502 = vmul.f32 %v4996, 2.0
          %v5503 = vmul.f32 %v4598, 2.0
          %v5504 = vmul.f32 %v4999, 2.0
          %v5505 = vmul.f32 %v4601, 2.0
          %v5506 = vmul.f32 %v5002, 2.0
          %v5507 = vmul.f32 %v4604, 2.0
          %v5508 = vmul.f32 %v5005, 2.0
          %v5509 = vmul.f32 %v4607, 2.0
          %v5510 = vmul.f32 %v5008, 2.0
          %v5511 = vmul.f32 %v4610, 2.0
          %v5512 = vmul.f32 %v5011, 2.0
          %v5513 = vmul.f32 %v4613, 2.0
          %v5514 = vmul.f32 %v5014, 2.0
          %v5515 = vmul.f32 %v4616, 2.0
          %v5516 = vmul.f32 %v5017, 2.0
          %v5517 = vmul.f32 %v4619, 2.0
          %v5518 = vmul.f32 %v5020, 2.0
          %v5519 = vmul.f32 %v4622, 2.0
          %v5520 = vmul.f32 %v5023, 2.0
          %v5521 = vmul.f32 %v4625, 2.0
          %v5522 = vmul.f32 %v5026, 2.0
          %v5523 = vmul.f32 %v4628, 2.0
          %v5524 = vmul.f32 %v5029, 2.0
          %v5525 = vmul.f32 %v4631, 2.0
          %v5526 = vmul.f32 %v5032, 2.0
          %v5527 = vmul.f32 %v4634, 2.0
          %v5528 = vmul.f32 %v5035, 2.0
          %v5529 = vmul.f32 %v4637, 2.0
          %v5530 = vmul.f32 %v5038, 2.0
          %v5531 = vmul.f32 %v4640, 2.0
          %v5532 = vmul.f32 %v5041, 2.0
          %v5533 = vmul.f32 %v4643, 2.0
          %v5534 = vmul.f32 %v5044, 2.0
          %v5535 = vmul.f32 %v4646, 2.0
          %v5536 = vmul.f32 %v5047, 2.0
          %v5537 = vmul.f32 %v4649, 2.0
          %v5538 = vmul.f32 %v5050, 2.0
          %v5539 = vmul.f32 %v4652, 2.0
          %v5540 = vmul.f32 %v5053, 2.0
          %v5541 = vmul.f32 %v4655, 2.0
          %v5542 = vmul.f32 %v5056, 2.0
          %v5543 = vmul.f32 %v4658, 2.0
          %v5544 = vmul.f32 %v5059, 2.0
          %v5545 = vmul.f32 %v4661, 2.0
          %v5546 = vmul.f32 %v5062, 2.0
          %v5547 = vmul.f32 %v4664, 2.0
          %v5548 = vmul.f32 %v5065, 2.0
          %v5549 = vmul.f32 %v4667, 2.0
          %v5550 = vmul.f32 %v5068, 2.0
          %v5551 = vmul.f32 %v4670, 2.0
          %v5552 = vmul.f32 %v5071, 2.0
          %v5553 = vmul.f32 %v4673, 2.0
          %v5554 = vmul.f32 %v5074, 2.0
          %v5555 = vmul.f32 %v4676, 2.0
          %v5556 = vmul.f32 %v5077, 2.0
          %v5557 = vmul.f32 %v4679, 2.0
          %v5558 = vmul.f32 %v5080, 2.0
          %v5559 = vmul.f32 %v4682, 2.0
          %v5560 = vmul.f32 %v5083, 2.0
          %v5561 = vmul.f32 %v4685, 2.0
          %v5562 = vmul.f32 %v5086, 2.0
          %v5563 = vmul.f32 %v4688, 2.0
          %v5564 = vmul.f32 %v5089, 2.0
          %v5565 = vmul.f32 %v4691, 2.0
          %v5566 = vmul.f32 %v5092, 2.0
          %v5567 = vmul.f32 %v4694, 2.0
          %v5568 = vmul.f32 %v5095, 2.0
          %v5569 = vmul.f32 %v4697, 2.0
          %v5570 = vmul.f32 %v5098, 2.0
          %v5571 = vmul.f32 %v4700, 2.0
          %v5572 = vmul.f32 %v5101, 2.0
          %v5573 = vmul.f32 %v4703, 2.0
          %v5574 = vmul.f32 %v5104, 2.0
          %v5575 = vmul.f32 %v4706, 2.0
          %v5576 = vmul.f32 %v5107, 2.0
          %v5577 = vmul.f32 %v4709, 2.0
          %v5578 = vmul.f32 %v5110, 2.0
          %v5579 = vmul.f32 %v4712, 2.0
          %v5580 = vmul.f32 %v5113, 2.0
          %v5581 = vmul.f32 %v4715, 2.0
          %v5582 = vmul.f32 %v5116, 2.0
          %v5583 = vmul.f32 %v4718, 2.0
          %v5584 = vmul.f32 %v5119, 2.0
          %v5585 = vmul.f32 %v4721, 2.0
          %v5586 = vmul.f32 %v5122, 2.0
          %v5587 = vmul.f32 %v4724, 2.0
          %v5588 = vmul.f32 %v5125, 2.0
          %v5589 = vmul.f32 %v4727, 2.0
          %v5590 = vmul.f32 %v5128, 2.0
          %v5591 = vmul.f32 %v4730, 2.0
          %v5592 = vmul.f32 %v5131, 2.0
          %v5593 = vmul.f32 %v4733, 2.0
          %v5594 = vmul.f32 %v5134, 2.0
          %v5595 = vmul.f32 %v4736, 2.0
          %v5596 = vmul.f32 %v5137, 2.0
          %v5597 = vmul.f32 %v4739, 2.0
          %v5598 = vmul.f32 %v5140, 2.0
          %v5599 = vmul.f32 %v4742, 2.0
          %v5600 = vmul.f32 %v5143, 2.0
          %v5601 = vmul.f32 %v4745, 2.0
          %v5602 = vmul.f32 %v5146, 2.0
          %v5603 = vmul.f32 %v4748, 2.0
          %v5604 = vmul.f32 %v5149, 2.0
          %v5605 = vmul.f32 %v4751, 2.0
          %v5606 = vmul.f32 %v5152, 2.0
          %v5607 = vmul.f32 %v4754, 2.0
          %v5608 = vmul.f32 %v5155, 2.0
          %v5609 = vmul.f32 %v4757, 2.0
          %v5610 = vmul.f32 %v5158, 2.0
          %v5611 = vmul.f32 %v4760, 2.0
          %v5612 = vmul.f32 %v5161, 2.0
          %v5613 = vmul.f32 %v4763, 2.0
          %v5614 = vmul.f32 %v5164, 2.0
          %v5615 = vmul.f32 %v4766, 2.0
          %v5616 = vmul.f32 %v5167, 2.0
          %v5617 = vmul.f32 %v4769, 2.0
          %v5618 = vmul.f32 %v5170, 2.0
          %v5619 = vmul.f32 %v4772, 2.0
          %v5620 = vmul.f32 %v5173, 2.0
          %v5621 = vmul.f32 %v4775, 2.0
          %v5622 = vmul.f32 %v5176, 2.0
          %v5623 = vmul.f32 %v4778, 2.0
          %v5624 = vmul.f32 %v5179, 2.0
          %v5625 = vmul.f32 %v4781, 2.0
          %v5626 = vmul.f32 %v5182, 2.0
          %v5627 = vmul.f32 %v4784, 2.0
          %v5628 = vmul.f32 %v5185, 2.0
          %v5629 = vmul.f32 %v4787, 2.0
          %v5630 = vmul.f32 %v5188, 2.0
          %v5631 = vmul.f32 %v4790, 2.0
          %v5632 = vmul.f32 %v5191, 2.0
          %v5633 = vmul.f32 %v4793, 2.0
          %v5634 = vmul.f32 %v5194, 2.0
          %v5635 = vmul.f32 %v4796, 2.0
          %v5636 = vmul.f32 %v5197, 2.0
          %v5637 = vmul.f32 %v4799, 2.0
          %v5638 = vmul.f32 %v5200, 2.0
          %v5639 = vmul.f32 %v4802, 2.0
          %v5640 = vmul.f32 %v5203, 2.0
          %v5641 = vmul.f32 %v4805, 2.0
          %v5642 = vmul.f32 %v5206, 2.0
          %v5643 = vmul.f32 %v4808, 2.0
          %v5644 = vmul.f32 %v5209, 2.0
          %v5645 = vmul.f32 %v4811, 2.0
          %v5646 = vmul.f32 %v5212, 2.0
          %v5647 = vmul.f32 %v4814, 2.0
          %v5648 = vmul.f32 %v5215, 2.0
          %v5649 = vmul.f32 %v4817, 2.0
          %v5650 = vmul.f32 %v5218, 2.0
          %v5651 = vmul.f32 %v4820, 2.0
          %v5652 = vmul.f32 %v5221, 2.0
          %v5653 = vmul.f32 %v4823, 2.0
          %v5654 = vmul.f32 %v5224, 2.0
          %v5655 = vmul.f32 %v4826, 2.0
          %v5656 = vmul.f32 %v5227, 2.0
          %v5657 = vmul.f32 %v4829, 2.0
          %v5658 = vmul.f32 %v5230, 2.0
          %v5659 = vmul.f32 %v4832, 2.0
          %v5660 = vmul.f32 %v5233, 2.0
          %v5661 = vmul.f32 %v4835, 2.0
          %v5662 = vmul.f32 %v5236, 2.0
          %v5663 = vmul.f32 %v4838, 2.0
          %v5664 = vmul.f32 %v5239, 2.0
          %v5665 = vmul.f32 %v4841, 2.0
          %v5666 = vmul.f32 %v5242, 2.0
          %v5667 = vmul.f32 %v4844, 2.0
          %v5668 = vmul.f32 %v5245, 2.0
          %v5669 = vmul.f32 %v4847, 2.0
          %v5670 = vmul.f32 %v5248, 2.0
          %v5671 = vmul.f32 %v4850, 2.0
          %v5672 = vmul.f32 %v5251, 2.0
          %v5673 = vmul.f32 %v4853, 2.0
          %v5674 = vmul.f32 %v5254, 2.0
          %v5675 = vmul.f32 %v4856, 2.0
          %v5676 = vmul.f32 %v5257, 2.0
          %v5677 = vmul.f32 %v4859, 2.0
          %v5678 = vmul.f32 %v5260, 2.0
          %v5679 = vmul.f32 %v4862, 2.0
          %v5680 = vmul.f32 %v5263, 2.0
          %v5681 = vmul.f32 %v4865, 2.0
          %v5682 = vmul.f32 %v5266, 2.0
          %v5683 = vmul.f32 %v4868, 2.0
          %v5684 = vmul.f32 %v5269, 2.0
          %v5685 = vmul.f32 %v4871, 2.0
          %v5686 = vmul.f32 %v5272, 2.0
          %v5687 = vmul.f32 %v4874, 2.0
          %v5688 = vmul.f32 %v5275, 2.0
          %v5689 = vmul.f32 %v4877, 2.0
          %v5690 = vmul.f32 %v5278, 2.0
          %v5691 = vmul.f32 %v4880, 2.0
          %v5692 = vmul.f32 %v5281, 2.0
          %v5693 = vmul.f32 %v4883, 2.0
          %v5694 = vmul.f32 %v5284, 2.0
          %v5695 = vmul.f32 %v4886, 2.0
          %v5696 = vmul.f32 %v5287, 2.0
          %v5697 = vmul.f32 %v4889, 2.0
          %v5698 = vmul.f32 %v5290, 2.0
          %v5699 = vmul.f32 %v4892, 2.0
          %v5700 = vmul.f32 %v5293, 2.0
          %v5701 = vmul.f32 %v4895, 2.0
          %v5702 = vmul.f32 %v5296, 2.0
          %v5703 = vmul.f32 %v4898, 2.0
          %v5704 = vmul.f32 %v5299, 2.0
          %v5705 = vmul.f32 %v4901, 2.0
          %v5706 = vmul.f32 %v5302, 2.0
          %v5707 = vmul.f32 %v4904, 2.0
          %v5708 = vmul.f32 %v5305, 2.0
          %v5709 = vmul.f32 %v4907, 2.0
          %v5710 = vmul.f32 %v5308, 2.0
          %v5711 = vmul.f32 %v4910, 2.0
          %v5712 = vmul.f32 %v5311, 2.0
          %v5713 = vmul.f32 %v4913, 2.0
          %v5714 = vmul.f32 %v5314, 2.0
          %v5715 = vmul.f32 %v4916, 2.0
          %v5716 = vmul.f32 %v5317, 2.0
          %v5717 = vmul.f32 %v4919, 2.0
          %v5718 = vmul.f32 %v5320, 2.0
          %v5719 = vmul.f32 %v4922, 2.0
          %v5720 = vmul.f32 %v5323, 2.0
          %v5721 = vmul.f32 %v4925, 2.0
          %v5722 = vmul.f32 %v5326, 2.0
          %v5723 = vmul.f32 %v4928, 2.0
          %v5724 = vmul.f32 %v5329, 2.0
          %v5725 = vmul.f32 %v4931, 2.0
          %v5726 = vmul.f32 %v5332, 2.0
          %v5727 = vmul.f32 %v4934, 2.0
          %v5728 = vmul.f32 %v5335, 2.0
          %v5729 = vmul.f32 %v4937, 2.0
          %v5730 = vmul.f32 %v5338, 2.0
          %v5731 = vmul.f32 %v4940, 2.0
          %v5732 = vmul.f32 %v5341, 2.0
          %v5733 = vmul.f32 %v4943, 2.0
          %v5734 = vmul.f32 %v5344, 2.0
          %v5735 = vmul.f32 %v4946, 2.0
          %v5736 = vmul.f32 %v5347, 2.0
          %v5737 = vmul.f32 %v4949, 2.0
          %v5738 = vmul.f32 %v5350, 2.0
          %v5739 = vmul.f32 %v4952, 2.0
          %v5740 = vmul.f32 %v5353, 2.0
          %v5741 = vmul.f32 %v4955, 2.0
          %v5742 = vmul.f32 %v5356, 2.0
          %v5743 = vmul.f32 %v4958, 2.0
          %v5744 = vmul.f32 %v5359, 2.0
          %5746 = vset.pattern.permute.xlu0 0
          %5747 = vperm.xlu0 %5746, %v5361
          %v5748 = vpop.permute.xlu0 %5747
          %5751 = vset.pattern.permute.xlu0 0
          %5752 = vperm.xlu0 %5751, %v5362
          %v5753 = vpop.permute.xlu0 %5752
          %5756 = vset.pattern.permute.xlu0 0
          %5757 = vperm.xlu0 %5756, %v5363
          %v5758 = vpop.permute.xlu0 %5757
          %5761 = vset.pattern.permute.xlu0 0
          %5762 = vperm.xlu0 %5761, %v5364
          %v5763 = vpop.permute.xlu0 %5762
          %5766 = vset.pattern.permute.xlu0 0
          %5767 = vperm.xlu0 %5766, %v5365
          %v5768 = vpop.permute.xlu0 %5767
          %5771 = vset.pattern.permute.xlu0 0
          %5772 = vperm.xlu0 %5771, %v5366
          %v5773 = vpop.permute.xlu0 %5772
          %5776 = vset.pattern.permute.xlu0 0
          %5777 = vperm.xlu0 %5776, %v5367
          %v5778 = vpop.permute.xlu0 %5777
          %5781 = vset.pattern.permute.xlu0 0
          %5782 = vperm.xlu0 %5781, %v5368
          %v5783 = vpop.permute.xlu0 %5782
          %5786 = vset.pattern.permute.xlu0 0
          %5787 = vperm.xlu0 %5786, %v5369
          %v5788 = vpop.permute.xlu0 %5787
          %5791 = vset.pattern.permute.xlu0 0
          %5792 = vperm.xlu0 %5791, %v5370
          %v5793 = vpop.permute.xlu0 %5792
          %5796 = vset.pattern.permute.xlu0 0
          %5797 = vperm.xlu0 %5796, %v5371
          %v5798 = vpop.permute.xlu0 %5797
          %5801 = vset.pattern.permute.xlu0 0
          %5802 = vperm.xlu0 %5801, %v5372
          %v5803 = vpop.permute.xlu0 %5802
          %5806 = vset.pattern.permute.xlu0 0
          %5807 = vperm.xlu0 %5806, %v5373
          %v5808 = vpop.permute.xlu0 %5807
          %5811 = vset.pattern.permute.xlu0 0
          %5812 = vperm.xlu0 %5811, %v5374
          %v5813 = vpop.permute.xlu0 %5812
          %5816 = vset.pattern.permute.xlu0 0
          %5817 = vperm.xlu0 %5816, %v5375
          %v5818 = vpop.permute.xlu0 %5817
          %5821 = vset.pattern.permute.xlu0 0
          %5822 = vperm.xlu0 %5821, %v5376
          %v5823 = vpop.permute.xlu0 %5822
          %5826 = vset.pattern.permute.xlu0 0
          %5827 = vperm.xlu0 %5826, %v5377
          %v5828 = vpop.permute.xlu0 %5827
          %5831 = vset.pattern.permute.xlu0 0
          %5832 = vperm.xlu0 %5831, %v5378
          %v5833 = vpop.permute.xlu0 %5832
          %5836 = vset.pattern.permute.xlu0 0
          %5837 = vperm.xlu0 %5836, %v5379
          %v5838 = vpop.permute.xlu0 %5837
          %5841 = vset.pattern.permute.xlu0 0
          %5842 = vperm.xlu0 %5841, %v5380
          %v5843 = vpop.permute.xlu0 %5842
          %5846 = vset.pattern.permute.xlu0 0
          %5847 = vperm.xlu0 %5846, %v5381
          %v5848 = vpop.permute.xlu0 %5847
          %5851 = vset.pattern.permute.xlu0 0
          %5852 = vperm.xlu0 %5851, %v5382
          %v5853 = vpop.permute.xlu0 %5852
          %5856 = vset.pattern.permute.xlu0 0
          %5857 = vperm.xlu0 %5856, %v5383
          %v5858 = vpop.permute.xlu0 %5857
          %5861 = vset.pattern.permute.xlu0 0
          %5862 = vperm.xlu0 %5861, %v5384
          %v5863 = vpop.permute.xlu0 %5862
          %5866 = vset.pattern.permute.xlu0 0
          %5867 = vperm.xlu0 %5866, %v5385
          %v5868 = vpop.permute.xlu0 %5867
          %5871 = vset.pattern.permute.xlu0 0
          %5872 = vperm.xlu0 %5871, %v5386
          %v5873 = vpop.permute.xlu0 %5872
          %5876 = vset.pattern.permute.xlu0 0
          %5877 = vperm.xlu0 %5876, %v5387
          %v5878 = vpop.permute.xlu0 %5877
          %5881 = vset.pattern.permute.xlu0 0
          %5882 = vperm.xlu0 %5881, %v5388
          %v5883 = vpop.permute.xlu0 %5882
          %5886 = vset.pattern.permute.xlu0 0
          %5887 = vperm.xlu0 %5886, %v5389
          %v5888 = vpop.permute.xlu0 %5887
          %5891 = vset.pattern.permute.xlu0 0
          %5892 = vperm.xlu0 %5891, %v5390
          %v5893 = vpop.permute.xlu0 %5892
          %5896 = vset.pattern.permute.xlu0 0
          %5897 = vperm.xlu0 %5896, %v5391
          %v5898 = vpop.permute.xlu0 %5897
          %5901 = vset.pattern.permute.xlu0 0
          %5902 = vperm.xlu0 %5901, %v5392
          %v5903 = vpop.permute.xlu0 %5902
          %5906 = vset.pattern.permute.xlu0 0
          %5907 = vperm.xlu0 %5906, %v5393
          %v5908 = vpop.permute.xlu0 %5907
          %5911 = vset.pattern.permute.xlu0 0
          %5912 = vperm.xlu0 %5911, %v5394
          %v5913 = vpop.permute.xlu0 %5912
          %5916 = vset.pattern.permute.xlu0 0
          %5917 = vperm.xlu0 %5916, %v5395
          %v5918 = vpop.permute.xlu0 %5917
          %5921 = vset.pattern.permute.xlu0 0
          %5922 = vperm.xlu0 %5921, %v5396
          %v5923 = vpop.permute.xlu0 %5922
          %5926 = vset.pattern.permute.xlu0 0
          %5927 = vperm.xlu0 %5926, %v5397
          %v5928 = vpop.permute.xlu0 %5927
          %5931 = vset.pattern.permute.xlu0 0
          %5932 = vperm.xlu0 %5931, %v5398
          %v5933 = vpop.permute.xlu0 %5932
          %5936 = vset.pattern.permute.xlu0 0
          %5937 = vperm.xlu0 %5936, %v5399
          %v5938 = vpop.permute.xlu0 %5937
          %5941 = vset.pattern.permute.xlu0 0
          %5942 = vperm.xlu0 %5941, %v5400
          %v5943 = vpop.permute.xlu0 %5942
          %5946 = vset.pattern.permute.xlu0 0
          %5947 = vperm.xlu0 %5946, %v5401
          %v5948 = vpop.permute.xlu0 %5947
          %5951 = vset.pattern.permute.xlu0 0
          %5952 = vperm.xlu0 %5951, %v5402
          %v5953 = vpop.permute.xlu0 %5952
          %5956 = vset.pattern.permute.xlu0 0
          %5957 = vperm.xlu0 %5956, %v5403
          %v5958 = vpop.permute.xlu0 %5957
          %5961 = vset.pattern.permute.xlu0 0
          %5962 = vperm.xlu0 %5961, %v5404
          %v5963 = vpop.permute.xlu0 %5962
          %5966 = vset.pattern.permute.xlu0 0
          %5967 = vperm.xlu0 %5966, %v5405
          %v5968 = vpop.permute.xlu0 %5967
          %5971 = vset.pattern.permute.xlu0 0
          %5972 = vperm.xlu0 %5971, %v5406
          %v5973 = vpop.permute.xlu0 %5972
          %5976 = vset.pattern.permute.xlu0 0
          %5977 = vperm.xlu0 %5976, %v5407
          %v5978 = vpop.permute.xlu0 %5977
          %5981 = vset.pattern.permute.xlu0 0
          %5982 = vperm.xlu0 %5981, %v5408
          %v5983 = vpop.permute.xlu0 %5982
          %5986 = vset.pattern.permute.xlu0 0
          %5987 = vperm.xlu0 %5986, %v5409
          %v5988 = vpop.permute.xlu0 %5987
          %5991 = vset.pattern.permute.xlu0 0
          %5992 = vperm.xlu0 %5991, %v5410
          %v5993 = vpop.permute.xlu0 %5992
          %5996 = vset.pattern.permute.xlu0 0
          %5997 = vperm.xlu0 %5996, %v5411
          %v5998 = vpop.permute.xlu0 %5997
          %6001 = vset.pattern.permute.xlu0 0
          %6002 = vperm.xlu0 %6001, %v5412
          %v6003 = vpop.permute.xlu0 %6002
          %6006 = vset.pattern.permute.xlu0 0
          %6007 = vperm.xlu0 %6006, %v5413
          %v6008 = vpop.permute.xlu0 %6007
          %6011 = vset.pattern.permute.xlu0 0
          %6012 = vperm.xlu0 %6011, %v5414
          %v6013 = vpop.permute.xlu0 %6012
          %6016 = vset.pattern.permute.xlu0 0
          %6017 = vperm.xlu0 %6016, %v5415
          %v6018 = vpop.permute.xlu0 %6017
          %6021 = vset.pattern.permute.xlu0 0
          %6022 = vperm.xlu0 %6021, %v5416
          %v6023 = vpop.permute.xlu0 %6022
          %6026 = vset.pattern.permute.xlu0 0
          %6027 = vperm.xlu0 %6026, %v5417
          %v6028 = vpop.permute.xlu0 %6027
          %6031 = vset.pattern.permute.xlu0 0
          %6032 = vperm.xlu0 %6031, %v5418
          %v6033 = vpop.permute.xlu0 %6032
          %6036 = vset.pattern.permute.xlu0 0
          %6037 = vperm.xlu0 %6036, %v5419
          %v6038 = vpop.permute.xlu0 %6037
          %6041 = vset.pattern.permute.xlu0 0
          %6042 = vperm.xlu0 %6041, %v5420
          %v6043 = vpop.permute.xlu0 %6042
          %6046 = vset.pattern.permute.xlu0 0
          %6047 = vperm.xlu0 %6046, %v5421
          %v6048 = vpop.permute.xlu0 %6047
          %6051 = vset.pattern.permute.xlu0 0
          %6052 = vperm.xlu0 %6051, %v5422
          %v6053 = vpop.permute.xlu0 %6052
          %6056 = vset.pattern.permute.xlu0 0
          %6057 = vperm.xlu0 %6056, %v5423
          %v6058 = vpop.permute.xlu0 %6057
          %6061 = vset.pattern.permute.xlu0 0
          %6062 = vperm.xlu0 %6061, %v5424
          %v6063 = vpop.permute.xlu0 %6062
          %6066 = vset.pattern.permute.xlu0 0
          %6067 = vperm.xlu0 %6066, %v5425
          %v6068 = vpop.permute.xlu0 %6067
          %6071 = vset.pattern.permute.xlu0 0
          %6072 = vperm.xlu0 %6071, %v5426
          %v6073 = vpop.permute.xlu0 %6072
          %6076 = vset.pattern.permute.xlu0 0
          %6077 = vperm.xlu0 %6076, %v5427
          %v6078 = vpop.permute.xlu0 %6077
          %6081 = vset.pattern.permute.xlu0 0
          %6082 = vperm.xlu0 %6081, %v5428
          %v6083 = vpop.permute.xlu0 %6082
          %6086 = vset.pattern.permute.xlu0 0
          %6087 = vperm.xlu0 %6086, %v5429
          %v6088 = vpop.permute.xlu0 %6087
          %6091 = vset.pattern.permute.xlu0 0
          %6092 = vperm.xlu0 %6091, %v5430
          %v6093 = vpop.permute.xlu0 %6092
          %6096 = vset.pattern.permute.xlu0 0
          %6097 = vperm.xlu0 %6096, %v5431
          %v6098 = vpop.permute.xlu0 %6097
          %6101 = vset.pattern.permute.xlu0 0
          %6102 = vperm.xlu0 %6101, %v5432
          %v6103 = vpop.permute.xlu0 %6102
          %6106 = vset.pattern.permute.xlu0 0
          %6107 = vperm.xlu0 %6106, %v5433
          %v6108 = vpop.permute.xlu0 %6107
          %6111 = vset.pattern.permute.xlu0 0
          %6112 = vperm.xlu0 %6111, %v5434
          %v6113 = vpop.permute.xlu0 %6112
          %6116 = vset.pattern.permute.xlu0 0
          %6117 = vperm.xlu0 %6116, %v5435
          %v6118 = vpop.permute.xlu0 %6117
          %6121 = vset.pattern.permute.xlu0 0
          %6122 = vperm.xlu0 %6121, %v5436
          %v6123 = vpop.permute.xlu0 %6122
          %6126 = vset.pattern.permute.xlu0 0
          %6127 = vperm.xlu0 %6126, %v5437
          %v6128 = vpop.permute.xlu0 %6127
          %6131 = vset.pattern.permute.xlu0 0
          %6132 = vperm.xlu0 %6131, %v5438
          %v6133 = vpop.permute.xlu0 %6132
          %6136 = vset.pattern.permute.xlu0 0
          %6137 = vperm.xlu0 %6136, %v5439
          %v6138 = vpop.permute.xlu0 %6137
          %6141 = vset.pattern.permute.xlu0 0
          %6142 = vperm.xlu0 %6141, %v5440
          %v6143 = vpop.permute.xlu0 %6142
          %6146 = vset.pattern.permute.xlu0 0
          %6147 = vperm.xlu0 %6146, %v5441
          %v6148 = vpop.permute.xlu0 %6147
          %6151 = vset.pattern.permute.xlu0 0
          %6152 = vperm.xlu0 %6151, %v5442
          %v6153 = vpop.permute.xlu0 %6152
          %6156 = vset.pattern.permute.xlu0 0
          %6157 = vperm.xlu0 %6156, %v5443
          %v6158 = vpop.permute.xlu0 %6157
          %6161 = vset.pattern.permute.xlu0 0
          %6162 = vperm.xlu0 %6161, %v5444
          %v6163 = vpop.permute.xlu0 %6162
          %6166 = vset.pattern.permute.xlu0 0
          %6167 = vperm.xlu0 %6166, %v5445
          %v6168 = vpop.permute.xlu0 %6167
          %6171 = vset.pattern.permute.xlu0 0
          %6172 = vperm.xlu0 %6171, %v5446
          %v6173 = vpop.permute.xlu0 %6172
          %6176 = vset.pattern.permute.xlu0 0
          %6177 = vperm.xlu0 %6176, %v5447
          %v6178 = vpop.permute.xlu0 %6177
          %6181 = vset.pattern.permute.xlu0 0
          %6182 = vperm.xlu0 %6181, %v5448
          %v6183 = vpop.permute.xlu0 %6182
          %6186 = vset.pattern.permute.xlu0 0
          %6187 = vperm.xlu0 %6186, %v5449
          %v6188 = vpop.permute.xlu0 %6187
          %6191 = vset.pattern.permute.xlu0 0
          %6192 = vperm.xlu0 %6191, %v5450
          %v6193 = vpop.permute.xlu0 %6192
          %6196 = vset.pattern.permute.xlu0 0
          %6197 = vperm.xlu0 %6196, %v5451
          %v6198 = vpop.permute.xlu0 %6197
          %6201 = vset.pattern.permute.xlu0 0
          %6202 = vperm.xlu0 %6201, %v5452
          %v6203 = vpop.permute.xlu0 %6202
          %6206 = vset.pattern.permute.xlu0 0
          %6207 = vperm.xlu0 %6206, %v5453
          %v6208 = vpop.permute.xlu0 %6207
          %6211 = vset.pattern.permute.xlu0 0
          %6212 = vperm.xlu0 %6211, %v5454
          %v6213 = vpop.permute.xlu0 %6212
          %6216 = vset.pattern.permute.xlu0 0
          %6217 = vperm.xlu0 %6216, %v5455
          %v6218 = vpop.permute.xlu0 %6217
          %6221 = vset.pattern.permute.xlu0 0
          %6222 = vperm.xlu0 %6221, %v5456
          %v6223 = vpop.permute.xlu0 %6222
          %6226 = vset.pattern.permute.xlu0 0
          %6227 = vperm.xlu0 %6226, %v5457
          %v6228 = vpop.permute.xlu0 %6227
          %6231 = vset.pattern.permute.xlu0 0
          %6232 = vperm.xlu0 %6231, %v5458
          %v6233 = vpop.permute.xlu0 %6232
          %6236 = vset.pattern.permute.xlu0 0
          %6237 = vperm.xlu0 %6236, %v5459
          %v6238 = vpop.permute.xlu0 %6237
          %6241 = vset.pattern.permute.xlu0 0
          %6242 = vperm.xlu0 %6241, %v5460
          %v6243 = vpop.permute.xlu0 %6242
          %6246 = vset.pattern.permute.xlu0 0
          %6247 = vperm.xlu0 %6246, %v5461
          %v6248 = vpop.permute.xlu0 %6247
          %6251 = vset.pattern.permute.xlu0 0
          %6252 = vperm.xlu0 %6251, %v5462
          %v6253 = vpop.permute.xlu0 %6252
          %6256 = vset.pattern.permute.xlu0 0
          %6257 = vperm.xlu0 %6256, %v5463
          %v6258 = vpop.permute.xlu0 %6257
          %6261 = vset.pattern.permute.xlu0 0
          %6262 = vperm.xlu0 %6261, %v5464
          %v6263 = vpop.permute.xlu0 %6262
          %6266 = vset.pattern.permute.xlu0 0
          %6267 = vperm.xlu0 %6266, %v5465
          %v6268 = vpop.permute.xlu0 %6267
          %6271 = vset.pattern.permute.xlu0 0
          %6272 = vperm.xlu0 %6271, %v5466
          %v6273 = vpop.permute.xlu0 %6272
          %6276 = vset.pattern.permute.xlu0 0
          %6277 = vperm.xlu0 %6276, %v5467
          %v6278 = vpop.permute.xlu0 %6277
          %6281 = vset.pattern.permute.xlu0 0
          %6282 = vperm.xlu0 %6281, %v5468
          %v6283 = vpop.permute.xlu0 %6282
          %6286 = vset.pattern.permute.xlu0 0
          %6287 = vperm.xlu0 %6286, %v5469
          %v6288 = vpop.permute.xlu0 %6287
          %6291 = vset.pattern.permute.xlu0 0
          %6292 = vperm.xlu0 %6291, %v5470
          %v6293 = vpop.permute.xlu0 %6292
          %6296 = vset.pattern.permute.xlu0 0
          %6297 = vperm.xlu0 %6296, %v5471
          %v6298 = vpop.permute.xlu0 %6297
          %6301 = vset.pattern.permute.xlu0 0
          %6302 = vperm.xlu0 %6301, %v5472
          %v6303 = vpop.permute.xlu0 %6302
          %6306 = vset.pattern.permute.xlu0 0
          %6307 = vperm.xlu0 %6306, %v5473
          %v6308 = vpop.permute.xlu0 %6307
          %6311 = vset.pattern.permute.xlu0 0
          %6312 = vperm.xlu0 %6311, %v5474
          %v6313 = vpop.permute.xlu0 %6312
          %6316 = vset.pattern.permute.xlu0 0
          %6317 = vperm.xlu0 %6316, %v5475
          %v6318 = vpop.permute.xlu0 %6317
          %6321 = vset.pattern.permute.xlu0 0
          %6322 = vperm.xlu0 %6321, %v5476
          %v6323 = vpop.permute.xlu0 %6322
          %6326 = vset.pattern.permute.xlu0 0
          %6327 = vperm.xlu0 %6326, %v5477
          %v6328 = vpop.permute.xlu0 %6327
          %6331 = vset.pattern.permute.xlu0 0
          %6332 = vperm.xlu0 %6331, %v5478
          %v6333 = vpop.permute.xlu0 %6332
          %6336 = vset.pattern.permute.xlu0 0
          %6337 = vperm.xlu0 %6336, %v5479
          %v6338 = vpop.permute.xlu0 %6337
          %6341 = vset.pattern.permute.xlu0 0
          %6342 = vperm.xlu0 %6341, %v5480
          %v6343 = vpop.permute.xlu0 %6342
          %6346 = vset.pattern.permute.xlu0 0
          %6347 = vperm.xlu0 %6346, %v5481
          %v6348 = vpop.permute.xlu0 %6347
          %6351 = vset.pattern.permute.xlu0 0
          %6352 = vperm.xlu0 %6351, %v5482
          %v6353 = vpop.permute.xlu0 %6352
          %6356 = vset.pattern.permute.xlu0 0
          %6357 = vperm.xlu0 %6356, %v5483
          %v6358 = vpop.permute.xlu0 %6357
          %6361 = vset.pattern.permute.xlu0 0
          %6362 = vperm.xlu0 %6361, %v5484
          %v6363 = vpop.permute.xlu0 %6362
          %6366 = vset.pattern.permute.xlu0 0
          %6367 = vperm.xlu0 %6366, %v5485
          %v6368 = vpop.permute.xlu0 %6367
          %6371 = vset.pattern.permute.xlu0 0
          %6372 = vperm.xlu0 %6371, %v5486
          %v6373 = vpop.permute.xlu0 %6372
          %6376 = vset.pattern.permute.xlu0 0
          %6377 = vperm.xlu0 %6376, %v5487
          %v6378 = vpop.permute.xlu0 %6377
          %6381 = vset.pattern.permute.xlu0 0
          %6382 = vperm.xlu0 %6381, %v5488
          %v6383 = vpop.permute.xlu0 %6382
          %v6385 = vsub.f32 %v5748, %v5489
          %v6386 = vsub.f32 %v5748, %v5490
          %v6387 = vsub.f32 %v5753, %v5491
          %v6388 = vsub.f32 %v5753, %v5492
          %v6389 = vsub.f32 %v5758, %v5493
          %v6390 = vsub.f32 %v5758, %v5494
          %v6391 = vsub.f32 %v5763, %v5495
          %v6392 = vsub.f32 %v5763, %v5496
          %v6393 = vsub.f32 %v5768, %v5497
          %v6394 = vsub.f32 %v5768, %v5498
          %v6395 = vsub.f32 %v5773, %v5499
          %v6396 = vsub.f32 %v5773, %v5500
          %v6397 = vsub.f32 %v5778, %v5501
          %v6398 = vsub.f32 %v5778, %v5502
          %v6399 = vsub.f32 %v5783, %v5503
          %v6400 = vsub.f32 %v5783, %v5504
          %v6401 = vsub.f32 %v5788, %v5505
          %v6402 = vsub.f32 %v5788, %v5506
          %v6403 = vsub.f32 %v5793, %v5507
          %v6404 = vsub.f32 %v5793, %v5508
          %v6405 = vsub.f32 %v5798, %v5509
          %v6406 = vsub.f32 %v5798, %v5510
          %v6407 = vsub.f32 %v5803, %v5511
          %v6408 = vsub.f32 %v5803, %v5512
          %v6409 = vsub.f32 %v5808, %v5513
          %v6410 = vsub.f32 %v5808, %v5514
          %v6411 = vsub.f32 %v5813, %v5515
          %v6412 = vsub.f32 %v5813, %v5516
          %v6413 = vsub.f32 %v5818, %v5517
          %v6414 = vsub.f32 %v5818, %v5518
          %v6415 = vsub.f32 %v5823, %v5519
          %v6416 = vsub.f32 %v5823, %v5520
          %v6417 = vsub.f32 %v5828, %v5521
          %v6418 = vsub.f32 %v5828, %v5522
          %v6419 = vsub.f32 %v5833, %v5523
          %v6420 = vsub.f32 %v5833, %v5524
          %v6421 = vsub.f32 %v5838, %v5525
          %v6422 = vsub.f32 %v5838, %v5526
          %v6423 = vsub.f32 %v5843, %v5527
          %v6424 = vsub.f32 %v5843, %v5528
          %v6425 = vsub.f32 %v5848, %v5529
          %v6426 = vsub.f32 %v5848, %v5530
          %v6427 = vsub.f32 %v5853, %v5531
          %v6428 = vsub.f32 %v5853, %v5532
          %v6429 = vsub.f32 %v5858, %v5533
          %v6430 = vsub.f32 %v5858, %v5534
          %v6431 = vsub.f32 %v5863, %v5535
          %v6432 = vsub.f32 %v5863, %v5536
          %v6433 = vsub.f32 %v5868, %v5537
          %v6434 = vsub.f32 %v5868, %v5538
          %v6435 = vsub.f32 %v5873, %v5539
          %v6436 = vsub.f32 %v5873, %v5540
          %v6437 = vsub.f32 %v5878, %v5541
          %v6438 = vsub.f32 %v5878, %v5542
          %v6439 = vsub.f32 %v5883, %v5543
          %v6440 = vsub.f32 %v5883, %v5544
          %v6441 = vsub.f32 %v5888, %v5545
          %v6442 = vsub.f32 %v5888, %v5546
          %v6443 = vsub.f32 %v5893, %v5547
          %v6444 = vsub.f32 %v5893, %v5548
          %v6445 = vsub.f32 %v5898, %v5549
          %v6446 = vsub.f32 %v5898, %v5550
          %v6447 = vsub.f32 %v5903, %v5551
          %v6448 = vsub.f32 %v5903, %v5552
          %v6449 = vsub.f32 %v5908, %v5553
          %v6450 = vsub.f32 %v5908, %v5554
          %v6451 = vsub.f32 %v5913, %v5555
          %v6452 = vsub.f32 %v5913, %v5556
          %v6453 = vsub.f32 %v5918, %v5557
          %v6454 = vsub.f32 %v5918, %v5558
          %v6455 = vsub.f32 %v5923, %v5559
          %v6456 = vsub.f32 %v5923, %v5560
          %v6457 = vsub.f32 %v5928, %v5561
          %v6458 = vsub.f32 %v5928, %v5562
          %v6459 = vsub.f32 %v5933, %v5563
          %v6460 = vsub.f32 %v5933, %v5564
          %v6461 = vsub.f32 %v5938, %v5565
          %v6462 = vsub.f32 %v5938, %v5566
          %v6463 = vsub.f32 %v5943, %v5567
          %v6464 = vsub.f32 %v5943, %v5568
          %v6465 = vsub.f32 %v5948, %v5569
          %v6466 = vsub.f32 %v5948, %v5570
          %v6467 = vsub.f32 %v5953, %v5571
          %v6468 = vsub.f32 %v5953, %v5572
          %v6469 = vsub.f32 %v5958, %v5573
          %v6470 = vsub.f32 %v5958, %v5574
          %v6471 = vsub.f32 %v5963, %v5575
          %v6472 = vsub.f32 %v5963, %v5576
          %v6473 = vsub.f32 %v5968, %v5577
          %v6474 = vsub.f32 %v5968, %v5578
          %v6475 = vsub.f32 %v5973, %v5579
          %v6476 = vsub.f32 %v5973, %v5580
          %v6477 = vsub.f32 %v5978, %v5581
          %v6478 = vsub.f32 %v5978, %v5582
          %v6479 = vsub.f32 %v5983, %v5583
          %v6480 = vsub.f32 %v5983, %v5584
          %v6481 = vsub.f32 %v5988, %v5585
          %v6482 = vsub.f32 %v5988, %v5586
          %v6483 = vsub.f32 %v5993, %v5587
          %v6484 = vsub.f32 %v5993, %v5588
          %v6485 = vsub.f32 %v5998, %v5589
          %v6486 = vsub.f32 %v5998, %v5590
          %v6487 = vsub.f32 %v6003, %v5591
          %v6488 = vsub.f32 %v6003, %v5592
          %v6489 = vsub.f32 %v6008, %v5593
          %v6490 = vsub.f32 %v6008, %v5594
          %v6491 = vsub.f32 %v6013, %v5595
          %v6492 = vsub.f32 %v6013, %v5596
          %v6493 = vsub.f32 %v6018, %v5597
          %v6494 = vsub.f32 %v6018, %v5598
          %v6495 = vsub.f32 %v6023, %v5599
          %v6496 = vsub.f32 %v6023, %v5600
          %v6497 = vsub.f32 %v6028, %v5601
          %v6498 = vsub.f32 %v6028, %v5602
          %v6499 = vsub.f32 %v6033, %v5603
          %v6500 = vsub.f32 %v6033, %v5604
          %v6501 = vsub.f32 %v6038, %v5605
          %v6502 = vsub.f32 %v6038, %v5606
          %v6503 = vsub.f32 %v6043, %v5607
          %v6504 = vsub.f32 %v6043, %v5608
          %v6505 = vsub.f32 %v6048, %v5609
          %v6506 = vsub.f32 %v6048, %v5610
          %v6507 = vsub.f32 %v6053, %v5611
          %v6508 = vsub.f32 %v6053, %v5612
          %v6509 = vsub.f32 %v6058, %v5613
          %v6510 = vsub.f32 %v6058, %v5614
          %v6511 = vsub.f32 %v6063, %v5615
          %v6512 = vsub.f32 %v6063, %v5616
          %v6513 = vsub.f32 %v6068, %v5617
          %v6514 = vsub.f32 %v6068, %v5618
          %v6515 = vsub.f32 %v6073, %v5619
          %v6516 = vsub.f32 %v6073, %v5620
          %v6517 = vsub.f32 %v6078, %v5621
          %v6518 = vsub.f32 %v6078, %v5622
          %v6519 = vsub.f32 %v6083, %v5623
          %v6520 = vsub.f32 %v6083, %v5624
          %v6521 = vsub.f32 %v6088, %v5625
          %v6522 = vsub.f32 %v6088, %v5626
          %v6523 = vsub.f32 %v6093, %v5627
          %v6524 = vsub.f32 %v6093, %v5628
          %v6525 = vsub.f32 %v6098, %v5629
          %v6526 = vsub.f32 %v6098, %v5630
          %v6527 = vsub.f32 %v6103, %v5631
          %v6528 = vsub.f32 %v6103, %v5632
          %v6529 = vsub.f32 %v6108, %v5633
          %v6530 = vsub.f32 %v6108, %v5634
          %v6531 = vsub.f32 %v6113, %v5635
          %v6532 = vsub.f32 %v6113, %v5636
          %v6533 = vsub.f32 %v6118, %v5637
          %v6534 = vsub.f32 %v6118, %v5638
          %v6535 = vsub.f32 %v6123, %v5639
          %v6536 = vsub.f32 %v6123, %v5640
          %v6537 = vsub.f32 %v6128, %v5641
          %v6538 = vsub.f32 %v6128, %v5642
          %v6539 = vsub.f32 %v6133, %v5643
          %v6540 = vsub.f32 %v6133, %v5644
          %v6541 = vsub.f32 %v6138, %v5645
          %v6542 = vsub.f32 %v6138, %v5646
          %v6543 = vsub.f32 %v6143, %v5647
          %v6544 = vsub.f32 %v6143, %v5648
          %v6545 = vsub.f32 %v6148, %v5649
          %v6546 = vsub.f32 %v6148, %v5650
          %v6547 = vsub.f32 %v6153, %v5651
          %v6548 = vsub.f32 %v6153, %v5652
          %v6549 = vsub.f32 %v6158, %v5653
          %v6550 = vsub.f32 %v6158, %v5654
          %v6551 = vsub.f32 %v6163, %v5655
          %v6552 = vsub.f32 %v6163, %v5656
          %v6553 = vsub.f32 %v6168, %v5657
          %v6554 = vsub.f32 %v6168, %v5658
          %v6555 = vsub.f32 %v6173, %v5659
          %v6556 = vsub.f32 %v6173, %v5660
          %v6557 = vsub.f32 %v6178, %v5661
          %v6558 = vsub.f32 %v6178, %v5662
          %v6559 = vsub.f32 %v6183, %v5663
          %v6560 = vsub.f32 %v6183, %v5664
          %v6561 = vsub.f32 %v6188, %v5665
          %v6562 = vsub.f32 %v6188, %v5666
          %v6563 = vsub.f32 %v6193, %v5667
          %v6564 = vsub.f32 %v6193, %v5668
          %v6565 = vsub.f32 %v6198, %v5669
          %v6566 = vsub.f32 %v6198, %v5670
          %v6567 = vsub.f32 %v6203, %v5671
          %v6568 = vsub.f32 %v6203, %v5672
          %v6569 = vsub.f32 %v6208, %v5673
          %v6570 = vsub.f32 %v6208, %v5674
          %v6571 = vsub.f32 %v6213, %v5675
          %v6572 = vsub.f32 %v6213, %v5676
          %v6573 = vsub.f32 %v6218, %v5677
          %v6574 = vsub.f32 %v6218, %v5678
          %v6575 = vsub.f32 %v6223, %v5679
          %v6576 = vsub.f32 %v6223, %v5680
          %v6577 = vsub.f32 %v6228, %v5681
          %v6578 = vsub.f32 %v6228, %v5682
          %v6579 = vsub.f32 %v6233, %v5683
          %v6580 = vsub.f32 %v6233, %v5684
          %v6581 = vsub.f32 %v6238, %v5685
          %v6582 = vsub.f32 %v6238, %v5686
          %v6583 = vsub.f32 %v6243, %v5687
          %v6584 = vsub.f32 %v6243, %v5688
          %v6585 = vsub.f32 %v6248, %v5689
          %v6586 = vsub.f32 %v6248, %v5690
          %v6587 = vsub.f32 %v6253, %v5691
          %v6588 = vsub.f32 %v6253, %v5692
          %v6589 = vsub.f32 %v6258, %v5693
          %v6590 = vsub.f32 %v6258, %v5694
          %v6591 = vsub.f32 %v6263, %v5695
          %v6592 = vsub.f32 %v6263, %v5696
          %v6593 = vsub.f32 %v6268, %v5697
          %v6594 = vsub.f32 %v6268, %v5698
          %v6595 = vsub.f32 %v6273, %v5699
          %v6596 = vsub.f32 %v6273, %v5700
          %v6597 = vsub.f32 %v6278, %v5701
          %v6598 = vsub.f32 %v6278, %v5702
          %v6599 = vsub.f32 %v6283, %v5703
          %v6600 = vsub.f32 %v6283, %v5704
          %v6601 = vsub.f32 %v6288, %v5705
          %v6602 = vsub.f32 %v6288, %v5706
          %v6603 = vsub.f32 %v6293, %v5707
          %v6604 = vsub.f32 %v6293, %v5708
          %v6605 = vsub.f32 %v6298, %v5709
          %v6606 = vsub.f32 %v6298, %v5710
          %v6607 = vsub.f32 %v6303, %v5711
          %v6608 = vsub.f32 %v6303, %v5712
          %v6609 = vsub.f32 %v6308, %v5713
          %v6610 = vsub.f32 %v6308, %v5714
          %v6611 = vsub.f32 %v6313, %v5715
          %v6612 = vsub.f32 %v6313, %v5716
          %v6613 = vsub.f32 %v6318, %v5717
          %v6614 = vsub.f32 %v6318, %v5718
          %v6615 = vsub.f32 %v6323, %v5719
          %v6616 = vsub.f32 %v6323, %v5720
          %v6617 = vsub.f32 %v6328, %v5721
          %v6618 = vsub.f32 %v6328, %v5722
          %v6619 = vsub.f32 %v6333, %v5723
          %v6620 = vsub.f32 %v6333, %v5724
          %v6621 = vsub.f32 %v6338, %v5725
          %v6622 = vsub.f32 %v6338, %v5726
          %v6623 = vsub.f32 %v6343, %v5727
          %v6624 = vsub.f32 %v6343, %v5728
          %v6625 = vsub.f32 %v6348, %v5729
          %v6626 = vsub.f32 %v6348, %v5730
          %v6627 = vsub.f32 %v6353, %v5731
          %v6628 = vsub.f32 %v6353, %v5732
          %v6629 = vsub.f32 %v6358, %v5733
          %v6630 = vsub.f32 %v6358, %v5734
          %v6631 = vsub.f32 %v6363, %v5735
          %v6632 = vsub.f32 %v6363, %v5736
          %v6633 = vsub.f32 %v6368, %v5737
          %v6634 = vsub.f32 %v6368, %v5738
          %v6635 = vsub.f32 %v6373, %v5739
          %v6636 = vsub.f32 %v6373, %v5740
          %v6637 = vsub.f32 %v6378, %v5741
          %v6638 = vsub.f32 %v6378, %v5742
          %v6639 = vsub.f32 %v6383, %v5743
          %v6640 = vsub.f32 %v6383, %v5744
          %v6641 = vld [vmem:[%s294] sm:$0x3]
          %v6643 = vperm.slane %v6641, 0
          %v6644 = vperm.slane %v6641, 1
          %v6647 = vadd.f32 %v6385, %v6643
          %v6648 = vadd.f32 %v6386, %v6644
          %v6649 = vadd.f32 %v6387, %v6643
          %v6650 = vadd.f32 %v6388, %v6644
          %v6651 = vadd.f32 %v6389, %v6643
          %v6652 = vadd.f32 %v6390, %v6644
          %v6653 = vadd.f32 %v6391, %v6643
          %v6654 = vadd.f32 %v6392, %v6644
          %v6655 = vadd.f32 %v6393, %v6643
          %v6656 = vadd.f32 %v6394, %v6644
          %v6657 = vadd.f32 %v6395, %v6643
          %v6658 = vadd.f32 %v6396, %v6644
          %v6659 = vadd.f32 %v6397, %v6643
          %v6660 = vadd.f32 %v6398, %v6644
          %v6661 = vadd.f32 %v6399, %v6643
          %v6662 = vadd.f32 %v6400, %v6644
          %v6663 = vadd.f32 %v6401, %v6643
          %v6664 = vadd.f32 %v6402, %v6644
          %v6665 = vadd.f32 %v6403, %v6643
          %v6666 = vadd.f32 %v6404, %v6644
          %v6667 = vadd.f32 %v6405, %v6643
          %v6668 = vadd.f32 %v6406, %v6644
          %v6669 = vadd.f32 %v6407, %v6643
          %v6670 = vadd.f32 %v6408, %v6644
          %v6671 = vadd.f32 %v6409, %v6643
          %v6672 = vadd.f32 %v6410, %v6644
          %v6673 = vadd.f32 %v6411, %v6643
          %v6674 = vadd.f32 %v6412, %v6644
          %v6675 = vadd.f32 %v6413, %v6643
          %v6676 = vadd.f32 %v6414, %v6644
          %v6677 = vadd.f32 %v6415, %v6643
          %v6678 = vadd.f32 %v6416, %v6644
          %v6679 = vadd.f32 %v6417, %v6643
          %v6680 = vadd.f32 %v6418, %v6644
          %v6681 = vadd.f32 %v6419, %v6643
          %v6682 = vadd.f32 %v6420, %v6644
          %v6683 = vadd.f32 %v6421, %v6643
          %v6684 = vadd.f32 %v6422, %v6644
          %v6685 = vadd.f32 %v6423, %v6643
          %v6686 = vadd.f32 %v6424, %v6644
          %v6687 = vadd.f32 %v6425, %v6643
          %v6688 = vadd.f32 %v6426, %v6644
          %v6689 = vadd.f32 %v6427, %v6643
          %v6690 = vadd.f32 %v6428, %v6644
          %v6691 = vadd.f32 %v6429, %v6643
          %v6692 = vadd.f32 %v6430, %v6644
          %v6693 = vadd.f32 %v6431, %v6643
          %v6694 = vadd.f32 %v6432, %v6644
          %v6695 = vadd.f32 %v6433, %v6643
          %v6696 = vadd.f32 %v6434, %v6644
          %v6697 = vadd.f32 %v6435, %v6643
          %v6698 = vadd.f32 %v6436, %v6644
          %v6699 = vadd.f32 %v6437, %v6643
          %v6700 = vadd.f32 %v6438, %v6644
          %v6701 = vadd.f32 %v6439, %v6643
          %v6702 = vadd.f32 %v6440, %v6644
          %v6703 = vadd.f32 %v6441, %v6643
          %v6704 = vadd.f32 %v6442, %v6644
          %v6705 = vadd.f32 %v6443, %v6643
          %v6706 = vadd.f32 %v6444, %v6644
          %v6707 = vadd.f32 %v6445, %v6643
          %v6708 = vadd.f32 %v6446, %v6644
          %v6709 = vadd.f32 %v6447, %v6643
          %v6710 = vadd.f32 %v6448, %v6644
          %v6711 = vadd.f32 %v6449, %v6643
          %v6712 = vadd.f32 %v6450, %v6644
          %v6713 = vadd.f32 %v6451, %v6643
          %v6714 = vadd.f32 %v6452, %v6644
          %v6715 = vadd.f32 %v6453, %v6643
          %v6716 = vadd.f32 %v6454, %v6644
          %v6717 = vadd.f32 %v6455, %v6643
          %v6718 = vadd.f32 %v6456, %v6644
          %v6719 = vadd.f32 %v6457, %v6643
          %v6720 = vadd.f32 %v6458, %v6644
          %v6721 = vadd.f32 %v6459, %v6643
          %v6722 = vadd.f32 %v6460, %v6644
          %v6723 = vadd.f32 %v6461, %v6643
          %v6724 = vadd.f32 %v6462, %v6644
          %v6725 = vadd.f32 %v6463, %v6643
          %v6726 = vadd.f32 %v6464, %v6644
          %v6727 = vadd.f32 %v6465, %v6643
          %v6728 = vadd.f32 %v6466, %v6644
          %v6729 = vadd.f32 %v6467, %v6643
          %v6730 = vadd.f32 %v6468, %v6644
          %v6731 = vadd.f32 %v6469, %v6643
          %v6732 = vadd.f32 %v6470, %v6644
          %v6733 = vadd.f32 %v6471, %v6643
          %v6734 = vadd.f32 %v6472, %v6644
          %v6735 = vadd.f32 %v6473, %v6643
          %v6736 = vadd.f32 %v6474, %v6644
          %v6737 = vadd.f32 %v6475, %v6643
          %v6738 = vadd.f32 %v6476, %v6644
          %v6739 = vadd.f32 %v6477, %v6643
          %v6740 = vadd.f32 %v6478, %v6644
          %v6741 = vadd.f32 %v6479, %v6643
          %v6742 = vadd.f32 %v6480, %v6644
          %v6743 = vadd.f32 %v6481, %v6643
          %v6744 = vadd.f32 %v6482, %v6644
          %v6745 = vadd.f32 %v6483, %v6643
          %v6746 = vadd.f32 %v6484, %v6644
          %v6747 = vadd.f32 %v6485, %v6643
          %v6748 = vadd.f32 %v6486, %v6644
          %v6749 = vadd.f32 %v6487, %v6643
          %v6750 = vadd.f32 %v6488, %v6644
          %v6751 = vadd.f32 %v6489, %v6643
          %v6752 = vadd.f32 %v6490, %v6644
          %v6753 = vadd.f32 %v6491, %v6643
          %v6754 = vadd.f32 %v6492, %v6644
          %v6755 = vadd.f32 %v6493, %v6643
          %v6756 = vadd.f32 %v6494, %v6644
          %v6757 = vadd.f32 %v6495, %v6643
          %v6758 = vadd.f32 %v6496, %v6644
          %v6759 = vadd.f32 %v6497, %v6643
          %v6760 = vadd.f32 %v6498, %v6644
          %v6761 = vadd.f32 %v6499, %v6643
          %v6762 = vadd.f32 %v6500, %v6644
          %v6763 = vadd.f32 %v6501, %v6643
          %v6764 = vadd.f32 %v6502, %v6644
          %v6765 = vadd.f32 %v6503, %v6643
          %v6766 = vadd.f32 %v6504, %v6644
          %v6767 = vadd.f32 %v6505, %v6643
          %v6768 = vadd.f32 %v6506, %v6644
          %v6769 = vadd.f32 %v6507, %v6643
          %v6770 = vadd.f32 %v6508, %v6644
          %v6771 = vadd.f32 %v6509, %v6643
          %v6772 = vadd.f32 %v6510, %v6644
          %v6773 = vadd.f32 %v6511, %v6643
          %v6774 = vadd.f32 %v6512, %v6644
          %v6775 = vadd.f32 %v6513, %v6643
          %v6776 = vadd.f32 %v6514, %v6644
          %v6777 = vadd.f32 %v6515, %v6643
          %v6778 = vadd.f32 %v6516, %v6644
          %v6779 = vadd.f32 %v6517, %v6643
          %v6780 = vadd.f32 %v6518, %v6644
          %v6781 = vadd.f32 %v6519, %v6643
          %v6782 = vadd.f32 %v6520, %v6644
          %v6783 = vadd.f32 %v6521, %v6643
          %v6784 = vadd.f32 %v6522, %v6644
          %v6785 = vadd.f32 %v6523, %v6643
          %v6786 = vadd.f32 %v6524, %v6644
          %v6787 = vadd.f32 %v6525, %v6643
          %v6788 = vadd.f32 %v6526, %v6644
          %v6789 = vadd.f32 %v6527, %v6643
          %v6790 = vadd.f32 %v6528, %v6644
          %v6791 = vadd.f32 %v6529, %v6643
          %v6792 = vadd.f32 %v6530, %v6644
          %v6793 = vadd.f32 %v6531, %v6643
          %v6794 = vadd.f32 %v6532, %v6644
          %v6795 = vadd.f32 %v6533, %v6643
          %v6796 = vadd.f32 %v6534, %v6644
          %v6797 = vadd.f32 %v6535, %v6643
          %v6798 = vadd.f32 %v6536, %v6644
          %v6799 = vadd.f32 %v6537, %v6643
          %v6800 = vadd.f32 %v6538, %v6644
          %v6801 = vadd.f32 %v6539, %v6643
          %v6802 = vadd.f32 %v6540, %v6644
          %v6803 = vadd.f32 %v6541, %v6643
          %v6804 = vadd.f32 %v6542, %v6644
          %v6805 = vadd.f32 %v6543, %v6643
          %v6806 = vadd.f32 %v6544, %v6644
          %v6807 = vadd.f32 %v6545, %v6643
          %v6808 = vadd.f32 %v6546, %v6644
          %v6809 = vadd.f32 %v6547, %v6643
          %v6810 = vadd.f32 %v6548, %v6644
          %v6811 = vadd.f32 %v6549, %v6643
          %v6812 = vadd.f32 %v6550, %v6644
          %v6813 = vadd.f32 %v6551, %v6643
          %v6814 = vadd.f32 %v6552, %v6644
          %v6815 = vadd.f32 %v6553, %v6643
          %v6816 = vadd.f32 %v6554, %v6644
          %v6817 = vadd.f32 %v6555, %v6643
          %v6818 = vadd.f32 %v6556, %v6644
          %v6819 = vadd.f32 %v6557, %v6643
          %v6820 = vadd.f32 %v6558, %v6644
          %v6821 = vadd.f32 %v6559, %v6643
          %v6822 = vadd.f32 %v6560, %v6644
          %v6823 = vadd.f32 %v6561, %v6643
          %v6824 = vadd.f32 %v6562, %v6644
          %v6825 = vadd.f32 %v6563, %v6643
          %v6826 = vadd.f32 %v6564, %v6644
          %v6827 = vadd.f32 %v6565, %v6643
          %v6828 = vadd.f32 %v6566, %v6644
          %v6829 = vadd.f32 %v6567, %v6643
          %v6830 = vadd.f32 %v6568, %v6644
          %v6831 = vadd.f32 %v6569, %v6643
          %v6832 = vadd.f32 %v6570, %v6644
          %v6833 = vadd.f32 %v6571, %v6643
          %v6834 = vadd.f32 %v6572, %v6644
          %v6835 = vadd.f32 %v6573, %v6643
          %v6836 = vadd.f32 %v6574, %v6644
          %v6837 = vadd.f32 %v6575, %v6643
          %v6838 = vadd.f32 %v6576, %v6644
          %v6839 = vadd.f32 %v6577, %v6643
          %v6840 = vadd.f32 %v6578, %v6644
          %v6841 = vadd.f32 %v6579, %v6643
          %v6842 = vadd.f32 %v6580, %v6644
          %v6843 = vadd.f32 %v6581, %v6643
          %v6844 = vadd.f32 %v6582, %v6644
          %v6845 = vadd.f32 %v6583, %v6643
          %v6846 = vadd.f32 %v6584, %v6644
          %v6847 = vadd.f32 %v6585, %v6643
          %v6848 = vadd.f32 %v6586, %v6644
          %v6849 = vadd.f32 %v6587, %v6643
          %v6850 = vadd.f32 %v6588, %v6644
          %v6851 = vadd.f32 %v6589, %v6643
          %v6852 = vadd.f32 %v6590, %v6644
          %v6853 = vadd.f32 %v6591, %v6643
          %v6854 = vadd.f32 %v6592, %v6644
          %v6855 = vadd.f32 %v6593, %v6643
          %v6856 = vadd.f32 %v6594, %v6644
          %v6857 = vadd.f32 %v6595, %v6643
          %v6858 = vadd.f32 %v6596, %v6644
          %v6859 = vadd.f32 %v6597, %v6643
          %v6860 = vadd.f32 %v6598, %v6644
          %v6861 = vadd.f32 %v6599, %v6643
          %v6862 = vadd.f32 %v6600, %v6644
          %v6863 = vadd.f32 %v6601, %v6643
          %v6864 = vadd.f32 %v6602, %v6644
          %v6865 = vadd.f32 %v6603, %v6643
          %v6866 = vadd.f32 %v6604, %v6644
          %v6867 = vadd.f32 %v6605, %v6643
          %v6868 = vadd.f32 %v6606, %v6644
          %v6869 = vadd.f32 %v6607, %v6643
          %v6870 = vadd.f32 %v6608, %v6644
          %v6871 = vadd.f32 %v6609, %v6643
          %v6872 = vadd.f32 %v6610, %v6644
          %v6873 = vadd.f32 %v6611, %v6643
          %v6874 = vadd.f32 %v6612, %v6644
          %v6875 = vadd.f32 %v6613, %v6643
          %v6876 = vadd.f32 %v6614, %v6644
          %v6877 = vadd.f32 %v6615, %v6643
          %v6878 = vadd.f32 %v6616, %v6644
          %v6879 = vadd.f32 %v6617, %v6643
          %v6880 = vadd.f32 %v6618, %v6644
          %v6881 = vadd.f32 %v6619, %v6643
          %v6882 = vadd.f32 %v6620, %v6644
          %v6883 = vadd.f32 %v6621, %v6643
          %v6884 = vadd.f32 %v6622, %v6644
          %v6885 = vadd.f32 %v6623, %v6643
          %v6886 = vadd.f32 %v6624, %v6644
          %v6887 = vadd.f32 %v6625, %v6643
          %v6888 = vadd.f32 %v6626, %v6644
          %v6889 = vadd.f32 %v6627, %v6643
          %v6890 = vadd.f32 %v6628, %v6644
          %v6891 = vadd.f32 %v6629, %v6643
          %v6892 = vadd.f32 %v6630, %v6644
          %v6893 = vadd.f32 %v6631, %v6643
          %v6894 = vadd.f32 %v6632, %v6644
          %v6895 = vadd.f32 %v6633, %v6643
          %v6896 = vadd.f32 %v6634, %v6644
          %v6897 = vadd.f32 %v6635, %v6643
          %v6898 = vadd.f32 %v6636, %v6644
          %v6899 = vadd.f32 %v6637, %v6643
          %v6900 = vadd.f32 %v6638, %v6644
          %v6901 = vadd.f32 %v6639, %v6643
          %v6902 = vadd.f32 %v6640, %v6644
          %v6903 = vmax.f32 %v6647, 0.0
          %v6904 = vmax.f32 %v6648, 0.0
          %v6905 = vmax.f32 %v6649, 0.0
          %v6906 = vmax.f32 %v6650, 0.0
          %v6907 = vmax.f32 %v6651, 0.0
          %v6908 = vmax.f32 %v6652, 0.0
          %v6909 = vmax.f32 %v6653, 0.0
          %v6910 = vmax.f32 %v6654, 0.0
          %v6911 = vmax.f32 %v6655, 0.0
          %v6912 = vmax.f32 %v6656, 0.0
          %v6913 = vmax.f32 %v6657, 0.0
          %v6914 = vmax.f32 %v6658, 0.0
          %v6915 = vmax.f32 %v6659, 0.0
          %v6916 = vmax.f32 %v6660, 0.0
          %v6917 = vmax.f32 %v6661, 0.0
          %v6918 = vmax.f32 %v6662, 0.0
          %v6919 = vmax.f32 %v6663, 0.0
          %v6920 = vmax.f32 %v6664, 0.0
          %v6921 = vmax.f32 %v6665, 0.0
          %v6922 = vmax.f32 %v6666, 0.0
          %v6923 = vmax.f32 %v6667, 0.0
          %v6924 = vmax.f32 %v6668, 0.0
          %v6925 = vmax.f32 %v6669, 0.0
          %v6926 = vmax.f32 %v6670, 0.0
          %v6927 = vmax.f32 %v6671, 0.0
          %v6928 = vmax.f32 %v6672, 0.0
          %v6929 = vmax.f32 %v6673, 0.0
          %v6930 = vmax.f32 %v6674, 0.0
          %v6931 = vmax.f32 %v6675, 0.0
          %v6932 = vmax.f32 %v6676, 0.0
          %v6933 = vmax.f32 %v6677, 0.0
          %v6934 = vmax.f32 %v6678, 0.0
          %v6935 = vmax.f32 %v6679, 0.0
          %v6936 = vmax.f32 %v6680, 0.0
          %v6937 = vmax.f32 %v6681, 0.0
          %v6938 = vmax.f32 %v6682, 0.0
          %v6939 = vmax.f32 %v6683, 0.0
          %v6940 = vmax.f32 %v6684, 0.0
          %v6941 = vmax.f32 %v6685, 0.0
          %v6942 = vmax.f32 %v6686, 0.0
          %v6943 = vmax.f32 %v6687, 0.0
          %v6944 = vmax.f32 %v6688, 0.0
          %v6945 = vmax.f32 %v6689, 0.0
          %v6946 = vmax.f32 %v6690, 0.0
          %v6947 = vmax.f32 %v6691, 0.0
          %v6948 = vmax.f32 %v6692, 0.0
          %v6949 = vmax.f32 %v6693, 0.0
          %v6950 = vmax.f32 %v6694, 0.0
          %v6951 = vmax.f32 %v6695, 0.0
          %v6952 = vmax.f32 %v6696, 0.0
          %v6953 = vmax.f32 %v6697, 0.0
          %v6954 = vmax.f32 %v6698, 0.0
          %v6955 = vmax.f32 %v6699, 0.0
          %v6956 = vmax.f32 %v6700, 0.0
          %v6957 = vmax.f32 %v6701, 0.0
          %v6958 = vmax.f32 %v6702, 0.0
          %v6959 = vmax.f32 %v6703, 0.0
          %v6960 = vmax.f32 %v6704, 0.0
          %v6961 = vmax.f32 %v6705, 0.0
          %v6962 = vmax.f32 %v6706, 0.0
          %v6963 = vmax.f32 %v6707, 0.0
          %v6964 = vmax.f32 %v6708, 0.0
          %v6965 = vmax.f32 %v6709, 0.0
          %v6966 = vmax.f32 %v6710, 0.0
          %v6967 = vmax.f32 %v6711, 0.0
          %v6968 = vmax.f32 %v6712, 0.0
          %v6969 = vmax.f32 %v6713, 0.0
          %v6970 = vmax.f32 %v6714, 0.0
          %v6971 = vmax.f32 %v6715, 0.0
          %v6972 = vmax.f32 %v6716, 0.0
          %v6973 = vmax.f32 %v6717, 0.0
          %v6974 = vmax.f32 %v6718, 0.0
          %v6975 = vmax.f32 %v6719, 0.0
          %v6976 = vmax.f32 %v6720, 0.0
          %v6977 = vmax.f32 %v6721, 0.0
          %v6978 = vmax.f32 %v6722, 0.0
          %v6979 = vmax.f32 %v6723, 0.0
          %v6980 = vmax.f32 %v6724, 0.0
          %v6981 = vmax.f32 %v6725, 0.0
          %v6982 = vmax.f32 %v6726, 0.0
          %v6983 = vmax.f32 %v6727, 0.0
          %v6984 = vmax.f32 %v6728, 0.0
          %v6985 = vmax.f32 %v6729, 0.0
          %v6986 = vmax.f32 %v6730, 0.0
          %v6987 = vmax.f32 %v6731, 0.0
          %v6988 = vmax.f32 %v6732, 0.0
          %v6989 = vmax.f32 %v6733, 0.0
          %v6990 = vmax.f32 %v6734, 0.0
          %v6991 = vmax.f32 %v6735, 0.0
          %v6992 = vmax.f32 %v6736, 0.0
          %v6993 = vmax.f32 %v6737, 0.0
          %v6994 = vmax.f32 %v6738, 0.0
          %v6995 = vmax.f32 %v6739, 0.0
          %v6996 = vmax.f32 %v6740, 0.0
          %v6997 = vmax.f32 %v6741, 0.0
          %v6998 = vmax.f32 %v6742, 0.0
          %v6999 = vmax.f32 %v6743, 0.0
          %v7000 = vmax.f32 %v6744, 0.0
          %v7001 = vmax.f32 %v6745, 0.0
          %v7002 = vmax.f32 %v6746, 0.0
          %v7003 = vmax.f32 %v6747, 0.0
          %v7004 = vmax.f32 %v6748, 0.0
          %v7005 = vmax.f32 %v6749, 0.0
          %v7006 = vmax.f32 %v6750, 0.0
          %v7007 = vmax.f32 %v6751, 0.0
          %v7008 = vmax.f32 %v6752, 0.0
          %v7009 = vmax.f32 %v6753, 0.0
          %v7010 = vmax.f32 %v6754, 0.0
          %v7011 = vmax.f32 %v6755, 0.0
          %v7012 = vmax.f32 %v6756, 0.0
          %v7013 = vmax.f32 %v6757, 0.0
          %v7014 = vmax.f32 %v6758, 0.0
          %v7015 = vmax.f32 %v6759, 0.0
          %v7016 = vmax.f32 %v6760, 0.0
          %v7017 = vmax.f32 %v6761, 0.0
          %v7018 = vmax.f32 %v6762, 0.0
          %v7019 = vmax.f32 %v6763, 0.0
          %v7020 = vmax.f32 %v6764, 0.0
          %v7021 = vmax.f32 %v6765, 0.0
          %v7022 = vmax.f32 %v6766, 0.0
          %v7023 = vmax.f32 %v6767, 0.0
          %v7024 = vmax.f32 %v6768, 0.0
          %v7025 = vmax.f32 %v6769, 0.0
          %v7026 = vmax.f32 %v6770, 0.0
          %v7027 = vmax.f32 %v6771, 0.0
          %v7028 = vmax.f32 %v6772, 0.0
          %v7029 = vmax.f32 %v6773, 0.0
          %v7030 = vmax.f32 %v6774, 0.0
          %v7031 = vmax.f32 %v6775, 0.0
          %v7032 = vmax.f32 %v6776, 0.0
          %v7033 = vmax.f32 %v6777, 0.0
          %v7034 = vmax.f32 %v6778, 0.0
          %v7035 = vmax.f32 %v6779, 0.0
          %v7036 = vmax.f32 %v6780, 0.0
          %v7037 = vmax.f32 %v6781, 0.0
          %v7038 = vmax.f32 %v6782, 0.0
          %v7039 = vmax.f32 %v6783, 0.0
          %v7040 = vmax.f32 %v6784, 0.0
          %v7041 = vmax.f32 %v6785, 0.0
          %v7042 = vmax.f32 %v6786, 0.0
          %v7043 = vmax.f32 %v6787, 0.0
          %v7044 = vmax.f32 %v6788, 0.0
          %v7045 = vmax.f32 %v6789, 0.0
          %v7046 = vmax.f32 %v6790, 0.0
          %v7047 = vmax.f32 %v6791, 0.0
          %v7048 = vmax.f32 %v6792, 0.0
          %v7049 = vmax.f32 %v6793, 0.0
          %v7050 = vmax.f32 %v6794, 0.0
          %v7051 = vmax.f32 %v6795, 0.0
          %v7052 = vmax.f32 %v6796, 0.0
          %v7053 = vmax.f32 %v6797, 0.0
          %v7054 = vmax.f32 %v6798, 0.0
          %v7055 = vmax.f32 %v6799, 0.0
          %v7056 = vmax.f32 %v6800, 0.0
          %v7057 = vmax.f32 %v6801, 0.0
          %v7058 = vmax.f32 %v6802, 0.0
          %v7059 = vmax.f32 %v6803, 0.0
          %v7060 = vmax.f32 %v6804, 0.0
          %v7061 = vmax.f32 %v6805, 0.0
          %v7062 = vmax.f32 %v6806, 0.0
          %v7063 = vmax.f32 %v6807, 0.0
          %v7064 = vmax.f32 %v6808, 0.0
          %v7065 = vmax.f32 %v6809, 0.0
          %v7066 = vmax.f32 %v6810, 0.0
          %v7067 = vmax.f32 %v6811, 0.0
          %v7068 = vmax.f32 %v6812, 0.0
          %v7069 = vmax.f32 %v6813, 0.0
          %v7070 = vmax.f32 %v6814, 0.0
          %v7071 = vmax.f32 %v6815, 0.0
          %v7072 = vmax.f32 %v6816, 0.0
          %v7073 = vmax.f32 %v6817, 0.0
          %v7074 = vmax.f32 %v6818, 0.0
          %v7075 = vmax.f32 %v6819, 0.0
          %v7076 = vmax.f32 %v6820, 0.0
          %v7077 = vmax.f32 %v6821, 0.0
          %v7078 = vmax.f32 %v6822, 0.0
          %v7079 = vmax.f32 %v6823, 0.0
          %v7080 = vmax.f32 %v6824, 0.0
          %v7081 = vmax.f32 %v6825, 0.0
          %v7082 = vmax.f32 %v6826, 0.0
          %v7083 = vmax.f32 %v6827, 0.0
          %v7084 = vmax.f32 %v6828, 0.0
          %v7085 = vmax.f32 %v6829, 0.0
          %v7086 = vmax.f32 %v6830, 0.0
          %v7087 = vmax.f32 %v6831, 0.0
          %v7088 = vmax.f32 %v6832, 0.0
          %v7089 = vmax.f32 %v6833, 0.0
          %v7090 = vmax.f32 %v6834, 0.0
          %v7091 = vmax.f32 %v6835, 0.0
          %v7092 = vmax.f32 %v6836, 0.0
          %v7093 = vmax.f32 %v6837, 0.0
          %v7094 = vmax.f32 %v6838, 0.0
          %v7095 = vmax.f32 %v6839, 0.0
          %v7096 = vmax.f32 %v6840, 0.0
          %v7097 = vmax.f32 %v6841, 0.0
          %v7098 = vmax.f32 %v6842, 0.0
          %v7099 = vmax.f32 %v6843, 0.0
          %v7100 = vmax.f32 %v6844, 0.0
          %v7101 = vmax.f32 %v6845, 0.0
          %v7102 = vmax.f32 %v6846, 0.0
          %v7103 = vmax.f32 %v6847, 0.0
          %v7104 = vmax.f32 %v6848, 0.0
          %v7105 = vmax.f32 %v6849, 0.0
          %v7106 = vmax.f32 %v6850, 0.0
          %v7107 = vmax.f32 %v6851, 0.0
          %v7108 = vmax.f32 %v6852, 0.0
          %v7109 = vmax.f32 %v6853, 0.0
          %v7110 = vmax.f32 %v6854, 0.0
          %v7111 = vmax.f32 %v6855, 0.0
          %v7112 = vmax.f32 %v6856, 0.0
          %v7113 = vmax.f32 %v6857, 0.0
          %v7114 = vmax.f32 %v6858, 0.0
          %v7115 = vmax.f32 %v6859, 0.0
          %v7116 = vmax.f32 %v6860, 0.0
          %v7117 = vmax.f32 %v6861, 0.0
          %v7118 = vmax.f32 %v6862, 0.0
          %v7119 = vmax.f32 %v6863, 0.0
          %v7120 = vmax.f32 %v6864, 0.0
          %v7121 = vmax.f32 %v6865, 0.0
          %v7122 = vmax.f32 %v6866, 0.0
          %v7123 = vmax.f32 %v6867, 0.0
          %v7124 = vmax.f32 %v6868, 0.0
          %v7125 = vmax.f32 %v6869, 0.0
          %v7126 = vmax.f32 %v6870, 0.0
          %v7127 = vmax.f32 %v6871, 0.0
          %v7128 = vmax.f32 %v6872, 0.0
          %v7129 = vmax.f32 %v6873, 0.0
          %v7130 = vmax.f32 %v6874, 0.0
          %v7131 = vmax.f32 %v6875, 0.0
          %v7132 = vmax.f32 %v6876, 0.0
          %v7133 = vmax.f32 %v6877, 0.0
          %v7134 = vmax.f32 %v6878, 0.0
          %v7135 = vmax.f32 %v6879, 0.0
          %v7136 = vmax.f32 %v6880, 0.0
          %v7137 = vmax.f32 %v6881, 0.0
          %v7138 = vmax.f32 %v6882, 0.0
          %v7139 = vmax.f32 %v6883, 0.0
          %v7140 = vmax.f32 %v6884, 0.0
          %v7141 = vmax.f32 %v6885, 0.0
          %v7142 = vmax.f32 %v6886, 0.0
          %v7143 = vmax.f32 %v6887, 0.0
          %v7144 = vmax.f32 %v6888, 0.0
          %v7145 = vmax.f32 %v6889, 0.0
          %v7146 = vmax.f32 %v6890, 0.0
          %v7147 = vmax.f32 %v6891, 0.0
          %v7148 = vmax.f32 %v6892, 0.0
          %v7149 = vmax.f32 %v6893, 0.0
          %v7150 = vmax.f32 %v6894, 0.0
          %v7151 = vmax.f32 %v6895, 0.0
          %v7152 = vmax.f32 %v6896, 0.0
          %v7153 = vmax.f32 %v6897, 0.0
          %v7154 = vmax.f32 %v6898, 0.0
          %v7155 = vmax.f32 %v6899, 0.0
          %v7156 = vmax.f32 %v6900, 0.0
          %v7157 = vmax.f32 %v6901, 0.0
          %v7158 = vmax.f32 %v6902, 0.0
          %v7159 = vsel %vm4271, 1, 0
          %v7160 = vsel %vm4272, 1, 0
          %v7161 = vsel %vm4273, 1, 0
          %v7162 = vsel %vm4274, 1, 0
          %v7163 = vsel %vm4275, 1, 0
          %v7164 = vsel %vm4276, 1, 0
          %v7165 = vsel %vm4277, 1, 0
          %v7166 = vsel %vm4278, 1, 0
          %v7167 = vsel %vm4279, 1, 0
          %v7168 = vsel %vm4280, 1, 0
          %v7169 = vsel %vm4281, 1, 0
          %v7170 = vsel %vm4282, 1, 0
          %v7171 = vsel %vm4283, 1, 0
          %v7172 = vsel %vm4284, 1, 0
          %v7173 = vsel %vm4285, 1, 0
          %v7174 = vsel %vm4286, 1, 0
          %v7175 = vsel %vm4287, 1, 0
          %v7176 = vsel %vm4288, 1, 0
          %v7177 = vsel %vm4289, 1, 0
          %v7178 = vsel %vm4290, 1, 0
          %v7179 = vsel %vm4291, 1, 0
          %v7180 = vsel %vm4292, 1, 0
          %v7181 = vsel %vm4293, 1, 0
          %v7182 = vsel %vm4294, 1, 0
          %v7183 = vsel %vm4295, 1, 0
          %v7184 = vsel %vm4296, 1, 0
          %v7185 = vsel %vm4297, 1, 0
          %v7186 = vsel %vm4298, 1, 0
          %v7187 = vsel %vm4299, 1, 0
          %v7188 = vsel %vm4300, 1, 0
          %v7189 = vsel %vm4301, 1, 0
          %v7190 = vsel %vm4302, 1, 0
          %v7191 = vsel %vm4303, 1, 0
          %v7192 = vsel %vm4304, 1, 0
          %v7193 = vsel %vm4305, 1, 0
          %v7194 = vsel %vm4306, 1, 0
          %v7195 = vsel %vm4307, 1, 0
          %v7196 = vsel %vm4308, 1, 0
          %v7197 = vsel %vm4309, 1, 0
          %v7198 = vsel %vm4310, 1, 0
          %v7199 = vsel %vm4311, 1, 0
          %v7200 = vsel %vm4312, 1, 0
          %v7201 = vsel %vm4313, 1, 0
          %v7202 = vsel %vm4314, 1, 0
          %v7203 = vsel %vm4315, 1, 0
          %v7204 = vsel %vm4316, 1, 0
          %v7205 = vsel %vm4317, 1, 0
          %v7206 = vsel %vm4318, 1, 0
          %v7207 = vsel %vm4319, 1, 0
          %v7208 = vsel %vm4320, 1, 0
          %v7209 = vsel %vm4321, 1, 0
          %v7210 = vsel %vm4322, 1, 0
          %v7211 = vsel %vm4323, 1, 0
          %v7212 = vsel %vm4324, 1, 0
          %v7213 = vsel %vm4325, 1, 0
          %v7214 = vsel %vm4326, 1, 0
          %v7215 = vsel %vm4327, 1, 0
          %v7216 = vsel %vm4328, 1, 0
          %v7217 = vsel %vm4329, 1, 0
          %v7218 = vsel %vm4330, 1, 0
          %v7219 = vsel %vm4331, 1, 0
          %v7220 = vsel %vm4332, 1, 0
          %v7221 = vsel %vm4333, 1, 0
          %v7222 = vsel %vm4334, 1, 0
          %v7223 = vsel %vm4335, 1, 0
          %v7224 = vsel %vm4336, 1, 0
          %v7225 = vsel %vm4337, 1, 0
          %v7226 = vsel %vm4338, 1, 0
          %v7227 = vsel %vm4339, 1, 0
          %v7228 = vsel %vm4340, 1, 0
          %v7229 = vsel %vm4341, 1, 0
          %v7230 = vsel %vm4342, 1, 0
          %v7231 = vsel %vm4343, 1, 0
          %v7232 = vsel %vm4344, 1, 0
          %v7233 = vsel %vm4345, 1, 0
          %v7234 = vsel %vm4346, 1, 0
          %v7235 = vsel %vm4347, 1, 0
          %v7236 = vsel %vm4348, 1, 0
          %v7237 = vsel %vm4349, 1, 0
          %v7238 = vsel %vm4350, 1, 0
          %v7239 = vsel %vm4351, 1, 0
          %v7240 = vsel %vm4352, 1, 0
          %v7241 = vsel %vm4353, 1, 0
          %v7242 = vsel %vm4354, 1, 0
          %v7243 = vsel %vm4355, 1, 0
          %v7244 = vsel %vm4356, 1, 0
          %v7245 = vsel %vm4357, 1, 0
          %v7246 = vsel %vm4358, 1, 0
          %v7247 = vsel %vm4359, 1, 0
          %v7248 = vsel %vm4360, 1, 0
          %v7249 = vsel %vm4361, 1, 0
          %v7250 = vsel %vm4362, 1, 0
          %v7251 = vsel %vm4363, 1, 0
          %v7252 = vsel %vm4364, 1, 0
          %v7253 = vsel %vm4365, 1, 0
          %v7254 = vsel %vm4366, 1, 0
          %v7255 = vsel %vm4367, 1, 0
          %v7256 = vsel %vm4368, 1, 0
          %v7257 = vsel %vm4369, 1, 0
          %v7258 = vsel %vm4370, 1, 0
          %v7259 = vsel %vm4371, 1, 0
          %v7260 = vsel %vm4372, 1, 0
          %v7261 = vsel %vm4373, 1, 0
          %v7262 = vsel %vm4374, 1, 0
          %v7263 = vsel %vm4375, 1, 0
          %v7264 = vsel %vm4376, 1, 0
          %v7265 = vsel %vm4377, 1, 0
          %v7266 = vsel %vm4378, 1, 0
          %v7267 = vsel %vm4379, 1, 0
          %v7268 = vsel %vm4380, 1, 0
          %v7269 = vsel %vm4381, 1, 0
          %v7270 = vsel %vm4382, 1, 0
          %v7271 = vsel %vm4383, 1, 0
          %v7272 = vsel %vm4384, 1, 0
          %v7273 = vsel %vm4385, 1, 0
          %v7274 = vsel %vm4386, 1, 0
          %v7275 = vsel %vm4387, 1, 0
          %v7276 = vsel %vm4388, 1, 0
          %v7277 = vsel %vm4389, 1, 0
          %v7278 = vsel %vm4390, 1, 0
          %v7279 = vsel %vm4391, 1, 0
          %v7280 = vsel %vm4392, 1, 0
          %v7281 = vsel %vm4393, 1, 0
          %v7282 = vsel %vm4394, 1, 0
          %v7283 = vsel %vm4395, 1, 0
          %v7284 = vsel %vm4396, 1, 0
          %v7285 = vsel %vm4397, 1, 0
          %v7286 = vsel %vm4398, 1, 0
          %vm7287 = vcmp.eq.s32.totalorder %v7159, 1
          %vm7288 = vcmp.eq.s32.totalorder %v7160, 1
          %vm7289 = vcmp.eq.s32.totalorder %v7161, 1
          %vm7290 = vcmp.eq.s32.totalorder %v7162, 1
          %vm7291 = vcmp.eq.s32.totalorder %v7163, 1
          %vm7292 = vcmp.eq.s32.totalorder %v7164, 1
          %vm7293 = vcmp.eq.s32.totalorder %v7165, 1
          %vm7294 = vcmp.eq.s32.totalorder %v7166, 1
          %vm7295 = vcmp.eq.s32.totalorder %v7167, 1
          %vm7296 = vcmp.eq.s32.totalorder %v7168, 1
          %vm7297 = vcmp.eq.s32.totalorder %v7169, 1
          %vm7298 = vcmp.eq.s32.totalorder %v7170, 1
          %vm7299 = vcmp.eq.s32.totalorder %v7171, 1
          %vm7300 = vcmp.eq.s32.totalorder %v7172, 1
          %vm7301 = vcmp.eq.s32.totalorder %v7173, 1
          %vm7302 = vcmp.eq.s32.totalorder %v7174, 1
          %vm7303 = vcmp.eq.s32.totalorder %v7175, 1
          %vm7304 = vcmp.eq.s32.totalorder %v7176, 1
          %vm7305 = vcmp.eq.s32.totalorder %v7177, 1
          %vm7306 = vcmp.eq.s32.totalorder %v7178, 1
          %vm7307 = vcmp.eq.s32.totalorder %v7179, 1
          %vm7308 = vcmp.eq.s32.totalorder %v7180, 1
          %vm7309 = vcmp.eq.s32.totalorder %v7181, 1
          %vm7310 = vcmp.eq.s32.totalorder %v7182, 1
          %vm7311 = vcmp.eq.s32.totalorder %v7183, 1
          %vm7312 = vcmp.eq.s32.totalorder %v7184, 1
          %vm7313 = vcmp.eq.s32.totalorder %v7185, 1
          %vm7314 = vcmp.eq.s32.totalorder %v7186, 1
          %vm7315 = vcmp.eq.s32.totalorder %v7187, 1
          %vm7316 = vcmp.eq.s32.totalorder %v7188, 1
          %vm7317 = vcmp.eq.s32.totalorder %v7189, 1
          %vm7318 = vcmp.eq.s32.totalorder %v7190, 1
          %vm7319 = vcmp.eq.s32.totalorder %v7191, 1
          %vm7320 = vcmp.eq.s32.totalorder %v7192, 1
          %vm7321 = vcmp.eq.s32.totalorder %v7193, 1
          %vm7322 = vcmp.eq.s32.totalorder %v7194, 1
          %vm7323 = vcmp.eq.s32.totalorder %v7195, 1
          %vm7324 = vcmp.eq.s32.totalorder %v7196, 1
          %vm7325 = vcmp.eq.s32.totalorder %v7197, 1
          %vm7326 = vcmp.eq.s32.totalorder %v7198, 1
          %vm7327 = vcmp.eq.s32.totalorder %v7199, 1
          %vm7328 = vcmp.eq.s32.totalorder %v7200, 1
          %vm7329 = vcmp.eq.s32.totalorder %v7201, 1
          %vm7330 = vcmp.eq.s32.totalorder %v7202, 1
          %vm7331 = vcmp.eq.s32.totalorder %v7203, 1
          %vm7332 = vcmp.eq.s32.totalorder %v7204, 1
          %vm7333 = vcmp.eq.s32.totalorder %v7205, 1
          %vm7334 = vcmp.eq.s32.totalorder %v7206, 1
          %vm7335 = vcmp.eq.s32.totalorder %v7207, 1
          %vm7336 = vcmp.eq.s32.totalorder %v7208, 1
          %vm7337 = vcmp.eq.s32.totalorder %v7209, 1
          %vm7338 = vcmp.eq.s32.totalorder %v7210, 1
          %vm7339 = vcmp.eq.s32.totalorder %v7211, 1
          %vm7340 = vcmp.eq.s32.totalorder %v7212, 1
          %vm7341 = vcmp.eq.s32.totalorder %v7213, 1
          %vm7342 = vcmp.eq.s32.totalorder %v7214, 1
          %vm7343 = vcmp.eq.s32.totalorder %v7215, 1
          %vm7344 = vcmp.eq.s32.totalorder %v7216, 1
          %vm7345 = vcmp.eq.s32.totalorder %v7217, 1
          %vm7346 = vcmp.eq.s32.totalorder %v7218, 1
          %vm7347 = vcmp.eq.s32.totalorder %v7219, 1
          %vm7348 = vcmp.eq.s32.totalorder %v7220, 1
          %vm7349 = vcmp.eq.s32.totalorder %v7221, 1
          %vm7350 = vcmp.eq.s32.totalorder %v7222, 1
          %vm7351 = vcmp.eq.s32.totalorder %v7223, 1
          %vm7352 = vcmp.eq.s32.totalorder %v7224, 1
          %vm7353 = vcmp.eq.s32.totalorder %v7225, 1
          %vm7354 = vcmp.eq.s32.totalorder %v7226, 1
          %vm7355 = vcmp.eq.s32.totalorder %v7227, 1
          %vm7356 = vcmp.eq.s32.totalorder %v7228, 1
          %vm7357 = vcmp.eq.s32.totalorder %v7229, 1
          %vm7358 = vcmp.eq.s32.totalorder %v7230, 1
          %vm7359 = vcmp.eq.s32.totalorder %v7231, 1
          %vm7360 = vcmp.eq.s32.totalorder %v7232, 1
          %vm7361 = vcmp.eq.s32.totalorder %v7233, 1
          %vm7362 = vcmp.eq.s32.totalorder %v7234, 1
          %vm7363 = vcmp.eq.s32.totalorder %v7235, 1
          %vm7364 = vcmp.eq.s32.totalorder %v7236, 1
          %vm7365 = vcmp.eq.s32.totalorder %v7237, 1
          %vm7366 = vcmp.eq.s32.totalorder %v7238, 1
          %vm7367 = vcmp.eq.s32.totalorder %v7239, 1
          %vm7368 = vcmp.eq.s32.totalorder %v7240, 1
          %vm7369 = vcmp.eq.s32.totalorder %v7241, 1
          %vm7370 = vcmp.eq.s32.totalorder %v7242, 1
          %vm7371 = vcmp.eq.s32.totalorder %v7243, 1
          %vm7372 = vcmp.eq.s32.totalorder %v7244, 1
          %vm7373 = vcmp.eq.s32.totalorder %v7245, 1
          %vm7374 = vcmp.eq.s32.totalorder %v7246, 1
          %vm7375 = vcmp.eq.s32.totalorder %v7247, 1
          %vm7376 = vcmp.eq.s32.totalorder %v7248, 1
          %vm7377 = vcmp.eq.s32.totalorder %v7249, 1
          %vm7378 = vcmp.eq.s32.totalorder %v7250, 1
          %vm7379 = vcmp.eq.s32.totalorder %v7251, 1
          %vm7380 = vcmp.eq.s32.totalorder %v7252, 1
          %vm7381 = vcmp.eq.s32.totalorder %v7253, 1
          %vm7382 = vcmp.eq.s32.totalorder %v7254, 1
          %vm7383 = vcmp.eq.s32.totalorder %v7255, 1
          %vm7384 = vcmp.eq.s32.totalorder %v7256, 1
          %vm7385 = vcmp.eq.s32.totalorder %v7257, 1
          %vm7386 = vcmp.eq.s32.totalorder %v7258, 1
          %vm7387 = vcmp.eq.s32.totalorder %v7259, 1
          %vm7388 = vcmp.eq.s32.totalorder %v7260, 1
          %vm7389 = vcmp.eq.s32.totalorder %v7261, 1
          %vm7390 = vcmp.eq.s32.totalorder %v7262, 1
          %vm7391 = vcmp.eq.s32.totalorder %v7263, 1
          %vm7392 = vcmp.eq.s32.totalorder %v7264, 1
          %vm7393 = vcmp.eq.s32.totalorder %v7265, 1
          %vm7394 = vcmp.eq.s32.totalorder %v7266, 1
          %vm7395 = vcmp.eq.s32.totalorder %v7267, 1
          %vm7396 = vcmp.eq.s32.totalorder %v7268, 1
          %vm7397 = vcmp.eq.s32.totalorder %v7269, 1
          %vm7398 = vcmp.eq.s32.totalorder %v7270, 1
          %vm7399 = vcmp.eq.s32.totalorder %v7271, 1
          %vm7400 = vcmp.eq.s32.totalorder %v7272, 1
          %vm7401 = vcmp.eq.s32.totalorder %v7273, 1
          %vm7402 = vcmp.eq.s32.totalorder %v7274, 1
          %vm7403 = vcmp.eq.s32.totalorder %v7275, 1
          %vm7404 = vcmp.eq.s32.totalorder %v7276, 1
          %vm7405 = vcmp.eq.s32.totalorder %v7277, 1
          %vm7406 = vcmp.eq.s32.totalorder %v7278, 1
          %vm7407 = vcmp.eq.s32.totalorder %v7279, 1
          %vm7408 = vcmp.eq.s32.totalorder %v7280, 1
          %vm7409 = vcmp.eq.s32.totalorder %v7281, 1
          %vm7410 = vcmp.eq.s32.totalorder %v7282, 1
          %vm7411 = vcmp.eq.s32.totalorder %v7283, 1
          %vm7412 = vcmp.eq.s32.totalorder %v7284, 1
          %vm7413 = vcmp.eq.s32.totalorder %v7285, 1
          %vm7414 = vcmp.eq.s32.totalorder %v7286, 1
          %v7415 = vsel %vm7287, %v6903, inf
          %v7416 = vsel %vm7287, %v6904, inf
          %v7417 = vsel %vm7288, %v6905, inf
          %v7418 = vsel %vm7288, %v6906, inf
          %v7419 = vsel %vm7289, %v6907, inf
          %v7420 = vsel %vm7289, %v6908, inf
          %v7421 = vsel %vm7290, %v6909, inf
          %v7422 = vsel %vm7290, %v6910, inf
          %v7423 = vsel %vm7291, %v6911, inf
          %v7424 = vsel %vm7291, %v6912, inf
          %v7425 = vsel %vm7292, %v6913, inf
          %v7426 = vsel %vm7292, %v6914, inf
          %v7427 = vsel %vm7293, %v6915, inf
          %v7428 = vsel %vm7293, %v6916, inf
          %v7429 = vsel %vm7294, %v6917, inf
          %v7430 = vsel %vm7294, %v6918, inf
          %v7431 = vsel %vm7295, %v6919, inf
          %v7432 = vsel %vm7295, %v6920, inf
          %v7433 = vsel %vm7296, %v6921, inf
          %v7434 = vsel %vm7296, %v6922, inf
          %v7435 = vsel %vm7297, %v6923, inf
          %v7436 = vsel %vm7297, %v6924, inf
          %v7437 = vsel %vm7298, %v6925, inf
          %v7438 = vsel %vm7298, %v6926, inf
          %v7439 = vsel %vm7299, %v6927, inf
          %v7440 = vsel %vm7299, %v6928, inf
          %v7441 = vsel %vm7300, %v6929, inf
          %v7442 = vsel %vm7300, %v6930, inf
          %v7443 = vsel %vm7301, %v6931, inf
          %v7444 = vsel %vm7301, %v6932, inf
          %v7445 = vsel %vm7302, %v6933, inf
          %v7446 = vsel %vm7302, %v6934, inf
          %v7447 = vsel %vm7303, %v6935, inf
          %v7448 = vsel %vm7303, %v6936, inf
          %v7449 = vsel %vm7304, %v6937, inf
          %v7450 = vsel %vm7304, %v6938, inf
          %v7451 = vsel %vm7305, %v6939, inf
          %v7452 = vsel %vm7305, %v6940, inf
          %v7453 = vsel %vm7306, %v6941, inf
          %v7454 = vsel %vm7306, %v6942, inf
          %v7455 = vsel %vm7307, %v6943, inf
          %v7456 = vsel %vm7307, %v6944, inf
          %v7457 = vsel %vm7308, %v6945, inf
          %v7458 = vsel %vm7308, %v6946, inf
          %v7459 = vsel %vm7309, %v6947, inf
          %v7460 = vsel %vm7309, %v6948, inf
          %v7461 = vsel %vm7310, %v6949, inf
          %v7462 = vsel %vm7310, %v6950, inf
          %v7463 = vsel %vm7311, %v6951, inf
          %v7464 = vsel %vm7311, %v6952, inf
          %v7465 = vsel %vm7312, %v6953, inf
          %v7466 = vsel %vm7312, %v6954, inf
          %v7467 = vsel %vm7313, %v6955, inf
          %v7468 = vsel %vm7313, %v6956, inf
          %v7469 = vsel %vm7314, %v6957, inf
          %v7470 = vsel %vm7314, %v6958, inf
          %v7471 = vsel %vm7315, %v6959, inf
          %v7472 = vsel %vm7315, %v6960, inf
          %v7473 = vsel %vm7316, %v6961, inf
          %v7474 = vsel %vm7316, %v6962, inf
          %v7475 = vsel %vm7317, %v6963, inf
          %v7476 = vsel %vm7317, %v6964, inf
          %v7477 = vsel %vm7318, %v6965, inf
          %v7478 = vsel %vm7318, %v6966, inf
          %v7479 = vsel %vm7319, %v6967, inf
          %v7480 = vsel %vm7319, %v6968, inf
          %v7481 = vsel %vm7320, %v6969, inf
          %v7482 = vsel %vm7320, %v6970, inf
          %v7483 = vsel %vm7321, %v6971, inf
          %v7484 = vsel %vm7321, %v6972, inf
          %v7485 = vsel %vm7322, %v6973, inf
          %v7486 = vsel %vm7322, %v6974, inf
          %v7487 = vsel %vm7323, %v6975, inf
          %v7488 = vsel %vm7323, %v6976, inf
          %v7489 = vsel %vm7324, %v6977, inf
          %v7490 = vsel %vm7324, %v6978, inf
          %v7491 = vsel %vm7325, %v6979, inf
          %v7492 = vsel %vm7325, %v6980, inf
          %v7493 = vsel %vm7326, %v6981, inf
          %v7494 = vsel %vm7326, %v6982, inf
          %v7495 = vsel %vm7327, %v6983, inf
          %v7496 = vsel %vm7327, %v6984, inf
          %v7497 = vsel %vm7328, %v6985, inf
          %v7498 = vsel %vm7328, %v6986, inf
          %v7499 = vsel %vm7329, %v6987, inf
          %v7500 = vsel %vm7329, %v6988, inf
          %v7501 = vsel %vm7330, %v6989, inf
          %v7502 = vsel %vm7330, %v6990, inf
          %v7503 = vsel %vm7331, %v6991, inf
          %v7504 = vsel %vm7331, %v6992, inf
          %v7505 = vsel %vm7332, %v6993, inf
          %v7506 = vsel %vm7332, %v6994, inf
          %v7507 = vsel %vm7333, %v6995, inf
          %v7508 = vsel %vm7333, %v6996, inf
          %v7509 = vsel %vm7334, %v6997, inf
          %v7510 = vsel %vm7334, %v6998, inf
          %v7511 = vsel %vm7335, %v6999, inf
          %v7512 = vsel %vm7335, %v7000, inf
          %v7513 = vsel %vm7336, %v7001, inf
          %v7514 = vsel %vm7336, %v7002, inf
          %v7515 = vsel %vm7337, %v7003, inf
          %v7516 = vsel %vm7337, %v7004, inf
          %v7517 = vsel %vm7338, %v7005, inf
          %v7518 = vsel %vm7338, %v7006, inf
          %v7519 = vsel %vm7339, %v7007, inf
          %v7520 = vsel %vm7339, %v7008, inf
          %v7521 = vsel %vm7340, %v7009, inf
          %v7522 = vsel %vm7340, %v7010, inf
          %v7523 = vsel %vm7341, %v7011, inf
          %v7524 = vsel %vm7341, %v7012, inf
          %v7525 = vsel %vm7342, %v7013, inf
          %v7526 = vsel %vm7342, %v7014, inf
          %v7527 = vsel %vm7343, %v7015, inf
          %v7528 = vsel %vm7343, %v7016, inf
          %v7529 = vsel %vm7344, %v7017, inf
          %v7530 = vsel %vm7344, %v7018, inf
          %v7531 = vsel %vm7345, %v7019, inf
          %v7532 = vsel %vm7345, %v7020, inf
          %v7533 = vsel %vm7346, %v7021, inf
          %v7534 = vsel %vm7346, %v7022, inf
          %v7535 = vsel %vm7347, %v7023, inf
          %v7536 = vsel %vm7347, %v7024, inf
          %v7537 = vsel %vm7348, %v7025, inf
          %v7538 = vsel %vm7348, %v7026, inf
          %v7539 = vsel %vm7349, %v7027, inf
          %v7540 = vsel %vm7349, %v7028, inf
          %v7541 = vsel %vm7350, %v7029, inf
          %v7542 = vsel %vm7350, %v7030, inf
          %v7543 = vsel %vm7351, %v7031, inf
          %v7544 = vsel %vm7351, %v7032, inf
          %v7545 = vsel %vm7352, %v7033, inf
          %v7546 = vsel %vm7352, %v7034, inf
          %v7547 = vsel %vm7353, %v7035, inf
          %v7548 = vsel %vm7353, %v7036, inf
          %v7549 = vsel %vm7354, %v7037, inf
          %v7550 = vsel %vm7354, %v7038, inf
          %v7551 = vsel %vm7355, %v7039, inf
          %v7552 = vsel %vm7355, %v7040, inf
          %v7553 = vsel %vm7356, %v7041, inf
          %v7554 = vsel %vm7356, %v7042, inf
          %v7555 = vsel %vm7357, %v7043, inf
          %v7556 = vsel %vm7357, %v7044, inf
          %v7557 = vsel %vm7358, %v7045, inf
          %v7558 = vsel %vm7358, %v7046, inf
          %v7559 = vsel %vm7359, %v7047, inf
          %v7560 = vsel %vm7359, %v7048, inf
          %v7561 = vsel %vm7360, %v7049, inf
          %v7562 = vsel %vm7360, %v7050, inf
          %v7563 = vsel %vm7361, %v7051, inf
          %v7564 = vsel %vm7361, %v7052, inf
          %v7565 = vsel %vm7362, %v7053, inf
          %v7566 = vsel %vm7362, %v7054, inf
          %v7567 = vsel %vm7363, %v7055, inf
          %v7568 = vsel %vm7363, %v7056, inf
          %v7569 = vsel %vm7364, %v7057, inf
          %v7570 = vsel %vm7364, %v7058, inf
          %v7571 = vsel %vm7365, %v7059, inf
          %v7572 = vsel %vm7365, %v7060, inf
          %v7573 = vsel %vm7366, %v7061, inf
          %v7574 = vsel %vm7366, %v7062, inf
          %v7575 = vsel %vm7367, %v7063, inf
          %v7576 = vsel %vm7367, %v7064, inf
          %v7577 = vsel %vm7368, %v7065, inf
          %v7578 = vsel %vm7368, %v7066, inf
          %v7579 = vsel %vm7369, %v7067, inf
          %v7580 = vsel %vm7369, %v7068, inf
          %v7581 = vsel %vm7370, %v7069, inf
          %v7582 = vsel %vm7370, %v7070, inf
          %v7583 = vsel %vm7371, %v7071, inf
          %v7584 = vsel %vm7371, %v7072, inf
          %v7585 = vsel %vm7372, %v7073, inf
          %v7586 = vsel %vm7372, %v7074, inf
          %v7587 = vsel %vm7373, %v7075, inf
          %v7588 = vsel %vm7373, %v7076, inf
          %v7589 = vsel %vm7374, %v7077, inf
          %v7590 = vsel %vm7374, %v7078, inf
          %v7591 = vsel %vm7375, %v7079, inf
          %v7592 = vsel %vm7375, %v7080, inf
          %v7593 = vsel %vm7376, %v7081, inf
          %v7594 = vsel %vm7376, %v7082, inf
          %v7595 = vsel %vm7377, %v7083, inf
          %v7596 = vsel %vm7377, %v7084, inf
          %v7597 = vsel %vm7378, %v7085, inf
          %v7598 = vsel %vm7378, %v7086, inf
          %v7599 = vsel %vm7379, %v7087, inf
          %v7600 = vsel %vm7379, %v7088, inf
          %v7601 = vsel %vm7380, %v7089, inf
          %v7602 = vsel %vm7380, %v7090, inf
          %v7603 = vsel %vm7381, %v7091, inf
          %v7604 = vsel %vm7381, %v7092, inf
          %v7605 = vsel %vm7382, %v7093, inf
          %v7606 = vsel %vm7382, %v7094, inf
          %v7607 = vsel %vm7383, %v7095, inf
          %v7608 = vsel %vm7383, %v7096, inf
          %v7609 = vsel %vm7384, %v7097, inf
          %v7610 = vsel %vm7384, %v7098, inf
          %v7611 = vsel %vm7385, %v7099, inf
          %v7612 = vsel %vm7385, %v7100, inf
          %v7613 = vsel %vm7386, %v7101, inf
          %v7614 = vsel %vm7386, %v7102, inf
          %v7615 = vsel %vm7387, %v7103, inf
          %v7616 = vsel %vm7387, %v7104, inf
          %v7617 = vsel %vm7388, %v7105, inf
          %v7618 = vsel %vm7388, %v7106, inf
          %v7619 = vsel %vm7389, %v7107, inf
          %v7620 = vsel %vm7389, %v7108, inf
          %v7621 = vsel %vm7390, %v7109, inf
          %v7622 = vsel %vm7390, %v7110, inf
          %v7623 = vsel %vm7391, %v7111, inf
          %v7624 = vsel %vm7391, %v7112, inf
          %v7625 = vsel %vm7392, %v7113, inf
          %v7626 = vsel %vm7392, %v7114, inf
          %v7627 = vsel %vm7393, %v7115, inf
          %v7628 = vsel %vm7393, %v7116, inf
          %v7629 = vsel %vm7394, %v7117, inf
          %v7630 = vsel %vm7394, %v7118, inf
          %v7631 = vsel %vm7395, %v7119, inf
          %v7632 = vsel %vm7395, %v7120, inf
          %v7633 = vsel %vm7396, %v7121, inf
          %v7634 = vsel %vm7396, %v7122, inf
          %v7635 = vsel %vm7397, %v7123, inf
          %v7636 = vsel %vm7397, %v7124, inf
          %v7637 = vsel %vm7398, %v7125, inf
          %v7638 = vsel %vm7398, %v7126, inf
          %v7639 = vsel %vm7399, %v7127, inf
          %v7640 = vsel %vm7399, %v7128, inf
          %v7641 = vsel %vm7400, %v7129, inf
          %v7642 = vsel %vm7400, %v7130, inf
          %v7643 = vsel %vm7401, %v7131, inf
          %v7644 = vsel %vm7401, %v7132, inf
          %v7645 = vsel %vm7402, %v7133, inf
          %v7646 = vsel %vm7402, %v7134, inf
          %v7647 = vsel %vm7403, %v7135, inf
          %v7648 = vsel %vm7403, %v7136, inf
          %v7649 = vsel %vm7404, %v7137, inf
          %v7650 = vsel %vm7404, %v7138, inf
          %v7651 = vsel %vm7405, %v7139, inf
          %v7652 = vsel %vm7405, %v7140, inf
          %v7653 = vsel %vm7406, %v7141, inf
          %v7654 = vsel %vm7406, %v7142, inf
          %v7655 = vsel %vm7407, %v7143, inf
          %v7656 = vsel %vm7407, %v7144, inf
          %v7657 = vsel %vm7408, %v7145, inf
          %v7658 = vsel %vm7408, %v7146, inf
          %v7659 = vsel %vm7409, %v7147, inf
          %v7660 = vsel %vm7409, %v7148, inf
          %v7661 = vsel %vm7410, %v7149, inf
          %v7662 = vsel %vm7410, %v7150, inf
          %v7663 = vsel %vm7411, %v7151, inf
          %v7664 = vsel %vm7411, %v7152, inf
          %v7665 = vsel %vm7412, %v7153, inf
          %v7666 = vsel %vm7412, %v7154, inf
          %v7667 = vsel %vm7413, %v7155, inf
          %v7668 = vsel %vm7413, %v7156, inf
          %v7669 = vsel %vm7414, %v7157, inf
          %v7670 = vsel %vm7414, %v7158, inf
          %v7671 = vld [vmem:[#allocation3] sm:$0x3]
          %v7672 = vmin.f32 %v7415, %v7419
          %v7673 = vmin.f32 %v7417, %v7421
          %v7674 = vmin.f32 %v7672, %v7423
          %v7675 = vmin.f32 %v7673, %v7425
          %v7676 = vmin.f32 %v7674, %v7427
          %v7677 = vmin.f32 %v7675, %v7429
          %v7678 = vmin.f32 %v7676, %v7431
          %v7679 = vmin.f32 %v7677, %v7433
          %v7680 = vmin.f32 %v7678, %v7435
          %v7681 = vmin.f32 %v7679, %v7437
          %v7682 = vmin.f32 %v7680, %v7439
          %v7683 = vmin.f32 %v7681, %v7441
          %v7684 = vmin.f32 %v7682, %v7443
          %v7685 = vmin.f32 %v7683, %v7445
          %v7686 = vmin.f32 %v7684, %v7447
          %v7687 = vmin.f32 %v7685, %v7449
          %v7688 = vmin.f32 %v7686, %v7451
          %v7689 = vmin.f32 %v7687, %v7453
          %v7690 = vmin.f32 %v7688, %v7455
          %v7691 = vmin.f32 %v7689, %v7457
          %v7692 = vmin.f32 %v7690, %v7459
          %v7693 = vmin.f32 %v7691, %v7461
          %v7694 = vmin.f32 %v7692, %v7463
          %v7695 = vmin.f32 %v7693, %v7465
          %v7696 = vmin.f32 %v7694, %v7467
          %v7697 = vmin.f32 %v7695, %v7469
          %v7698 = vmin.f32 %v7696, %v7471
          %v7699 = vmin.f32 %v7697, %v7473
          %v7700 = vmin.f32 %v7698, %v7475
          %v7701 = vmin.f32 %v7699, %v7477
          %v7702 = vmin.f32 %v7700, %v7479
          %v7703 = vmin.f32 %v7701, %v7481
          %v7704 = vmin.f32 %v7702, %v7483
          %v7705 = vmin.f32 %v7703, %v7485
          %v7706 = vmin.f32 %v7704, %v7487
          %v7707 = vmin.f32 %v7705, %v7489
          %v7708 = vmin.f32 %v7706, %v7491
          %v7709 = vmin.f32 %v7707, %v7493
          %v7710 = vmin.f32 %v7708, %v7495
          %v7711 = vmin.f32 %v7709, %v7497
          %v7712 = vmin.f32 %v7710, %v7499
          %v7713 = vmin.f32 %v7711, %v7501
          %v7714 = vmin.f32 %v7712, %v7503
          %v7715 = vmin.f32 %v7713, %v7505
          %v7716 = vmin.f32 %v7714, %v7507
          %v7717 = vmin.f32 %v7715, %v7509
          %v7718 = vmin.f32 %v7716, %v7511
          %v7719 = vmin.f32 %v7717, %v7513
          %v7720 = vmin.f32 %v7718, %v7515
          %v7721 = vmin.f32 %v7719, %v7517
          %v7722 = vmin.f32 %v7720, %v7519
          %v7723 = vmin.f32 %v7721, %v7521
          %v7724 = vmin.f32 %v7722, %v7523
          %v7725 = vmin.f32 %v7723, %v7525
          %v7726 = vmin.f32 %v7724, %v7527
          %v7727 = vmin.f32 %v7725, %v7529
          %v7728 = vmin.f32 %v7726, %v7531
          %v7729 = vmin.f32 %v7727, %v7533
          %v7730 = vmin.f32 %v7728, %v7535
          %v7731 = vmin.f32 %v7729, %v7537
          %v7732 = vmin.f32 %v7730, %v7539
          %v7733 = vmin.f32 %v7731, %v7541
          %v7734 = vmin.f32 %v7732, %v7543
          %v7735 = vmin.f32 %v7733, %v7545
          %v7736 = vmin.f32 %v7734, %v7547
          %v7737 = vmin.f32 %v7735, %v7549
          %v7738 = vmin.f32 %v7736, %v7551
          %v7739 = vmin.f32 %v7737, %v7553
          %v7740 = vmin.f32 %v7738, %v7555
          %v7741 = vmin.f32 %v7739, %v7557
          %v7742 = vmin.f32 %v7740, %v7559
          %v7743 = vmin.f32 %v7741, %v7561
          %v7744 = vmin.f32 %v7742, %v7563
          %v7745 = vmin.f32 %v7743, %v7565
          %v7746 = vmin.f32 %v7744, %v7567
          %v7747 = vmin.f32 %v7745, %v7569
          %v7748 = vmin.f32 %v7746, %v7571
          %v7749 = vmin.f32 %v7747, %v7573
          %v7750 = vmin.f32 %v7748, %v7575
          %v7751 = vmin.f32 %v7749, %v7577
          %v7752 = vmin.f32 %v7750, %v7579
          %v7753 = vmin.f32 %v7751, %v7581
          %v7754 = vmin.f32 %v7752, %v7583
          %v7755 = vmin.f32 %v7753, %v7585
          %v7756 = vmin.f32 %v7754, %v7587
          %v7757 = vmin.f32 %v7755, %v7589
          %v7758 = vmin.f32 %v7756, %v7591
          %v7759 = vmin.f32 %v7757, %v7593
          %v7760 = vmin.f32 %v7758, %v7595
          %v7761 = vmin.f32 %v7759, %v7597
          %v7762 = vmin.f32 %v7760, %v7599
          %v7763 = vmin.f32 %v7761, %v7601
          %v7764 = vmin.f32 %v7762, %v7603
          %v7765 = vmin.f32 %v7763, %v7605
          %v7766 = vmin.f32 %v7764, %v7607
          %v7767 = vmin.f32 %v7765, %v7609
          %v7768 = vmin.f32 %v7766, %v7611
          %v7769 = vmin.f32 %v7767, %v7613
          %v7770 = vmin.f32 %v7768, %v7615
          %v7771 = vmin.f32 %v7769, %v7617
          %v7772 = vmin.f32 %v7770, %v7619
          %v7773 = vmin.f32 %v7771, %v7621
          %v7774 = vmin.f32 %v7772, %v7623
          %v7775 = vmin.f32 %v7773, %v7625
          %v7776 = vmin.f32 %v7774, %v7627
          %v7777 = vmin.f32 %v7775, %v7629
          %v7778 = vmin.f32 %v7776, %v7631
          %v7779 = vmin.f32 %v7777, %v7633
          %v7780 = vmin.f32 %v7778, %v7635
          %v7781 = vmin.f32 %v7779, %v7637
          %v7782 = vmin.f32 %v7780, %v7639
          %v7783 = vmin.f32 %v7781, %v7641
          %v7784 = vmin.f32 %v7782, %v7643
          %v7785 = vmin.f32 %v7783, %v7645
          %v7786 = vmin.f32 %v7784, %v7647
          %v7787 = vmin.f32 %v7785, %v7649
          %v7788 = vmin.f32 %v7786, %v7651
          %v7789 = vmin.f32 %v7787, %v7653
          %v7790 = vmin.f32 %v7788, %v7655
          %v7791 = vmin.f32 %v7789, %v7657
          %v7792 = vmin.f32 %v7790, %v7659
          %v7793 = vmin.f32 %v7791, %v7661
          %v7794 = vmin.f32 %v7792, %v7663
          %v7795 = vmin.f32 %v7793, %v7665
          %v7796 = vmin.f32 %v7794, %v7667
          %v7797 = vmin.f32 %v7795, %v7669
          %v7798 = vmin.f32 %v7796, %v7797
          %v7799 = vrot.slane %v7798, 4
          %v7800 = vmin.f32 %v7798, %v7799
          %v7801 = vrot.slane %v7800, 2
          %v7802 = vmin.f32 %v7800, %v7801
          %v7803 = vrot.slane %v7802, 1
          %v7804 = vmin.f32 %v7802, %v7803
          %v7805 = vmin.f32 %v7416, %v7420
          %v7806 = vmin.f32 %v7418, %v7422
          %v7807 = vmin.f32 %v7805, %v7424
          %v7808 = vmin.f32 %v7806, %v7426
          %v7809 = vmin.f32 %v7807, %v7428
          %v7810 = vmin.f32 %v7808, %v7430
          %v7811 = vmin.f32 %v7809, %v7432
          %v7812 = vmin.f32 %v7810, %v7434
          %v7813 = vmin.f32 %v7811, %v7436
          %v7814 = vmin.f32 %v7812, %v7438
          %v7815 = vmin.f32 %v7813, %v7440
          %v7816 = vmin.f32 %v7814, %v7442
          %v7817 = vmin.f32 %v7815, %v7444
          %v7818 = vmin.f32 %v7816, %v7446
          %v7819 = vmin.f32 %v7817, %v7448
          %v7820 = vmin.f32 %v7818, %v7450
          %v7821 = vmin.f32 %v7819, %v7452
          %v7822 = vmin.f32 %v7820, %v7454
          %v7823 = vmin.f32 %v7821, %v7456
          %v7824 = vmin.f32 %v7822, %v7458
          %v7825 = vmin.f32 %v7823, %v7460
          %v7826 = vmin.f32 %v7824, %v7462
          %v7827 = vmin.f32 %v7825, %v7464
          %v7828 = vmin.f32 %v7826, %v7466
          %v7829 = vmin.f32 %v7827, %v7468
          %v7830 = vmin.f32 %v7828, %v7470
          %v7831 = vmin.f32 %v7829, %v7472
          %v7832 = vmin.f32 %v7830, %v7474
          %v7833 = vmin.f32 %v7831, %v7476
          %v7834 = vmin.f32 %v7832, %v7478
          %v7835 = vmin.f32 %v7833, %v7480
          %v7836 = vmin.f32 %v7834, %v7482
          %v7837 = vmin.f32 %v7835, %v7484
          %v7838 = vmin.f32 %v7836, %v7486
          %v7839 = vmin.f32 %v7837, %v7488
          %v7840 = vmin.f32 %v7838, %v7490
          %v7841 = vmin.f32 %v7839, %v7492
          %v7842 = vmin.f32 %v7840, %v7494
          %v7843 = vmin.f32 %v7841, %v7496
          %v7844 = vmin.f32 %v7842, %v7498
          %v7845 = vmin.f32 %v7843, %v7500
          %v7846 = vmin.f32 %v7844, %v7502
          %v7847 = vmin.f32 %v7845, %v7504
          %v7848 = vmin.f32 %v7846, %v7506
          %v7849 = vmin.f32 %v7847, %v7508
          %v7850 = vmin.f32 %v7848, %v7510
          %v7851 = vmin.f32 %v7849, %v7512
          %v7852 = vmin.f32 %v7850, %v7514
          %v7853 = vmin.f32 %v7851, %v7516
          %v7854 = vmin.f32 %v7852, %v7518
          %v7855 = vmin.f32 %v7853, %v7520
          %v7856 = vmin.f32 %v7854, %v7522
          %v7857 = vmin.f32 %v7855, %v7524
          %v7858 = vmin.f32 %v7856, %v7526
          %v7859 = vmin.f32 %v7857, %v7528
          %v7860 = vmin.f32 %v7858, %v7530
          %v7861 = vmin.f32 %v7859, %v7532
          %v7862 = vmin.f32 %v7860, %v7534
          %v7863 = vmin.f32 %v7861, %v7536
          %v7864 = vmin.f32 %v7862, %v7538
          %v7865 = vmin.f32 %v7863, %v7540
          %v7866 = vmin.f32 %v7864, %v7542
          %v7867 = vmin.f32 %v7865, %v7544
          %v7868 = vmin.f32 %v7866, %v7546
          %v7869 = vmin.f32 %v7867, %v7548
          %v7870 = vmin.f32 %v7868, %v7550
          %v7871 = vmin.f32 %v7869, %v7552
          %v7872 = vmin.f32 %v7870, %v7554
          %v7873 = vmin.f32 %v7871, %v7556
          %v7874 = vmin.f32 %v7872, %v7558
          %v7875 = vmin.f32 %v7873, %v7560
          %v7876 = vmin.f32 %v7874, %v7562
          %v7877 = vmin.f32 %v7875, %v7564
          %v7878 = vmin.f32 %v7876, %v7566
          %v7879 = vmin.f32 %v7877, %v7568
          %v7880 = vmin.f32 %v7878, %v7570
          %v7881 = vmin.f32 %v7879, %v7572
          %v7882 = vmin.f32 %v7880, %v7574
          %v7883 = vmin.f32 %v7881, %v7576
          %v7884 = vmin.f32 %v7882, %v7578
          %v7885 = vmin.f32 %v7883, %v7580
          %v7886 = vmin.f32 %v7884, %v7582
          %v7887 = vmin.f32 %v7885, %v7584
          %v7888 = vmin.f32 %v7886, %v7586
          %v7889 = vmin.f32 %v7887, %v7588
          %v7890 = vmin.f32 %v7888, %v7590
          %v7891 = vmin.f32 %v7889, %v7592
          %v7892 = vmin.f32 %v7890, %v7594
          %v7893 = vmin.f32 %v7891, %v7596
          %v7894 = vmin.f32 %v7892, %v7598
          %v7895 = vmin.f32 %v7893, %v7600
          %v7896 = vmin.f32 %v7894, %v7602
          %v7897 = vmin.f32 %v7895, %v7604
          %v7898 = vmin.f32 %v7896, %v7606
          %v7899 = vmin.f32 %v7897, %v7608
          %v7900 = vmin.f32 %v7898, %v7610
          %v7901 = vmin.f32 %v7899, %v7612
          %v7902 = vmin.f32 %v7900, %v7614
          %v7903 = vmin.f32 %v7901, %v7616
          %v7904 = vmin.f32 %v7902, %v7618
          %v7905 = vmin.f32 %v7903, %v7620
          %v7906 = vmin.f32 %v7904, %v7622
          %v7907 = vmin.f32 %v7905, %v7624
          %v7908 = vmin.f32 %v7906, %v7626
          %v7909 = vmin.f32 %v7907, %v7628
          %v7910 = vmin.f32 %v7908, %v7630
          %v7911 = vmin.f32 %v7909, %v7632
          %v7912 = vmin.f32 %v7910, %v7634
          %v7913 = vmin.f32 %v7911, %v7636
          %v7914 = vmin.f32 %v7912, %v7638
          %v7915 = vmin.f32 %v7913, %v7640
          %v7916 = vmin.f32 %v7914, %v7642
          %v7917 = vmin.f32 %v7915, %v7644
          %v7918 = vmin.f32 %v7916, %v7646
          %v7919 = vmin.f32 %v7917, %v7648
          %v7920 = vmin.f32 %v7918, %v7650
          %v7921 = vmin.f32 %v7919, %v7652
          %v7922 = vmin.f32 %v7920, %v7654
          %v7923 = vmin.f32 %v7921, %v7656
          %v7924 = vmin.f32 %v7922, %v7658
          %v7925 = vmin.f32 %v7923, %v7660
          %v7926 = vmin.f32 %v7924, %v7662
          %v7927 = vmin.f32 %v7925, %v7664
          %v7928 = vmin.f32 %v7926, %v7666
          %v7929 = vmin.f32 %v7927, %v7668
          %v7930 = vmin.f32 %v7928, %v7670
          %v7931 = vmin.f32 %v7929, %v7930
          %v7932 = vrot.slane %v7931, 4
          %v7933 = vmin.f32 %v7931, %v7932
          %v7934 = vrot.slane %v7933, 2
          %v7935 = vmin.f32 %v7933, %v7934
          %v7936 = vrot.slane %v7935, 1
          %v7937 = vmin.f32 %v7935, %v7936
          %v7940 = vrot.slane %v7937, 7
          %vm7941 = vcmask 1040384
          %v7942 = vsel %vm7941, %v7804, %v7940
          %v7944 = vmin.f32 %v7671, %v7942
          %v7945 = vlaneseq
          %vm7946 = vcmp.ge.s32.totalorder %v7945, 0
          %vm7947 = vcmp.lt.s32.totalorder %v7945, 256
          %vm7948 = vmand %vm7946, %vm7947
          %7949 = vst.msk [vmem:[#allocation3] sm:$0x3] %vm7948, %v7944
        $region52: #{tpu_custom_call.1} parent=35 // pred_fallthru
          _
        %p7950 = scmp.eq.s32.totalorder %s35, 1
        // Predicated region
        $region53: #{tpu_custom_call.1} parent=35 // pred_check
          %p7951 = pneg %p7950
        $region54: #{tpu_custom_call.1} parent=35 // pred_check_branch
          %7953 = sbr.rel (%p7951) target = $region56
        $region55: #{tpu_custom_call.1} parent=35 // pred_region
          %v7954 = vlaneseq
          %v7955 = vand.u32 %v7954, 127
          %v7956 = vadd.s32 %v7955, 128
          %v7957 = vstv %s315
          %v7958 = vadd.s32 %v7957, %v7955
          %v7959 = vadd.s32 %v7957, %v7956
          %v7960 = vstv %s303
          %vm7961 = vcmp.lt.s32.totalorder %v7958, %v7960
          %vm7962 = vcmp.lt.s32.totalorder %v7959, %v7960
          %v7963 = vld [vmem:[#allocation2] sm:$0x3]
          %v7964 = vadd.f32 %v7963, 1.25e-05
          %v7965 = vrsqrt.pop %v7964
          %v7966 = vmul.f32 %v7965, %v7964
          %v7967 = vmul.f32 %v7966, %v7965
          %v7968 = vmul.f32 0.5, %v7967
          %v7969 = vsub.f32 1.5, %v7968
          %v7970 = vmul.f32 %v7965, %v7969
          %v7971 = vmul.f32 %v7964, %v7970
          %vm7972 = vcmp.eq.f32.partialorder %v7964, inf
          %v7973 = vsel %vm7972, %v7964, %v7971
          %vm7974 = vcmp.eq.f32.partialorder %v7964, 0.0
          %v7975 = vand.u32 %v7964, 2147483648
          %v7976 = vsel %vm7974, %v7975, %v7973
          %v7977 = vld [vmem:[#allocation3] sm:$0x3]
          %v7978 = vadd.f32 %v7977, 1.25e-05
          %v7979 = vrsqrt.pop %v7978
          %v7980 = vmul.f32 %v7979, %v7978
          %v7981 = vmul.f32 %v7980, %v7979
          %v7982 = vmul.f32 0.5, %v7981
          %v7983 = vsub.f32 1.5, %v7982
          %v7984 = vmul.f32 %v7979, %v7983
          %v7985 = vmul.f32 %v7978, %v7984
          %vm7986 = vcmp.eq.f32.partialorder %v7978, inf
          %v7987 = vsel %vm7986, %v7978, %v7985
          %vm7988 = vcmp.eq.f32.partialorder %v7978, 0.0
          %v7989 = vand.u32 %v7978, 2147483648
          %v7990 = vsel %vm7988, %v7989, %v7987
          %v7991 = vadd.f32 %v7976, 1.0
          %v7992 = vsub.f32 %v7991, %v7990
          %v7993 = vmax.f32 %v7992, 0.0
          %v7995 = vperm.slane %v7993, 0
          %v7996 = vperm.slane %v7993, 1
          %v7999 = vsel %vm7961, %v7995, 0.0
          %v8000 = vsel %vm7962, %v7996, 0.0
          %v8003 = vrot.slane %v8000, 7
          %vm8004 = vcmask 1040384
          %v8005 = vsel %vm8004, %v7999, %v8003
          %v8007 = vlaneseq
          %vm8008 = vcmp.ge.s32.totalorder %v8007, 0
          %vm8009 = vcmp.lt.s32.totalorder %v8007, 256
          %vm8010 = vmand %vm8008, %vm8009
          %8011 = vst.msk [vmem:[%s284] sm:$0x3] %vm8010, %v8005
        $region56: #{tpu_custom_call.1} parent=35 // pred_fallthru
          _
        %s8012 = sand.u32 %s154, 1
        %s8013 = scalar_lea.sflag [#allocation8], %s8012
        %s8014 = sand.u32 %s154, 1
        %s8015 = smul.addr %s8014, 2
        %s8016 = scalar_lea.vmem [#allocation9], %s8015
        // Predicated region
        $region57: #{tpu_custom_call.1} parent=35 // pred_check
          %p8017 = pneg %p164
        $region58: #{tpu_custom_call.1} parent=35 // pred_check_branch
          %8019 = sbr.rel (%p8017) target = $region60
        $region59: #{tpu_custom_call.1} parent=35 // pred_region
          %8021 = vsyncadd %s8013, 0
          %s8022 = smul.addr %s34, 2
          %s8023 = scalar_lea.hbm %s5, %s8022
          %s8025 = sshll.u32 %s8016, 4
          %s8026 = int_to_ptr.vmem [resolvable:$true] %s8025
          %s8027 = sshll.u32 %s8023, 4
          %s8028 = int_to_ptr.hbm [resolvable:$true] %s8027
          %8030 = dma.vmem_to_hbm [thread:$0]  %s8026, 32, %s8028, %s8013
        $region60: #{tpu_custom_call.1} parent=35 // pred_fallthru
          _
      $region36: #{tpu_custom_call.1} parent=5 // pred_fallthru
        _
      %p8031 = scmp.le.s32.totalorder 2, %s25
      // Predicated region
      $region61: #{tpu_custom_call.1} parent=5 // pred_check
        %p8032 = pneg %p8031
      $region62: #{tpu_custom_call.1} parent=5 // pred_check_branch
        %8034 = sbr.rel (%p8032) target = $region64
      $region63: #{tpu_custom_call.1} parent=5 // pred_region
        %s8035 = ssub.s32 %s25, 2
        // Predicated region
        $region65: #{tpu_custom_call.1} parent=63 // pred_check
          %p8036 = pneg %p170
        $region66: #{tpu_custom_call.1} parent=63 // pred_check_branch
          %8038 = sbr.rel (%p8036) target = $region68
        $region67: #{tpu_custom_call.1} parent=63 // pred_region
          %s8039 = sand.u32 %s155, 1
          %s8040 = scalar_lea.sflag [#allocation8], %s8039
          %s8041 = sand.u32 %s155, 1
          %s8042 = smul.addr %s8041, 2
          %s8043 = scalar_lea.vmem [#allocation9], %s8042
          %8045 = dma.done %s8040, 32
        $region68: #{tpu_custom_call.1} parent=63 // pred_fallthru
          _
      $region64: #{tpu_custom_call.1} parent=5 // pred_fallthru
        _
    $region6: #{tpu_custom_call.1} parent=1 // loop_footer
      %s29 = sadd.s32 1, %s25
    $region7: #{tpu_custom_call.1} parent=1 // loop_footer_branch
      %24 = sbr.rel target = $region3
    $region8: #{tpu_custom_call.1} parent=1 // loop_exit
      _
    %8046 = vsyncpa [#allocation7], 1
    %s8047 = scalar_lea.sflag [#allocation7], 1
    %8048 = vsyncpa %s8047, 1
    %8049 = vsyncpa [#allocation8], 1
    %s8050 = scalar_lea.sflag [#allocation8], 1
    %8051 = vsyncpa %s8050, 1

</llo_original>
